<compile_context>
chip_gen: v7x
topology: tpu7x:2x2x1
jax: 0.10.0
libtpu: 0.0.40
codegen_flags: <defaults>
</compile_context>

<pallas_src>
import jax
import jax.numpy as jnp
from jax.experimental import pallas as pl
from jax.experimental.pallas import tpu as pltpu

PAD = 0  # Constants.PAD


# ----------------------------------------------------------------------------
# Kernel 1: 2-layer LSTM, single kernel invocation, in-kernel skewed time loop.
#   x_ref    : (T*B, E) bf16 time-major-flattened embedded input (row n = t*B+b)
#   wih0_ref : (E, 4H)  bf16 layer-0 input weights
#   b0_ref   : (1, 4H)  f32  combined layer-0 bias
#   wblk_ref : (2H, 8H) bf16 block weight [[Whh0, Wih1],[0, Whh1]]
#   b1_ref   : (1, 4H)  f32  combined layer-1 bias
#   out_ref  : (T*B, H) bf16 layer-1 hidden states, same row order
#   Gate column order everywhere is (i, f, o, g).
# ----------------------------------------------------------------------------
def lstm2_kernel(x_ref, wih0_ref, b0_ref, wblk_ref, b1_ref,
                 out_ref, xg0, xh, c0, c1):
    B, H = c0.shape
    G = 4 * H
    T = x_ref.shape[0] // B

    # Preamble: time-independent layer-0 input projection for ALL steps as one
    # big bf16 MXU matmul (M = T*B), f32 accumulate + bias, cached in VMEM.
    xg0[...] = (jnp.dot(x_ref[...], wih0_ref[...],
                        preferred_element_type=jnp.float32) + b0_ref[...])

    # Hoisted bias broadcast: computed once, reused by every unrolled step.
    b1_b = jnp.broadcast_to(b1_ref[...], (B, G))

    def gates_to_hc(gates, c_prev):
        # (i, f, o, g) order: one contiguous sigmoid over 3H lanes, one tanh.
        # Gate/cell math stays in f32 (v5e has no bf16 VPU/EUP; bf16 is MXU-only).
        sig = jax.nn.sigmoid(gates[:, :3 * H])
        i = sig[:, 0 * H:1 * H]
        f = sig[:, 1 * H:2 * H]
        o = sig[:, 2 * H:3 * H]
        g = jnp.tanh(gates[:, 3 * H:4 * H])
        c_new = f * c_prev + i * g
        h_new = o * jnp.tanh(c_new)
        return h_new, c_new

    # --- step 0: h0(-1)=0 so layer 0 needs no recurrent matmul ---------------
    h0_0, c0_0 = gates_to_hc(xg0[pl.ds(0, B), :],
                             jnp.zeros((B, H), jnp.float32))
    c0[...] = c0_0
    c1[...] = jnp.zeros_like(c1)
    xh[:, :H] = h0_0.astype(xh.dtype)            # h0(0)
    xh[:, H:] = jnp.zeros((B, H), xh.dtype)      # h1(-1) = 0

    # --- skewed steps t = 1..T-1: a single matmul per step -------------------
    #   big = [h0(t-1) | h1(t-2)] @ [[Whh0, Wih1],[0, Whh1]]
    #   cols 0:4H  -> layer-0 recurrent gates for step t
    #   cols 4H:8H -> layer-1 gates for step t-1
    def step(t, carry):
        big = jnp.dot(xh[...], wblk_ref[...],
                      preferred_element_type=jnp.float32)       # (B, 8H) f32

        # layer 0, step t
        row = pl.multiple_of(t * B, B)
        g0 = xg0[pl.ds(row, B), :] + big[:, :G]
        h0_new, c0_new = gates_to_hc(g0, c0[...])
        c0[...] = c0_new
        xh[:, :H] = h0_new.astype(xh.dtype)

        # layer 1, step t-1  (inter-layer dropout = identity in eval mode)
        g1 = big[:, G:] + b1_b
        h1_new, c1_new = gates_to_hc(g1, c1[...])
        c1[...] = c1_new
        h1_bf = h1_new.astype(out_ref.dtype)
        xh[:, H:] = h1_bf
        prev_row = pl.multiple_of((t - 1) * B, B)
        out_ref[pl.ds(prev_row, B), :] = h1_bf
        return carry

    # Short static trip count (toy T): full unroll for LLO scheduler
    # visibility; partial unroll once T grows (instr-mem / vreg pressure).
    jax.lax.fori_loop(1, T, step, 0, unroll=True if T <= 32 else 8)

    # --- epilogue: layer-1 for step T-1 (right half of the block weight) -----
    g1 = (jnp.dot(xh[...], wblk_ref[:, G:],
                  preferred_element_type=jnp.float32) + b1_b)
    h1_last, _ = gates_to_hc(g1, c1[...])
    last_row = pl.multiple_of((T - 1) * B, B)
    out_ref[pl.ds(last_row, B), :] = h1_last.astype(out_ref.dtype)


def run_lstm2(x_flat, wih0_t, b0, wblk_t, b1, *, batch):
    """x_flat: (T*B, E) bf16 time-major-flattened. Weights pre-transposed."""
    N, E = x_flat.shape
    G = wih0_t.shape[1]
    H = G // 4
    B = batch
    return pl.pallas_call(
        lstm2_kernel,
        out_shape=jax.ShapeDtypeStruct((N, H), jnp.bfloat16),
        grid_spec=pltpu.PrefetchScalarGridSpec(
            num_scalar_prefetch=0,
            grid=(1,),
            in_specs=[
                pl.BlockSpec((N, E), lambda i: (0, 0)),
                pl.BlockSpec((E, G), lambda i: (0, 0)),
                pl.BlockSpec((1, G), lambda i: (0, 0)),
                pl.BlockSpec((2 * H, 2 * G), lambda i: (0, 0)),
                pl.BlockSpec((1, G), lambda i: (0, 0)),
            ],
            out_specs=pl.BlockSpec((N, H), lambda i: (0, 0)),
            scratch_shapes=[
                pltpu.VMEM((N, G), jnp.float32),        # precomputed layer-0 gates
                pltpu.VMEM((B, 2 * H), jnp.bfloat16),   # xh = [h0 | h1] (MXU LHS)
                pltpu.VMEM((B, H), jnp.float32),        # c0
                pltpu.VMEM((B, H), jnp.float32),        # c1
            ],
        ),
        compiler_params=pltpu.CompilerParams(
            dimension_semantics=("arbitrary",)),
    )(x_flat, wih0_t, b0, wblk_t, b1)


# ----------------------------------------------------------------------------
# Kernel 2: fused Linear projection + CrossEntropyLoss(ignore_index=PAD),
# row-tiled over N with resident (H,V) weights and VMEM-scratch accumulation.
# TODO(synk): tile the vocab axis (TV multiple of 512 lanes, online LSE,
#             pl.Buffered weight streaming) before scaling V beyond VMEM.
# ----------------------------------------------------------------------------
def proj_ce_kernel(x_ref, w_ref, b_ref, tgt_ref, loss_ref, tot_ref, cnt_ref):
    i = pl.program_id(0)

    @pl.when(i == 0)
    def _():
        tot_ref[...] = jnp.zeros_like(tot_ref)
        cnt_ref[...] = jnp.zeros_like(cnt_ref)

    logits = (jnp.dot(x_ref[...], w_ref[...],
                      preferred_element_type=jnp.float32)
              + b_ref[...])                                    # (TM, V) f32
    m = jnp.max(logits, axis=-1, keepdims=True)                # (TM, 1)
    lse = jnp.log(jnp.sum(jnp.exp(logits - m), axis=-1, keepdims=True)) + m

    tgt = tgt_ref[...]                                         # (TM, 1) int32
    col = jax.lax.broadcasted_iota(jnp.int32, logits.shape, 1)
    tgt_logit = jnp.sum(jnp.where(col == tgt, logits, 0.0),
                        axis=-1, keepdims=True)                # (TM, 1)

    per_row = lse - tgt_logit                                  # -log_softmax[tgt]
    mask = (tgt != PAD).astype(jnp.float32)
    tot_ref[...] += jnp.sum(per_row * mask, keepdims=True)
    cnt_ref[...] += jnp.sum(mask, keepdims=True)

    @pl.when(i == pl.num_programs(0) - 1)
    def _():
        tot = tot_ref[...]
        cnt = cnt_ref[...]
        # Guard: all-PAD batch -> 0 instead of NaN/Inf (deliberate divergence
        # from torch, which returns NaN in that case).
        loss_ref[...] = jnp.where(cnt > 0.0, tot / jnp.maximum(cnt, 1.0), 0.0)


def run_proj_ce(x_flat, w_t, b, tgt_flat):
    """x_flat: (N, H) bf16; w_t: (H, V) bf16; b: (1, V) f32; tgt_flat: (N,) i32."""
    N, H = x_flat.shape
    V = w_t.shape[1]
    tm = 32 if (N % 32 == 0 and N > 32) else N      # row tile (multiple of 8)
    tgt2d = tgt_flat.reshape(N, 1).astype(jnp.int32)
    loss = pl.pallas_call(
        proj_ce_kernel,
        out_shape=jax.ShapeDtypeStruct((1, 1), jnp.float32),
        grid_spec=pltpu.PrefetchScalarGridSpec(
            num_scalar_prefetch=0,
            grid=(N // tm,),
            in_specs=[
                pl.BlockSpec((tm, H), lambda i: (i, 0)),
                pl.BlockSpec((H, V), lambda i: (0, 0)),   # resident weights
                pl.BlockSpec((1, V), lambda i: (0, 0)),
                pl.BlockSpec((tm, 1), lambda i: (i, 0)),
            ],
            out_specs=pl.BlockSpec((1, 1), lambda i: (0, 0)),
            scratch_shapes=[
                pltpu.VMEM((1, 1), jnp.float32),   # masked loss total
                pltpu.VMEM((1, 1), jnp.float32),   # non-PAD count
            ],
        ),
        compiler_params=pltpu.CompilerParams(
            dimension_semantics=("arbitrary",)),
    )(x_flat, w_t, b, tgt2d)
    return loss[0, 0]


# ----------------------------------------------------------------------------
# Wrapper reproducing LanguageModel.forward (activations stay time-major).
# ----------------------------------------------------------------------------
def language_model_forward(params, input_seq, tgt_seq):
    """input_seq, tgt_seq: (B, T) int32 token ids. Returns scalar loss."""
    B, T = input_seq.shape
    # Transpose only the tiny int32 id tensors; the embedding gather (glue)
    # produces time-major bf16 activations directly — no big activation
    # transposes / HBM round-trips.  Dropout(embedding) = identity (eval).
    ids_tm = jnp.transpose(input_seq)                          # (T, B)
    emb_tm = jnp.take(params["embedding"], ids_tm, axis=0)     # (T, B, E) bf16
    x_flat = emb_tm.reshape(T * B, -1)                         # time-major flatten

    out_flat = run_lstm2(
        x_flat,
        params["wih0_t"], params["b0"],
        params["wblk_t"], params["b1"],
        batch=B,
    )                                                          # (T*B, H) bf16

    # CE(ignore_index=PAD) is an order-invariant masked mean, so flatten the
    # targets in the same time-major order instead of transposing activations.
    tgt_flat = jnp.transpose(tgt_seq).reshape(T * B)
    return run_proj_ce(out_flat, params["wproj_t"], params["bproj"], tgt_flat)


def init_params(key, emb_size, hidden_size, output_size):
    assert emb_size == hidden_size  # module feeds Embedding(H) into LSTM(emb_size)
    ks = jax.random.split(key, 12)
    s = 0.05
    H, E, V, G = hidden_size, emb_size, output_size, 4 * hidden_size
    n = lambda k, shp: jax.random.normal(k, shp, dtype=jnp.float32) * s

    # Gate column order everywhere is (i, f, o, g).  When porting real torch
    # weights, permute torch's (i, f, g, o) gate blocks, transpose to
    # (input_dim, 4H), and sum b_ih + b_hh per layer.
    whh0_t = n(ks[2], (H, G))
    wih1_t = n(ks[3], (H, G))
    whh1_t = n(ks[4], (H, G))
    # Block weight for the skewed per-step matmul:
    #   [h0(t-1) | h1(t-2)] @ [[Whh0, Wih1],[0, Whh1]]
    wblk_t = jnp.concatenate(
        [jnp.concatenate([whh0_t, wih1_t], axis=1),
         jnp.concatenate([jnp.zeros((H, G), jnp.float32), whh1_t], axis=1)],
        axis=0)                                            # (2H, 8H)

    return {
        "embedding": n(ks[0], (V, H)).astype(jnp.bfloat16),
        "wih0_t": n(ks[1], (E, G)).astype(jnp.bfloat16),
        "b0": n(ks[5], (1, G)),                    # b_ih_l0 + b_hh_l0 combined
        "wblk_t": wblk_t.astype(jnp.bfloat16),
        "b1": n(ks[6], (1, G)),                    # b_ih_l1 + b_hh_l1 combined
        "wproj_t": n(ks[7], (H, V)).astype(jnp.bfloat16),
        "bproj": n(ks[8], (1, V)),
    }


if __name__ == "__main__":
    B, T = 8, 8
    emb_size = hidden_size = 128
    output_size = 256  # vocab

    params = init_params(jax.random.PRNGKey(42), emb_size, hidden_size, output_size)

    kin, ktg = jax.random.split(jax.random.PRNGKey(0))
    input_seq = jax.random.randint(kin, (B, T), 0, output_size, dtype=jnp.int32)
    tgt_seq = jax.random.randint(ktg, (B, T), 0, output_size, dtype=jnp.int32)
    # sprinkle some PAD tokens into the targets so ignore_index matters
    tgt_seq = tgt_seq.at[:, -1].set(PAD)

    loss = jax.jit(language_model_forward)(params, input_seq, tgt_seq)
    loss = jax.block_until_ready(loss)
    assert bool(jnp.isfinite(loss)), "loss is not finite"
    print("KERNEL_OK")
</pallas_src>

<mosaic_0001>
module attributes {stable_mosaic.version = 11 : i64} {
  func.func @proj_ce_kernel(%arg0: i32, %arg1: memref<32x128xbf16, #tpu.memory_space<vmem>>, %arg2: memref<128x256xbf16, #tpu.memory_space<vmem>>, %arg3: memref<1x256xf32, #tpu.memory_space<vmem>>, %arg4: memref<32x1xi32, #tpu.memory_space<vmem>>, %arg5: memref<1x1xf32, #tpu.memory_space<vmem>>, %arg6: memref<1x1xf32, #tpu.memory_space<vmem>>, %arg7: memref<1x1xf32, #tpu.memory_space<vmem>>) attributes {dimension_semantics = [#tpu.dimension_semantics<arbitrary>], iteration_bounds = array<i64: 2>, scalar_prefetch = 0 : i64, scratch_operands = 2 : i64, tpu.core_type = #tpu.core_type<tc>, window_params = [{transform_indices = @transform_0, window_bounds = array<i64: 32, 128>}, {pipeline_mode = #tpu.pipeline_mode<synchronous>, transform_indices = @transform_1, window_bounds = array<i64: 128, 256>}, {pipeline_mode = #tpu.pipeline_mode<synchronous>, transform_indices = @transform_2, window_bounds = array<i64: 1, 256>}, {transform_indices = @transform_3, window_bounds = array<i64: 32, 1>}, {pipeline_mode = #tpu.pipeline_mode<synchronous>, transform_indices = @transform_4, window_bounds = array<i64: 1, 1>}]} {
    %c0_i32 = arith.constant 0 : i32
    %0 = arith.cmpi eq, %arg0, %c0_i32 : i32
    %1 = arith.extui %0 : i1 to i32
    %c0_i32_0 = arith.constant 0 : i32
    %2 = arith.cmpi ne, %1, %c0_i32_0 : i32
    scf.if %2 {
      %cst_24 = arith.constant 0.000000e+00 : f32
      %51 = vector.broadcast %cst_24 : f32 to vector<1x1xf32>
      %c0_25 = arith.constant 0 : index
      %c0_26 = arith.constant 0 : index
      %52 = vector.load %arg6[%c0_25, %c0_26] : memref<1x1xf32, #tpu.memory_space<vmem>>, vector<1x1xf32>
      tpu.vector_store %arg6[%c0_25, %c0_26], %51 {strides = array<i32>} : memref<1x1xf32, #tpu.memory_space<vmem>>, vector<1x1xf32>,
      %cst_27 = arith.constant 0.000000e+00 : f32
      %53 = vector.broadcast %cst_27 : f32 to vector<1x1xf32>
      %c0_28 = arith.constant 0 : index
      %c0_29 = arith.constant 0 : index
      %54 = vector.load %arg7[%c0_28, %c0_29] : memref<1x1xf32, #tpu.memory_space<vmem>>, vector<1x1xf32>
      tpu.vector_store %arg7[%c0_28, %c0_29], %53 {strides = array<i32>} : memref<1x1xf32, #tpu.memory_space<vmem>>, vector<1x1xf32>,
    } else {
    }
    %c0 = arith.constant 0 : index
    %c0_1 = arith.constant 0 : index
    %3 = vector.load %arg1[%c0, %c0_1] : memref<32x128xbf16, #tpu.memory_space<vmem>>, vector<32x128xbf16>
    %c0_2 = arith.constant 0 : index
    %c0_3 = arith.constant 0 : index
    %4 = vector.load %arg2[%c0_2, %c0_3] : memref<128x256xbf16, #tpu.memory_space<vmem>>, vector<128x256xbf16>
    %cst = arith.constant dense<0.000000e+00> : vector<32x256xf32>
    %5 = tpu.matmul %3, %4, %cst {dimension_numbers = #tpu.dot_dimension_numbers<[1], [0], [0], [1], [0, 0, 1, 1], [], []>} : vector<32x128xbf16>, vector<128x256xbf16>, vector<32x256xf32> -> vector<32x256xf32>
    %c0_4 = arith.constant 0 : index
    %c0_5 = arith.constant 0 : index
    %6 = vector.load %arg3[%c0_4, %c0_5] : memref<1x256xf32, #tpu.memory_space<vmem>>, vector<1x256xf32>
    %7 = vector.broadcast %6 : vector<1x256xf32> to vector<32x256xf32>
    %8 = arith.addf %5, %7 : vector<32x256xf32>
    %cst_6 = arith.constant dense<0xFF800000> : vector<32xf32>
    %9 = vector.multi_reduction <maximumf>, %8, %cst_6 [1] : vector<32x256xf32> to vector<32xf32>
    %10 = vector.shape_cast %9 : vector<32xf32> to vector<32x1xf32>
    %11 = vector.broadcast %10 : vector<32x1xf32> to vector<32x256xf32>
    %12 = arith.subf %8, %11 : vector<32x256xf32>
    %13 = math.exp %12 : vector<32x256xf32>
    %cst_7 = arith.constant dense<0.000000e+00> : vector<32xf32>
    %14 = vector.multi_reduction <add>, %13, %cst_7 [1] : vector<32x256xf32> to vector<32xf32>
    %15 = vector.shape_cast %14 : vector<32xf32> to vector<32x1xf32>
    %16 = math.log %15 : vector<32x1xf32>
    %17 = arith.addf %16, %10 : vector<32x1xf32>
    %c0_8 = arith.constant 0 : index
    %c0_9 = arith.constant 0 : index
    %18 = vector.load %arg4[%c0_8, %c0_9] : memref<32x1xi32, #tpu.memory_space<vmem>>, vector<32x1xi32>
    %19 = tpu.iota {dimensions = array<i32: 1>} : vector<32x256xi32>
    %20 = vector.broadcast %18 : vector<32x1xi32> to vector<32x256xi32>
    %21 = arith.cmpi eq, %19, %20 : vector<32x256xi32>
    %cst_10 = arith.constant 0.000000e+00 : f32
    %22 = vector.broadcast %cst_10 : f32 to vector<32x256xf32>
    %23 = arith.select %21, %8, %22 : vector<32x256xi1>, vector<32x256xf32>
    %cst_11 = arith.constant dense<0.000000e+00> : vector<32xf32>
    %24 = vector.multi_reduction <add>, %23, %cst_11 [1] : vector<32x256xf32> to vector<32xf32>
    %25 = vector.shape_cast %24 : vector<32xf32> to vector<32x1xf32>
    %26 = arith.subf %17, %25 : vector<32x1xf32>
    %c0_i32_12 = arith.constant 0 : i32
    %27 = vector.broadcast %c0_i32_12 : i32 to vector<32x1xi32>
    %28 = arith.cmpi ne, %18, %27 : vector<32x1xi32>
    %29 = arith.extui %28 : vector<32x1xi1> to vector<32x1xi32>
    %30 = arith.sitofp %29 : vector<32x1xi32> to vector<32x1xf32>
    %c0_13 = arith.constant 0 : index
    %c0_14 = arith.constant 0 : index
    %31 = vector.load %arg6[%c0_13, %c0_14] : memref<1x1xf32, #tpu.memory_space<vmem>>, vector<1x1xf32>
    %32 = arith.mulf %26, %30 : vector<32x1xf32>
    %33 = vector.shape_cast %32 : vector<32x1xf32> to vector<1x32x1xf32>
    %cst_15 = arith.constant dense<0.000000e+00> : vector<1xf32>
    %34 = vector.multi_reduction <add>, %33, %cst_15 [1, 2] : vector<1x32x1xf32> to vector<1xf32>
    %35 = vector.shape_cast %34 : vector<1xf32> to vector<1x1x1xf32>
    %36 = vector.extract %35[0, 0, 0] : f32 from vector<1x1x1xf32>
    %37 = vector.broadcast %36 : f32 to vector<1x1xf32>
    %38 = arith.addf %31, %37 : vector<1x1xf32>
    %c0_16 = arith.constant 0 : index
    %c0_17 = arith.constant 0 : index
    %39 = vector.load %arg6[%c0_16, %c0_17] : memref<1x1xf32, #tpu.memory_space<vmem>>, vector<1x1xf32>
    tpu.vector_store %arg6[%c0_16, %c0_17], %38 {strides = array<i32>} : memref<1x1xf32, #tpu.memory_space<vmem>>, vector<1x1xf32>,
    %c0_18 = arith.constant 0 : index
    %c0_19 = arith.constant 0 : index
    %40 = vector.load %arg7[%c0_18, %c0_19] : memref<1x1xf32, #tpu.memory_space<vmem>>, vector<1x1xf32>
    %41 = vector.shape_cast %30 : vector<32x1xf32> to vector<1x32x1xf32>
    %cst_20 = arith.constant dense<0.000000e+00> : vector<1xf32>
    %42 = vector.multi_reduction <add>, %41, %cst_20 [1, 2] : vector<1x32x1xf32> to vector<1xf32>
    %43 = vector.shape_cast %42 : vector<1xf32> to vector<1x1x1xf32>
    %44 = vector.extract %43[0, 0, 0] : f32 from vector<1x1x1xf32>
    %45 = vector.broadcast %44 : f32 to vector<1x1xf32>
    %46 = arith.addf %40, %45 : vector<1x1xf32>
    %c0_21 = arith.constant 0 : index
    %c0_22 = arith.constant 0 : index
    %47 = vector.load %arg7[%c0_21, %c0_22] : memref<1x1xf32, #tpu.memory_space<vmem>>, vector<1x1xf32>
    tpu.vector_store %arg7[%c0_21, %c0_22], %46 {strides = array<i32>} : memref<1x1xf32, #tpu.memory_space<vmem>>, vector<1x1xf32>,
    %c1_i32 = arith.constant 1 : i32
    %48 = arith.cmpi eq, %arg0, %c1_i32 : i32
    %49 = arith.extui %48 : i1 to i32
    %c0_i32_23 = arith.constant 0 : i32
    %50 = arith.cmpi ne, %49, %c0_i32_23 : i32
    scf.if %50 {
      %c0_24 = arith.constant 0 : index
      %c0_25 = arith.constant 0 : index
      %51 = vector.load %arg6[%c0_24, %c0_25] : memref<1x1xf32, #tpu.memory_space<vmem>>, vector<1x1xf32>
      %c0_26 = arith.constant 0 : index
      %c0_27 = arith.constant 0 : index
      %52 = vector.load %arg7[%c0_26, %c0_27] : memref<1x1xf32, #tpu.memory_space<vmem>>, vector<1x1xf32>
      %cst_28 = arith.constant 0.000000e+00 : f32
      %53 = vector.broadcast %cst_28 : f32 to vector<1x1xf32>
      %54 = arith.cmpf ogt, %52, %53 : vector<1x1xf32>
      %cst_29 = arith.constant 1.000000e+00 : f32
      %55 = vector.broadcast %cst_29 : f32 to vector<1x1xf32>
      %56 = arith.maximumf %52, %55 : vector<1x1xf32>
      %57 = arith.divf %51, %56 : vector<1x1xf32>
      %cst_30 = arith.constant 0.000000e+00 : f32
      %58 = vector.broadcast %cst_30 : f32 to vector<1x1xf32>
      %59 = arith.select %54, %57, %58 : vector<1x1xi1>, vector<1x1xf32>
      %c0_31 = arith.constant 0 : index
      %c0_32 = arith.constant 0 : index
      %60 = vector.load %arg5[%c0_31, %c0_32] : memref<1x1xf32, #tpu.memory_space<vmem>>, vector<1x1xf32>
      tpu.vector_store %arg5[%c0_31, %c0_32], %59 {strides = array<i32>} : memref<1x1xf32, #tpu.memory_space<vmem>>, vector<1x1xf32>,
    } else {
    }
    return
  }
  func.func @transform_0(%arg0: i32) -> (i32, i32) {
    %c0_i32 = arith.constant 0 : i32
    %c0_i32_0 = arith.constant 0 : i32
    return %arg0, %c0_i32 : i32, i32
  }
  func.func @transform_1(%arg0: i32) -> (i32, i32) {
    %c0_i32 = arith.constant 0 : i32
    %c0_i32_0 = arith.constant 0 : i32
    %c0_i32_1 = arith.constant 0 : i32
    return %c0_i32, %c0_i32_0 : i32, i32
  }
  func.func @transform_2(%arg0: i32) -> (i32, i32) {
    %c0_i32 = arith.constant 0 : i32
    %c0_i32_0 = arith.constant 0 : i32
    %c0_i32_1 = arith.constant 0 : i32
    return %c0_i32, %c0_i32_0 : i32, i32
  }
  func.func @transform_3(%arg0: i32) -> (i32, i32) {
    %c0_i32 = arith.constant 0 : i32
    %c0_i32_0 = arith.constant 0 : i32
    return %arg0, %c0_i32 : i32, i32
  }
  func.func @transform_4(%arg0: i32) -> (i32, i32) {
    %c0_i32 = arith.constant 0 : i32
    %c0_i32_0 = arith.constant 0 : i32
    %c0_i32_1 = arith.constant 0 : i32
    return %c0_i32, %c0_i32_0 : i32, i32
  }
}

module attributes {stable_mosaic.version = 11 : i64} {
  func.func @lstm2_kernel(%arg0: i32, %arg1: memref<64x128xbf16, #tpu.memory_space<vmem>>, %arg2: memref<128x512xbf16, #tpu.memory_space<vmem>>, %arg3: memref<1x512xf32, #tpu.memory_space<vmem>>, %arg4: memref<256x1024xbf16, #tpu.memory_space<vmem>>, %arg5: memref<1x512xf32, #tpu.memory_space<vmem>>, %arg6: memref<64x128xbf16, #tpu.memory_space<vmem>>, %arg7: memref<64x512xf32, #tpu.memory_space<vmem>>, %arg8: memref<8x256xbf16, #tpu.memory_space<vmem>>, %arg9: memref<8x128xf32, #tpu.memory_space<vmem>>, %arg10: memref<8x128xf32, #tpu.memory_space<vmem>>) attributes {dimension_semantics = [#tpu.dimension_semantics<arbitrary>], iteration_bounds = array<i64: 1>, scalar_prefetch = 0 : i64, scratch_operands = 4 : i64, tpu.core_type = #tpu.core_type<tc>, window_params = [{pipeline_mode = #tpu.pipeline_mode<synchronous>, transform_indices = @transform_0, window_bounds = array<i64: 64, 128>}, {pipeline_mode = #tpu.pipeline_mode<synchronous>, transform_indices = @transform_1, window_bounds = array<i64: 128, 512>}, {pipeline_mode = #tpu.pipeline_mode<synchronous>, transform_indices = @transform_2, window_bounds = array<i64: 1, 512>}, {pipeline_mode = #tpu.pipeline_mode<synchronous>, transform_indices = @transform_3, window_bounds = array<i64: 256, 1024>}, {pipeline_mode = #tpu.pipeline_mode<synchronous>, transform_indices = @transform_4, window_bounds = array<i64: 1, 512>}, {pipeline_mode = #tpu.pipeline_mode<synchronous>, transform_indices = @transform_5, window_bounds = array<i64: 64, 128>}]} {
    %c0 = arith.constant 0 : index
    %c0_0 = arith.constant 0 : index
    %0 = vector.load %arg1[%c0, %c0_0] : memref<64x128xbf16, #tpu.memory_space<vmem>>, vector<64x128xbf16>
    %c0_1 = arith.constant 0 : index
    %c0_2 = arith.constant 0 : index
    %1 = vector.load %arg2[%c0_1, %c0_2] : memref<128x512xbf16, #tpu.memory_space<vmem>>, vector<128x512xbf16>
    %cst = arith.constant dense<0.000000e+00> : vector<64x512xf32>
    %2 = tpu.matmul %0, %1, %cst {dimension_numbers = #tpu.dot_dimension_numbers<[1], [0], [0], [1], [0, 0, 1, 1], [], []>} : vector<64x128xbf16>, vector<128x512xbf16>, vector<64x512xf32> -> vector<64x512xf32>
    %c0_3 = arith.constant 0 : index
    %c0_4 = arith.constant 0 : index
    %3 = vector.load %arg3[%c0_3, %c0_4] : memref<1x512xf32, #tpu.memory_space<vmem>>, vector<1x512xf32>
    %4 = vector.broadcast %3 : vector<1x512xf32> to vector<64x512xf32>
    %5 = arith.addf %2, %4 : vector<64x512xf32>
    %c0_5 = arith.constant 0 : index
    %c0_6 = arith.constant 0 : index
    %6 = vector.load %arg7[%c0_5, %c0_6] : memref<64x512xf32, #tpu.memory_space<vmem>>, vector<64x512xf32>
    tpu.vector_store %arg7[%c0_5, %c0_6], %5 {strides = array<i32>} : memref<64x512xf32, #tpu.memory_space<vmem>>, vector<64x512xf32>,
    %c0_7 = arith.constant 0 : index
    %c0_8 = arith.constant 0 : index
    %7 = vector.load %arg5[%c0_7, %c0_8] : memref<1x512xf32, #tpu.memory_space<vmem>>, vector<1x512xf32>
    %8 = vector.shape_cast %7 : vector<1x512xf32> to vector<1x512xf32>
    %9 = vector.broadcast %8 : vector<1x512xf32> to vector<8x512xf32>
    %c0_9 = arith.constant 0 : index
    %c0_10 = arith.constant 0 : index
    %10 = vector.load %arg7[%c0_9, %c0_10] : memref<64x512xf32, #tpu.memory_space<vmem>>, vector<8x512xf32>
    %cst_11 = arith.constant 0.000000e+00 : f32
    %11 = vector.broadcast %cst_11 : f32 to vector<8x128xf32>
    %12 = vector.extract_strided_slice %10 {offsets = [0, 0], sizes = [8, 384], strides = [1, 1]} : vector<8x512xf32> to vector<8x384xf32>
    %13 = arith.negf %12 : vector<8x384xf32>
    %14 = math.exp %13 : vector<8x384xf32>
    %cst_12 = arith.constant 1.000000e+00 : f32
    %15 = vector.broadcast %cst_12 : f32 to vector<8x384xf32>
    %16 = arith.addf %15, %14 : vector<8x384xf32>
    %17 = arith.divf %15, %16 : vector<8x384xf32>
    %18 = vector.extract_strided_slice %17 {offsets = [0, 0], sizes = [8, 128], strides = [1, 1]} : vector<8x384xf32> to vector<8x128xf32>
    %19 = vector.extract_strided_slice %17 {offsets = [0, 128], sizes = [8, 128], strides = [1, 1]} : vector<8x384xf32> to vector<8x128xf32>
    %20 = vector.extract_strided_slice %17 {offsets = [0, 256], sizes = [8, 128], strides = [1, 1]} : vector<8x384xf32> to vector<8x128xf32>
    %21 = vector.extract_strided_slice %10 {offsets = [0, 384], sizes = [8, 128], strides = [1, 1]} : vector<8x512xf32> to vector<8x128xf32>
    %22 = math.tanh %21 : vector<8x128xf32>
    %23 = arith.mulf %19, %11 : vector<8x128xf32>
    %24 = arith.mulf %18, %22 : vector<8x128xf32>
    %25 = arith.addf %23, %24 : vector<8x128xf32>
    %26 = math.tanh %25 : vector<8x128xf32>
    %27 = arith.mulf %20, %26 : vector<8x128xf32>
    %c0_13 = arith.constant 0 : index
    %c0_14 = arith.constant 0 : index
    %28 = vector.load %arg9[%c0_13, %c0_14] : memref<8x128xf32, #tpu.memory_space<vmem>>, vector<8x128xf32>
    tpu.vector_store %arg9[%c0_13, %c0_14], %25 {strides = array<i32>} : memref<8x128xf32, #tpu.memory_space<vmem>>, vector<8x128xf32>,
    %cst_15 = arith.constant 0.000000e+00 : f32
    %29 = vector.broadcast %cst_15 : f32 to vector<8x128xf32>
    %c0_16 = arith.constant 0 : index
    %c0_17 = arith.constant 0 : index
    %30 = vector.load %arg10[%c0_16, %c0_17] : memref<8x128xf32, #tpu.memory_space<vmem>>, vector<8x128xf32>
    tpu.vector_store %arg10[%c0_16, %c0_17], %29 {strides = array<i32>} : memref<8x128xf32, #tpu.memory_space<vmem>>, vector<8x128xf32>,
    %31 = arith.truncf %27 : vector<8x128xf32> to vector<8x128xbf16>
    %c0_18 = arith.constant 0 : index
    %c0_19 = arith.constant 0 : index
    %32 = vector.load %arg8[%c0_18, %c0_19] : memref<8x256xbf16, #tpu.memory_space<vmem>>, vector<8x128xbf16>
    tpu.vector_store %arg8[%c0_18, %c0_19], %31 {strides = array<i32>} : memref<8x256xbf16, #tpu.memory_space<vmem>>, vector<8x128xbf16>,
    %cst_20 = arith.constant 0.000000e+00 : bf16
    %33 = vector.broadcast %cst_20 : bf16 to vector<8x128xbf16>
    %c0_21 = arith.constant 0 : index
    %c128 = arith.constant 128 : index
    %34 = vector.load %arg8[%c0_21, %c128] : memref<8x256xbf16, #tpu.memory_space<vmem>>, vector<8x128xbf16>
    tpu.vector_store %arg8[%c0_21, %c128], %33 {strides = array<i32>} : memref<8x256xbf16, #tpu.memory_space<vmem>>, vector<8x128xbf16>,
    %c1_i32 = arith.constant 1 : i32
    %c0_22 = arith.constant 0 : index
    %c0_23 = arith.constant 0 : index
    %35 = vector.load %arg8[%c0_22, %c0_23] : memref<8x256xbf16, #tpu.memory_space<vmem>>, vector<8x256xbf16>
    %c0_24 = arith.constant 0 : index
    %c0_25 = arith.constant 0 : index
    %36 = vector.load %arg4[%c0_24, %c0_25] : memref<256x1024xbf16, #tpu.memory_space<vmem>>, vector<256x1024xbf16>
    %cst_26 = arith.constant dense<0.000000e+00> : vector<8x1024xf32>
    %37 = tpu.matmul %35, %36, %cst_26 {dimension_numbers = #tpu.dot_dimension_numbers<[1], [0], [0], [1], [0, 0, 1, 1], [], []>} : vector<8x256xbf16>, vector<256x1024xbf16>, vector<8x1024xf32> -> vector<8x1024xf32>
    %c8_i32 = arith.constant 8 : i32
    %38 = arith.muli %c1_i32, %c8_i32 : i32
    %39 = tpu.assume_multiple %38, 8 : i32
    %40 = arith.index_cast %39 : i32 to index
    %c0_27 = arith.constant 0 : index
    %41 = vector.load %arg7[%40, %c0_27] : memref<64x512xf32, #tpu.memory_space<vmem>>, vector<8x512xf32>
    %42 = vector.extract_strided_slice %37 {offsets = [0, 0], sizes = [8, 512], strides = [1, 1]} : vector<8x1024xf32> to vector<8x512xf32>
    %43 = arith.addf %41, %42 : vector<8x512xf32>
    %c0_28 = arith.constant 0 : index
    %c0_29 = arith.constant 0 : index
    %44 = vector.load %arg9[%c0_28, %c0_29] : memref<8x128xf32, #tpu.memory_space<vmem>>, vector<8x128xf32>
    %45 = vector.extract_strided_slice %43 {offsets = [0, 0], sizes = [8, 384], strides = [1, 1]} : vector<8x512xf32> to vector<8x384xf32>
    %46 = arith.negf %45 : vector<8x384xf32>
    %47 = math.exp %46 : vector<8x384xf32>
    %cst_30 = arith.constant 1.000000e+00 : f32
    %48 = vector.broadcast %cst_30 : f32 to vector<8x384xf32>
    %49 = arith.addf %48, %47 : vector<8x384xf32>
    %50 = arith.divf %48, %49 : vector<8x384xf32>
    %51 = vector.extract_strided_slice %50 {offsets = [0, 0], sizes = [8, 128], strides = [1, 1]} : vector<8x384xf32> to vector<8x128xf32>
    %52 = vector.extract_strided_slice %50 {offsets = [0, 128], sizes = [8, 128], strides = [1, 1]} : vector<8x384xf32> to vector<8x128xf32>
    %53 = vector.extract_strided_slice %50 {offsets = [0, 256], sizes = [8, 128], strides = [1, 1]} : vector<8x384xf32> to vector<8x128xf32>
    %54 = vector.extract_strided_slice %43 {offsets = [0, 384], sizes = [8, 128], strides = [1, 1]} : vector<8x512xf32> to vector<8x128xf32>
    %55 = math.tanh %54 : vector<8x128xf32>
    %56 = arith.mulf %52, %44 : vector<8x128xf32>
    %57 = arith.mulf %51, %55 : vector<8x128xf32>
    %58 = arith.addf %56, %57 : vector<8x128xf32>
    %59 = math.tanh %58 : vector<8x128xf32>
    %60 = arith.mulf %53, %59 : vector<8x128xf32>
    %c0_31 = arith.constant 0 : index
    %c0_32 = arith.constant 0 : index
    %61 = vector.load %arg9[%c0_31, %c0_32] : memref<8x128xf32, #tpu.memory_space<vmem>>, vector<8x128xf32>
    tpu.vector_store %arg9[%c0_31, %c0_32], %58 {strides = array<i32>} : memref<8x128xf32, #tpu.memory_space<vmem>>, vector<8x128xf32>,
    %62 = arith.truncf %60 : vector<8x128xf32> to vector<8x128xbf16>
    %c0_33 = arith.constant 0 : index
    %c0_34 = arith.constant 0 : index
    %63 = vector.load %arg8[%c0_33, %c0_34] : memref<8x256xbf16, #tpu.memory_space<vmem>>, vector<8x128xbf16>
    tpu.vector_store %arg8[%c0_33, %c0_34], %62 {strides = array<i32>} : memref<8x256xbf16, #tpu.memory_space<vmem>>, vector<8x128xbf16>,
    %64 = vector.extract_strided_slice %37 {offsets = [0, 512], sizes = [8, 512], strides = [1, 1]} : vector<8x1024xf32> to vector<8x512xf32>
    %65 = arith.addf %64, %9 : vector<8x512xf32>
    %c0_35 = arith.constant 0 : index
    %c0_36 = arith.constant 0 : index
    %66 = vector.load %arg10[%c0_35, %c0_36] : memref<8x128xf32, #tpu.memory_space<vmem>>, vector<8x128xf32>
    %67 = vector.extract_strided_slice %65 {offsets = [0, 0], sizes = [8, 384], strides = [1, 1]} : vector<8x512xf32> to vector<8x384xf32>
    %68 = arith.negf %67 : vector<8x384xf32>
    %69 = math.exp %68 : vector<8x384xf32>
    %cst_37 = arith.constant 1.000000e+00 : f32
    %70 = vector.broadcast %cst_37 : f32 to vector<8x384xf32>
    %71 = arith.addf %70, %69 : vector<8x384xf32>
    %72 = arith.divf %70, %71 : vector<8x384xf32>
    %73 = vector.extract_strided_slice %72 {offsets = [0, 0], sizes = [8, 128], strides = [1, 1]} : vector<8x384xf32> to vector<8x128xf32>
    %74 = vector.extract_strided_slice %72 {offsets = [0, 128], sizes = [8, 128], strides = [1, 1]} : vector<8x384xf32> to vector<8x128xf32>
    %75 = vector.extract_strided_slice %72 {offsets = [0, 256], sizes = [8, 128], strides = [1, 1]} : vector<8x384xf32> to vector<8x128xf32>
    %76 = vector.extract_strided_slice %65 {offsets = [0, 384], sizes = [8, 128], strides = [1, 1]} : vector<8x512xf32> to vector<8x128xf32>
    %77 = math.tanh %76 : vector<8x128xf32>
    %78 = arith.mulf %74, %66 : vector<8x128xf32>
    %79 = arith.mulf %73, %77 : vector<8x128xf32>
    %80 = arith.addf %78, %79 : vector<8x128xf32>
    %81 = math.tanh %80 : vector<8x128xf32>
    %82 = arith.mulf %75, %81 : vector<8x128xf32>
    %c0_38 = arith.constant 0 : index
    %c0_39 = arith.constant 0 : index
    %83 = vector.load %arg10[%c0_38, %c0_39] : memref<8x128xf32, #tpu.memory_space<vmem>>, vector<8x128xf32>
    tpu.vector_store %arg10[%c0_38, %c0_39], %80 {strides = array<i32>} : memref<8x128xf32, #tpu.memory_space<vmem>>, vector<8x128xf32>,
    %84 = arith.truncf %82 : vector<8x128xf32> to vector<8x128xbf16>
    %c0_40 = arith.constant 0 : index
    %c128_41 = arith.constant 128 : index
    %85 = vector.load %arg8[%c0_40, %c128_41] : memref<8x256xbf16, #tpu.memory_space<vmem>>, vector<8x128xbf16>
    tpu.vector_store %arg8[%c0_40, %c128_41], %84 {strides = array<i32>} : memref<8x256xbf16, #tpu.memory_space<vmem>>, vector<8x128xbf16>,
    %c1_i32_42 = arith.constant 1 : i32
    %86 = arith.subi %c1_i32, %c1_i32_42 : i32
    %c8_i32_43 = arith.constant 8 : i32
    %87 = arith.muli %86, %c8_i32_43 : i32
    %88 = tpu.assume_multiple %87, 8 : i32
    %89 = arith.index_cast %88 : i32 to index
    %c0_44 = arith.constant 0 : index
    %90 = vector.load %arg6[%89, %c0_44] : memref<64x128xbf16, #tpu.memory_space<vmem>>, vector<8x128xbf16>
    tpu.vector_store %arg6[%89, %c0_44], %84 {strides = array<i32>} : memref<64x128xbf16, #tpu.memory_space<vmem>>, vector<8x128xbf16>,
    %c2_i32 = arith.constant 2 : i32
    %c0_45 = arith.constant 0 : index
    %c0_46 = arith.constant 0 : index
    %91 = vector.load %arg8[%c0_45, %c0_46] : memref<8x256xbf16, #tpu.memory_space<vmem>>, vector<8x256xbf16>
    %c0_47 = arith.constant 0 : index
    %c0_48 = arith.constant 0 : index
    %92 = vector.load %arg4[%c0_47, %c0_48] : memref<256x1024xbf16, #tpu.memory_space<vmem>>, vector<256x1024xbf16>
    %cst_49 = arith.constant dense<0.000000e+00> : vector<8x1024xf32>
    %93 = tpu.matmul %91, %92, %cst_49 {dimension_numbers = #tpu.dot_dimension_numbers<[1], [0], [0], [1], [0, 0, 1, 1], [], []>} : vector<8x256xbf16>, vector<256x1024xbf16>, vector<8x1024xf32> -> vector<8x1024xf32>
    %c8_i32_50 = arith.constant 8 : i32
    %94 = arith.muli %c2_i32, %c8_i32_50 : i32
    %95 = tpu.assume_multiple %94, 8 : i32
    %96 = arith.index_cast %95 : i32 to index
    %c0_51 = arith.constant 0 : index
    %97 = vector.load %arg7[%96, %c0_51] : memref<64x512xf32, #tpu.memory_space<vmem>>, vector<8x512xf32>
    %98 = vector.extract_strided_slice %93 {offsets = [0, 0], sizes = [8, 512], strides = [1, 1]} : vector<8x1024xf32> to vector<8x512xf32>
    %99 = arith.addf %97, %98 : vector<8x512xf32>
    %c0_52 = arith.constant 0 : index
    %c0_53 = arith.constant 0 : index
    %100 = vector.load %arg9[%c0_52, %c0_53] : memref<8x128xf32, #tpu.memory_space<vmem>>, vector<8x128xf32>
    %101 = vector.extract_strided_slice %99 {offsets = [0, 0], sizes = [8, 384], strides = [1, 1]} : vector<8x512xf32> to vector<8x384xf32>
    %102 = arith.negf %101 : vector<8x384xf32>
    %103 = math.exp %102 : vector<8x384xf32>
    %cst_54 = arith.constant 1.000000e+00 : f32
    %104 = vector.broadcast %cst_54 : f32 to vector<8x384xf32>
    %105 = arith.addf %104, %103 : vector<8x384xf32>
    %106 = arith.divf %104, %105 : vector<8x384xf32>
    %107 = vector.extract_strided_slice %106 {offsets = [0, 0], sizes = [8, 128], strides = [1, 1]} : vector<8x384xf32> to vector<8x128xf32>
    %108 = vector.extract_strided_slice %106 {offsets = [0, 128], sizes = [8, 128], strides = [1, 1]} : vector<8x384xf32> to vector<8x128xf32>
    %109 = vector.extract_strided_slice %106 {offsets = [0, 256], sizes = [8, 128], strides = [1, 1]} : vector<8x384xf32> to vector<8x128xf32>
    %110 = vector.extract_strided_slice %99 {offsets = [0, 384], sizes = [8, 128], strides = [1, 1]} : vector<8x512xf32> to vector<8x128xf32>
    %111 = math.tanh %110 : vector<8x128xf32>
    %112 = arith.mulf %108, %100 : vector<8x128xf32>
    %113 = arith.mulf %107, %111 : vector<8x128xf32>
    %114 = arith.addf %112, %113 : vector<8x128xf32>
    %115 = math.tanh %114 : vector<8x128xf32>
    %116 = arith.mulf %109, %115 : vector<8x128xf32>
    %c0_55 = arith.constant 0 : index
    %c0_56 = arith.constant 0 : index
    %117 = vector.load %arg9[%c0_55, %c0_56] : memref<8x128xf32, #tpu.memory_space<vmem>>, vector<8x128xf32>
    tpu.vector_store %arg9[%c0_55, %c0_56], %114 {strides = array<i32>} : memref<8x128xf32, #tpu.memory_space<vmem>>, vector<8x128xf32>,
    %118 = arith.truncf %116 : vector<8x128xf32> to vector<8x128xbf16>
    %c0_57 = arith.constant 0 : index
    %c0_58 = arith.constant 0 : index
    %119 = vector.load %arg8[%c0_57, %c0_58] : memref<8x256xbf16, #tpu.memory_space<vmem>>, vector<8x128xbf16>
    tpu.vector_store %arg8[%c0_57, %c0_58], %118 {strides = array<i32>} : memref<8x256xbf16, #tpu.memory_space<vmem>>, vector<8x128xbf16>,
    %120 = vector.extract_strided_slice %93 {offsets = [0, 512], sizes = [8, 512], strides = [1, 1]} : vector<8x1024xf32> to vector<8x512xf32>
    %121 = arith.addf %120, %9 : vector<8x512xf32>
    %c0_59 = arith.constant 0 : index
    %c0_60 = arith.constant 0 : index
    %122 = vector.load %arg10[%c0_59, %c0_60] : memref<8x128xf32, #tpu.memory_space<vmem>>, vector<8x128xf32>
    %123 = vector.extract_strided_slice %121 {offsets = [0, 0], sizes = [8, 384], strides = [1, 1]} : vector<8x512xf32> to vector<8x384xf32>
    %124 = arith.negf %123 : vector<8x384xf32>
    %125 = math.exp %124 : vector<8x384xf32>
    %cst_61 = arith.constant 1.000000e+00 : f32
    %126 = vector.broadcast %cst_61 : f32 to vector<8x384xf32>
    %127 = arith.addf %126, %125 : vector<8x384xf32>
    %128 = arith.divf %126, %127 : vector<8x384xf32>
    %129 = vector.extract_strided_slice %128 {offsets = [0, 0], sizes = [8, 128], strides = [1, 1]} : vector<8x384xf32> to vector<8x128xf32>
    %130 = vector.extract_strided_slice %128 {offsets = [0, 128], sizes = [8, 128], strides = [1, 1]} : vector<8x384xf32> to vector<8x128xf32>
    %131 = vector.extract_strided_slice %128 {offsets = [0, 256], sizes = [8, 128], strides = [1, 1]} : vector<8x384xf32> to vector<8x128xf32>
    %132 = vector.extract_strided_slice %121 {offsets = [0, 384], sizes = [8, 128], strides = [1, 1]} : vector<8x512xf32> to vector<8x128xf32>
    %133 = math.tanh %132 : vector<8x128xf32>
    %134 = arith.mulf %130, %122 : vector<8x128xf32>
    %135 = arith.mulf %129, %133 : vector<8x128xf32>
    %136 = arith.addf %134, %135 : vector<8x128xf32>
    %137 = math.tanh %136 : vector<8x128xf32>
    %138 = arith.mulf %131, %137 : vector<8x128xf32>
    %c0_62 = arith.constant 0 : index
    %c0_63 = arith.constant 0 : index
    %139 = vector.load %arg10[%c0_62, %c0_63] : memref<8x128xf32, #tpu.memory_space<vmem>>, vector<8x128xf32>
    tpu.vector_store %arg10[%c0_62, %c0_63], %136 {strides = array<i32>} : memref<8x128xf32, #tpu.memory_space<vmem>>, vector<8x128xf32>,
    %140 = arith.truncf %138 : vector<8x128xf32> to vector<8x128xbf16>
    %c0_64 = arith.constant 0 : index
    %c128_65 = arith.constant 128 : index
    %141 = vector.load %arg8[%c0_64, %c128_65] : memref<8x256xbf16, #tpu.memory_space<vmem>>, vector<8x128xbf16>
    tpu.vector_store %arg8[%c0_64, %c128_65], %140 {strides = array<i32>} : memref<8x256xbf16, #tpu.memory_space<vmem>>, vector<8x128xbf16>,
    %c1_i32_66 = arith.constant 1 : i32
    %142 = arith.subi %c2_i32, %c1_i32_66 : i32
    %c8_i32_67 = arith.constant 8 : i32
    %143 = arith.muli %142, %c8_i32_67 : i32
    %144 = tpu.assume_multiple %143, 8 : i32
    %145 = arith.index_cast %144 : i32 to index
    %c0_68 = arith.constant 0 : index
    %146 = vector.load %arg6[%145, %c0_68] : memref<64x128xbf16, #tpu.memory_space<vmem>>, vector<8x128xbf16>
    tpu.vector_store %arg6[%145, %c0_68], %140 {strides = array<i32>} : memref<64x128xbf16, #tpu.memory_space<vmem>>, vector<8x128xbf16>,
    %c3_i32 = arith.constant 3 : i32
    %c0_69 = arith.constant 0 : index
    %c0_70 = arith.constant 0 : index
    %147 = vector.load %arg8[%c0_69, %c0_70] : memref<8x256xbf16, #tpu.memory_space<vmem>>, vector<8x256xbf16>
    %c0_71 = arith.constant 0 : index
    %c0_72 = arith.constant 0 : index
    %148 = vector.load %arg4[%c0_71, %c0_72] : memref<256x1024xbf16, #tpu.memory_space<vmem>>, vector<256x1024xbf16>
    %cst_73 = arith.constant dense<0.000000e+00> : vector<8x1024xf32>
    %149 = tpu.matmul %147, %148, %cst_73 {dimension_numbers = #tpu.dot_dimension_numbers<[1], [0], [0], [1], [0, 0, 1, 1], [], []>} : vector<8x256xbf16>, vector<256x1024xbf16>, vector<8x1024xf32> -> vector<8x1024xf32>
    %c8_i32_74 = arith.constant 8 : i32
    %150 = arith.muli %c3_i32, %c8_i32_74 : i32
    %151 = tpu.assume_multiple %150, 8 : i32
    %152 = arith.index_cast %151 : i32 to index
    %c0_75 = arith.constant 0 : index
    %153 = vector.load %arg7[%152, %c0_75] : memref<64x512xf32, #tpu.memory_space<vmem>>, vector<8x512xf32>
    %154 = vector.extract_strided_slice %149 {offsets = [0, 0], sizes = [8, 512], strides = [1, 1]} : vector<8x1024xf32> to vector<8x512xf32>
    %155 = arith.addf %153, %154 : vector<8x512xf32>
    %c0_76 = arith.constant 0 : index
    %c0_77 = arith.constant 0 : index
    %156 = vector.load %arg9[%c0_76, %c0_77] : memref<8x128xf32, #tpu.memory_space<vmem>>, vector<8x128xf32>
    %157 = vector.extract_strided_slice %155 {offsets = [0, 0], sizes = [8, 384], strides = [1, 1]} : vector<8x512xf32> to vector<8x384xf32>
    %158 = arith.negf %157 : vector<8x384xf32>
    %159 = math.exp %158 : vector<8x384xf32>
    %cst_78 = arith.constant 1.000000e+00 : f32
    %160 = vector.broadcast %cst_78 : f32 to vector<8x384xf32>
    %161 = arith.addf %160, %159 : vector<8x384xf32>
    %162 = arith.divf %160, %161 : vector<8x384xf32>
    %163 = vector.extract_strided_slice %162 {offsets = [0, 0], sizes = [8, 128], strides = [1, 1]} : vector<8x384xf32> to vector<8x128xf32>
    %164 = vector.extract_strided_slice %162 {offsets = [0, 128], sizes = [8, 128], strides = [1, 1]} : vector<8x384xf32> to vector<8x128xf32>
    %165 = vector.extract_strided_slice %162 {offsets = [0, 256], sizes = [8, 128], strides = [1, 1]} : vector<8x384xf32> to vector<8x128xf32>
    %166 = vector.extract_strided_slice %155 {offsets = [0, 384], sizes = [8, 128], strides = [1, 1]} : vector<8x512xf32> to vector<8x128xf32>
    %167 = math.tanh %166 : vector<8x128xf32>
    %168 = arith.mulf %164, %156 : vector<8x128xf32>
    %169 = arith.mulf %163, %167 : vector<8x128xf32>
    %170 = arith.addf %168, %169 : vector<8x128xf32>
    %171 = math.tanh %170 : vector<8x128xf32>
    %172 = arith.mulf %165, %171 : vector<8x128xf32>
    %c0_79 = arith.constant 0 : index
    %c0_80 = arith.constant 0 : index
    %173 = vector.load %arg9[%c0_79, %c0_80] : memref<8x128xf32, #tpu.memory_space<vmem>>, vector<8x128xf32>
    tpu.vector_store %arg9[%c0_79, %c0_80], %170 {strides = array<i32>} : memref<8x128xf32, #tpu.memory_space<vmem>>, vector<8x128xf32>,
    %174 = arith.truncf %172 : vector<8x128xf32> to vector<8x128xbf16>
    %c0_81 = arith.constant 0 : index
    %c0_82 = arith.constant 0 : index
    %175 = vector.load %arg8[%c0_81, %c0_82] : memref<8x256xbf16, #tpu.memory_space<vmem>>, vector<8x128xbf16>
    tpu.vector_store %arg8[%c0_81, %c0_82], %174 {strides = array<i32>} : memref<8x256xbf16, #tpu.memory_space<vmem>>, vector<8x128xbf16>,
    %176 = vector.extract_strided_slice %149 {offsets = [0, 512], sizes = [8, 512], strides = [1, 1]} : vector<8x1024xf32> to vector<8x512xf32>
    %177 = arith.addf %176, %9 : vector<8x512xf32>
    %c0_83 = arith.constant 0 : index
    %c0_84 = arith.constant 0 : index
    %178 = vector.load %arg10[%c0_83, %c0_84] : memref<8x128xf32, #tpu.memory_space<vmem>>, vector<8x128xf32>
    %179 = vector.extract_strided_slice %177 {offsets = [0, 0], sizes = [8, 384], strides = [1, 1]} : vector<8x512xf32> to vector<8x384xf32>
    %180 = arith.negf %179 : vector<8x384xf32>
    %181 = math.exp %180 : vector<8x384xf32>
    %cst_85 = arith.constant 1.000000e+00 : f32
    %182 = vector.broadcast %cst_85 : f32 to vector<8x384xf32>
    %183 = arith.addf %182, %181 : vector<8x384xf32>
    %184 = arith.divf %182, %183 : vector<8x384xf32>
    %185 = vector.extract_strided_slice %184 {offsets = [0, 0], sizes = [8, 128], strides = [1, 1]} : vector<8x384xf32> to vector<8x128xf32>
    %186 = vector.extract_strided_slice %184 {offsets = [0, 128], sizes = [8, 128], strides = [1, 1]} : vector<8x384xf32> to vector<8x128xf32>
    %187 = vector.extract_strided_slice %184 {offsets = [0, 256], sizes = [8, 128], strides = [1, 1]} : vector<8x384xf32> to vector<8x128xf32>
    %188 = vector.extract_strided_slice %177 {offsets = [0, 384], sizes = [8, 128], strides = [1, 1]} : vector<8x512xf32> to vector<8x128xf32>
    %189 = math.tanh %188 : vector<8x128xf32>
    %190 = arith.mulf %186, %178 : vector<8x128xf32>
    %191 = arith.mulf %185, %189 : vector<8x128xf32>
    %192 = arith.addf %190, %191 : vector<8x128xf32>
    %193 = math.tanh %192 : vector<8x128xf32>
    %194 = arith.mulf %187, %193 : vector<8x128xf32>
    %c0_86 = arith.constant 0 : index
    %c0_87 = arith.constant 0 : index
    %195 = vector.load %arg10[%c0_86, %c0_87] : memref<8x128xf32, #tpu.memory_space<vmem>>, vector<8x128xf32>
    tpu.vector_store %arg10[%c0_86, %c0_87], %192 {strides = array<i32>} : memref<8x128xf32, #tpu.memory_space<vmem>>, vector<8x128xf32>,
    %196 = arith.truncf %194 : vector<8x128xf32> to vector<8x128xbf16>
    %c0_88 = arith.constant 0 : index
    %c128_89 = arith.constant 128 : index
    %197 = vector.load %arg8[%c0_88, %c128_89] : memref<8x256xbf16, #tpu.memory_space<vmem>>, vector<8x128xbf16>
    tpu.vector_store %arg8[%c0_88, %c128_89], %196 {strides = array<i32>} : memref<8x256xbf16, #tpu.memory_space<vmem>>, vector<8x128xbf16>,
    %c1_i32_90 = arith.constant 1 : i32
    %198 = arith.subi %c3_i32, %c1_i32_90 : i32
    %c8_i32_91 = arith.constant 8 : i32
    %199 = arith.muli %198, %c8_i32_91 : i32
    %200 = tpu.assume_multiple %199, 8 : i32
    %201 = arith.index_cast %200 : i32 to index
    %c0_92 = arith.constant 0 : index
    %202 = vector.load %arg6[%201, %c0_92] : memref<64x128xbf16, #tpu.memory_space<vmem>>, vector<8x128xbf16>
    tpu.vector_store %arg6[%201, %c0_92], %196 {strides = array<i32>} : memref<64x128xbf16, #tpu.memory_space<vmem>>, vector<8x128xbf16>,
    %c4_i32 = arith.constant 4 : i32
    %c0_93 = arith.constant 0 : index
    %c0_94 = arith.constant 0 : index
    %203 = vector.load %arg8[%c0_93, %c0_94] : memref<8x256xbf16, #tpu.memory_space<vmem>>, vector<8x256xbf16>
    %c0_95 = arith.constant 0 : index
    %c0_96 = arith.constant 0 : index
    %204 = vector.load %arg4[%c0_95, %c0_96] : memref<256x1024xbf16, #tpu.memory_space<vmem>>, vector<256x1024xbf16>
    %cst_97 = arith.constant dense<0.000000e+00> : vector<8x1024xf32>
    %205 = tpu.matmul %203, %204, %cst_97 {dimension_numbers = #tpu.dot_dimension_numbers<[1], [0], [0], [1], [0, 0, 1, 1], [], []>} : vector<8x256xbf16>, vector<256x1024xbf16>, vector<8x1024xf32> -> vector<8x1024xf32>
    %c8_i32_98 = arith.constant 8 : i32
    %206 = arith.muli %c4_i32, %c8_i32_98 : i32
    %207 = tpu.assume_multiple %206, 8 : i32
    %208 = arith.index_cast %207 : i32 to index
    %c0_99 = arith.constant 0 : index
    %209 = vector.load %arg7[%208, %c0_99] : memref<64x512xf32, #tpu.memory_space<vmem>>, vector<8x512xf32>
    %210 = vector.extract_strided_slice %205 {offsets = [0, 0], sizes = [8, 512], strides = [1, 1]} : vector<8x1024xf32> to vector<8x512xf32>
    %211 = arith.addf %209, %210 : vector<8x512xf32>
    %c0_100 = arith.constant 0 : index
    %c0_101 = arith.constant 0 : index
    %212 = vector.load %arg9[%c0_100, %c0_101] : memref<8x128xf32, #tpu.memory_space<vmem>>, vector<8x128xf32>
    %213 = vector.extract_strided_slice %211 {offsets = [0, 0], sizes = [8, 384], strides = [1, 1]} : vector<8x512xf32> to vector<8x384xf32>
    %214 = arith.negf %213 : vector<8x384xf32>
    %215 = math.exp %214 : vector<8x384xf32>
    %cst_102 = arith.constant 1.000000e+00 : f32
    %216 = vector.broadcast %cst_102 : f32 to vector<8x384xf32>
    %217 = arith.addf %216, %215 : vector<8x384xf32>
    %218 = arith.divf %216, %217 : vector<8x384xf32>
    %219 = vector.extract_strided_slice %218 {offsets = [0, 0], sizes = [8, 128], strides = [1, 1]} : vector<8x384xf32> to vector<8x128xf32>
    %220 = vector.extract_strided_slice %218 {offsets = [0, 128], sizes = [8, 128], strides = [1, 1]} : vector<8x384xf32> to vector<8x128xf32>
    %221 = vector.extract_strided_slice %218 {offsets = [0, 256], sizes = [8, 128], strides = [1, 1]} : vector<8x384xf32> to vector<8x128xf32>
    %222 = vector.extract_strided_slice %211 {offsets = [0, 384], sizes = [8, 128], strides = [1, 1]} : vector<8x512xf32> to vector<8x128xf32>
    %223 = math.tanh %222 : vector<8x128xf32>
    %224 = arith.mulf %220, %212 : vector<8x128xf32>
    %225 = arith.mulf %219, %223 : vector<8x128xf32>
    %226 = arith.addf %224, %225 : vector<8x128xf32>
    %227 = math.tanh %226 : vector<8x128xf32>
    %228 = arith.mulf %221, %227 : vector<8x128xf32>
    %c0_103 = arith.constant 0 : index
    %c0_104 = arith.constant 0 : index
    %229 = vector.load %arg9[%c0_103, %c0_104] : memref<8x128xf32, #tpu.memory_space<vmem>>, vector<8x128xf32>
    tpu.vector_store %arg9[%c0_103, %c0_104], %226 {strides = array<i32>} : memref<8x128xf32, #tpu.memory_space<vmem>>, vector<8x128xf32>,
    %230 = arith.truncf %228 : vector<8x128xf32> to vector<8x128xbf16>
    %c0_105 = arith.constant 0 : index
    %c0_106 = arith.constant 0 : index
    %231 = vector.load %arg8[%c0_105, %c0_106] : memref<8x256xbf16, #tpu.memory_space<vmem>>, vector<8x128xbf16>
    tpu.vector_store %arg8[%c0_105, %c0_106], %230 {strides = array<i32>} : memref<8x256xbf16, #tpu.memory_space<vmem>>, vector<8x128xbf16>,
    %232 = vector.extract_strided_slice %205 {offsets = [0, 512], sizes = [8, 512], strides = [1, 1]} : vector<8x1024xf32> to vector<8x512xf32>
    %233 = arith.addf %232, %9 : vector<8x512xf32>
    %c0_107 = arith.constant 0 : index
    %c0_108 = arith.constant 0 : index
    %234 = vector.load %arg10[%c0_107, %c0_108] : memref<8x128xf32, #tpu.memory_space<vmem>>, vector<8x128xf32>
    %235 = vector.extract_strided_slice %233 {offsets = [0, 0], sizes = [8, 384], strides = [1, 1]} : vector<8x512xf32> to vector<8x384xf32>
    %236 = arith.negf %235 : vector<8x384xf32>
    %237 = math.exp %236 : vector<8x384xf32>
    %cst_109 = arith.constant 1.000000e+00 : f32
    %238 = vector.broadcast %cst_109 : f32 to vector<8x384xf32>
    %239 = arith.addf %238, %237 : vector<8x384xf32>
    %240 = arith.divf %238, %239 : vector<8x384xf32>
    %241 = vector.extract_strided_slice %240 {offsets = [0, 0], sizes = [8, 128], strides = [1, 1]} : vector<8x384xf32> to vector<8x128xf32>
    %242 = vector.extract_strided_slice %240 {offsets = [0, 128], sizes = [8, 128], strides = [1, 1]} : vector<8x384xf32> to vector<8x128xf32>
    %243 = vector.extract_strided_slice %240 {offsets = [0, 256], sizes = [8, 128], strides = [1, 1]} : vector<8x384xf32> to vector<8x128xf32>
    %244 = vector.extract_strided_slice %233 {offsets = [0, 384], sizes = [8, 128], strides = [1, 1]} : vector<8x512xf32> to vector<8x128xf32>
    %245 = math.tanh %244 : vector<8x128xf32>
    %246 = arith.mulf %242, %234 : vector<8x128xf32>
    %247 = arith.mulf %241, %245 : vector<8x128xf32>
    %248 = arith.addf %246, %247 : vector<8x128xf32>
    %249 = math.tanh %248 : vector<8x128xf32>
    %250 = arith.mulf %243, %249 : vector<8x128xf32>
    %c0_110 = arith.constant 0 : index
    %c0_111 = arith.constant 0 : index
    %251 = vector.load %arg10[%c0_110, %c0_111] : memref<8x128xf32, #tpu.memory_space<vmem>>, vector<8x128xf32>
    tpu.vector_store %arg10[%c0_110, %c0_111], %248 {strides = array<i32>} : memref<8x128xf32, #tpu.memory_space<vmem>>, vector<8x128xf32>,
    %252 = arith.truncf %250 : vector<8x128xf32> to vector<8x128xbf16>
    %c0_112 = arith.constant 0 : index
    %c128_113 = arith.constant 128 : index
    %253 = vector.load %arg8[%c0_112, %c128_113] : memref<8x256xbf16, #tpu.memory_space<vmem>>, vector<8x128xbf16>
    tpu.vector_store %arg8[%c0_112, %c128_113], %252 {strides = array<i32>} : memref<8x256xbf16, #tpu.memory_space<vmem>>, vector<8x128xbf16>,
    %c1_i32_114 = arith.constant 1 : i32
    %254 = arith.subi %c4_i32, %c1_i32_114 : i32
    %c8_i32_115 = arith.constant 8 : i32
    %255 = arith.muli %254, %c8_i32_115 : i32
    %256 = tpu.assume_multiple %255, 8 : i32
    %257 = arith.index_cast %256 : i32 to index
    %c0_116 = arith.constant 0 : index
    %258 = vector.load %arg6[%257, %c0_116] : memref<64x128xbf16, #tpu.memory_space<vmem>>, vector<8x128xbf16>
    tpu.vector_store %arg6[%257, %c0_116], %252 {strides = array<i32>} : memref<64x128xbf16, #tpu.memory_space<vmem>>, vector<8x128xbf16>,
    %c5_i32 = arith.constant 5 : i32
    %c0_117 = arith.constant 0 : index
    %c0_118 = arith.constant 0 : index
    %259 = vector.load %arg8[%c0_117, %c0_118] : memref<8x256xbf16, #tpu.memory_space<vmem>>, vector<8x256xbf16>
    %c0_119 = arith.constant 0 : index
    %c0_120 = arith.constant 0 : index
    %260 = vector.load %arg4[%c0_119, %c0_120] : memref<256x1024xbf16, #tpu.memory_space<vmem>>, vector<256x1024xbf16>
    %cst_121 = arith.constant dense<0.000000e+00> : vector<8x1024xf32>
    %261 = tpu.matmul %259, %260, %cst_121 {dimension_numbers = #tpu.dot_dimension_numbers<[1], [0], [0], [1], [0, 0, 1, 1], [], []>} : vector<8x256xbf16>, vector<256x1024xbf16>, vector<8x1024xf32> -> vector<8x1024xf32>
    %c8_i32_122 = arith.constant 8 : i32
    %262 = arith.muli %c5_i32, %c8_i32_122 : i32
    %263 = tpu.assume_multiple %262, 8 : i32
    %264 = arith.index_cast %263 : i32 to index
    %c0_123 = arith.constant 0 : index
    %265 = vector.load %arg7[%264, %c0_123] : memref<64x512xf32, #tpu.memory_space<vmem>>, vector<8x512xf32>
    %266 = vector.extract_strided_slice %261 {offsets = [0, 0], sizes = [8, 512], strides = [1, 1]} : vector<8x1024xf32> to vector<8x512xf32>
    %267 = arith.addf %265, %266 : vector<8x512xf32>
    %c0_124 = arith.constant 0 : index
    %c0_125 = arith.constant 0 : index
    %268 = vector.load %arg9[%c0_124, %c0_125] : memref<8x128xf32, #tpu.memory_space<vmem>>, vector<8x128xf32>
    %269 = vector.extract_strided_slice %267 {offsets = [0, 0], sizes = [8, 384], strides = [1, 1]} : vector<8x512xf32> to vector<8x384xf32>
    %270 = arith.negf %269 : vector<8x384xf32>
    %271 = math.exp %270 : vector<8x384xf32>
    %cst_126 = arith.constant 1.000000e+00 : f32
    %272 = vector.broadcast %cst_126 : f32 to vector<8x384xf32>
    %273 = arith.addf %272, %271 : vector<8x384xf32>
    %274 = arith.divf %272, %273 : vector<8x384xf32>
    %275 = vector.extract_strided_slice %274 {offsets = [0, 0], sizes = [8, 128], strides = [1, 1]} : vector<8x384xf32> to vector<8x128xf32>
    %276 = vector.extract_strided_slice %274 {offsets = [0, 128], sizes = [8, 128], strides = [1, 1]} : vector<8x384xf32> to vector<8x128xf32>
    %277 = vector.extract_strided_slice %274 {offsets = [0, 256], sizes = [8, 128], strides = [1, 1]} : vector<8x384xf32> to vector<8x128xf32>
    %278 = vector.extract_strided_slice %267 {offsets = [0, 384], sizes = [8, 128], strides = [1, 1]} : vector<8x512xf32> to vector<8x128xf32>
    %279 = math.tanh %278 : vector<8x128xf32>
    %280 = arith.mulf %276, %268 : vector<8x128xf32>
    %281 = arith.mulf %275, %279 : vector<8x128xf32>
    %282 = arith.addf %280, %281 : vector<8x128xf32>
    %283 = math.tanh %282 : vector<8x128xf32>
    %284 = arith.mulf %277, %283 : vector<8x128xf32>
    %c0_127 = arith.constant 0 : index
    %c0_128 = arith.constant 0 : index
    %285 = vector.load %arg9[%c0_127, %c0_128] : memref<8x128xf32, #tpu.memory_space<vmem>>, vector<8x128xf32>
    tpu.vector_store %arg9[%c0_127, %c0_128], %282 {strides = array<i32>} : memref<8x128xf32, #tpu.memory_space<vmem>>, vector<8x128xf32>,
    %286 = arith.truncf %284 : vector<8x128xf32> to vector<8x128xbf16>
    %c0_129 = arith.constant 0 : index
    %c0_130 = arith.constant 0 : index
    %287 = vector.load %arg8[%c0_129, %c0_130] : memref<8x256xbf16, #tpu.memory_space<vmem>>, vector<8x128xbf16>
    tpu.vector_store %arg8[%c0_129, %c0_130], %286 {strides = array<i32>} : memref<8x256xbf16, #tpu.memory_space<vmem>>, vector<8x128xbf16>,
    %288 = vector.extract_strided_slice %261 {offsets = [0, 512], sizes = [8, 512], strides = [1, 1]} : vector<8x1024xf32> to vector<8x512xf32>
    %289 = arith.addf %288, %9 : vector<8x512xf32>
    %c0_131 = arith.constant 0 : index
    %c0_132 = arith.constant 0 : index
    %290 = vector.load %arg10[%c0_131, %c0_132] : memref<8x128xf32, #tpu.memory_space<vmem>>, vector<8x128xf32>
    %291 = vector.extract_strided_slice %289 {offsets = [0, 0], sizes = [8, 384], strides = [1, 1]} : vector<8x512xf32> to vector<8x384xf32>
    %292 = arith.negf %291 : vector<8x384xf32>
    %293 = math.exp %292 : vector<8x384xf32>
    %cst_133 = arith.constant 1.000000e+00 : f32
    %294 = vector.broadcast %cst_133 : f32 to vector<8x384xf32>
    %295 = arith.addf %294, %293 : vector<8x384xf32>
    %296 = arith.divf %294, %295 : vector<8x384xf32>
    %297 = vector.extract_strided_slice %296 {offsets = [0, 0], sizes = [8, 128], strides = [1, 1]} : vector<8x384xf32> to vector<8x128xf32>
    %298 = vector.extract_strided_slice %296 {offsets = [0, 128], sizes = [8, 128], strides = [1, 1]} : vector<8x384xf32> to vector<8x128xf32>
    %299 = vector.extract_strided_slice %296 {offsets = [0, 256], sizes = [8, 128], strides = [1, 1]} : vector<8x384xf32> to vector<8x128xf32>
    %300 = vector.extract_strided_slice %289 {offsets = [0, 384], sizes = [8, 128], strides = [1, 1]} : vector<8x512xf32> to vector<8x128xf32>
    %301 = math.tanh %300 : vector<8x128xf32>
    %302 = arith.mulf %298, %290 : vector<8x128xf32>
    %303 = arith.mulf %297, %301 : vector<8x128xf32>
    %304 = arith.addf %302, %303 : vector<8x128xf32>
    %305 = math.tanh %304 : vector<8x128xf32>
    %306 = arith.mulf %299, %305 : vector<8x128xf32>
    %c0_134 = arith.constant 0 : index
    %c0_135 = arith.constant 0 : index
    %307 = vector.load %arg10[%c0_134, %c0_135] : memref<8x128xf32, #tpu.memory_space<vmem>>, vector<8x128xf32>
    tpu.vector_store %arg10[%c0_134, %c0_135], %304 {strides = array<i32>} : memref<8x128xf32, #tpu.memory_space<vmem>>, vector<8x128xf32>,
    %308 = arith.truncf %306 : vector<8x128xf32> to vector<8x128xbf16>
    %c0_136 = arith.constant 0 : index
    %c128_137 = arith.constant 128 : index
    %309 = vector.load %arg8[%c0_136, %c128_137] : memref<8x256xbf16, #tpu.memory_space<vmem>>, vector<8x128xbf16>
    tpu.vector_store %arg8[%c0_136, %c128_137], %308 {strides = array<i32>} : memref<8x256xbf16, #tpu.memory_space<vmem>>, vector<8x128xbf16>,
    %c1_i32_138 = arith.constant 1 : i32
    %310 = arith.subi %c5_i32, %c1_i32_138 : i32
    %c8_i32_139 = arith.constant 8 : i32
    %311 = arith.muli %310, %c8_i32_139 : i32
    %312 = tpu.assume_multiple %311, 8 : i32
    %313 = arith.index_cast %312 : i32 to index
    %c0_140 = arith.constant 0 : index
    %314 = vector.load %arg6[%313, %c0_140] : memref<64x128xbf16, #tpu.memory_space<vmem>>, vector<8x128xbf16>
    tpu.vector_store %arg6[%313, %c0_140], %308 {strides = array<i32>} : memref<64x128xbf16, #tpu.memory_space<vmem>>, vector<8x128xbf16>,
    %c6_i32 = arith.constant 6 : i32
    %c0_141 = arith.constant 0 : index
    %c0_142 = arith.constant 0 : index
    %315 = vector.load %arg8[%c0_141, %c0_142] : memref<8x256xbf16, #tpu.memory_space<vmem>>, vector<8x256xbf16>
    %c0_143 = arith.constant 0 : index
    %c0_144 = arith.constant 0 : index
    %316 = vector.load %arg4[%c0_143, %c0_144] : memref<256x1024xbf16, #tpu.memory_space<vmem>>, vector<256x1024xbf16>
    %cst_145 = arith.constant dense<0.000000e+00> : vector<8x1024xf32>
    %317 = tpu.matmul %315, %316, %cst_145 {dimension_numbers = #tpu.dot_dimension_numbers<[1], [0], [0], [1], [0, 0, 1, 1], [], []>} : vector<8x256xbf16>, vector<256x1024xbf16>, vector<8x1024xf32> -> vector<8x1024xf32>
    %c8_i32_146 = arith.constant 8 : i32
    %318 = arith.muli %c6_i32, %c8_i32_146 : i32
    %319 = tpu.assume_multiple %318, 8 : i32
    %320 = arith.index_cast %319 : i32 to index
    %c0_147 = arith.constant 0 : index
    %321 = vector.load %arg7[%320, %c0_147] : memref<64x512xf32, #tpu.memory_space<vmem>>, vector<8x512xf32>
    %322 = vector.extract_strided_slice %317 {offsets = [0, 0], sizes = [8, 512], strides = [1, 1]} : vector<8x1024xf32> to vector<8x512xf32>
    %323 = arith.addf %321, %322 : vector<8x512xf32>
    %c0_148 = arith.constant 0 : index
    %c0_149 = arith.constant 0 : index
    %324 = vector.load %arg9[%c0_148, %c0_149] : memref<8x128xf32, #tpu.memory_space<vmem>>, vector<8x128xf32>
    %325 = vector.extract_strided_slice %323 {offsets = [0, 0], sizes = [8, 384], strides = [1, 1]} : vector<8x512xf32> to vector<8x384xf32>
    %326 = arith.negf %325 : vector<8x384xf32>
    %327 = math.exp %326 : vector<8x384xf32>
    %cst_150 = arith.constant 1.000000e+00 : f32
    %328 = vector.broadcast %cst_150 : f32 to vector<8x384xf32>
    %329 = arith.addf %328, %327 : vector<8x384xf32>
    %330 = arith.divf %328, %329 : vector<8x384xf32>
    %331 = vector.extract_strided_slice %330 {offsets = [0, 0], sizes = [8, 128], strides = [1, 1]} : vector<8x384xf32> to vector<8x128xf32>
    %332 = vector.extract_strided_slice %330 {offsets = [0, 128], sizes = [8, 128], strides = [1, 1]} : vector<8x384xf32> to vector<8x128xf32>
    %333 = vector.extract_strided_slice %330 {offsets = [0, 256], sizes = [8, 128], strides = [1, 1]} : vector<8x384xf32> to vector<8x128xf32>
    %334 = vector.extract_strided_slice %323 {offsets = [0, 384], sizes = [8, 128], strides = [1, 1]} : vector<8x512xf32> to vector<8x128xf32>
    %335 = math.tanh %334 : vector<8x128xf32>
    %336 = arith.mulf %332, %324 : vector<8x128xf32>
    %337 = arith.mulf %331, %335 : vector<8x128xf32>
    %338 = arith.addf %336, %337 : vector<8x128xf32>
    %339 = math.tanh %338 : vector<8x128xf32>
    %340 = arith.mulf %333, %339 : vector<8x128xf32>
    %c0_151 = arith.constant 0 : index
    %c0_152 = arith.constant 0 : index
    %341 = vector.load %arg9[%c0_151, %c0_152] : memref<8x128xf32, #tpu.memory_space<vmem>>, vector<8x128xf32>
    tpu.vector_store %arg9[%c0_151, %c0_152], %338 {strides = array<i32>} : memref<8x128xf32, #tpu.memory_space<vmem>>, vector<8x128xf32>,
    %342 = arith.truncf %340 : vector<8x128xf32> to vector<8x128xbf16>
    %c0_153 = arith.constant 0 : index
    %c0_154 = arith.constant 0 : index
    %343 = vector.load %arg8[%c0_153, %c0_154] : memref<8x256xbf16, #tpu.memory_space<vmem>>, vector<8x128xbf16>
    tpu.vector_store %arg8[%c0_153, %c0_154], %342 {strides = array<i32>} : memref<8x256xbf16, #tpu.memory_space<vmem>>, vector<8x128xbf16>,
    %344 = vector.extract_strided_slice %317 {offsets = [0, 512], sizes = [8, 512], strides = [1, 1]} : vector<8x1024xf32> to vector<8x512xf32>
    %345 = arith.addf %344, %9 : vector<8x512xf32>
    %c0_155 = arith.constant 0 : index
    %c0_156 = arith.constant 0 : index
    %346 = vector.load %arg10[%c0_155, %c0_156] : memref<8x128xf32, #tpu.memory_space<vmem>>, vector<8x128xf32>
    %347 = vector.extract_strided_slice %345 {offsets = [0, 0], sizes = [8, 384], strides = [1, 1]} : vector<8x512xf32> to vector<8x384xf32>
    %348 = arith.negf %347 : vector<8x384xf32>
    %349 = math.exp %348 : vector<8x384xf32>
    %cst_157 = arith.constant 1.000000e+00 : f32
    %350 = vector.broadcast %cst_157 : f32 to vector<8x384xf32>
    %351 = arith.addf %350, %349 : vector<8x384xf32>
    %352 = arith.divf %350, %351 : vector<8x384xf32>
    %353 = vector.extract_strided_slice %352 {offsets = [0, 0], sizes = [8, 128], strides = [1, 1]} : vector<8x384xf32> to vector<8x128xf32>
    %354 = vector.extract_strided_slice %352 {offsets = [0, 128], sizes = [8, 128], strides = [1, 1]} : vector<8x384xf32> to vector<8x128xf32>
    %355 = vector.extract_strided_slice %352 {offsets = [0, 256], sizes = [8, 128], strides = [1, 1]} : vector<8x384xf32> to vector<8x128xf32>
    %356 = vector.extract_strided_slice %345 {offsets = [0, 384], sizes = [8, 128], strides = [1, 1]} : vector<8x512xf32> to vector<8x128xf32>
    %357 = math.tanh %356 : vector<8x128xf32>
    %358 = arith.mulf %354, %346 : vector<8x128xf32>
    %359 = arith.mulf %353, %357 : vector<8x128xf32>
    %360 = arith.addf %358, %359 : vector<8x128xf32>
    %361 = math.tanh %360 : vector<8x128xf32>
    %362 = arith.mulf %355, %361 : vector<8x128xf32>
    %c0_158 = arith.constant 0 : index
    %c0_159 = arith.constant 0 : index
    %363 = vector.load %arg10[%c0_158, %c0_159] : memref<8x128xf32, #tpu.memory_space<vmem>>, vector<8x128xf32>
    tpu.vector_store %arg10[%c0_158, %c0_159], %360 {strides = array<i32>} : memref<8x128xf32, #tpu.memory_space<vmem>>, vector<8x128xf32>,
    %364 = arith.truncf %362 : vector<8x128xf32> to vector<8x128xbf16>
    %c0_160 = arith.constant 0 : index
    %c128_161 = arith.constant 128 : index
    %365 = vector.load %arg8[%c0_160, %c128_161] : memref<8x256xbf16, #tpu.memory_space<vmem>>, vector<8x128xbf16>
    tpu.vector_store %arg8[%c0_160, %c128_161], %364 {strides = array<i32>} : memref<8x256xbf16, #tpu.memory_space<vmem>>, vector<8x128xbf16>,
    %c1_i32_162 = arith.constant 1 : i32
    %366 = arith.subi %c6_i32, %c1_i32_162 : i32
    %c8_i32_163 = arith.constant 8 : i32
    %367 = arith.muli %366, %c8_i32_163 : i32
    %368 = tpu.assume_multiple %367, 8 : i32
    %369 = arith.index_cast %368 : i32 to index
    %c0_164 = arith.constant 0 : index
    %370 = vector.load %arg6[%369, %c0_164] : memref<64x128xbf16, #tpu.memory_space<vmem>>, vector<8x128xbf16>
    tpu.vector_store %arg6[%369, %c0_164], %364 {strides = array<i32>} : memref<64x128xbf16, #tpu.memory_space<vmem>>, vector<8x128xbf16>,
    %c7_i32 = arith.constant 7 : i32
    %c0_165 = arith.constant 0 : index
    %c0_166 = arith.constant 0 : index
    %371 = vector.load %arg8[%c0_165, %c0_166] : memref<8x256xbf16, #tpu.memory_space<vmem>>, vector<8x256xbf16>
    %c0_167 = arith.constant 0 : index
    %c0_168 = arith.constant 0 : index
    %372 = vector.load %arg4[%c0_167, %c0_168] : memref<256x1024xbf16, #tpu.memory_space<vmem>>, vector<256x1024xbf16>
    %cst_169 = arith.constant dense<0.000000e+00> : vector<8x1024xf32>
    %373 = tpu.matmul %371, %372, %cst_169 {dimension_numbers = #tpu.dot_dimension_numbers<[1], [0], [0], [1], [0, 0, 1, 1], [], []>} : vector<8x256xbf16>, vector<256x1024xbf16>, vector<8x1024xf32> -> vector<8x1024xf32>
    %c8_i32_170 = arith.constant 8 : i32
    %374 = arith.muli %c7_i32, %c8_i32_170 : i32
    %375 = tpu.assume_multiple %374, 8 : i32
    %376 = arith.index_cast %375 : i32 to index
    %c0_171 = arith.constant 0 : index
    %377 = vector.load %arg7[%376, %c0_171] : memref<64x512xf32, #tpu.memory_space<vmem>>, vector<8x512xf32>
    %378 = vector.extract_strided_slice %373 {offsets = [0, 0], sizes = [8, 512], strides = [1, 1]} : vector<8x1024xf32> to vector<8x512xf32>
    %379 = arith.addf %377, %378 : vector<8x512xf32>
    %c0_172 = arith.constant 0 : index
    %c0_173 = arith.constant 0 : index
    %380 = vector.load %arg9[%c0_172, %c0_173] : memref<8x128xf32, #tpu.memory_space<vmem>>, vector<8x128xf32>
    %381 = vector.extract_strided_slice %379 {offsets = [0, 0], sizes = [8, 384], strides = [1, 1]} : vector<8x512xf32> to vector<8x384xf32>
    %382 = arith.negf %381 : vector<8x384xf32>
    %383 = math.exp %382 : vector<8x384xf32>
    %cst_174 = arith.constant 1.000000e+00 : f32
    %384 = vector.broadcast %cst_174 : f32 to vector<8x384xf32>
    %385 = arith.addf %384, %383 : vector<8x384xf32>
    %386 = arith.divf %384, %385 : vector<8x384xf32>
    %387 = vector.extract_strided_slice %386 {offsets = [0, 0], sizes = [8, 128], strides = [1, 1]} : vector<8x384xf32> to vector<8x128xf32>
    %388 = vector.extract_strided_slice %386 {offsets = [0, 128], sizes = [8, 128], strides = [1, 1]} : vector<8x384xf32> to vector<8x128xf32>
    %389 = vector.extract_strided_slice %386 {offsets = [0, 256], sizes = [8, 128], strides = [1, 1]} : vector<8x384xf32> to vector<8x128xf32>
    %390 = vector.extract_strided_slice %379 {offsets = [0, 384], sizes = [8, 128], strides = [1, 1]} : vector<8x512xf32> to vector<8x128xf32>
    %391 = math.tanh %390 : vector<8x128xf32>
    %392 = arith.mulf %388, %380 : vector<8x128xf32>
    %393 = arith.mulf %387, %391 : vector<8x128xf32>
    %394 = arith.addf %392, %393 : vector<8x128xf32>
    %395 = math.tanh %394 : vector<8x128xf32>
    %396 = arith.mulf %389, %395 : vector<8x128xf32>
    %c0_175 = arith.constant 0 : index
    %c0_176 = arith.constant 0 : index
    %397 = vector.load %arg9[%c0_175, %c0_176] : memref<8x128xf32, #tpu.memory_space<vmem>>, vector<8x128xf32>
    tpu.vector_store %arg9[%c0_175, %c0_176], %394 {strides = array<i32>} : memref<8x128xf32, #tpu.memory_space<vmem>>, vector<8x128xf32>,
    %398 = arith.truncf %396 : vector<8x128xf32> to vector<8x128xbf16>
    %c0_177 = arith.constant 0 : index
    %c0_178 = arith.constant 0 : index
    %399 = vector.load %arg8[%c0_177, %c0_178] : memref<8x256xbf16, #tpu.memory_space<vmem>>, vector<8x128xbf16>
    tpu.vector_store %arg8[%c0_177, %c0_178], %398 {strides = array<i32>} : memref<8x256xbf16, #tpu.memory_space<vmem>>, vector<8x128xbf16>,
    %400 = vector.extract_strided_slice %373 {offsets = [0, 512], sizes = [8, 512], strides = [1, 1]} : vector<8x1024xf32> to vector<8x512xf32>
    %401 = arith.addf %400, %9 : vector<8x512xf32>
    %c0_179 = arith.constant 0 : index
    %c0_180 = arith.constant 0 : index
    %402 = vector.load %arg10[%c0_179, %c0_180] : memref<8x128xf32, #tpu.memory_space<vmem>>, vector<8x128xf32>
    %403 = vector.extract_strided_slice %401 {offsets = [0, 0], sizes = [8, 384], strides = [1, 1]} : vector<8x512xf32> to vector<8x384xf32>
    %404 = arith.negf %403 : vector<8x384xf32>
    %405 = math.exp %404 : vector<8x384xf32>
    %cst_181 = arith.constant 1.000000e+00 : f32
    %406 = vector.broadcast %cst_181 : f32 to vector<8x384xf32>
    %407 = arith.addf %406, %405 : vector<8x384xf32>
    %408 = arith.divf %406, %407 : vector<8x384xf32>
    %409 = vector.extract_strided_slice %408 {offsets = [0, 0], sizes = [8, 128], strides = [1, 1]} : vector<8x384xf32> to vector<8x128xf32>
    %410 = vector.extract_strided_slice %408 {offsets = [0, 128], sizes = [8, 128], strides = [1, 1]} : vector<8x384xf32> to vector<8x128xf32>
    %411 = vector.extract_strided_slice %408 {offsets = [0, 256], sizes = [8, 128], strides = [1, 1]} : vector<8x384xf32> to vector<8x128xf32>
    %412 = vector.extract_strided_slice %401 {offsets = [0, 384], sizes = [8, 128], strides = [1, 1]} : vector<8x512xf32> to vector<8x128xf32>
    %413 = math.tanh %412 : vector<8x128xf32>
    %414 = arith.mulf %410, %402 : vector<8x128xf32>
    %415 = arith.mulf %409, %413 : vector<8x128xf32>
    %416 = arith.addf %414, %415 : vector<8x128xf32>
    %417 = math.tanh %416 : vector<8x128xf32>
    %418 = arith.mulf %411, %417 : vector<8x128xf32>
    %c0_182 = arith.constant 0 : index
    %c0_183 = arith.constant 0 : index
    %419 = vector.load %arg10[%c0_182, %c0_183] : memref<8x128xf32, #tpu.memory_space<vmem>>, vector<8x128xf32>
    tpu.vector_store %arg10[%c0_182, %c0_183], %416 {strides = array<i32>} : memref<8x128xf32, #tpu.memory_space<vmem>>, vector<8x128xf32>,
    %420 = arith.truncf %418 : vector<8x128xf32> to vector<8x128xbf16>
    %c0_184 = arith.constant 0 : index
    %c128_185 = arith.constant 128 : index
    %421 = vector.load %arg8[%c0_184, %c128_185] : memref<8x256xbf16, #tpu.memory_space<vmem>>, vector<8x128xbf16>
    tpu.vector_store %arg8[%c0_184, %c128_185], %420 {strides = array<i32>} : memref<8x256xbf16, #tpu.memory_space<vmem>>, vector<8x128xbf16>,
    %c1_i32_186 = arith.constant 1 : i32
    %422 = arith.subi %c7_i32, %c1_i32_186 : i32
    %c8_i32_187 = arith.constant 8 : i32
    %423 = arith.muli %422, %c8_i32_187 : i32
    %424 = tpu.assume_multiple %423, 8 : i32
    %425 = arith.index_cast %424 : i32 to index
    %c0_188 = arith.constant 0 : index
    %426 = vector.load %arg6[%425, %c0_188] : memref<64x128xbf16, #tpu.memory_space<vmem>>, vector<8x128xbf16>
    tpu.vector_store %arg6[%425, %c0_188], %420 {strides = array<i32>} : memref<64x128xbf16, #tpu.memory_space<vmem>>, vector<8x128xbf16>,
    %c7_i32_189 = arith.constant 7 : i32
    %c0_190 = arith.constant 0 : index
    %c0_191 = arith.constant 0 : index
    %427 = vector.load %arg8[%c0_190, %c0_191] : memref<8x256xbf16, #tpu.memory_space<vmem>>, vector<8x256xbf16>
    %c0_192 = arith.constant 0 : index
    %c512 = arith.constant 512 : index
    %428 = vector.load %arg4[%c0_192, %c512] : memref<256x1024xbf16, #tpu.memory_space<vmem>>, vector<256x512xbf16>
    %cst_193 = arith.constant dense<0.000000e+00> : vector<8x512xf32>
    %429 = tpu.matmul %427, %428, %cst_193 {dimension_numbers = #tpu.dot_dimension_numbers<[1], [0], [0], [1], [0, 0, 1, 1], [], []>} : vector<8x256xbf16>, vector<256x512xbf16>, vector<8x512xf32> -> vector<8x512xf32>
    %430 = arith.addf %429, %9 : vector<8x512xf32>
    %c0_194 = arith.constant 0 : index
    %c0_195 = arith.constant 0 : index
    %431 = vector.load %arg10[%c0_194, %c0_195] : memref<8x128xf32, #tpu.memory_space<vmem>>, vector<8x128xf32>
    %432 = vector.extract_strided_slice %430 {offsets = [0, 0], sizes = [8, 384], strides = [1, 1]} : vector<8x512xf32> to vector<8x384xf32>
    %433 = arith.negf %432 : vector<8x384xf32>
    %434 = math.exp %433 : vector<8x384xf32>
    %cst_196 = arith.constant 1.000000e+00 : f32
    %435 = vector.broadcast %cst_196 : f32 to vector<8x384xf32>
    %436 = arith.addf %435, %434 : vector<8x384xf32>
    %437 = arith.divf %435, %436 : vector<8x384xf32>
    %438 = vector.extract_strided_slice %437 {offsets = [0, 0], sizes = [8, 128], strides = [1, 1]} : vector<8x384xf32> to vector<8x128xf32>
    %439 = vector.extract_strided_slice %437 {offsets = [0, 128], sizes = [8, 128], strides = [1, 1]} : vector<8x384xf32> to vector<8x128xf32>
    %440 = vector.extract_strided_slice %437 {offsets = [0, 256], sizes = [8, 128], strides = [1, 1]} : vector<8x384xf32> to vector<8x128xf32>
    %441 = vector.extract_strided_slice %430 {offsets = [0, 384], sizes = [8, 128], strides = [1, 1]} : vector<8x512xf32> to vector<8x128xf32>
    %442 = math.tanh %441 : vector<8x128xf32>
    %443 = arith.mulf %439, %431 : vector<8x128xf32>
    %444 = arith.mulf %438, %442 : vector<8x128xf32>
    %445 = arith.addf %443, %444 : vector<8x128xf32>
    %446 = math.tanh %445 : vector<8x128xf32>
    %447 = arith.mulf %440, %446 : vector<8x128xf32>
    %c56_i32 = arith.constant 56 : i32
    %448 = tpu.assume_multiple %c56_i32, 8 : i32
    %449 = arith.truncf %447 : vector<8x128xf32> to vector<8x128xbf16>
    %450 = arith.index_cast %448 : i32 to index
    %c0_197 = arith.constant 0 : index
    %451 = vector.load %arg6[%450, %c0_197] : memref<64x128xbf16, #tpu.memory_space<vmem>>, vector<8x128xbf16>
    tpu.vector_store %arg6[%450, %c0_197], %449 {strides = array<i32>} : memref<64x128xbf16, #tpu.memory_space<vmem>>, vector<8x128xbf16>,
    return
  }
  func.func @transform_0(%arg0: i32) -> (i32, i32) {
    %c0_i32 = arith.constant 0 : i32
    %c0_i32_0 = arith.constant 0 : i32
    %c0_i32_1 = arith.constant 0 : i32
    return %c0_i32, %c0_i32_0 : i32, i32
  }
  func.func @transform_1(%arg0: i32) -> (i32, i32) {
    %c0_i32 = arith.constant 0 : i32
    %c0_i32_0 = arith.constant 0 : i32
    %c0_i32_1 = arith.constant 0 : i32
    return %c0_i32, %c0_i32_0 : i32, i32
  }
  func.func @transform_2(%arg0: i32) -> (i32, i32) {
    %c0_i32 = arith.constant 0 : i32
    %c0_i32_0 = arith.constant 0 : i32
    %c0_i32_1 = arith.constant 0 : i32
    return %c0_i32, %c0_i32_0 : i32, i32
  }
  func.func @transform_3(%arg0: i32) -> (i32, i32) {
    %c0_i32 = arith.constant 0 : i32
    %c0_i32_0 = arith.constant 0 : i32
    %c0_i32_1 = arith.constant 0 : i32
    return %c0_i32, %c0_i32_0 : i32, i32
  }
  func.func @transform_4(%arg0: i32) -> (i32, i32) {
    %c0_i32 = arith.constant 0 : i32
    %c0_i32_0 = arith.constant 0 : i32
    %c0_i32_1 = arith.constant 0 : i32
    return %c0_i32, %c0_i32_0 : i32, i32
  }
  func.func @transform_5(%arg0: i32) -> (i32, i32) {
    %c0_i32 = arith.constant 0 : i32
    %c0_i32_0 = arith.constant 0 : i32
    %c0_i32_1 = arith.constant 0 : i32
    return %c0_i32, %c0_i32_0 : i32, i32
  }
}

</mosaic_0001>

<llo_original>
// kernel: language_model_forward.3
$region0: #{language_model_forward.3}
  #allocation0 [shape = 'u32[]', space=smem, size = 0x4, offset = 0x4, fixed_abs, tag = 'smem constant byte address 0x4 - core index']
  #allocation1 [shape = 'u32[144,128]{1,0:T(1,128)}', space=vmem, size = 0x12000, scoped, tag = 'internal scratch']
  #allocation2 [shape = 'f32[1,1]{1,0:T(1,128)}', space=vmem, size = 0x200, scoped, tag = 'scratch operand']
  #allocation3 [shape = 'f32[1,1]{1,0:T(1,128)}', space=vmem, size = 0x200, scoped, tag = 'scratch operand']
  %s0 = inlined_call_operand.vmem [shape: bf16[64,128], index: 0, kind: input, shape index: {}]
  %s1 = inlined_call_operand.vmem [shape: bf16[128,256], index: 1, kind: input, shape index: {}]
  %s2 = inlined_call_operand.vmem [shape: f32[1,256], index: 2, kind: input, shape index: {}]
  %s3 = inlined_call_operand.vmem [shape: s32[64,1], index: 3, kind: input, shape index: {}]
  %s4 = inlined_call_operand.hbm [shape: f32[1,1], index: 4, kind: output, shape index: {}]
  %s5 = sld [smem:[#allocation0]]
  $region57: #{language_model_forward.3} parent=0
    _
  %s7 = ssub.s32 1, %s5
  %s8 = scalar_select 0, %s7, %s5
  $region1: #{language_model_forward.3} parent=0
    #allocation4 [shape = 'u8[512]{0}', space=vmem, size = 0x400, scoped, tag = 'output window, operand 0, single buffered']
    #allocation5 [shape = 's32[2]{0}', space=sflag, size = 0x8, scoped, tag = 'scoped memory for language_model_forward.3']
    %9 = vsyncpa [#allocation5], 0
    loop: start=0, step=1, limit=4
    $region2: #{language_model_forward.3} parent=1 // loop_pre_header
      _
    $region3: #{language_model_forward.3} parent=1 // loop_header
      %s11 = sphi 0, %s15
      %p12 = scmp.ge.s32.totalorder %s11, 4
      %s21 = sphi 0, %s23
      %s24 = sphi 0, %s21
      %s25 = sphi 0, %s24
      %s41 = sphi 0, %s25
      %s45 = sphi 0, %s45
      %s47 = sphi 0, %s45
      %s48 = sphi 0, %s47
      %s62 = sphi 0, %s48
      %s66 = sphi 0, %s66
      %s68 = sphi 0, %s66
      %s69 = sphi 0, %s68
      %s83 = sphi 0, %s69
      %s89 = sphi 0, %s91
      %s92 = sphi 0, %s89
      %s93 = sphi 0, %s92
      %s109 = sphi 0, %s93
      %s113 = sphi 0, %s113
      %s115 = sphi 0, %s113
      %s116 = sphi 0, %s115
      %s130 = sphi 0, %s116
    $region4: #{language_model_forward.3} parent=1 // loop_header_branch
      %14 = sbr.rel (%p12) target = $region8
    $region5: #{language_model_forward.3} parent=1 // loop_body
      %s16 = ssub.s32 %s11, 1
      %s17 = ssub.s32 %s11, 2
      %s18 = sadd.s32 %s11, 1
      %s19 = ssub.s32 %s11, %s18
      %p20 = scmp.eq.s32.totalorder %s19, 0
      %s22 = sadd.s32 %s21, 1
      %s23 = scalar_select %p20, %s21, %s22
      %p26 = pneg %p20
      %p27 = scmp.eq.s32.totalorder %s11, 1
      %p28 = por %p26, %p27
      %p29 = scmp.ne.s32.totalorder %s21, %s24
      %p30 = scmp.eq.s32.totalorder %s11, 0
      %p31 = por %p29, %p30
      %p32 = scmp.ne.s32.totalorder %s21, %s24
      %p33 = scmp.eq.s32.totalorder %s16, 1
      %p34 = por %p32, %p33
      %p35 = scmp.ne.s32.totalorder %s24, %s25
      %p36 = scmp.eq.s32.totalorder %s16, 0
      %p37 = por %p35, %p36
      %p38 = scmp.ne.s32.totalorder %s24, %s25
      %p39 = scmp.eq.s32.totalorder %s17, 1
      %p40 = por %p38, %p39
      %p42 = scmp.ne.s32.totalorder %s25, %s41
      %p43 = scmp.eq.s32.totalorder %s17, 0
      %p44 = por %p42, %p43
      %s46 = sadd.s32 %s45, 1
      %p49 = scmp.eq.s32.totalorder %s11, 1
      %p50 = scmp.ne.s32.totalorder %s45, %s47
      %p51 = scmp.eq.s32.totalorder %s11, 0
      %p52 = por %p50, %p51
      %p53 = scmp.ne.s32.totalorder %s45, %s47
      %p54 = scmp.eq.s32.totalorder %s16, 1
      %p55 = por %p53, %p54
      %p56 = scmp.ne.s32.totalorder %s47, %s48
      %p57 = scmp.eq.s32.totalorder %s16, 0
      %p58 = por %p56, %p57
      %p59 = scmp.ne.s32.totalorder %s47, %s48
      %p60 = scmp.eq.s32.totalorder %s17, 1
      %p61 = por %p59, %p60
      %p63 = scmp.ne.s32.totalorder %s48, %s62
      %p64 = scmp.eq.s32.totalorder %s17, 0
      %p65 = por %p63, %p64
      %s67 = sadd.s32 %s66, 1
      %p70 = scmp.eq.s32.totalorder %s11, 1
      %p71 = scmp.ne.s32.totalorder %s66, %s68
      %p72 = scmp.eq.s32.totalorder %s11, 0
      %p73 = por %p71, %p72
      %p74 = scmp.ne.s32.totalorder %s66, %s68
      %p75 = scmp.eq.s32.totalorder %s16, 1
      %p76 = por %p74, %p75
      %p77 = scmp.ne.s32.totalorder %s68, %s69
      %p78 = scmp.eq.s32.totalorder %s16, 0
      %p79 = por %p77, %p78
      %p80 = scmp.ne.s32.totalorder %s68, %s69
      %p81 = scmp.eq.s32.totalorder %s17, 1
      %p82 = por %p80, %p81
      %p84 = scmp.ne.s32.totalorder %s69, %s83
      %p85 = scmp.eq.s32.totalorder %s17, 0
      %p86 = por %p84, %p85
      %s87 = ssub.s32 %s11, %s18
      %p88 = scmp.eq.s32.totalorder %s87, 0
      %s90 = sadd.s32 %s89, 1
      %s91 = scalar_select %p88, %s89, %s90
      %p94 = pneg %p88
      %p95 = scmp.eq.s32.totalorder %s11, 1
      %p96 = por %p94, %p95
      %p97 = scmp.ne.s32.totalorder %s89, %s92
      %p98 = scmp.eq.s32.totalorder %s11, 0
      %p99 = por %p97, %p98
      %p100 = scmp.ne.s32.totalorder %s89, %s92
      %p101 = scmp.eq.s32.totalorder %s16, 1
      %p102 = por %p100, %p101
      %p103 = scmp.ne.s32.totalorder %s92, %s93
      %p104 = scmp.eq.s32.totalorder %s16, 0
      %p105 = por %p103, %p104
      %p106 = scmp.ne.s32.totalorder %s92, %s93
      %p107 = scmp.eq.s32.totalorder %s17, 1
      %p108 = por %p106, %p107
      %p110 = scmp.ne.s32.totalorder %s93, %s109
      %p111 = scmp.eq.s32.totalorder %s17, 0
      %p112 = por %p110, %p111
      %s114 = sadd.s32 %s113, 1
      %p117 = scmp.eq.s32.totalorder %s11, 1
      %p118 = scmp.ne.s32.totalorder %s113, %s115
      %p119 = scmp.eq.s32.totalorder %s11, 0
      %p120 = por %p118, %p119
      %p121 = scmp.ne.s32.totalorder %s113, %s115
      %p122 = scmp.eq.s32.totalorder %s16, 1
      %p123 = por %p121, %p122
      %p124 = scmp.ne.s32.totalorder %s115, %s116
      %p125 = scmp.eq.s32.totalorder %s16, 0
      %p126 = por %p124, %p125
      %p127 = scmp.ne.s32.totalorder %s115, %s116
      %p128 = scmp.eq.s32.totalorder %s17, 1
      %p129 = por %p127, %p128
      %p131 = scmp.ne.s32.totalorder %s116, %s130
      %p132 = scmp.eq.s32.totalorder %s17, 0
      %p133 = por %p131, %p132
      %p134 = scmp.le.s32.totalorder 1, %s11
      %p135 = scmp.lt.s32.totalorder %s11, 3
      %p136 = pnand %p134, %p135
      %p137 = pneg %p136
      // Predicated region
      $region9: #{language_model_forward.3} parent=5 // pred_check
        _
      $region10: #{language_model_forward.3} parent=5 // pred_check_branch
        %139 = sbr.rel (%p136) target = $region12
      $region11: #{language_model_forward.3} parent=5 // pred_region
        %s140 = ssub.s32 %s11, 1
        // Predicated region
        $region13: #{language_model_forward.3} parent=11 // pred_check
          %p141 = pneg %p58
        $region14: #{language_model_forward.3} parent=11 // pred_check_branch
          %143 = sbr.rel (%p141) target = $region16
        $region15: #{language_model_forward.3} parent=11 // pred_region
          _
        $region16: #{language_model_forward.3} parent=11 // pred_fallthru
          _
        // Predicated region
        $region17: #{language_model_forward.3} parent=11 // pred_check
          %p144 = pneg %p79
        $region18: #{language_model_forward.3} parent=11 // pred_check_branch
          %146 = sbr.rel (%p144) target = $region20
        $region19: #{language_model_forward.3} parent=11 // pred_region
          _
        $region20: #{language_model_forward.3} parent=11 // pred_fallthru
          _
      $region12: #{language_model_forward.3} parent=5 // pred_fallthru
        _
      %p147 = scmp.lt.s32.totalorder %s11, 2
      // Predicated region
      $region21: #{language_model_forward.3} parent=5 // pred_check
        %p148 = pneg %p147
      $region22: #{language_model_forward.3} parent=5 // pred_check_branch
        %150 = sbr.rel (%p148) target = $region24
      $region23: #{language_model_forward.3} parent=5 // pred_region
        // Predicated region
        $region25: #{language_model_forward.3} parent=23 // pred_check
          %p151 = pneg %p31
        $region26: #{language_model_forward.3} parent=23 // pred_check_branch
          %153 = sbr.rel (%p151) target = $region28
        $region27: #{language_model_forward.3} parent=23 // pred_region
          %s154 = smul.u32 4, %s11
          %p155 = scmp.lt.s32.totalorder %s154, 7
          %s156 = scalar_select %p155, %s154, 7
          %s157 = smul.addr %s156, 4
          %s158 = scalar_lea.vmem %s0, %s157
          %s159 = smul.u32 4, %s11
        $region28: #{language_model_forward.3} parent=23 // pred_fallthru
          _
        // Predicated region
        $region29: #{language_model_forward.3} parent=23 // pred_check
          %p160 = pneg %p99
        $region30: #{language_model_forward.3} parent=23 // pred_check_branch
          %162 = sbr.rel (%p160) target = $region32
        $region31: #{language_model_forward.3} parent=23 // pred_region
          %s163 = smul.u32 4, %s11
          %p164 = scmp.lt.s32.totalorder %s163, 7
          %s165 = scalar_select %p164, %s163, 7
          %s166 = smul.addr %s165, 8
          %s167 = scalar_lea.vmem %s3, %s166
          %s168 = smul.u32 4, %s11
        $region32: #{language_model_forward.3} parent=23 // pred_fallthru
          _
      $region24: #{language_model_forward.3} parent=5 // pred_fallthru
        _
      %p169 = scmp.le.s32.totalorder 1, %s11
      %p170 = scmp.lt.s32.totalorder %s11, 3
      %p171 = pnand %p169, %p170
      %p172 = pneg %p171
      // Predicated region
      $region33: #{language_model_forward.3} parent=5 // pred_check
        _
      $region34: #{language_model_forward.3} parent=5 // pred_check_branch
        %174 = sbr.rel (%p171) target = $region36
      $region35: #{language_model_forward.3} parent=5 // pred_region
        %s175 = ssub.s32 %s11, 1
        %s176 = smul.u32 4, %s16
        %p177 = scmp.lt.s32.totalorder %s176, 7
        %s178 = scalar_select %p177, %s176, 7
        %s179 = smul.addr %s178, 4
        %s180 = scalar_lea.vmem %s0, %s179
        %p181 = pneg %p37
        %p182 = pneg %p34
        %p183 = pneg %p58
        %p184 = pneg %p55
        %p185 = pneg %p79
        %p186 = pneg %p76
        %s187 = smul.u32 4, %s16
        %p188 = scmp.lt.s32.totalorder %s187, 7
        %s189 = scalar_select %p188, %s187, 7
        %s190 = smul.addr %s189, 8
        %s191 = scalar_lea.vmem %s3, %s190
        %p192 = pneg %p105
        %p193 = pneg %p102
        %p194 = pneg %p126
        %p195 = pneg %p123
        %s196 = smul.u32 4, %s16
        %p197 = scmp.lt.s32.totalorder %s196, 7
        %s198 = scalar_select %p197, %s196, 7
        %s199 = smul.addr %s198, 4
        %s200 = scalar_lea.vmem %s0, %s199
        %s201 = smul.u32 4, %s16
        %s202 = smul.u32 4, %s16
        %p203 = scmp.lt.s32.totalorder %s202, 7
        %s204 = scalar_select %p203, %s202, 7
        %s205 = smul.addr %s204, 8
        %s206 = scalar_lea.vmem %s3, %s205
        %s207 = smul.u32 4, %s16
        %p209 = scmp.eq.s32.totalorder %s16, 0
        // Predicated region
        $region37: #{language_model_forward.3} parent=35 // pred_check
          %p210 = pneg %p209
        $region38: #{language_model_forward.3} parent=35 // pred_check_branch
          %212 = sbr.rel (%p210) target = $region40
        $region39: #{language_model_forward.3} parent=35 // pred_region
          %vm213 = vcmask 0
          %214 = vst.msk [vmem:[#allocation2] sm:$0x1] %vm213, 0.0
          %215 = vst.msk [vmem:[#allocation3] sm:$0x1] %vm213, 0.0
        $region40: #{language_model_forward.3} parent=35 // pred_fallthru
          _
        %v216 = vld [vmem:[%s200] sm:$0xf]
        %v217 = vld [vmem:[%s200 + $0x4] sm:$0xf]
        %v218 = vld [vmem:[%s200 + $0x8] sm:$0xf]
        %v219 = vld [vmem:[%s200 + $0xc] sm:$0xf]
        %v220 = vld [vmem:[%s1] sm:$0xff]
        %v221 = vld [vmem:[%s1 + $0x8] sm:$0xff]
        %v222 = vld [vmem:[%s1 + $0x10] sm:$0xff]
        %v223 = vld [vmem:[%s1 + $0x18] sm:$0xff]
        %v224 = vld [vmem:[%s1 + $0x20] sm:$0xff]
        %v225 = vld [vmem:[%s1 + $0x28] sm:$0xff]
        %v226 = vld [vmem:[%s1 + $0x30] sm:$0xff]
        %v227 = vld [vmem:[%s1 + $0x38] sm:$0xff]
        %v228 = vld [vmem:[%s1 + $0x40] sm:$0xff]
        %v229 = vld [vmem:[%s1 + $0x48] sm:$0xff]
        %v230 = vld [vmem:[%s1 + $0x50] sm:$0xff]
        %v231 = vld [vmem:[%s1 + $0x58] sm:$0xff]
        %v232 = vld [vmem:[%s1 + $0x60] sm:$0xff]
        %v233 = vld [vmem:[%s1 + $0x68] sm:$0xff]
        %v234 = vld [vmem:[%s1 + $0x70] sm:$0xff]
        %v235 = vld [vmem:[%s1 + $0x78] sm:$0xff]
        %v236 = vld [vmem:[%s2] sm:$0x3]
        %v238 = vlaneseq
        %v239 = vshrl.u32 %v238, 7
        %v240 = vsub.s32 0, %v239
        %v241 = vrot.slane %v236, %v240
        %v242 = vlaneseq
        %v243 = vshrl.u32 %v242, 7
        %v244 = vsub.s32 1, %v243
        %v245 = vrot.slane %v236, %v244
        %v252 = vunpack.c.l.b16 %v216
        %v253 = vunpack.c.l.b16 %v217
        %v254 = vunpack.c.l.b16 %v218
        %v255 = vunpack.c.l.b16 %v219
        %v256 = vpack.c.b16 %v253, %v252
        %v257 = vpack.c.b16 %v255, %v254
        %v276 = vunpack.c.l.b16 %v220
        %v277 = vunpack.c.h.b16 %v220
        %v278 = vunpack.c.l.b16 %v221
        %v279 = vunpack.c.h.b16 %v221
        %v280 = vunpack.c.l.b16 %v222
        %v281 = vunpack.c.h.b16 %v222
        %v282 = vunpack.c.l.b16 %v223
        %v283 = vunpack.c.h.b16 %v223
        %v284 = vunpack.c.l.b16 %v224
        %v285 = vunpack.c.h.b16 %v224
        %v286 = vunpack.c.l.b16 %v225
        %v287 = vunpack.c.h.b16 %v225
        %v288 = vunpack.c.l.b16 %v226
        %v289 = vunpack.c.h.b16 %v226
        %v290 = vunpack.c.l.b16 %v227
        %v291 = vunpack.c.h.b16 %v227
        %v292 = vunpack.c.l.b16 %v228
        %v293 = vunpack.c.h.b16 %v228
        %v294 = vunpack.c.l.b16 %v229
        %v295 = vunpack.c.h.b16 %v229
        %v296 = vunpack.c.l.b16 %v230
        %v297 = vunpack.c.h.b16 %v230
        %v298 = vunpack.c.l.b16 %v231
        %v299 = vunpack.c.h.b16 %v231
        %v300 = vunpack.c.l.b16 %v232
        %v301 = vunpack.c.h.b16 %v232
        %v302 = vunpack.c.l.b16 %v233
        %v303 = vunpack.c.h.b16 %v233
        %v304 = vunpack.c.l.b16 %v234
        %v305 = vunpack.c.h.b16 %v234
        %v306 = vunpack.c.l.b16 %v235
        %v307 = vunpack.c.h.b16 %v235
        %v308 = vpack.c.b16 %v278, %v276
        %v309 = vpack.c.b16 %v279, %v277
        %v310 = vpack.c.b16 %v282, %v280
        %v311 = vpack.c.b16 %v283, %v281
        %v312 = vpack.c.b16 %v286, %v284
        %v313 = vpack.c.b16 %v287, %v285
        %v314 = vpack.c.b16 %v290, %v288
        %v315 = vpack.c.b16 %v291, %v289
        %v316 = vpack.c.b16 %v294, %v292
        %v317 = vpack.c.b16 %v295, %v293
        %v318 = vpack.c.b16 %v298, %v296
        %v319 = vpack.c.b16 %v299, %v297
        %v320 = vpack.c.b16 %v302, %v300
        %v321 = vpack.c.b16 %v303, %v301
        %v322 = vpack.c.b16 %v306, %v304
        %v323 = vpack.c.b16 %v307, %v305
        %340 = vmatprep.subr.bf16.mxu0 %v309
        %341 = vmatpush1.bf16.msra.mxu0 %v308
        %342 = vmatprep.subr.bf16.mxu0 %v311
        %343 = vmatpush1.bf16.msra.mxu0 %v310
        %344 = vmatprep.subr.bf16.mxu0 %v313
        %345 = vmatpush1.bf16.msra.mxu0 %v312
        %346 = vmatprep.subr.bf16.mxu0 %v315
        %347 = vmatpush1.bf16.msra.mxu0 %v314
        %348 = vmatprep.subr.bf16.mxu0 %v317
        %349 = vmatpush1.bf16.msra.mxu0 %v316
        %350 = vmatprep.subr.bf16.mxu0 %v319
        %351 = vmatpush1.bf16.msra.mxu0 %v318
        %352 = vmatprep.subr.bf16.mxu0 %v321
        %353 = vmatpush1.bf16.msra.mxu0 %v320
        %354 = vmatprep.subr.bf16.mxu0 %v323
        %355 = vmatpush1.bf16.msra.mxu0 %v322
        %356 = vmatprep.subr.bf16.mxu0 0
        %357 = vmatpush1.bf16.msra.mxu0 0
        %358 = vmatprep.subr.bf16.mxu0 0
        %359 = vmatpush1.bf16.msra.mxu0 0
        %360 = vmatprep.subr.bf16.mxu0 0
        %361 = vmatpush1.bf16.msra.mxu0 0
        %362 = vmatprep.subr.bf16.mxu0 0
        %363 = vmatpush1.bf16.msra.mxu0 0
        %364 = vmatprep.subr.bf16.mxu0 0
        %365 = vmatpush1.bf16.msra.mxu0 0
        %366 = vmatprep.subr.bf16.mxu0 0
        %367 = vmatpush1.bf16.msra.mxu0 0
        %368 = vmatprep.subr.bf16.mxu0 0
        %369 = vmatpush1.bf16.msra.mxu0 0
        %370 = vmatprep.subr.bf16.mxu0 0
        %371 = vmatpush1.bf16.msra.mxu0 0
        %372 = vmatprep.mubr.bf16.mxu0 0
        %373 = vmatmul.mubr.bf16.gmra.mrb[0].mxu0 %v256
        %v374 = vpop.f32.mrb[0].mxu0
        %v375 = vadd.f32 %v241, %v374
        %v376 = vpop.f32.mrb[0].mxu0
        %v377 = vadd.f32 %v245, %v376
        %v378 = vpop.f32.mrb[0].mxu0
        %v379 = vadd.f32 %v241, %v378
        %v380 = vpop.f32.mrb[0].mxu0
        %v381 = vadd.f32 %v245, %v380
        %382 = vmatprep.mubr.bf16.mxu0 0
        %383 = vmatmul.mubr.bf16.gmra.mrb[0].mxu0 %v257
        %v384 = vpop.f32.mrb[0].mxu0
        %v385 = vadd.f32 %v241, %v384
        %v386 = vpop.f32.mrb[0].mxu0
        %v387 = vadd.f32 %v245, %v386
        %v388 = vpop.f32.mrb[0].mxu0
        %v389 = vadd.f32 %v241, %v388
        %v390 = vpop.f32.mrb[0].mxu0
        %v391 = vadd.f32 %v245, %v390
        %392 = vdwg.mxu0
        %v393 = vmax.f32 %v375, %v377
        %394 = vmax.xlane.f32.xlu0 %v393
        %v395 = vpop.xlane.xlu0 %394
        %v396 = vmax.f32 %v379, %v381
        %397 = vmax.xlane.f32.xlu0 %v396
        %v398 = vpop.xlane.xlu0 %397
        %v399 = vmax.f32 %v385, %v387
        %400 = vmax.xlane.f32.xlu0 %v399
        %v401 = vpop.xlane.xlu0 %400
        %v402 = vmax.f32 %v389, %v391
        %403 = vmax.xlane.f32.xlu0 %v402
        %v404 = vpop.xlane.xlu0 %403
        %v405 = vsub.f32 %v375, %v395
        %v406 = vsub.f32 %v377, %v395
        %v407 = vsub.f32 %v379, %v398
        %v408 = vsub.f32 %v381, %v398
        %v409 = vsub.f32 %v385, %v401
        %v410 = vsub.f32 %v387, %v401
        %v411 = vsub.f32 %v389, %v404
        %v412 = vsub.f32 %v391, %v404
        %v413 = vmul.f32 %v405, 1.442695
        %v414 = vpow.pop %v413
        %v415 = vmul.f32 %v406, 1.442695
        %v416 = vpow.pop %v415
        %v417 = vmul.f32 %v407, 1.442695
        %v418 = vpow.pop %v417
        %v419 = vmul.f32 %v408, 1.442695
        %v420 = vpow.pop %v419
        %v421 = vmul.f32 %v409, 1.442695
        %v422 = vpow.pop %v421
        %v423 = vmul.f32 %v410, 1.442695
        %v424 = vpow.pop %v423
        %v425 = vmul.f32 %v411, 1.442695
        %v426 = vpow.pop %v425
        %v427 = vmul.f32 %v412, 1.442695
        %v428 = vpow.pop %v427
        %v429 = vadd.f32 %v414, %v416
        %430 = vadd.xlane.f32.xlu0 %v429
        %v431 = vpop.xlane.xlu0 %430
        %v432 = vadd.f32 %v418, %v420
        %433 = vadd.xlane.f32.xlu0 %v432
        %v434 = vpop.xlane.xlu0 %433
        %v435 = vadd.f32 %v422, %v424
        %436 = vadd.xlane.f32.xlu0 %v435
        %v437 = vpop.xlane.xlu0 %436
        %v438 = vadd.f32 %v426, %v428
        %439 = vadd.xlane.f32.xlu0 %v438
        %v440 = vpop.xlane.xlu0 %439
        %v441 = vlog2.pop %v431
        %v442 = vmul.f32 %v441, 0.6931472
        %v443 = vlog2.pop %v434
        %v444 = vmul.f32 %v443, 0.6931472
        %v445 = vlog2.pop %v437
        %v446 = vmul.f32 %v445, 0.6931472
        %v447 = vlog2.pop %v440
        %v448 = vmul.f32 %v447, 0.6931472
        %v449 = vadd.f32 %v442, %v395
        %v450 = vadd.f32 %v444, %v398
        %v451 = vadd.f32 %v446, %v401
        %v452 = vadd.f32 %v448, %v404
        %v453 = vld [vmem:[%s206] sm:$0xff]
        %v454 = vld [vmem:[%s206 + $0x8] sm:$0xff]
        %v455 = vld [vmem:[%s206 + $0x10] sm:$0xff]
        %v456 = vld [vmem:[%s206 + $0x18] sm:$0xff]
        %v457 = vlaneseq
        %v458 = vand.u32 %v457, 127
        %v459 = vadd.s32 %v458, 128
        %460 = vset.pattern.permute.xlu0 0
        %461 = vperm.xlu0 %460, %v453
        %v462 = vpop.permute.xlu0 %461
        %463 = vset.pattern.permute.xlu0 0
        %464 = vperm.xlu0 %463, %v454
        %v465 = vpop.permute.xlu0 %464
        %466 = vset.pattern.permute.xlu0 0
        %467 = vperm.xlu0 %466, %v455
        %v468 = vpop.permute.xlu0 %467
        %469 = vset.pattern.permute.xlu0 0
        %470 = vperm.xlu0 %469, %v456
        %v471 = vpop.permute.xlu0 %470
        %vm472 = vcmp.eq.s32.totalorder %v458, %v462
        %vm473 = vcmp.eq.s32.totalorder %v459, %v462
        %vm474 = vcmp.eq.s32.totalorder %v458, %v465
        %vm475 = vcmp.eq.s32.totalorder %v459, %v465
        %vm476 = vcmp.eq.s32.totalorder %v458, %v468
        %vm477 = vcmp.eq.s32.totalorder %v459, %v468
        %vm478 = vcmp.eq.s32.totalorder %v458, %v471
        %vm479 = vcmp.eq.s32.totalorder %v459, %v471
        %v480 = vsel %vm472, %v375, 0.0
        %v481 = vsel %vm473, %v377, 0.0
        %v482 = vsel %vm474, %v379, 0.0
        %v483 = vsel %vm475, %v381, 0.0
        %v484 = vsel %vm476, %v385, 0.0
        %v485 = vsel %vm477, %v387, 0.0
        %v486 = vsel %vm478, %v389, 0.0
        %v487 = vsel %vm479, %v391, 0.0
        %v488 = vadd.f32 %v480, %v481
        %489 = vadd.xlane.f32.xlu0 %v488
        %v490 = vpop.xlane.xlu0 %489
        %v491 = vadd.f32 %v482, %v483
        %492 = vadd.xlane.f32.xlu0 %v491
        %v493 = vpop.xlane.xlu0 %492
        %v494 = vadd.f32 %v484, %v485
        %495 = vadd.xlane.f32.xlu0 %v494
        %v496 = vpop.xlane.xlu0 %495
        %v497 = vadd.f32 %v486, %v487
        %498 = vadd.xlane.f32.xlu0 %v497
        %v499 = vpop.xlane.xlu0 %498
        %v500 = vsub.f32 %v449, %v490
        %v501 = vsub.f32 %v450, %v493
        %v502 = vsub.f32 %v451, %v496
        %v503 = vsub.f32 %v452, %v499
        %vm504 = vcmp.ne.s32.totalorder %v453, 0
        %vm505 = vcmp.ne.s32.totalorder %v454, 0
        %vm506 = vcmp.ne.s32.totalorder %v455, 0
        %vm507 = vcmp.ne.s32.totalorder %v456, 0
        %v508 = vsel %vm504, 1, 0
        %v509 = vsel %vm505, 1, 0
        %v510 = vsel %vm506, 1, 0
        %v511 = vsel %vm507, 1, 0
        %v512 = vcvt.s32.f32 %v508
        %v513 = vcvt.s32.f32 %v509
        %v514 = vcvt.s32.f32 %v510
        %v515 = vcvt.s32.f32 %v511
        %v516 = vld [vmem:[#allocation2] sm:$0x1]
        %v517 = vmul.f32 %v500, %v512
        %v518 = vmul.f32 %v501, %v513
        %v519 = vmul.f32 %v502, %v514
        %v520 = vmul.f32 %v503, %v515
        %vm521 = vcmask 7168
        %v522 = vsel %vm521, %v517, 0.0
        %v523 = vsel %vm521, %v518, 0.0
        %v524 = vadd.f32 %v522, %v523
        %v525 = vsel %vm521, %v519, 0.0
        %v526 = vadd.f32 %v524, %v525
        %v527 = vsel %vm521, %v520, 0.0
        %v528 = vadd.f32 %v526, %v527
        %529 = vadd.xlane.f32.xlu0 %v528
        %v530 = vpop.xlane.xlu0 %529
        %v531 = vrot.slane %v530, 4
        %v532 = vadd.f32 %v530, %v531
        %v533 = vrot.slane %v532, 2
        %v534 = vadd.f32 %v532, %v533
        %v535 = vrot.slane %v534, 1
        %v536 = vadd.f32 %v534, %v535
        %s537 = vtos %v536
        %v538 = vstv %s537
        %v539 = vadd.f32 %v516, %v538
        %vm540 = vcmask 0
        %541 = vst.msk [vmem:[#allocation2] sm:$0x1] %vm540, %v539
        %v542 = vld [vmem:[#allocation3] sm:$0x1]
        %v543 = vsel %vm521, %v512, 0.0
        %v544 = vsel %vm521, %v513, 0.0
        %v545 = vadd.f32 %v543, %v544
        %v546 = vsel %vm521, %v514, 0.0
        %v547 = vadd.f32 %v545, %v546
        %v548 = vsel %vm521, %v515, 0.0
        %v549 = vadd.f32 %v547, %v548
        %550 = vadd.xlane.f32.xlu0 %v549
        %v551 = vpop.xlane.xlu0 %550
        %v552 = vrot.slane %v551, 4
        %v553 = vadd.f32 %v551, %v552
        %v554 = vrot.slane %v553, 2
        %v555 = vadd.f32 %v553, %v554
        %v556 = vrot.slane %v555, 1
        %v557 = vadd.f32 %v555, %v556
        %s558 = vtos %v557
        %v559 = vstv %s558
        %v560 = vadd.f32 %v542, %v559
        %561 = vst.msk [vmem:[#allocation3] sm:$0x1] %vm540, %v560
        %p562 = scmp.eq.s32.totalorder %s16, 1
        // Predicated region
        $region41: #{language_model_forward.3} parent=35 // pred_check
          %p563 = pneg %p562
        $region42: #{language_model_forward.3} parent=35 // pred_check_branch
          %565 = sbr.rel (%p563) target = $region44
        $region43: #{language_model_forward.3} parent=35 // pred_region
          %v566 = vld [vmem:[#allocation2] sm:$0x1]
          %v567 = vld [vmem:[#allocation3] sm:$0x1]
          %vm568 = vcmp.gt.f32.partialorder %v567, 0.0
          %v569 = vmax.f32 %v567, 1.0
          %v570 = vrcp.pop %v569
          %v571 = vmul.f32 %v566, %v570
          %v572 = vsel %vm568, %v571, 0.0
          %573 = vst.msk [vmem:[#allocation4] sm:$0x1] %vm540, %v572
        $region44: #{language_model_forward.3} parent=35 // pred_fallthru
          _
        // Predicated region
        $region45: #{language_model_forward.3} parent=35 // pred_check
          %p574 = pneg %p123
        $region46: #{language_model_forward.3} parent=35 // pred_check_branch
          %576 = sbr.rel (%p574) target = $region48
        $region47: #{language_model_forward.3} parent=35 // pred_region
          %s578 = ssub.s32 16, 16
          %579 = vsyncadd [#allocation5], %s578
          %s581 = sshll.u32 [#allocation4], 4
          %s582 = int_to_ptr.vmem [resolvable:$true] %s581
          %584 = dma.vmem_to_hbm [thread:$0]  %s582, 16, %s4, [#allocation5]
        $region48: #{language_model_forward.3} parent=35 // pred_fallthru
          _
        // Predicated region
        $region49: #{language_model_forward.3} parent=35 // pred_check
          %p585 = pneg %p123
        $region50: #{language_model_forward.3} parent=35 // pred_check_branch
          %587 = sbr.rel (%p585) target = $region52
        $region51: #{language_model_forward.3} parent=35 // pred_region
          %588 = dma.done [#allocation5], 16
        $region52: #{language_model_forward.3} parent=35 // pred_fallthru
          _
      $region36: #{language_model_forward.3} parent=5 // pred_fallthru
        _
      %p589 = scmp.le.s32.totalorder 2, %s11
      // Predicated region
      $region53: #{language_model_forward.3} parent=5 // pred_check
        %p590 = pneg %p589
      $region54: #{language_model_forward.3} parent=5 // pred_check_branch
        %592 = sbr.rel (%p590) target = $region56
      $region55: #{language_model_forward.3} parent=5 // pred_region
        %s593 = ssub.s32 %s11, 2
      $region56: #{language_model_forward.3} parent=5 // pred_fallthru
        _
    $region6: #{language_model_forward.3} parent=1 // loop_footer
      %s15 = sadd.s32 1, %s11
    $region7: #{language_model_forward.3} parent=1 // loop_footer_branch
      %10 = sbr.rel target = $region3
    $region8: #{language_model_forward.3} parent=1 // loop_exit
      _
    %594 = vsyncpa [#allocation5], 1
    %s595 = scalar_lea.sflag [#allocation5], 1
    %596 = vsyncpa %s595, 1

// kernel: language_model_forward.2
$region0: #{language_model_forward.2}
  #allocation0 [shape = 'u32[]', space=smem, size = 0x4, offset = 0x4, fixed_abs, tag = 'smem constant byte address 0x4 - core index']
  #allocation1 [shape = 'u32[144,128]{1,0:T(1,128)}', space=vmem, size = 0x12000, scoped, tag = 'internal scratch']
  #allocation2 [shape = 'f32[64,512]{1,0:T(8,128)}', space=vmem, size = 0x20000, scoped, tag = 'scratch operand']
  #allocation3 [shape = 'bf16[8,256]{1,0:T(8,128)(2,1)}', space=vmem, size = 0x1000, scoped, tag = 'scratch operand']
  #allocation4 [shape = 'f32[8,128]{1,0:T(8,128)}', space=vmem, size = 0x1000, scoped, tag = 'scratch operand']
  #allocation5 [shape = 'f32[8,128]{1,0:T(8,128)}', space=vmem, size = 0x1000, scoped, tag = 'scratch operand']
  %s0 = inlined_call_operand.vmem [shape: bf16[64,128], index: 0, kind: input, shape index: {}]
  %s1 = inlined_call_operand.vmem [shape: bf16[128,512], index: 1, kind: input, shape index: {}]
  %s2 = inlined_call_operand.vmem [shape: f32[1,512], index: 2, kind: input, shape index: {}]
  %s3 = inlined_call_operand.hbm [shape: bf16[256,1024], index: 3, kind: input, shape index: {}]
  %s4 = inlined_call_operand.vmem [shape: f32[1,512], index: 4, kind: input, shape index: {}]
  %s5 = inlined_call_operand.vmem [shape: bf16[64,128], index: 5, kind: output, shape index: {}]
  %s6 = sld [smem:[#allocation0]]
  $region34: #{language_model_forward.2} parent=0
    _
  %s8 = ssub.s32 1, %s6
  %s9 = scalar_select 0, %s8, %s6
  $region1: #{language_model_forward.2} parent=0
    #allocation6 [shape = 'u8[524288]{0}', space=vmem, size = 0x80000, scoped, tag = 'input window, operand 3, single buffered']
    #allocation7 [shape = 's32[1]{0}', space=sflag, size = 0x4, scoped, tag = 'scoped memory for language_model_forward.2']
    %10 = vsyncpa [#allocation7], 0
    // Predicated region
    $region2: #{language_model_forward.2} parent=1 // pred_check
      _
    $region3: #{language_model_forward.2} parent=1 // pred_check_branch
      %12 = sbr.rel (0) target = $region5
    $region4: #{language_model_forward.2} parent=1 // pred_region
      _
    $region5: #{language_model_forward.2} parent=1 // pred_fallthru
      _
    // Predicated region
    $region6: #{language_model_forward.2} parent=1 // pred_check
      _
    $region7: #{language_model_forward.2} parent=1 // pred_check_branch
      %14 = sbr.rel (0) target = $region9
    $region8: #{language_model_forward.2} parent=1 // pred_region
      _
    $region9: #{language_model_forward.2} parent=1 // pred_fallthru
      _
    // Predicated region
    $region10: #{language_model_forward.2} parent=1 // pred_check
      _
    $region11: #{language_model_forward.2} parent=1 // pred_check_branch
      %16 = sbr.rel (0) target = $region13
    $region12: #{language_model_forward.2} parent=1 // pred_region
      _
    $region13: #{language_model_forward.2} parent=1 // pred_fallthru
      _
    // Predicated region
    $region14: #{language_model_forward.2} parent=1 // pred_check
      _
    $region15: #{language_model_forward.2} parent=1 // pred_check_branch
      %18 = sbr.rel (0) target = $region17
    $region16: #{language_model_forward.2} parent=1 // pred_region
      %s20 = ssub.s32 16384, 16384
      %21 = vsyncadd [#allocation7], %s20
      %s22 = sshll.u32 [#allocation6], 4
      %s23 = int_to_ptr.vmem [resolvable:$true] %s22
      %28 = dma.hbm_to_vmem [thread:$0]  %s3, 16384, %s23, [#allocation7], 512, 512, 32
    $region17: #{language_model_forward.2} parent=1 // pred_fallthru
      _
    // Predicated region
    $region18: #{language_model_forward.2} parent=1 // pred_check
      _
    $region19: #{language_model_forward.2} parent=1 // pred_check_branch
      %30 = sbr.rel (0) target = $region21
    $region20: #{language_model_forward.2} parent=1 // pred_region
      _
    $region21: #{language_model_forward.2} parent=1 // pred_fallthru
      _
    // Predicated region
    $region22: #{language_model_forward.2} parent=1 // pred_check
      _
    $region23: #{language_model_forward.2} parent=1 // pred_check_branch
      %32 = sbr.rel (0) target = $region25
    $region24: #{language_model_forward.2} parent=1 // pred_region
      %33 = dma.done [#allocation7], 16384
    $region25: #{language_model_forward.2} parent=1 // pred_fallthru
      _
    %v35 = vld [vmem:[%s0] sm:$0xf]
    %v36 = vld [vmem:[%s0 + $0x4] sm:$0xf]
    %v37 = vld [vmem:[%s0 + $0x8] sm:$0xf]
    %v38 = vld [vmem:[%s0 + $0xc] sm:$0xf]
    %v39 = vld [vmem:[%s0 + $0x10] sm:$0xf]
    %v40 = vld [vmem:[%s0 + $0x14] sm:$0xf]
    %v41 = vld [vmem:[%s0 + $0x18] sm:$0xf]
    %v42 = vld [vmem:[%s0 + $0x1c] sm:$0xf]
    %v43 = vld [vmem:[%s1] sm:$0xff]
    %v44 = vld [vmem:[%s1 + $0x8] sm:$0xff]
    %v45 = vld [vmem:[%s1 + $0x10] sm:$0xff]
    %v46 = vld [vmem:[%s1 + $0x18] sm:$0xff]
    %v47 = vld [vmem:[%s1 + $0x20] sm:$0xff]
    %v48 = vld [vmem:[%s1 + $0x28] sm:$0xff]
    %v49 = vld [vmem:[%s1 + $0x30] sm:$0xff]
    %v50 = vld [vmem:[%s1 + $0x38] sm:$0xff]
    %v51 = vld [vmem:[%s1 + $0x40] sm:$0xff]
    %v52 = vld [vmem:[%s1 + $0x48] sm:$0xff]
    %v53 = vld [vmem:[%s1 + $0x50] sm:$0xff]
    %v54 = vld [vmem:[%s1 + $0x58] sm:$0xff]
    %v55 = vld [vmem:[%s1 + $0x60] sm:$0xff]
    %v56 = vld [vmem:[%s1 + $0x68] sm:$0xff]
    %v57 = vld [vmem:[%s1 + $0x70] sm:$0xff]
    %v58 = vld [vmem:[%s1 + $0x78] sm:$0xff]
    %v59 = vld [vmem:[%s1 + $0x80] sm:$0xff]
    %v60 = vld [vmem:[%s1 + $0x88] sm:$0xff]
    %v61 = vld [vmem:[%s1 + $0x90] sm:$0xff]
    %v62 = vld [vmem:[%s1 + $0x98] sm:$0xff]
    %v63 = vld [vmem:[%s1 + $0xa0] sm:$0xff]
    %v64 = vld [vmem:[%s1 + $0xa8] sm:$0xff]
    %v65 = vld [vmem:[%s1 + $0xb0] sm:$0xff]
    %v66 = vld [vmem:[%s1 + $0xb8] sm:$0xff]
    %v67 = vld [vmem:[%s1 + $0xc0] sm:$0xff]
    %v68 = vld [vmem:[%s1 + $0xc8] sm:$0xff]
    %v69 = vld [vmem:[%s1 + $0xd0] sm:$0xff]
    %v70 = vld [vmem:[%s1 + $0xd8] sm:$0xff]
    %v71 = vld [vmem:[%s1 + $0xe0] sm:$0xff]
    %v72 = vld [vmem:[%s1 + $0xe8] sm:$0xff]
    %v73 = vld [vmem:[%s1 + $0xf0] sm:$0xff]
    %v74 = vld [vmem:[%s1 + $0xf8] sm:$0xff]
    %v75 = vld [vmem:[%s2] sm:$0xf]
    %v77 = vlaneseq
    %v78 = vshrl.u32 %v77, 7
    %v79 = vsub.s32 0, %v78
    %v80 = vrot.slane %v75, %v79
    %v81 = vlaneseq
    %v82 = vshrl.u32 %v81, 7
    %v83 = vsub.s32 1, %v82
    %v84 = vrot.slane %v75, %v83
    %v85 = vlaneseq
    %v86 = vshrl.u32 %v85, 7
    %v87 = vsub.s32 2, %v86
    %v88 = vrot.slane %v75, %v87
    %v89 = vlaneseq
    %v90 = vshrl.u32 %v89, 7
    %v91 = vsub.s32 3, %v90
    %v92 = vrot.slane %v75, %v91
    %v105 = vunpack.c.l.b16 %v35
    %v106 = vunpack.c.l.b16 %v36
    %v107 = vunpack.c.l.b16 %v37
    %v108 = vunpack.c.l.b16 %v38
    %v109 = vunpack.c.l.b16 %v39
    %v110 = vunpack.c.l.b16 %v40
    %v111 = vunpack.c.l.b16 %v41
    %v112 = vunpack.c.l.b16 %v42
    %v113 = vpack.c.b16 %v106, %v105
    %v114 = vpack.c.b16 %v108, %v107
    %v115 = vpack.c.b16 %v110, %v109
    %v116 = vpack.c.b16 %v112, %v111
    %v153 = vunpack.c.l.b16 %v43
    %v154 = vunpack.c.h.b16 %v43
    %v155 = vunpack.c.l.b16 %v44
    %v156 = vunpack.c.h.b16 %v44
    %v157 = vunpack.c.l.b16 %v45
    %v158 = vunpack.c.h.b16 %v45
    %v159 = vunpack.c.l.b16 %v46
    %v160 = vunpack.c.h.b16 %v46
    %v161 = vunpack.c.l.b16 %v47
    %v162 = vunpack.c.h.b16 %v47
    %v163 = vunpack.c.l.b16 %v48
    %v164 = vunpack.c.h.b16 %v48
    %v165 = vunpack.c.l.b16 %v49
    %v166 = vunpack.c.h.b16 %v49
    %v167 = vunpack.c.l.b16 %v50
    %v168 = vunpack.c.h.b16 %v50
    %v169 = vunpack.c.l.b16 %v51
    %v170 = vunpack.c.h.b16 %v51
    %v171 = vunpack.c.l.b16 %v52
    %v172 = vunpack.c.h.b16 %v52
    %v173 = vunpack.c.l.b16 %v53
    %v174 = vunpack.c.h.b16 %v53
    %v175 = vunpack.c.l.b16 %v54
    %v176 = vunpack.c.h.b16 %v54
    %v177 = vunpack.c.l.b16 %v55
    %v178 = vunpack.c.h.b16 %v55
    %v179 = vunpack.c.l.b16 %v56
    %v180 = vunpack.c.h.b16 %v56
    %v181 = vunpack.c.l.b16 %v57
    %v182 = vunpack.c.h.b16 %v57
    %v183 = vunpack.c.l.b16 %v58
    %v184 = vunpack.c.h.b16 %v58
    %v185 = vunpack.c.l.b16 %v59
    %v186 = vunpack.c.h.b16 %v59
    %v187 = vunpack.c.l.b16 %v60
    %v188 = vunpack.c.h.b16 %v60
    %v189 = vunpack.c.l.b16 %v61
    %v190 = vunpack.c.h.b16 %v61
    %v191 = vunpack.c.l.b16 %v62
    %v192 = vunpack.c.h.b16 %v62
    %v193 = vunpack.c.l.b16 %v63
    %v194 = vunpack.c.h.b16 %v63
    %v195 = vunpack.c.l.b16 %v64
    %v196 = vunpack.c.h.b16 %v64
    %v197 = vunpack.c.l.b16 %v65
    %v198 = vunpack.c.h.b16 %v65
    %v199 = vunpack.c.l.b16 %v66
    %v200 = vunpack.c.h.b16 %v66
    %v201 = vunpack.c.l.b16 %v67
    %v202 = vunpack.c.h.b16 %v67
    %v203 = vunpack.c.l.b16 %v68
    %v204 = vunpack.c.h.b16 %v68
    %v205 = vunpack.c.l.b16 %v69
    %v206 = vunpack.c.h.b16 %v69
    %v207 = vunpack.c.l.b16 %v70
    %v208 = vunpack.c.h.b16 %v70
    %v209 = vunpack.c.l.b16 %v71
    %v210 = vunpack.c.h.b16 %v71
    %v211 = vunpack.c.l.b16 %v72
    %v212 = vunpack.c.h.b16 %v72
    %v213 = vunpack.c.l.b16 %v73
    %v214 = vunpack.c.h.b16 %v73
    %v215 = vunpack.c.l.b16 %v74
    %v216 = vunpack.c.h.b16 %v74
    %v217 = vpack.c.b16 %v157, %v153
    %v218 = vpack.c.b16 %v158, %v154
    %v219 = vpack.c.b16 %v159, %v155
    %v220 = vpack.c.b16 %v160, %v156
    %v221 = vpack.c.b16 %v165, %v161
    %v222 = vpack.c.b16 %v166, %v162
    %v223 = vpack.c.b16 %v167, %v163
    %v224 = vpack.c.b16 %v168, %v164
    %v225 = vpack.c.b16 %v173, %v169
    %v226 = vpack.c.b16 %v174, %v170
    %v227 = vpack.c.b16 %v175, %v171
    %v228 = vpack.c.b16 %v176, %v172
    %v229 = vpack.c.b16 %v181, %v177
    %v230 = vpack.c.b16 %v182, %v178
    %v231 = vpack.c.b16 %v183, %v179
    %v232 = vpack.c.b16 %v184, %v180
    %v233 = vpack.c.b16 %v189, %v185
    %v234 = vpack.c.b16 %v190, %v186
    %v235 = vpack.c.b16 %v191, %v187
    %v236 = vpack.c.b16 %v192, %v188
    %v237 = vpack.c.b16 %v197, %v193
    %v238 = vpack.c.b16 %v198, %v194
    %v239 = vpack.c.b16 %v199, %v195
    %v240 = vpack.c.b16 %v200, %v196
    %v241 = vpack.c.b16 %v205, %v201
    %v242 = vpack.c.b16 %v206, %v202
    %v243 = vpack.c.b16 %v207, %v203
    %v244 = vpack.c.b16 %v208, %v204
    %v245 = vpack.c.b16 %v213, %v209
    %v246 = vpack.c.b16 %v214, %v210
    %v247 = vpack.c.b16 %v215, %v211
    %v248 = vpack.c.b16 %v216, %v212
    %281 = vmatprep.subr.bf16.mxu0 %v218
    %282 = vmatpush1.bf16.msra.mxu0 %v217
    %283 = vmatprep.subr.bf16.mxu0 %v222
    %284 = vmatpush1.bf16.msra.mxu0 %v221
    %285 = vmatprep.subr.bf16.mxu0 %v226
    %286 = vmatpush1.bf16.msra.mxu0 %v225
    %287 = vmatprep.subr.bf16.mxu0 %v230
    %288 = vmatpush1.bf16.msra.mxu0 %v229
    %289 = vmatprep.subr.bf16.mxu0 %v234
    %290 = vmatpush1.bf16.msra.mxu0 %v233
    %291 = vmatprep.subr.bf16.mxu0 %v238
    %292 = vmatpush1.bf16.msra.mxu0 %v237
    %293 = vmatprep.subr.bf16.mxu0 %v242
    %294 = vmatpush1.bf16.msra.mxu0 %v241
    %295 = vmatprep.subr.bf16.mxu0 %v246
    %296 = vmatpush1.bf16.msra.mxu0 %v245
    %297 = vmatprep.subr.bf16.mxu0 0
    %298 = vmatpush1.bf16.msra.mxu0 0
    %299 = vmatprep.subr.bf16.mxu0 0
    %300 = vmatpush1.bf16.msra.mxu0 0
    %301 = vmatprep.subr.bf16.mxu0 0
    %302 = vmatpush1.bf16.msra.mxu0 0
    %303 = vmatprep.subr.bf16.mxu0 0
    %304 = vmatpush1.bf16.msra.mxu0 0
    %305 = vmatprep.subr.bf16.mxu0 0
    %306 = vmatpush1.bf16.msra.mxu0 0
    %307 = vmatprep.subr.bf16.mxu0 0
    %308 = vmatpush1.bf16.msra.mxu0 0
    %309 = vmatprep.subr.bf16.mxu0 0
    %310 = vmatpush1.bf16.msra.mxu0 0
    %311 = vmatprep.subr.bf16.mxu0 0
    %312 = vmatpush1.bf16.msra.mxu0 0
    %313 = vmatprep.mubr.bf16.mxu0 0
    %314 = vmatmul.mubr.bf16.gmra.mrb[0].mxu0 %v113
    %v315 = vpop.f32.mrb[0].mxu0
    %v316 = vadd.f32 %v80, %v315
    %v317 = vpop.f32.mrb[0].mxu0
    %v318 = vadd.f32 %v84, %v317
    %v319 = vpop.f32.mrb[0].mxu0
    %v320 = vadd.f32 %v80, %v319
    %v321 = vpop.f32.mrb[0].mxu0
    %v322 = vadd.f32 %v84, %v321
    %323 = vmatprep.mubr.bf16.mxu0 0
    %324 = vmatmul.mubr.bf16.gmra.mrb[0].mxu0 %v114
    %v325 = vpop.f32.mrb[0].mxu0
    %v326 = vadd.f32 %v80, %v325
    %v327 = vpop.f32.mrb[0].mxu0
    %v328 = vadd.f32 %v84, %v327
    %v329 = vpop.f32.mrb[0].mxu0
    %v330 = vadd.f32 %v80, %v329
    %v331 = vpop.f32.mrb[0].mxu0
    %v332 = vadd.f32 %v84, %v331
    %333 = vmatprep.mubr.bf16.mxu0 0
    %334 = vmatmul.mubr.bf16.gmra.mrb[0].mxu0 %v115
    %v335 = vpop.f32.mrb[0].mxu0
    %v336 = vadd.f32 %v80, %v335
    %v337 = vpop.f32.mrb[0].mxu0
    %v338 = vadd.f32 %v84, %v337
    %v339 = vpop.f32.mrb[0].mxu0
    %v340 = vadd.f32 %v80, %v339
    %v341 = vpop.f32.mrb[0].mxu0
    %v342 = vadd.f32 %v84, %v341
    %343 = vmatprep.mubr.bf16.mxu0 0
    %344 = vmatmul.mubr.bf16.gmra.mrb[0].mxu0 %v116
    %v345 = vpop.f32.mrb[0].mxu0
    %v346 = vadd.f32 %v80, %v345
    %v347 = vpop.f32.mrb[0].mxu0
    %v348 = vadd.f32 %v84, %v347
    %v349 = vpop.f32.mrb[0].mxu0
    %v350 = vadd.f32 %v80, %v349
    %v351 = vpop.f32.mrb[0].mxu0
    %v352 = vadd.f32 %v84, %v351
    %353 = vdwg.mxu0
    %354 = vmatprep.subr.bf16.mxu0 %v220
    %355 = vmatpush1.bf16.msra.mxu0 %v219
    %356 = vmatprep.subr.bf16.mxu0 %v224
    %357 = vmatpush1.bf16.msra.mxu0 %v223
    %358 = vmatprep.subr.bf16.mxu0 %v228
    %359 = vmatpush1.bf16.msra.mxu0 %v227
    %360 = vmatprep.subr.bf16.mxu0 %v232
    %361 = vmatpush1.bf16.msra.mxu0 %v231
    %362 = vmatprep.subr.bf16.mxu0 %v236
    %363 = vmatpush1.bf16.msra.mxu0 %v235
    %364 = vmatprep.subr.bf16.mxu0 %v240
    %365 = vmatpush1.bf16.msra.mxu0 %v239
    %366 = vmatprep.subr.bf16.mxu0 %v244
    %367 = vmatpush1.bf16.msra.mxu0 %v243
    %368 = vmatprep.subr.bf16.mxu0 %v248
    %369 = vmatpush1.bf16.msra.mxu0 %v247
    %370 = vmatprep.subr.bf16.mxu0 0
    %371 = vmatpush1.bf16.msra.mxu0 0
    %372 = vmatprep.subr.bf16.mxu0 0
    %373 = vmatpush1.bf16.msra.mxu0 0
    %374 = vmatprep.subr.bf16.mxu0 0
    %375 = vmatpush1.bf16.msra.mxu0 0
    %376 = vmatprep.subr.bf16.mxu0 0
    %377 = vmatpush1.bf16.msra.mxu0 0
    %378 = vmatprep.subr.bf16.mxu0 0
    %379 = vmatpush1.bf16.msra.mxu0 0
    %380 = vmatprep.subr.bf16.mxu0 0
    %381 = vmatpush1.bf16.msra.mxu0 0
    %382 = vmatprep.subr.bf16.mxu0 0
    %383 = vmatpush1.bf16.msra.mxu0 0
    %384 = vmatprep.subr.bf16.mxu0 0
    %385 = vmatpush1.bf16.msra.mxu0 0
    %386 = vmatprep.mubr.bf16.mxu0 0
    %387 = vmatmul.mubr.bf16.gmra.mrb[0].mxu0 %v113
    %v388 = vpop.f32.mrb[0].mxu0
    %v389 = vadd.f32 %v88, %v388
    %v390 = vpop.f32.mrb[0].mxu0
    %v391 = vadd.f32 %v92, %v390
    %v392 = vpop.f32.mrb[0].mxu0
    %v393 = vadd.f32 %v88, %v392
    %v394 = vpop.f32.mrb[0].mxu0
    %v395 = vadd.f32 %v92, %v394
    %396 = vmatprep.mubr.bf16.mxu0 0
    %397 = vmatmul.mubr.bf16.gmra.mrb[0].mxu0 %v114
    %v398 = vpop.f32.mrb[0].mxu0
    %v399 = vadd.f32 %v88, %v398
    %v400 = vpop.f32.mrb[0].mxu0
    %v401 = vadd.f32 %v92, %v400
    %v402 = vpop.f32.mrb[0].mxu0
    %v403 = vadd.f32 %v88, %v402
    %v404 = vpop.f32.mrb[0].mxu0
    %v405 = vadd.f32 %v92, %v404
    %406 = vmatprep.mubr.bf16.mxu0 0
    %407 = vmatmul.mubr.bf16.gmra.mrb[0].mxu0 %v115
    %v408 = vpop.f32.mrb[0].mxu0
    %v409 = vadd.f32 %v88, %v408
    %v410 = vpop.f32.mrb[0].mxu0
    %v411 = vadd.f32 %v92, %v410
    %v412 = vpop.f32.mrb[0].mxu0
    %v413 = vadd.f32 %v88, %v412
    %v414 = vpop.f32.mrb[0].mxu0
    %v415 = vadd.f32 %v92, %v414
    %416 = vmatprep.mubr.bf16.mxu0 0
    %417 = vmatmul.mubr.bf16.gmra.mrb[0].mxu0 %v116
    %v418 = vpop.f32.mrb[0].mxu0
    %v419 = vadd.f32 %v88, %v418
    %v420 = vpop.f32.mrb[0].mxu0
    %v421 = vadd.f32 %v92, %v420
    %v422 = vpop.f32.mrb[0].mxu0
    %v423 = vadd.f32 %v88, %v422
    %v424 = vpop.f32.mrb[0].mxu0
    %v425 = vadd.f32 %v92, %v424
    %426 = vdwg.mxu0
    %427 = vst [vmem:[#allocation2] sm:$0xff] %v316
    %428 = vst [vmem:[#allocation2 + $0x8] sm:$0xff] %v318
    %429 = vst [vmem:[#allocation2 + $0x10] sm:$0xff] %v389
    %430 = vst [vmem:[#allocation2 + $0x18] sm:$0xff] %v391
    %431 = vst [vmem:[#allocation2 + $0x20] sm:$0xff] %v320
    %432 = vst [vmem:[#allocation2 + $0x28] sm:$0xff] %v322
    %433 = vst [vmem:[#allocation2 + $0x30] sm:$0xff] %v393
    %434 = vst [vmem:[#allocation2 + $0x38] sm:$0xff] %v395
    %435 = vst [vmem:[#allocation2 + $0x40] sm:$0xff] %v326
    %436 = vst [vmem:[#allocation2 + $0x48] sm:$0xff] %v328
    %437 = vst [vmem:[#allocation2 + $0x50] sm:$0xff] %v399
    %438 = vst [vmem:[#allocation2 + $0x58] sm:$0xff] %v401
    %439 = vst [vmem:[#allocation2 + $0x60] sm:$0xff] %v330
    %440 = vst [vmem:[#allocation2 + $0x68] sm:$0xff] %v332
    %441 = vst [vmem:[#allocation2 + $0x70] sm:$0xff] %v403
    %442 = vst [vmem:[#allocation2 + $0x78] sm:$0xff] %v405
    %443 = vst [vmem:[#allocation2 + $0x80] sm:$0xff] %v336
    %444 = vst [vmem:[#allocation2 + $0x88] sm:$0xff] %v338
    %445 = vst [vmem:[#allocation2 + $0x90] sm:$0xff] %v409
    %446 = vst [vmem:[#allocation2 + $0x98] sm:$0xff] %v411
    %447 = vst [vmem:[#allocation2 + $0xa0] sm:$0xff] %v340
    %448 = vst [vmem:[#allocation2 + $0xa8] sm:$0xff] %v342
    %449 = vst [vmem:[#allocation2 + $0xb0] sm:$0xff] %v413
    %450 = vst [vmem:[#allocation2 + $0xb8] sm:$0xff] %v415
    %451 = vst [vmem:[#allocation2 + $0xc0] sm:$0xff] %v346
    %452 = vst [vmem:[#allocation2 + $0xc8] sm:$0xff] %v348
    %453 = vst [vmem:[#allocation2 + $0xd0] sm:$0xff] %v419
    %454 = vst [vmem:[#allocation2 + $0xd8] sm:$0xff] %v421
    %455 = vst [vmem:[#allocation2 + $0xe0] sm:$0xff] %v350
    %456 = vst [vmem:[#allocation2 + $0xe8] sm:$0xff] %v352
    %457 = vst [vmem:[#allocation2 + $0xf0] sm:$0xff] %v423
    %458 = vst [vmem:[#allocation2 + $0xf8] sm:$0xff] %v425
    %v459 = vld [vmem:[%s4] sm:$0xf]
    %v461 = vlaneseq
    %v462 = vshrl.u32 %v461, 7
    %v463 = vsub.s32 0, %v462
    %v464 = vrot.slane %v459, %v463
    %v465 = vlaneseq
    %v466 = vshrl.u32 %v465, 7
    %v467 = vsub.s32 1, %v466
    %v468 = vrot.slane %v459, %v467
    %v469 = vlaneseq
    %v470 = vshrl.u32 %v469, 7
    %v471 = vsub.s32 2, %v470
    %v472 = vrot.slane %v459, %v471
    %v473 = vlaneseq
    %v474 = vshrl.u32 %v473, 7
    %v475 = vsub.s32 3, %v474
    %v476 = vrot.slane %v459, %v475
    %v481 = vld [vmem:[#allocation2] sm:$0xff]
    %v482 = vld [vmem:[#allocation2 + $0x8] sm:$0xff]
    %v483 = vld [vmem:[#allocation2 + $0x10] sm:$0xff]
    %v484 = vld [vmem:[#allocation2 + $0x18] sm:$0xff]
    %v485 = vxor.u32 %v481, 2147483648
    %v486 = vxor.u32 %v482, 2147483648
    %v487 = vxor.u32 %v483, 2147483648
    %v488 = vmul.f32 %v485, 1.442695
    %v489 = vpow.pop %v488
    %v490 = vmul.f32 %v486, 1.442695
    %v491 = vpow.pop %v490
    %v492 = vmul.f32 %v487, 1.442695
    %v493 = vpow.pop %v492
    %v494 = vadd.f32 %v489, 1.0
    %v495 = vadd.f32 %v491, 1.0
    %v496 = vadd.f32 %v493, 1.0
    %v497 = vrcp.pop %v494
    %v498 = vmul.f32 1.0, %v497
    %v499 = vrcp.pop %v495
    %v500 = vmul.f32 1.0, %v499
    %v501 = vrcp.pop %v496
    %v502 = vmul.f32 1.0, %v501
    %v503 = vtanh.pop %v484
    %v504 = vmul.f32 %v500, 0.0
    %v505 = vmul.f32 %v498, %v503
    %v506 = vadd.f32 %v504, %v505
    %v507 = vtanh.pop %v506
    %v508 = vmul.f32 %v502, %v507
    %509 = vst [vmem:[#allocation4] sm:$0xff] %v506
    %510 = vst [vmem:[#allocation5] sm:$0xff] 0.0
    %v511 = vpack.c.bf16 %v508, %v508
    %512 = vst [vmem:[#allocation3] sm:$0xf] %v511
    %513 = vst [vmem:[#allocation3 + $0x4] sm:$0xf] 0
    %v514 = vld [vmem:[#allocation3] sm:$0xff]
    %v515 = vld [vmem:[#allocation6] sm:$0xff]
    %v516 = vld [vmem:[#allocation6 + $0x8] sm:$0xff]
    %v517 = vld [vmem:[#allocation6 + $0x10] sm:$0xff]
    %v518 = vld [vmem:[#allocation6 + $0x18] sm:$0xff]
    %v519 = vld [vmem:[#allocation6 + $0x20] sm:$0xff]
    %v520 = vld [vmem:[#allocation6 + $0x28] sm:$0xff]
    %v521 = vld [vmem:[#allocation6 + $0x30] sm:$0xff]
    %v522 = vld [vmem:[#allocation6 + $0x38] sm:$0xff]
    %v523 = vld [vmem:[#allocation6 + $0x40] sm:$0xff]
    %v524 = vld [vmem:[#allocation6 + $0x48] sm:$0xff]
    %v525 = vld [vmem:[#allocation6 + $0x50] sm:$0xff]
    %v526 = vld [vmem:[#allocation6 + $0x58] sm:$0xff]
    %v527 = vld [vmem:[#allocation6 + $0x60] sm:$0xff]
    %v528 = vld [vmem:[#allocation6 + $0x68] sm:$0xff]
    %v529 = vld [vmem:[#allocation6 + $0x70] sm:$0xff]
    %v530 = vld [vmem:[#allocation6 + $0x78] sm:$0xff]
    %v531 = vld [vmem:[#allocation6 + $0x80] sm:$0xff]
    %v532 = vld [vmem:[#allocation6 + $0x88] sm:$0xff]
    %v533 = vld [vmem:[#allocation6 + $0x90] sm:$0xff]
    %v534 = vld [vmem:[#allocation6 + $0x98] sm:$0xff]
    %v535 = vld [vmem:[#allocation6 + $0xa0] sm:$0xff]
    %v536 = vld [vmem:[#allocation6 + $0xa8] sm:$0xff]
    %v537 = vld [vmem:[#allocation6 + $0xb0] sm:$0xff]
    %v538 = vld [vmem:[#allocation6 + $0xb8] sm:$0xff]
    %v539 = vld [vmem:[#allocation6 + $0xc0] sm:$0xff]
    %v540 = vld [vmem:[#allocation6 + $0xc8] sm:$0xff]
    %v541 = vld [vmem:[#allocation6 + $0xd0] sm:$0xff]
    %v542 = vld [vmem:[#allocation6 + $0xd8] sm:$0xff]
    %v543 = vld [vmem:[#allocation6 + $0xe0] sm:$0xff]
    %v544 = vld [vmem:[#allocation6 + $0xe8] sm:$0xff]
    %v545 = vld [vmem:[#allocation6 + $0xf0] sm:$0xff]
    %v546 = vld [vmem:[#allocation6 + $0xf8] sm:$0xff]
    %v547 = vld [vmem:[#allocation6 + $0x100] sm:$0xff]
    %v548 = vld [vmem:[#allocation6 + $0x108] sm:$0xff]
    %v549 = vld [vmem:[#allocation6 + $0x110] sm:$0xff]
    %v550 = vld [vmem:[#allocation6 + $0x118] sm:$0xff]
    %v551 = vld [vmem:[#allocation6 + $0x120] sm:$0xff]
    %v552 = vld [vmem:[#allocation6 + $0x128] sm:$0xff]
    %v553 = vld [vmem:[#allocation6 + $0x130] sm:$0xff]
    %v554 = vld [vmem:[#allocation6 + $0x138] sm:$0xff]
    %v555 = vld [vmem:[#allocation6 + $0x140] sm:$0xff]
    %v556 = vld [vmem:[#allocation6 + $0x148] sm:$0xff]
    %v557 = vld [vmem:[#allocation6 + $0x150] sm:$0xff]
    %v558 = vld [vmem:[#allocation6 + $0x158] sm:$0xff]
    %v559 = vld [vmem:[#allocation6 + $0x160] sm:$0xff]
    %v560 = vld [vmem:[#allocation6 + $0x168] sm:$0xff]
    %v561 = vld [vmem:[#allocation6 + $0x170] sm:$0xff]
    %v562 = vld [vmem:[#allocation6 + $0x178] sm:$0xff]
    %v563 = vld [vmem:[#allocation6 + $0x180] sm:$0xff]
    %v564 = vld [vmem:[#allocation6 + $0x188] sm:$0xff]
    %v565 = vld [vmem:[#allocation6 + $0x190] sm:$0xff]
    %v566 = vld [vmem:[#allocation6 + $0x198] sm:$0xff]
    %v567 = vld [vmem:[#allocation6 + $0x1a0] sm:$0xff]
    %v568 = vld [vmem:[#allocation6 + $0x1a8] sm:$0xff]
    %v569 = vld [vmem:[#allocation6 + $0x1b0] sm:$0xff]
    %v570 = vld [vmem:[#allocation6 + $0x1b8] sm:$0xff]
    %v571 = vld [vmem:[#allocation6 + $0x1c0] sm:$0xff]
    %v572 = vld [vmem:[#allocation6 + $0x1c8] sm:$0xff]
    %v573 = vld [vmem:[#allocation6 + $0x1d0] sm:$0xff]
    %v574 = vld [vmem:[#allocation6 + $0x1d8] sm:$0xff]
    %v575 = vld [vmem:[#allocation6 + $0x1e0] sm:$0xff]
    %v576 = vld [vmem:[#allocation6 + $0x1e8] sm:$0xff]
    %v577 = vld [vmem:[#allocation6 + $0x1f0] sm:$0xff]
    %v578 = vld [vmem:[#allocation6 + $0x1f8] sm:$0xff]
    %v579 = vld [vmem:[#allocation6 + $0x200] sm:$0xff]
    %v580 = vld [vmem:[#allocation6 + $0x208] sm:$0xff]
    %v581 = vld [vmem:[#allocation6 + $0x210] sm:$0xff]
    %v582 = vld [vmem:[#allocation6 + $0x218] sm:$0xff]
    %v583 = vld [vmem:[#allocation6 + $0x220] sm:$0xff]
    %v584 = vld [vmem:[#allocation6 + $0x228] sm:$0xff]
    %v585 = vld [vmem:[#allocation6 + $0x230] sm:$0xff]
    %v586 = vld [vmem:[#allocation6 + $0x238] sm:$0xff]
    %v587 = vld [vmem:[#allocation6 + $0x240] sm:$0xff]
    %v588 = vld [vmem:[#allocation6 + $0x248] sm:$0xff]
    %v589 = vld [vmem:[#allocation6 + $0x250] sm:$0xff]
    %v590 = vld [vmem:[#allocation6 + $0x258] sm:$0xff]
    %v591 = vld [vmem:[#allocation6 + $0x260] sm:$0xff]
    %v592 = vld [vmem:[#allocation6 + $0x268] sm:$0xff]
    %v593 = vld [vmem:[#allocation6 + $0x270] sm:$0xff]
    %v594 = vld [vmem:[#allocation6 + $0x278] sm:$0xff]
    %v595 = vld [vmem:[#allocation6 + $0x280] sm:$0xff]
    %v596 = vld [vmem:[#allocation6 + $0x288] sm:$0xff]
    %v597 = vld [vmem:[#allocation6 + $0x290] sm:$0xff]
    %v598 = vld [vmem:[#allocation6 + $0x298] sm:$0xff]
    %v599 = vld [vmem:[#allocation6 + $0x2a0] sm:$0xff]
    %v600 = vld [vmem:[#allocation6 + $0x2a8] sm:$0xff]
    %v601 = vld [vmem:[#allocation6 + $0x2b0] sm:$0xff]
    %v602 = vld [vmem:[#allocation6 + $0x2b8] sm:$0xff]
    %v603 = vld [vmem:[#allocation6 + $0x2c0] sm:$0xff]
    %v604 = vld [vmem:[#allocation6 + $0x2c8] sm:$0xff]
    %v605 = vld [vmem:[#allocation6 + $0x2d0] sm:$0xff]
    %v606 = vld [vmem:[#allocation6 + $0x2d8] sm:$0xff]
    %v607 = vld [vmem:[#allocation6 + $0x2e0] sm:$0xff]
    %v608 = vld [vmem:[#allocation6 + $0x2e8] sm:$0xff]
    %v609 = vld [vmem:[#allocation6 + $0x2f0] sm:$0xff]
    %v610 = vld [vmem:[#allocation6 + $0x2f8] sm:$0xff]
    %v611 = vld [vmem:[#allocation6 + $0x300] sm:$0xff]
    %v612 = vld [vmem:[#allocation6 + $0x308] sm:$0xff]
    %v613 = vld [vmem:[#allocation6 + $0x310] sm:$0xff]
    %v614 = vld [vmem:[#allocation6 + $0x318] sm:$0xff]
    %v615 = vld [vmem:[#allocation6 + $0x320] sm:$0xff]
    %v616 = vld [vmem:[#allocation6 + $0x328] sm:$0xff]
    %v617 = vld [vmem:[#allocation6 + $0x330] sm:$0xff]
    %v618 = vld [vmem:[#allocation6 + $0x338] sm:$0xff]
    %v619 = vld [vmem:[#allocation6 + $0x340] sm:$0xff]
    %v620 = vld [vmem:[#allocation6 + $0x348] sm:$0xff]
    %v621 = vld [vmem:[#allocation6 + $0x350] sm:$0xff]
    %v622 = vld [vmem:[#allocation6 + $0x358] sm:$0xff]
    %v623 = vld [vmem:[#allocation6 + $0x360] sm:$0xff]
    %v624 = vld [vmem:[#allocation6 + $0x368] sm:$0xff]
    %v625 = vld [vmem:[#allocation6 + $0x370] sm:$0xff]
    %v626 = vld [vmem:[#allocation6 + $0x378] sm:$0xff]
    %v627 = vld [vmem:[#allocation6 + $0x380] sm:$0xff]
    %v628 = vld [vmem:[#allocation6 + $0x388] sm:$0xff]
    %v629 = vld [vmem:[#allocation6 + $0x390] sm:$0xff]
    %v630 = vld [vmem:[#allocation6 + $0x398] sm:$0xff]
    %v631 = vld [vmem:[#allocation6 + $0x3a0] sm:$0xff]
    %v632 = vld [vmem:[#allocation6 + $0x3a8] sm:$0xff]
    %v633 = vld [vmem:[#allocation6 + $0x3b0] sm:$0xff]
    %v634 = vld [vmem:[#allocation6 + $0x3b8] sm:$0xff]
    %v635 = vld [vmem:[#allocation6 + $0x3c0] sm:$0xff]
    %v636 = vld [vmem:[#allocation6 + $0x3c8] sm:$0xff]
    %v637 = vld [vmem:[#allocation6 + $0x3d0] sm:$0xff]
    %v638 = vld [vmem:[#allocation6 + $0x3d8] sm:$0xff]
    %v639 = vld [vmem:[#allocation6 + $0x3e0] sm:$0xff]
    %v640 = vld [vmem:[#allocation6 + $0x3e8] sm:$0xff]
    %v641 = vld [vmem:[#allocation6 + $0x3f0] sm:$0xff]
    %v642 = vld [vmem:[#allocation6 + $0x3f8] sm:$0xff]
    %v644 = vunpack.c.l.b16 %v514
    %v645 = vunpack.c.h.b16 %v514
    %v646 = vpack.c.b16 %v644, %v644
    %v647 = vpack.c.b16 %v645, %v645
    %v778 = vunpack.c.l.b16 %v515
    %v779 = vunpack.c.h.b16 %v515
    %v780 = vunpack.c.l.b16 %v516
    %v781 = vunpack.c.h.b16 %v516
    %v782 = vunpack.c.l.b16 %v517
    %v783 = vunpack.c.h.b16 %v517
    %v784 = vunpack.c.l.b16 %v518
    %v785 = vunpack.c.h.b16 %v518
    %v786 = vunpack.c.l.b16 %v519
    %v787 = vunpack.c.h.b16 %v519
    %v788 = vunpack.c.l.b16 %v520
    %v789 = vunpack.c.h.b16 %v520
    %v790 = vunpack.c.l.b16 %v521
    %v791 = vunpack.c.h.b16 %v521
    %v792 = vunpack.c.l.b16 %v522
    %v793 = vunpack.c.h.b16 %v522
    %v794 = vunpack.c.l.b16 %v523
    %v795 = vunpack.c.h.b16 %v523
    %v796 = vunpack.c.l.b16 %v524
    %v797 = vunpack.c.h.b16 %v524
    %v798 = vunpack.c.l.b16 %v525
    %v799 = vunpack.c.h.b16 %v525
    %v800 = vunpack.c.l.b16 %v526
    %v801 = vunpack.c.h.b16 %v526
    %v802 = vunpack.c.l.b16 %v527
    %v803 = vunpack.c.h.b16 %v527
    %v804 = vunpack.c.l.b16 %v528
    %v805 = vunpack.c.h.b16 %v528
    %v806 = vunpack.c.l.b16 %v529
    %v807 = vunpack.c.h.b16 %v529
    %v808 = vunpack.c.l.b16 %v530
    %v809 = vunpack.c.h.b16 %v530
    %v810 = vunpack.c.l.b16 %v531
    %v811 = vunpack.c.h.b16 %v531
    %v812 = vunpack.c.l.b16 %v532
    %v813 = vunpack.c.h.b16 %v532
    %v814 = vunpack.c.l.b16 %v533
    %v815 = vunpack.c.h.b16 %v533
    %v816 = vunpack.c.l.b16 %v534
    %v817 = vunpack.c.h.b16 %v534
    %v818 = vunpack.c.l.b16 %v535
    %v819 = vunpack.c.h.b16 %v535
    %v820 = vunpack.c.l.b16 %v536
    %v821 = vunpack.c.h.b16 %v536
    %v822 = vunpack.c.l.b16 %v537
    %v823 = vunpack.c.h.b16 %v537
    %v824 = vunpack.c.l.b16 %v538
    %v825 = vunpack.c.h.b16 %v538
    %v826 = vunpack.c.l.b16 %v539
    %v827 = vunpack.c.h.b16 %v539
    %v828 = vunpack.c.l.b16 %v540
    %v829 = vunpack.c.h.b16 %v540
    %v830 = vunpack.c.l.b16 %v541
    %v831 = vunpack.c.h.b16 %v541
    %v832 = vunpack.c.l.b16 %v542
    %v833 = vunpack.c.h.b16 %v542
    %v834 = vunpack.c.l.b16 %v543
    %v835 = vunpack.c.h.b16 %v543
    %v836 = vunpack.c.l.b16 %v544
    %v837 = vunpack.c.h.b16 %v544
    %v838 = vunpack.c.l.b16 %v545
    %v839 = vunpack.c.h.b16 %v545
    %v840 = vunpack.c.l.b16 %v546
    %v841 = vunpack.c.h.b16 %v546
    %v842 = vunpack.c.l.b16 %v547
    %v843 = vunpack.c.h.b16 %v547
    %v844 = vunpack.c.l.b16 %v548
    %v845 = vunpack.c.h.b16 %v548
    %v846 = vunpack.c.l.b16 %v549
    %v847 = vunpack.c.h.b16 %v549
    %v848 = vunpack.c.l.b16 %v550
    %v849 = vunpack.c.h.b16 %v550
    %v850 = vunpack.c.l.b16 %v551
    %v851 = vunpack.c.h.b16 %v551
    %v852 = vunpack.c.l.b16 %v552
    %v853 = vunpack.c.h.b16 %v552
    %v854 = vunpack.c.l.b16 %v553
    %v855 = vunpack.c.h.b16 %v553
    %v856 = vunpack.c.l.b16 %v554
    %v857 = vunpack.c.h.b16 %v554
    %v858 = vunpack.c.l.b16 %v555
    %v859 = vunpack.c.h.b16 %v555
    %v860 = vunpack.c.l.b16 %v556
    %v861 = vunpack.c.h.b16 %v556
    %v862 = vunpack.c.l.b16 %v557
    %v863 = vunpack.c.h.b16 %v557
    %v864 = vunpack.c.l.b16 %v558
    %v865 = vunpack.c.h.b16 %v558
    %v866 = vunpack.c.l.b16 %v559
    %v867 = vunpack.c.h.b16 %v559
    %v868 = vunpack.c.l.b16 %v560
    %v869 = vunpack.c.h.b16 %v560
    %v870 = vunpack.c.l.b16 %v561
    %v871 = vunpack.c.h.b16 %v561
    %v872 = vunpack.c.l.b16 %v562
    %v873 = vunpack.c.h.b16 %v562
    %v874 = vunpack.c.l.b16 %v563
    %v875 = vunpack.c.h.b16 %v563
    %v876 = vunpack.c.l.b16 %v564
    %v877 = vunpack.c.h.b16 %v564
    %v878 = vunpack.c.l.b16 %v565
    %v879 = vunpack.c.h.b16 %v565
    %v880 = vunpack.c.l.b16 %v566
    %v881 = vunpack.c.h.b16 %v566
    %v882 = vunpack.c.l.b16 %v567
    %v883 = vunpack.c.h.b16 %v567
    %v884 = vunpack.c.l.b16 %v568
    %v885 = vunpack.c.h.b16 %v568
    %v886 = vunpack.c.l.b16 %v569
    %v887 = vunpack.c.h.b16 %v569
    %v888 = vunpack.c.l.b16 %v570
    %v889 = vunpack.c.h.b16 %v570
    %v890 = vunpack.c.l.b16 %v571
    %v891 = vunpack.c.h.b16 %v571
    %v892 = vunpack.c.l.b16 %v572
    %v893 = vunpack.c.h.b16 %v572
    %v894 = vunpack.c.l.b16 %v573
    %v895 = vunpack.c.h.b16 %v573
    %v896 = vunpack.c.l.b16 %v574
    %v897 = vunpack.c.h.b16 %v574
    %v898 = vunpack.c.l.b16 %v575
    %v899 = vunpack.c.h.b16 %v575
    %v900 = vunpack.c.l.b16 %v576
    %v901 = vunpack.c.h.b16 %v576
    %v902 = vunpack.c.l.b16 %v577
    %v903 = vunpack.c.h.b16 %v577
    %v904 = vunpack.c.l.b16 %v578
    %v905 = vunpack.c.h.b16 %v578
    %v906 = vunpack.c.l.b16 %v579
    %v907 = vunpack.c.h.b16 %v579
    %v908 = vunpack.c.l.b16 %v580
    %v909 = vunpack.c.h.b16 %v580
    %v910 = vunpack.c.l.b16 %v581
    %v911 = vunpack.c.h.b16 %v581
    %v912 = vunpack.c.l.b16 %v582
    %v913 = vunpack.c.h.b16 %v582
    %v914 = vunpack.c.l.b16 %v583
    %v915 = vunpack.c.h.b16 %v583
    %v916 = vunpack.c.l.b16 %v584
    %v917 = vunpack.c.h.b16 %v584
    %v918 = vunpack.c.l.b16 %v585
    %v919 = vunpack.c.h.b16 %v585
    %v920 = vunpack.c.l.b16 %v586
    %v921 = vunpack.c.h.b16 %v586
    %v922 = vunpack.c.l.b16 %v587
    %v923 = vunpack.c.h.b16 %v587
    %v924 = vunpack.c.l.b16 %v588
    %v925 = vunpack.c.h.b16 %v588
    %v926 = vunpack.c.l.b16 %v589
    %v927 = vunpack.c.h.b16 %v589
    %v928 = vunpack.c.l.b16 %v590
    %v929 = vunpack.c.h.b16 %v590
    %v930 = vunpack.c.l.b16 %v591
    %v931 = vunpack.c.h.b16 %v591
    %v932 = vunpack.c.l.b16 %v592
    %v933 = vunpack.c.h.b16 %v592
    %v934 = vunpack.c.l.b16 %v593
    %v935 = vunpack.c.h.b16 %v593
    %v936 = vunpack.c.l.b16 %v594
    %v937 = vunpack.c.h.b16 %v594
    %v938 = vunpack.c.l.b16 %v595
    %v939 = vunpack.c.h.b16 %v595
    %v940 = vunpack.c.l.b16 %v596
    %v941 = vunpack.c.h.b16 %v596
    %v942 = vunpack.c.l.b16 %v597
    %v943 = vunpack.c.h.b16 %v597
    %v944 = vunpack.c.l.b16 %v598
    %v945 = vunpack.c.h.b16 %v598
    %v946 = vunpack.c.l.b16 %v599
    %v947 = vunpack.c.h.b16 %v599
    %v948 = vunpack.c.l.b16 %v600
    %v949 = vunpack.c.h.b16 %v600
    %v950 = vunpack.c.l.b16 %v601
    %v951 = vunpack.c.h.b16 %v601
    %v952 = vunpack.c.l.b16 %v602
    %v953 = vunpack.c.h.b16 %v602
    %v954 = vunpack.c.l.b16 %v603
    %v955 = vunpack.c.h.b16 %v603
    %v956 = vunpack.c.l.b16 %v604
    %v957 = vunpack.c.h.b16 %v604
    %v958 = vunpack.c.l.b16 %v605
    %v959 = vunpack.c.h.b16 %v605
    %v960 = vunpack.c.l.b16 %v606
    %v961 = vunpack.c.h.b16 %v606
    %v962 = vunpack.c.l.b16 %v607
    %v963 = vunpack.c.h.b16 %v607
    %v964 = vunpack.c.l.b16 %v608
    %v965 = vunpack.c.h.b16 %v608
    %v966 = vunpack.c.l.b16 %v609
    %v967 = vunpack.c.h.b16 %v609
    %v968 = vunpack.c.l.b16 %v610
    %v969 = vunpack.c.h.b16 %v610
    %v970 = vunpack.c.l.b16 %v611
    %v971 = vunpack.c.h.b16 %v611
    %v972 = vunpack.c.l.b16 %v612
    %v973 = vunpack.c.h.b16 %v612
    %v974 = vunpack.c.l.b16 %v613
    %v975 = vunpack.c.h.b16 %v613
    %v976 = vunpack.c.l.b16 %v614
    %v977 = vunpack.c.h.b16 %v614
    %v978 = vunpack.c.l.b16 %v615
    %v979 = vunpack.c.h.b16 %v615
    %v980 = vunpack.c.l.b16 %v616
    %v981 = vunpack.c.h.b16 %v616
    %v982 = vunpack.c.l.b16 %v617
    %v983 = vunpack.c.h.b16 %v617
    %v984 = vunpack.c.l.b16 %v618
    %v985 = vunpack.c.h.b16 %v618
    %v986 = vunpack.c.l.b16 %v619
    %v987 = vunpack.c.h.b16 %v619
    %v988 = vunpack.c.l.b16 %v620
    %v989 = vunpack.c.h.b16 %v620
    %v990 = vunpack.c.l.b16 %v621
    %v991 = vunpack.c.h.b16 %v621
    %v992 = vunpack.c.l.b16 %v622
    %v993 = vunpack.c.h.b16 %v622
    %v994 = vunpack.c.l.b16 %v623
    %v995 = vunpack.c.h.b16 %v623
    %v996 = vunpack.c.l.b16 %v624
    %v997 = vunpack.c.h.b16 %v624
    %v998 = vunpack.c.l.b16 %v625
    %v999 = vunpack.c.h.b16 %v625
    %v1000 = vunpack.c.l.b16 %v626
    %v1001 = vunpack.c.h.b16 %v626
    %v1002 = vunpack.c.l.b16 %v627
    %v1003 = vunpack.c.h.b16 %v627
    %v1004 = vunpack.c.l.b16 %v628
    %v1005 = vunpack.c.h.b16 %v628
    %v1006 = vunpack.c.l.b16 %v629
    %v1007 = vunpack.c.h.b16 %v629
    %v1008 = vunpack.c.l.b16 %v630
    %v1009 = vunpack.c.h.b16 %v630
    %v1010 = vunpack.c.l.b16 %v631
    %v1011 = vunpack.c.h.b16 %v631
    %v1012 = vunpack.c.l.b16 %v632
    %v1013 = vunpack.c.h.b16 %v632
    %v1014 = vunpack.c.l.b16 %v633
    %v1015 = vunpack.c.h.b16 %v633
    %v1016 = vunpack.c.l.b16 %v634
    %v1017 = vunpack.c.h.b16 %v634
    %v1018 = vunpack.c.l.b16 %v635
    %v1019 = vunpack.c.h.b16 %v635
    %v1020 = vunpack.c.l.b16 %v636
    %v1021 = vunpack.c.h.b16 %v636
    %v1022 = vunpack.c.l.b16 %v637
    %v1023 = vunpack.c.h.b16 %v637
    %v1024 = vunpack.c.l.b16 %v638
    %v1025 = vunpack.c.h.b16 %v638
    %v1026 = vunpack.c.l.b16 %v639
    %v1027 = vunpack.c.h.b16 %v639
    %v1028 = vunpack.c.l.b16 %v640
    %v1029 = vunpack.c.h.b16 %v640
    %v1030 = vunpack.c.l.b16 %v641
    %v1031 = vunpack.c.h.b16 %v641
    %v1032 = vunpack.c.l.b16 %v642
    %v1033 = vunpack.c.h.b16 %v642
    %v1034 = vpack.c.b16 %v786, %v778
    %v1035 = vpack.c.b16 %v787, %v779
    %v1036 = vpack.c.b16 %v788, %v780
    %v1037 = vpack.c.b16 %v789, %v781
    %v1038 = vpack.c.b16 %v790, %v782
    %v1039 = vpack.c.b16 %v791, %v783
    %v1040 = vpack.c.b16 %v792, %v784
    %v1041 = vpack.c.b16 %v793, %v785
    %v1042 = vpack.c.b16 %v802, %v794
    %v1043 = vpack.c.b16 %v803, %v795
    %v1044 = vpack.c.b16 %v804, %v796
    %v1045 = vpack.c.b16 %v805, %v797
    %v1046 = vpack.c.b16 %v806, %v798
    %v1047 = vpack.c.b16 %v807, %v799
    %v1048 = vpack.c.b16 %v808, %v800
    %v1049 = vpack.c.b16 %v809, %v801
    %v1050 = vpack.c.b16 %v818, %v810
    %v1051 = vpack.c.b16 %v819, %v811
    %v1052 = vpack.c.b16 %v820, %v812
    %v1053 = vpack.c.b16 %v821, %v813
    %v1054 = vpack.c.b16 %v822, %v814
    %v1055 = vpack.c.b16 %v823, %v815
    %v1056 = vpack.c.b16 %v824, %v816
    %v1057 = vpack.c.b16 %v825, %v817
    %v1058 = vpack.c.b16 %v834, %v826
    %v1059 = vpack.c.b16 %v835, %v827
    %v1060 = vpack.c.b16 %v836, %v828
    %v1061 = vpack.c.b16 %v837, %v829
    %v1062 = vpack.c.b16 %v838, %v830
    %v1063 = vpack.c.b16 %v839, %v831
    %v1064 = vpack.c.b16 %v840, %v832
    %v1065 = vpack.c.b16 %v841, %v833
    %v1066 = vpack.c.b16 %v850, %v842
    %v1067 = vpack.c.b16 %v851, %v843
    %v1068 = vpack.c.b16 %v852, %v844
    %v1069 = vpack.c.b16 %v853, %v845
    %v1070 = vpack.c.b16 %v854, %v846
    %v1071 = vpack.c.b16 %v855, %v847
    %v1072 = vpack.c.b16 %v856, %v848
    %v1073 = vpack.c.b16 %v857, %v849
    %v1074 = vpack.c.b16 %v866, %v858
    %v1075 = vpack.c.b16 %v867, %v859
    %v1076 = vpack.c.b16 %v868, %v860
    %v1077 = vpack.c.b16 %v869, %v861
    %v1078 = vpack.c.b16 %v870, %v862
    %v1079 = vpack.c.b16 %v871, %v863
    %v1080 = vpack.c.b16 %v872, %v864
    %v1081 = vpack.c.b16 %v873, %v865
    %v1082 = vpack.c.b16 %v882, %v874
    %v1083 = vpack.c.b16 %v883, %v875
    %v1084 = vpack.c.b16 %v884, %v876
    %v1085 = vpack.c.b16 %v885, %v877
    %v1086 = vpack.c.b16 %v886, %v878
    %v1087 = vpack.c.b16 %v887, %v879
    %v1088 = vpack.c.b16 %v888, %v880
    %v1089 = vpack.c.b16 %v889, %v881
    %v1090 = vpack.c.b16 %v898, %v890
    %v1091 = vpack.c.b16 %v899, %v891
    %v1092 = vpack.c.b16 %v900, %v892
    %v1093 = vpack.c.b16 %v901, %v893
    %v1094 = vpack.c.b16 %v902, %v894
    %v1095 = vpack.c.b16 %v903, %v895
    %v1096 = vpack.c.b16 %v904, %v896
    %v1097 = vpack.c.b16 %v905, %v897
    %v1098 = vpack.c.b16 %v914, %v906
    %v1099 = vpack.c.b16 %v915, %v907
    %v1100 = vpack.c.b16 %v916, %v908
    %v1101 = vpack.c.b16 %v917, %v909
    %v1102 = vpack.c.b16 %v918, %v910
    %v1103 = vpack.c.b16 %v919, %v911
    %v1104 = vpack.c.b16 %v920, %v912
    %v1105 = vpack.c.b16 %v921, %v913
    %v1106 = vpack.c.b16 %v930, %v922
    %v1107 = vpack.c.b16 %v931, %v923
    %v1108 = vpack.c.b16 %v932, %v924
    %v1109 = vpack.c.b16 %v933, %v925
    %v1110 = vpack.c.b16 %v934, %v926
    %v1111 = vpack.c.b16 %v935, %v927
    %v1112 = vpack.c.b16 %v936, %v928
    %v1113 = vpack.c.b16 %v937, %v929
    %v1114 = vpack.c.b16 %v946, %v938
    %v1115 = vpack.c.b16 %v947, %v939
    %v1116 = vpack.c.b16 %v948, %v940
    %v1117 = vpack.c.b16 %v949, %v941
    %v1118 = vpack.c.b16 %v950, %v942
    %v1119 = vpack.c.b16 %v951, %v943
    %v1120 = vpack.c.b16 %v952, %v944
    %v1121 = vpack.c.b16 %v953, %v945
    %v1122 = vpack.c.b16 %v962, %v954
    %v1123 = vpack.c.b16 %v963, %v955
    %v1124 = vpack.c.b16 %v964, %v956
    %v1125 = vpack.c.b16 %v965, %v957
    %v1126 = vpack.c.b16 %v966, %v958
    %v1127 = vpack.c.b16 %v967, %v959
    %v1128 = vpack.c.b16 %v968, %v960
    %v1129 = vpack.c.b16 %v969, %v961
    %v1130 = vpack.c.b16 %v978, %v970
    %v1131 = vpack.c.b16 %v979, %v971
    %v1132 = vpack.c.b16 %v980, %v972
    %v1133 = vpack.c.b16 %v981, %v973
    %v1134 = vpack.c.b16 %v982, %v974
    %v1135 = vpack.c.b16 %v983, %v975
    %v1136 = vpack.c.b16 %v984, %v976
    %v1137 = vpack.c.b16 %v985, %v977
    %v1138 = vpack.c.b16 %v994, %v986
    %v1139 = vpack.c.b16 %v995, %v987
    %v1140 = vpack.c.b16 %v996, %v988
    %v1141 = vpack.c.b16 %v997, %v989
    %v1142 = vpack.c.b16 %v998, %v990
    %v1143 = vpack.c.b16 %v999, %v991
    %v1144 = vpack.c.b16 %v1000, %v992
    %v1145 = vpack.c.b16 %v1001, %v993
    %v1146 = vpack.c.b16 %v1010, %v1002
    %v1147 = vpack.c.b16 %v1011, %v1003
    %v1148 = vpack.c.b16 %v1012, %v1004
    %v1149 = vpack.c.b16 %v1013, %v1005
    %v1150 = vpack.c.b16 %v1014, %v1006
    %v1151 = vpack.c.b16 %v1015, %v1007
    %v1152 = vpack.c.b16 %v1016, %v1008
    %v1153 = vpack.c.b16 %v1017, %v1009
    %v1154 = vpack.c.b16 %v1026, %v1018
    %v1155 = vpack.c.b16 %v1027, %v1019
    %v1156 = vpack.c.b16 %v1028, %v1020
    %v1157 = vpack.c.b16 %v1029, %v1021
    %v1158 = vpack.c.b16 %v1030, %v1022
    %v1159 = vpack.c.b16 %v1031, %v1023
    %v1160 = vpack.c.b16 %v1032, %v1024
    %v1161 = vpack.c.b16 %v1033, %v1025
    %1290 = vmatprep.subr.bf16.mxu0 %v1035
    %1291 = vmatpush1.bf16.msra.mxu0 %v1034
    %1292 = vmatprep.subr.bf16.mxu0 %v1043
    %1293 = vmatpush1.bf16.msra.mxu0 %v1042
    %1294 = vmatprep.subr.bf16.mxu0 %v1051
    %1295 = vmatpush1.bf16.msra.mxu0 %v1050
    %1296 = vmatprep.subr.bf16.mxu0 %v1059
    %1297 = vmatpush1.bf16.msra.mxu0 %v1058
    %1298 = vmatprep.subr.bf16.mxu0 %v1067
    %1299 = vmatpush1.bf16.msra.mxu0 %v1066
    %1300 = vmatprep.subr.bf16.mxu0 %v1075
    %1301 = vmatpush1.bf16.msra.mxu0 %v1074
    %1302 = vmatprep.subr.bf16.mxu0 %v1083
    %1303 = vmatpush1.bf16.msra.mxu0 %v1082
    %1304 = vmatprep.subr.bf16.mxu0 %v1091
    %1305 = vmatpush1.bf16.msra.mxu0 %v1090
    %1306 = vmatprep.subr.bf16.mxu0 %v1099
    %1307 = vmatpush1.bf16.msra.mxu0 %v1098
    %1308 = vmatprep.subr.bf16.mxu0 %v1107
    %1309 = vmatpush1.bf16.msra.mxu0 %v1106
    %1310 = vmatprep.subr.bf16.mxu0 %v1115
    %1311 = vmatpush1.bf16.msra.mxu0 %v1114
    %1312 = vmatprep.subr.bf16.mxu0 %v1123
    %1313 = vmatpush1.bf16.msra.mxu0 %v1122
    %1314 = vmatprep.subr.bf16.mxu0 %v1131
    %1315 = vmatpush1.bf16.msra.mxu0 %v1130
    %1316 = vmatprep.subr.bf16.mxu0 %v1139
    %1317 = vmatpush1.bf16.msra.mxu0 %v1138
    %1318 = vmatprep.subr.bf16.mxu0 %v1147
    %1319 = vmatpush1.bf16.msra.mxu0 %v1146
    %1320 = vmatprep.subr.bf16.mxu0 %v1155
    %1321 = vmatpush1.bf16.msra.mxu0 %v1154
    %1322 = vmatprep.mubr.bf16.mxu0 %v647
    %1323 = vmatmul.mubr.bf16.gmra.mrb[0].mxu0 %v646
    %v1324 = vpop.f32.mrb[0].mxu0
    %v1325 = vadd.f32 0.0, %v1324
    %v1326 = vpop.f32.mrb[0].mxu0
    %v1327 = vadd.f32 0.0, %v1326
    %v1328 = vpop.f32.mrb[0].mxu0
    %v1329 = vpop.f32.mrb[0].mxu0
    %1330 = vdwg.mxu0
    %1331 = vmatprep.subr.bf16.mxu0 %v1037
    %1332 = vmatpush1.bf16.msra.mxu0 %v1036
    %1333 = vmatprep.subr.bf16.mxu0 %v1045
    %1334 = vmatpush1.bf16.msra.mxu0 %v1044
    %1335 = vmatprep.subr.bf16.mxu0 %v1053
    %1336 = vmatpush1.bf16.msra.mxu0 %v1052
    %1337 = vmatprep.subr.bf16.mxu0 %v1061
    %1338 = vmatpush1.bf16.msra.mxu0 %v1060
    %1339 = vmatprep.subr.bf16.mxu0 %v1069
    %1340 = vmatpush1.bf16.msra.mxu0 %v1068
    %1341 = vmatprep.subr.bf16.mxu0 %v1077
    %1342 = vmatpush1.bf16.msra.mxu0 %v1076
    %1343 = vmatprep.subr.bf16.mxu0 %v1085
    %1344 = vmatpush1.bf16.msra.mxu0 %v1084
    %1345 = vmatprep.subr.bf16.mxu0 %v1093
    %1346 = vmatpush1.bf16.msra.mxu0 %v1092
    %1347 = vmatprep.subr.bf16.mxu0 %v1101
    %1348 = vmatpush1.bf16.msra.mxu0 %v1100
    %1349 = vmatprep.subr.bf16.mxu0 %v1109
    %1350 = vmatpush1.bf16.msra.mxu0 %v1108
    %1351 = vmatprep.subr.bf16.mxu0 %v1117
    %1352 = vmatpush1.bf16.msra.mxu0 %v1116
    %1353 = vmatprep.subr.bf16.mxu0 %v1125
    %1354 = vmatpush1.bf16.msra.mxu0 %v1124
    %1355 = vmatprep.subr.bf16.mxu0 %v1133
    %1356 = vmatpush1.bf16.msra.mxu0 %v1132
    %1357 = vmatprep.subr.bf16.mxu0 %v1141
    %1358 = vmatpush1.bf16.msra.mxu0 %v1140
    %1359 = vmatprep.subr.bf16.mxu0 %v1149
    %1360 = vmatpush1.bf16.msra.mxu0 %v1148
    %1361 = vmatprep.subr.bf16.mxu0 %v1157
    %1362 = vmatpush1.bf16.msra.mxu0 %v1156
    %1363 = vmatprep.mubr.bf16.mxu0 %v647
    %1364 = vmatmul.mubr.bf16.gmra.mrb[0].mxu0 %v646
    %v1365 = vpop.f32.mrb[0].mxu0
    %v1366 = vadd.f32 0.0, %v1365
    %v1367 = vpop.f32.mrb[0].mxu0
    %v1368 = vadd.f32 0.0, %v1367
    %v1369 = vpop.f32.mrb[0].mxu0
    %v1370 = vpop.f32.mrb[0].mxu0
    %1371 = vdwg.mxu0
    %1372 = vmatprep.subr.bf16.mxu0 %v1039
    %1373 = vmatpush1.bf16.msra.mxu0 %v1038
    %1374 = vmatprep.subr.bf16.mxu0 %v1047
    %1375 = vmatpush1.bf16.msra.mxu0 %v1046
    %1376 = vmatprep.subr.bf16.mxu0 %v1055
    %1377 = vmatpush1.bf16.msra.mxu0 %v1054
    %1378 = vmatprep.subr.bf16.mxu0 %v1063
    %1379 = vmatpush1.bf16.msra.mxu0 %v1062
    %1380 = vmatprep.subr.bf16.mxu0 %v1071
    %1381 = vmatpush1.bf16.msra.mxu0 %v1070
    %1382 = vmatprep.subr.bf16.mxu0 %v1079
    %1383 = vmatpush1.bf16.msra.mxu0 %v1078
    %1384 = vmatprep.subr.bf16.mxu0 %v1087
    %1385 = vmatpush1.bf16.msra.mxu0 %v1086
    %1386 = vmatprep.subr.bf16.mxu0 %v1095
    %1387 = vmatpush1.bf16.msra.mxu0 %v1094
    %1388 = vmatprep.subr.bf16.mxu0 %v1103
    %1389 = vmatpush1.bf16.msra.mxu0 %v1102
    %1390 = vmatprep.subr.bf16.mxu0 %v1111
    %1391 = vmatpush1.bf16.msra.mxu0 %v1110
    %1392 = vmatprep.subr.bf16.mxu0 %v1119
    %1393 = vmatpush1.bf16.msra.mxu0 %v1118
    %1394 = vmatprep.subr.bf16.mxu0 %v1127
    %1395 = vmatpush1.bf16.msra.mxu0 %v1126
    %1396 = vmatprep.subr.bf16.mxu0 %v1135
    %1397 = vmatpush1.bf16.msra.mxu0 %v1134
    %1398 = vmatprep.subr.bf16.mxu0 %v1143
    %1399 = vmatpush1.bf16.msra.mxu0 %v1142
    %1400 = vmatprep.subr.bf16.mxu0 %v1151
    %1401 = vmatpush1.bf16.msra.mxu0 %v1150
    %1402 = vmatprep.subr.bf16.mxu0 %v1159
    %1403 = vmatpush1.bf16.msra.mxu0 %v1158
    %1404 = vmatprep.mubr.bf16.mxu0 %v647
    %1405 = vmatmul.mubr.bf16.gmra.mrb[0].mxu0 %v646
    %v1406 = vpop.f32.mrb[0].mxu0
    %v1407 = vadd.f32 0.0, %v1406
    %v1408 = vpop.f32.mrb[0].mxu0
    %v1409 = vadd.f32 0.0, %v1408
    %v1410 = vpop.f32.mrb[0].mxu0
    %v1411 = vpop.f32.mrb[0].mxu0
    %1412 = vdwg.mxu0
    %1413 = vmatprep.subr.bf16.mxu0 %v1041
    %1414 = vmatpush1.bf16.msra.mxu0 %v1040
    %1415 = vmatprep.subr.bf16.mxu0 %v1049
    %1416 = vmatpush1.bf16.msra.mxu0 %v1048
    %1417 = vmatprep.subr.bf16.mxu0 %v1057
    %1418 = vmatpush1.bf16.msra.mxu0 %v1056
    %1419 = vmatprep.subr.bf16.mxu0 %v1065
    %1420 = vmatpush1.bf16.msra.mxu0 %v1064
    %1421 = vmatprep.subr.bf16.mxu0 %v1073
    %1422 = vmatpush1.bf16.msra.mxu0 %v1072
    %1423 = vmatprep.subr.bf16.mxu0 %v1081
    %1424 = vmatpush1.bf16.msra.mxu0 %v1080
    %1425 = vmatprep.subr.bf16.mxu0 %v1089
    %1426 = vmatpush1.bf16.msra.mxu0 %v1088
    %1427 = vmatprep.subr.bf16.mxu0 %v1097
    %1428 = vmatpush1.bf16.msra.mxu0 %v1096
    %1429 = vmatprep.subr.bf16.mxu0 %v1105
    %1430 = vmatpush1.bf16.msra.mxu0 %v1104
    %1431 = vmatprep.subr.bf16.mxu0 %v1113
    %1432 = vmatpush1.bf16.msra.mxu0 %v1112
    %1433 = vmatprep.subr.bf16.mxu0 %v1121
    %1434 = vmatpush1.bf16.msra.mxu0 %v1120
    %1435 = vmatprep.subr.bf16.mxu0 %v1129
    %1436 = vmatpush1.bf16.msra.mxu0 %v1128
    %1437 = vmatprep.subr.bf16.mxu0 %v1137
    %1438 = vmatpush1.bf16.msra.mxu0 %v1136
    %1439 = vmatprep.subr.bf16.mxu0 %v1145
    %1440 = vmatpush1.bf16.msra.mxu0 %v1144
    %1441 = vmatprep.subr.bf16.mxu0 %v1153
    %1442 = vmatpush1.bf16.msra.mxu0 %v1152
    %1443 = vmatprep.subr.bf16.mxu0 %v1161
    %1444 = vmatpush1.bf16.msra.mxu0 %v1160
    %1445 = vmatprep.mubr.bf16.mxu0 %v647
    %1446 = vmatmul.mubr.bf16.gmra.mrb[0].mxu0 %v646
    %v1447 = vpop.f32.mrb[0].mxu0
    %v1448 = vadd.f32 0.0, %v1447
    %v1449 = vpop.f32.mrb[0].mxu0
    %v1450 = vadd.f32 0.0, %v1449
    %v1451 = vpop.f32.mrb[0].mxu0
    %v1452 = vpop.f32.mrb[0].mxu0
    %1453 = vdwg.mxu0
    %s1454 = smul.u32 1, 4
    %s1455 = smul.addr %s1454, 8
    %s1456 = scalar_lea.vmem [#allocation2], %s1455
    %v1457 = vld [vmem:[%s1456] sm:$0xff]
    %v1458 = vld [vmem:[%s1456 + $0x8] sm:$0xff]
    %v1459 = vld [vmem:[%s1456 + $0x10] sm:$0xff]
    %v1460 = vld [vmem:[%s1456 + $0x18] sm:$0xff]
    %v1461 = vadd.f32 %v1457, %v1325
    %v1462 = vadd.f32 %v1458, %v1327
    %v1463 = vadd.f32 %v1459, %v1366
    %v1464 = vadd.f32 %v1460, %v1368
    %v1465 = vld [vmem:[#allocation4] sm:$0xff]
    %v1466 = vxor.u32 %v1461, 2147483648
    %v1467 = vxor.u32 %v1462, 2147483648
    %v1468 = vxor.u32 %v1463, 2147483648
    %v1469 = vmul.f32 %v1466, 1.442695
    %v1470 = vpow.pop %v1469
    %v1471 = vmul.f32 %v1467, 1.442695
    %v1472 = vpow.pop %v1471
    %v1473 = vmul.f32 %v1468, 1.442695
    %v1474 = vpow.pop %v1473
    %v1475 = vadd.f32 %v1470, 1.0
    %v1476 = vadd.f32 %v1472, 1.0
    %v1477 = vadd.f32 %v1474, 1.0
    %v1478 = vrcp.pop %v1475
    %v1479 = vmul.f32 1.0, %v1478
    %v1480 = vrcp.pop %v1476
    %v1481 = vmul.f32 1.0, %v1480
    %v1482 = vrcp.pop %v1477
    %v1483 = vmul.f32 1.0, %v1482
    %v1484 = vtanh.pop %v1464
    %v1485 = vmul.f32 %v1481, %v1465
    %v1486 = vmul.f32 %v1479, %v1484
    %v1487 = vadd.f32 %v1485, %v1486
    %v1488 = vtanh.pop %v1487
    %v1489 = vmul.f32 %v1483, %v1488
    %1490 = vst [vmem:[#allocation4] sm:$0xff] %v1487
    %v1491 = vpack.c.bf16 %v1489, %v1489
    %1492 = vst [vmem:[#allocation3] sm:$0xf] %v1491
    %v1493 = vadd.f32 %v1407, %v464
    %v1494 = vadd.f32 %v1409, %v468
    %v1495 = vadd.f32 %v1448, %v472
    %v1496 = vadd.f32 %v1450, %v476
    %v1497 = vld [vmem:[#allocation5] sm:$0xff]
    %v1498 = vxor.u32 %v1493, 2147483648
    %v1499 = vxor.u32 %v1494, 2147483648
    %v1500 = vxor.u32 %v1495, 2147483648
    %v1501 = vmul.f32 %v1498, 1.442695
    %v1502 = vpow.pop %v1501
    %v1503 = vmul.f32 %v1499, 1.442695
    %v1504 = vpow.pop %v1503
    %v1505 = vmul.f32 %v1500, 1.442695
    %v1506 = vpow.pop %v1505
    %v1507 = vadd.f32 %v1502, 1.0
    %v1508 = vadd.f32 %v1504, 1.0
    %v1509 = vadd.f32 %v1506, 1.0
    %v1510 = vrcp.pop %v1507
    %v1511 = vmul.f32 1.0, %v1510
    %v1512 = vrcp.pop %v1508
    %v1513 = vmul.f32 1.0, %v1512
    %v1514 = vrcp.pop %v1509
    %v1515 = vmul.f32 1.0, %v1514
    %v1516 = vtanh.pop %v1496
    %v1517 = vmul.f32 %v1513, %v1497
    %v1518 = vmul.f32 %v1511, %v1516
    %v1519 = vadd.f32 %v1517, %v1518
    %v1520 = vtanh.pop %v1519
    %v1521 = vmul.f32 %v1515, %v1520
    %1522 = vst [vmem:[#allocation5] sm:$0xff] %v1519
    %v1523 = vpack.c.bf16 %v1521, %v1521
    %1524 = vst [vmem:[#allocation3 + $0x4] sm:$0xf] %v1523
    %1525 = vst [vmem:[%s5] sm:$0xf] %v1523
    %v1526 = vld [vmem:[#allocation3] sm:$0xff]
    %v1527 = vld [vmem:[#allocation6] sm:$0xff]
    %v1528 = vld [vmem:[#allocation6 + $0x8] sm:$0xff]
    %v1529 = vld [vmem:[#allocation6 + $0x10] sm:$0xff]
    %v1530 = vld [vmem:[#allocation6 + $0x18] sm:$0xff]
    %v1531 = vld [vmem:[#allocation6 + $0x20] sm:$0xff]
    %v1532 = vld [vmem:[#allocation6 + $0x28] sm:$0xff]
    %v1533 = vld [vmem:[#allocation6 + $0x30] sm:$0xff]
    %v1534 = vld [vmem:[#allocation6 + $0x38] sm:$0xff]
    %v1535 = vld [vmem:[#allocation6 + $0x40] sm:$0xff]
    %v1536 = vld [vmem:[#allocation6 + $0x48] sm:$0xff]
    %v1537 = vld [vmem:[#allocation6 + $0x50] sm:$0xff]
    %v1538 = vld [vmem:[#allocation6 + $0x58] sm:$0xff]
    %v1539 = vld [vmem:[#allocation6 + $0x60] sm:$0xff]
    %v1540 = vld [vmem:[#allocation6 + $0x68] sm:$0xff]
    %v1541 = vld [vmem:[#allocation6 + $0x70] sm:$0xff]
    %v1542 = vld [vmem:[#allocation6 + $0x78] sm:$0xff]
    %v1543 = vld [vmem:[#allocation6 + $0x80] sm:$0xff]
    %v1544 = vld [vmem:[#allocation6 + $0x88] sm:$0xff]
    %v1545 = vld [vmem:[#allocation6 + $0x90] sm:$0xff]
    %v1546 = vld [vmem:[#allocation6 + $0x98] sm:$0xff]
    %v1547 = vld [vmem:[#allocation6 + $0xa0] sm:$0xff]
    %v1548 = vld [vmem:[#allocation6 + $0xa8] sm:$0xff]
    %v1549 = vld [vmem:[#allocation6 + $0xb0] sm:$0xff]
    %v1550 = vld [vmem:[#allocation6 + $0xb8] sm:$0xff]
    %v1551 = vld [vmem:[#allocation6 + $0xc0] sm:$0xff]
    %v1552 = vld [vmem:[#allocation6 + $0xc8] sm:$0xff]
    %v1553 = vld [vmem:[#allocation6 + $0xd0] sm:$0xff]
    %v1554 = vld [vmem:[#allocation6 + $0xd8] sm:$0xff]
    %v1555 = vld [vmem:[#allocation6 + $0xe0] sm:$0xff]
    %v1556 = vld [vmem:[#allocation6 + $0xe8] sm:$0xff]
    %v1557 = vld [vmem:[#allocation6 + $0xf0] sm:$0xff]
    %v1558 = vld [vmem:[#allocation6 + $0xf8] sm:$0xff]
    %v1559 = vld [vmem:[#allocation6 + $0x100] sm:$0xff]
    %v1560 = vld [vmem:[#allocation6 + $0x108] sm:$0xff]
    %v1561 = vld [vmem:[#allocation6 + $0x110] sm:$0xff]
    %v1562 = vld [vmem:[#allocation6 + $0x118] sm:$0xff]
    %v1563 = vld [vmem:[#allocation6 + $0x120] sm:$0xff]
    %v1564 = vld [vmem:[#allocation6 + $0x128] sm:$0xff]
    %v1565 = vld [vmem:[#allocation6 + $0x130] sm:$0xff]
    %v1566 = vld [vmem:[#allocation6 + $0x138] sm:$0xff]
    %v1567 = vld [vmem:[#allocation6 + $0x140] sm:$0xff]
    %v1568 = vld [vmem:[#allocation6 + $0x148] sm:$0xff]
    %v1569 = vld [vmem:[#allocation6 + $0x150] sm:$0xff]
    %v1570 = vld [vmem:[#allocation6 + $0x158] sm:$0xff]
    %v1571 = vld [vmem:[#allocation6 + $0x160] sm:$0xff]
    %v1572 = vld [vmem:[#allocation6 + $0x168] sm:$0xff]
    %v1573 = vld [vmem:[#allocation6 + $0x170] sm:$0xff]
    %v1574 = vld [vmem:[#allocation6 + $0x178] sm:$0xff]
    %v1575 = vld [vmem:[#allocation6 + $0x180] sm:$0xff]
    %v1576 = vld [vmem:[#allocation6 + $0x188] sm:$0xff]
    %v1577 = vld [vmem:[#allocation6 + $0x190] sm:$0xff]
    %v1578 = vld [vmem:[#allocation6 + $0x198] sm:$0xff]
    %v1579 = vld [vmem:[#allocation6 + $0x1a0] sm:$0xff]
    %v1580 = vld [vmem:[#allocation6 + $0x1a8] sm:$0xff]
    %v1581 = vld [vmem:[#allocation6 + $0x1b0] sm:$0xff]
    %v1582 = vld [vmem:[#allocation6 + $0x1b8] sm:$0xff]
    %v1583 = vld [vmem:[#allocation6 + $0x1c0] sm:$0xff]
    %v1584 = vld [vmem:[#allocation6 + $0x1c8] sm:$0xff]
    %v1585 = vld [vmem:[#allocation6 + $0x1d0] sm:$0xff]
    %v1586 = vld [vmem:[#allocation6 + $0x1d8] sm:$0xff]
    %v1587 = vld [vmem:[#allocation6 + $0x1e0] sm:$0xff]
    %v1588 = vld [vmem:[#allocation6 + $0x1e8] sm:$0xff]
    %v1589 = vld [vmem:[#allocation6 + $0x1f0] sm:$0xff]
    %v1590 = vld [vmem:[#allocation6 + $0x1f8] sm:$0xff]
    %v1591 = vld [vmem:[#allocation6 + $0x200] sm:$0xff]
    %v1592 = vld [vmem:[#allocation6 + $0x208] sm:$0xff]
    %v1593 = vld [vmem:[#allocation6 + $0x210] sm:$0xff]
    %v1594 = vld [vmem:[#allocation6 + $0x218] sm:$0xff]
    %v1595 = vld [vmem:[#allocation6 + $0x220] sm:$0xff]
    %v1596 = vld [vmem:[#allocation6 + $0x228] sm:$0xff]
    %v1597 = vld [vmem:[#allocation6 + $0x230] sm:$0xff]
    %v1598 = vld [vmem:[#allocation6 + $0x238] sm:$0xff]
    %v1599 = vld [vmem:[#allocation6 + $0x240] sm:$0xff]
    %v1600 = vld [vmem:[#allocation6 + $0x248] sm:$0xff]
    %v1601 = vld [vmem:[#allocation6 + $0x250] sm:$0xff]
    %v1602 = vld [vmem:[#allocation6 + $0x258] sm:$0xff]
    %v1603 = vld [vmem:[#allocation6 + $0x260] sm:$0xff]
    %v1604 = vld [vmem:[#allocation6 + $0x268] sm:$0xff]
    %v1605 = vld [vmem:[#allocation6 + $0x270] sm:$0xff]
    %v1606 = vld [vmem:[#allocation6 + $0x278] sm:$0xff]
    %v1607 = vld [vmem:[#allocation6 + $0x280] sm:$0xff]
    %v1608 = vld [vmem:[#allocation6 + $0x288] sm:$0xff]
    %v1609 = vld [vmem:[#allocation6 + $0x290] sm:$0xff]
    %v1610 = vld [vmem:[#allocation6 + $0x298] sm:$0xff]
    %v1611 = vld [vmem:[#allocation6 + $0x2a0] sm:$0xff]
    %v1612 = vld [vmem:[#allocation6 + $0x2a8] sm:$0xff]
    %v1613 = vld [vmem:[#allocation6 + $0x2b0] sm:$0xff]
    %v1614 = vld [vmem:[#allocation6 + $0x2b8] sm:$0xff]
    %v1615 = vld [vmem:[#allocation6 + $0x2c0] sm:$0xff]
    %v1616 = vld [vmem:[#allocation6 + $0x2c8] sm:$0xff]
    %v1617 = vld [vmem:[#allocation6 + $0x2d0] sm:$0xff]
    %v1618 = vld [vmem:[#allocation6 + $0x2d8] sm:$0xff]
    %v1619 = vld [vmem:[#allocation6 + $0x2e0] sm:$0xff]
    %v1620 = vld [vmem:[#allocation6 + $0x2e8] sm:$0xff]
    %v1621 = vld [vmem:[#allocation6 + $0x2f0] sm:$0xff]
    %v1622 = vld [vmem:[#allocation6 + $0x2f8] sm:$0xff]
    %v1623 = vld [vmem:[#allocation6 + $0x300] sm:$0xff]
    %v1624 = vld [vmem:[#allocation6 + $0x308] sm:$0xff]
    %v1625 = vld [vmem:[#allocation6 + $0x310] sm:$0xff]
    %v1626 = vld [vmem:[#allocation6 + $0x318] sm:$0xff]
    %v1627 = vld [vmem:[#allocation6 + $0x320] sm:$0xff]
    %v1628 = vld [vmem:[#allocation6 + $0x328] sm:$0xff]
    %v1629 = vld [vmem:[#allocation6 + $0x330] sm:$0xff]
    %v1630 = vld [vmem:[#allocation6 + $0x338] sm:$0xff]
    %v1631 = vld [vmem:[#allocation6 + $0x340] sm:$0xff]
    %v1632 = vld [vmem:[#allocation6 + $0x348] sm:$0xff]
    %v1633 = vld [vmem:[#allocation6 + $0x350] sm:$0xff]
    %v1634 = vld [vmem:[#allocation6 + $0x358] sm:$0xff]
    %v1635 = vld [vmem:[#allocation6 + $0x360] sm:$0xff]
    %v1636 = vld [vmem:[#allocation6 + $0x368] sm:$0xff]
    %v1637 = vld [vmem:[#allocation6 + $0x370] sm:$0xff]
    %v1638 = vld [vmem:[#allocation6 + $0x378] sm:$0xff]
    %v1639 = vld [vmem:[#allocation6 + $0x380] sm:$0xff]
    %v1640 = vld [vmem:[#allocation6 + $0x388] sm:$0xff]
    %v1641 = vld [vmem:[#allocation6 + $0x390] sm:$0xff]
    %v1642 = vld [vmem:[#allocation6 + $0x398] sm:$0xff]
    %v1643 = vld [vmem:[#allocation6 + $0x3a0] sm:$0xff]
    %v1644 = vld [vmem:[#allocation6 + $0x3a8] sm:$0xff]
    %v1645 = vld [vmem:[#allocation6 + $0x3b0] sm:$0xff]
    %v1646 = vld [vmem:[#allocation6 + $0x3b8] sm:$0xff]
    %v1647 = vld [vmem:[#allocation6 + $0x3c0] sm:$0xff]
    %v1648 = vld [vmem:[#allocation6 + $0x3c8] sm:$0xff]
    %v1649 = vld [vmem:[#allocation6 + $0x3d0] sm:$0xff]
    %v1650 = vld [vmem:[#allocation6 + $0x3d8] sm:$0xff]
    %v1651 = vld [vmem:[#allocation6 + $0x3e0] sm:$0xff]
    %v1652 = vld [vmem:[#allocation6 + $0x3e8] sm:$0xff]
    %v1653 = vld [vmem:[#allocation6 + $0x3f0] sm:$0xff]
    %v1654 = vld [vmem:[#allocation6 + $0x3f8] sm:$0xff]
    %v1656 = vunpack.c.l.b16 %v1526
    %v1657 = vunpack.c.h.b16 %v1526
    %v1658 = vpack.c.b16 %v1656, %v1656
    %v1659 = vpack.c.b16 %v1657, %v1657
    %v1790 = vunpack.c.l.b16 %v1527
    %v1791 = vunpack.c.h.b16 %v1527
    %v1792 = vunpack.c.l.b16 %v1528
    %v1793 = vunpack.c.h.b16 %v1528
    %v1794 = vunpack.c.l.b16 %v1529
    %v1795 = vunpack.c.h.b16 %v1529
    %v1796 = vunpack.c.l.b16 %v1530
    %v1797 = vunpack.c.h.b16 %v1530
    %v1798 = vunpack.c.l.b16 %v1531
    %v1799 = vunpack.c.h.b16 %v1531
    %v1800 = vunpack.c.l.b16 %v1532
    %v1801 = vunpack.c.h.b16 %v1532
    %v1802 = vunpack.c.l.b16 %v1533
    %v1803 = vunpack.c.h.b16 %v1533
    %v1804 = vunpack.c.l.b16 %v1534
    %v1805 = vunpack.c.h.b16 %v1534
    %v1806 = vunpack.c.l.b16 %v1535
    %v1807 = vunpack.c.h.b16 %v1535
    %v1808 = vunpack.c.l.b16 %v1536
    %v1809 = vunpack.c.h.b16 %v1536
    %v1810 = vunpack.c.l.b16 %v1537
    %v1811 = vunpack.c.h.b16 %v1537
    %v1812 = vunpack.c.l.b16 %v1538
    %v1813 = vunpack.c.h.b16 %v1538
    %v1814 = vunpack.c.l.b16 %v1539
    %v1815 = vunpack.c.h.b16 %v1539
    %v1816 = vunpack.c.l.b16 %v1540
    %v1817 = vunpack.c.h.b16 %v1540
    %v1818 = vunpack.c.l.b16 %v1541
    %v1819 = vunpack.c.h.b16 %v1541
    %v1820 = vunpack.c.l.b16 %v1542
    %v1821 = vunpack.c.h.b16 %v1542
    %v1822 = vunpack.c.l.b16 %v1543
    %v1823 = vunpack.c.h.b16 %v1543
    %v1824 = vunpack.c.l.b16 %v1544
    %v1825 = vunpack.c.h.b16 %v1544
    %v1826 = vunpack.c.l.b16 %v1545
    %v1827 = vunpack.c.h.b16 %v1545
    %v1828 = vunpack.c.l.b16 %v1546
    %v1829 = vunpack.c.h.b16 %v1546
    %v1830 = vunpack.c.l.b16 %v1547
    %v1831 = vunpack.c.h.b16 %v1547
    %v1832 = vunpack.c.l.b16 %v1548
    %v1833 = vunpack.c.h.b16 %v1548
    %v1834 = vunpack.c.l.b16 %v1549
    %v1835 = vunpack.c.h.b16 %v1549
    %v1836 = vunpack.c.l.b16 %v1550
    %v1837 = vunpack.c.h.b16 %v1550
    %v1838 = vunpack.c.l.b16 %v1551
    %v1839 = vunpack.c.h.b16 %v1551
    %v1840 = vunpack.c.l.b16 %v1552
    %v1841 = vunpack.c.h.b16 %v1552
    %v1842 = vunpack.c.l.b16 %v1553
    %v1843 = vunpack.c.h.b16 %v1553
    %v1844 = vunpack.c.l.b16 %v1554
    %v1845 = vunpack.c.h.b16 %v1554
    %v1846 = vunpack.c.l.b16 %v1555
    %v1847 = vunpack.c.h.b16 %v1555
    %v1848 = vunpack.c.l.b16 %v1556
    %v1849 = vunpack.c.h.b16 %v1556
    %v1850 = vunpack.c.l.b16 %v1557
    %v1851 = vunpack.c.h.b16 %v1557
    %v1852 = vunpack.c.l.b16 %v1558
    %v1853 = vunpack.c.h.b16 %v1558
    %v1854 = vunpack.c.l.b16 %v1559
    %v1855 = vunpack.c.h.b16 %v1559
    %v1856 = vunpack.c.l.b16 %v1560
    %v1857 = vunpack.c.h.b16 %v1560
    %v1858 = vunpack.c.l.b16 %v1561
    %v1859 = vunpack.c.h.b16 %v1561
    %v1860 = vunpack.c.l.b16 %v1562
    %v1861 = vunpack.c.h.b16 %v1562
    %v1862 = vunpack.c.l.b16 %v1563
    %v1863 = vunpack.c.h.b16 %v1563
    %v1864 = vunpack.c.l.b16 %v1564
    %v1865 = vunpack.c.h.b16 %v1564
    %v1866 = vunpack.c.l.b16 %v1565
    %v1867 = vunpack.c.h.b16 %v1565
    %v1868 = vunpack.c.l.b16 %v1566
    %v1869 = vunpack.c.h.b16 %v1566
    %v1870 = vunpack.c.l.b16 %v1567
    %v1871 = vunpack.c.h.b16 %v1567
    %v1872 = vunpack.c.l.b16 %v1568
    %v1873 = vunpack.c.h.b16 %v1568
    %v1874 = vunpack.c.l.b16 %v1569
    %v1875 = vunpack.c.h.b16 %v1569
    %v1876 = vunpack.c.l.b16 %v1570
    %v1877 = vunpack.c.h.b16 %v1570
    %v1878 = vunpack.c.l.b16 %v1571
    %v1879 = vunpack.c.h.b16 %v1571
    %v1880 = vunpack.c.l.b16 %v1572
    %v1881 = vunpack.c.h.b16 %v1572
    %v1882 = vunpack.c.l.b16 %v1573
    %v1883 = vunpack.c.h.b16 %v1573
    %v1884 = vunpack.c.l.b16 %v1574
    %v1885 = vunpack.c.h.b16 %v1574
    %v1886 = vunpack.c.l.b16 %v1575
    %v1887 = vunpack.c.h.b16 %v1575
    %v1888 = vunpack.c.l.b16 %v1576
    %v1889 = vunpack.c.h.b16 %v1576
    %v1890 = vunpack.c.l.b16 %v1577
    %v1891 = vunpack.c.h.b16 %v1577
    %v1892 = vunpack.c.l.b16 %v1578
    %v1893 = vunpack.c.h.b16 %v1578
    %v1894 = vunpack.c.l.b16 %v1579
    %v1895 = vunpack.c.h.b16 %v1579
    %v1896 = vunpack.c.l.b16 %v1580
    %v1897 = vunpack.c.h.b16 %v1580
    %v1898 = vunpack.c.l.b16 %v1581
    %v1899 = vunpack.c.h.b16 %v1581
    %v1900 = vunpack.c.l.b16 %v1582
    %v1901 = vunpack.c.h.b16 %v1582
    %v1902 = vunpack.c.l.b16 %v1583
    %v1903 = vunpack.c.h.b16 %v1583
    %v1904 = vunpack.c.l.b16 %v1584
    %v1905 = vunpack.c.h.b16 %v1584
    %v1906 = vunpack.c.l.b16 %v1585
    %v1907 = vunpack.c.h.b16 %v1585
    %v1908 = vunpack.c.l.b16 %v1586
    %v1909 = vunpack.c.h.b16 %v1586
    %v1910 = vunpack.c.l.b16 %v1587
    %v1911 = vunpack.c.h.b16 %v1587
    %v1912 = vunpack.c.l.b16 %v1588
    %v1913 = vunpack.c.h.b16 %v1588
    %v1914 = vunpack.c.l.b16 %v1589
    %v1915 = vunpack.c.h.b16 %v1589
    %v1916 = vunpack.c.l.b16 %v1590
    %v1917 = vunpack.c.h.b16 %v1590
    %v1918 = vunpack.c.l.b16 %v1591
    %v1919 = vunpack.c.h.b16 %v1591
    %v1920 = vunpack.c.l.b16 %v1592
    %v1921 = vunpack.c.h.b16 %v1592
    %v1922 = vunpack.c.l.b16 %v1593
    %v1923 = vunpack.c.h.b16 %v1593
    %v1924 = vunpack.c.l.b16 %v1594
    %v1925 = vunpack.c.h.b16 %v1594
    %v1926 = vunpack.c.l.b16 %v1595
    %v1927 = vunpack.c.h.b16 %v1595
    %v1928 = vunpack.c.l.b16 %v1596
    %v1929 = vunpack.c.h.b16 %v1596
    %v1930 = vunpack.c.l.b16 %v1597
    %v1931 = vunpack.c.h.b16 %v1597
    %v1932 = vunpack.c.l.b16 %v1598
    %v1933 = vunpack.c.h.b16 %v1598
    %v1934 = vunpack.c.l.b16 %v1599
    %v1935 = vunpack.c.h.b16 %v1599
    %v1936 = vunpack.c.l.b16 %v1600
    %v1937 = vunpack.c.h.b16 %v1600
    %v1938 = vunpack.c.l.b16 %v1601
    %v1939 = vunpack.c.h.b16 %v1601
    %v1940 = vunpack.c.l.b16 %v1602
    %v1941 = vunpack.c.h.b16 %v1602
    %v1942 = vunpack.c.l.b16 %v1603
    %v1943 = vunpack.c.h.b16 %v1603
    %v1944 = vunpack.c.l.b16 %v1604
    %v1945 = vunpack.c.h.b16 %v1604
    %v1946 = vunpack.c.l.b16 %v1605
    %v1947 = vunpack.c.h.b16 %v1605
    %v1948 = vunpack.c.l.b16 %v1606
    %v1949 = vunpack.c.h.b16 %v1606
    %v1950 = vunpack.c.l.b16 %v1607
    %v1951 = vunpack.c.h.b16 %v1607
    %v1952 = vunpack.c.l.b16 %v1608
    %v1953 = vunpack.c.h.b16 %v1608
    %v1954 = vunpack.c.l.b16 %v1609
    %v1955 = vunpack.c.h.b16 %v1609
    %v1956 = vunpack.c.l.b16 %v1610
    %v1957 = vunpack.c.h.b16 %v1610
    %v1958 = vunpack.c.l.b16 %v1611
    %v1959 = vunpack.c.h.b16 %v1611
    %v1960 = vunpack.c.l.b16 %v1612
    %v1961 = vunpack.c.h.b16 %v1612
    %v1962 = vunpack.c.l.b16 %v1613
    %v1963 = vunpack.c.h.b16 %v1613
    %v1964 = vunpack.c.l.b16 %v1614
    %v1965 = vunpack.c.h.b16 %v1614
    %v1966 = vunpack.c.l.b16 %v1615
    %v1967 = vunpack.c.h.b16 %v1615
    %v1968 = vunpack.c.l.b16 %v1616
    %v1969 = vunpack.c.h.b16 %v1616
    %v1970 = vunpack.c.l.b16 %v1617
    %v1971 = vunpack.c.h.b16 %v1617
    %v1972 = vunpack.c.l.b16 %v1618
    %v1973 = vunpack.c.h.b16 %v1618
    %v1974 = vunpack.c.l.b16 %v1619
    %v1975 = vunpack.c.h.b16 %v1619
    %v1976 = vunpack.c.l.b16 %v1620
    %v1977 = vunpack.c.h.b16 %v1620
    %v1978 = vunpack.c.l.b16 %v1621
    %v1979 = vunpack.c.h.b16 %v1621
    %v1980 = vunpack.c.l.b16 %v1622
    %v1981 = vunpack.c.h.b16 %v1622
    %v1982 = vunpack.c.l.b16 %v1623
    %v1983 = vunpack.c.h.b16 %v1623
    %v1984 = vunpack.c.l.b16 %v1624
    %v1985 = vunpack.c.h.b16 %v1624
    %v1986 = vunpack.c.l.b16 %v1625
    %v1987 = vunpack.c.h.b16 %v1625
    %v1988 = vunpack.c.l.b16 %v1626
    %v1989 = vunpack.c.h.b16 %v1626
    %v1990 = vunpack.c.l.b16 %v1627
    %v1991 = vunpack.c.h.b16 %v1627
    %v1992 = vunpack.c.l.b16 %v1628
    %v1993 = vunpack.c.h.b16 %v1628
    %v1994 = vunpack.c.l.b16 %v1629
    %v1995 = vunpack.c.h.b16 %v1629
    %v1996 = vunpack.c.l.b16 %v1630
    %v1997 = vunpack.c.h.b16 %v1630
    %v1998 = vunpack.c.l.b16 %v1631
    %v1999 = vunpack.c.h.b16 %v1631
    %v2000 = vunpack.c.l.b16 %v1632
    %v2001 = vunpack.c.h.b16 %v1632
    %v2002 = vunpack.c.l.b16 %v1633
    %v2003 = vunpack.c.h.b16 %v1633
    %v2004 = vunpack.c.l.b16 %v1634
    %v2005 = vunpack.c.h.b16 %v1634
    %v2006 = vunpack.c.l.b16 %v1635
    %v2007 = vunpack.c.h.b16 %v1635
    %v2008 = vunpack.c.l.b16 %v1636
    %v2009 = vunpack.c.h.b16 %v1636
    %v2010 = vunpack.c.l.b16 %v1637
    %v2011 = vunpack.c.h.b16 %v1637
    %v2012 = vunpack.c.l.b16 %v1638
    %v2013 = vunpack.c.h.b16 %v1638
    %v2014 = vunpack.c.l.b16 %v1639
    %v2015 = vunpack.c.h.b16 %v1639
    %v2016 = vunpack.c.l.b16 %v1640
    %v2017 = vunpack.c.h.b16 %v1640
    %v2018 = vunpack.c.l.b16 %v1641
    %v2019 = vunpack.c.h.b16 %v1641
    %v2020 = vunpack.c.l.b16 %v1642
    %v2021 = vunpack.c.h.b16 %v1642
    %v2022 = vunpack.c.l.b16 %v1643
    %v2023 = vunpack.c.h.b16 %v1643
    %v2024 = vunpack.c.l.b16 %v1644
    %v2025 = vunpack.c.h.b16 %v1644
    %v2026 = vunpack.c.l.b16 %v1645
    %v2027 = vunpack.c.h.b16 %v1645
    %v2028 = vunpack.c.l.b16 %v1646
    %v2029 = vunpack.c.h.b16 %v1646
    %v2030 = vunpack.c.l.b16 %v1647
    %v2031 = vunpack.c.h.b16 %v1647
    %v2032 = vunpack.c.l.b16 %v1648
    %v2033 = vunpack.c.h.b16 %v1648
    %v2034 = vunpack.c.l.b16 %v1649
    %v2035 = vunpack.c.h.b16 %v1649
    %v2036 = vunpack.c.l.b16 %v1650
    %v2037 = vunpack.c.h.b16 %v1650
    %v2038 = vunpack.c.l.b16 %v1651
    %v2039 = vunpack.c.h.b16 %v1651
    %v2040 = vunpack.c.l.b16 %v1652
    %v2041 = vunpack.c.h.b16 %v1652
    %v2042 = vunpack.c.l.b16 %v1653
    %v2043 = vunpack.c.h.b16 %v1653
    %v2044 = vunpack.c.l.b16 %v1654
    %v2045 = vunpack.c.h.b16 %v1654
    %v2046 = vpack.c.b16 %v1798, %v1790
    %v2047 = vpack.c.b16 %v1799, %v1791
    %v2048 = vpack.c.b16 %v1800, %v1792
    %v2049 = vpack.c.b16 %v1801, %v1793
    %v2050 = vpack.c.b16 %v1802, %v1794
    %v2051 = vpack.c.b16 %v1803, %v1795
    %v2052 = vpack.c.b16 %v1804, %v1796
    %v2053 = vpack.c.b16 %v1805, %v1797
    %v2054 = vpack.c.b16 %v1814, %v1806
    %v2055 = vpack.c.b16 %v1815, %v1807
    %v2056 = vpack.c.b16 %v1816, %v1808
    %v2057 = vpack.c.b16 %v1817, %v1809
    %v2058 = vpack.c.b16 %v1818, %v1810
    %v2059 = vpack.c.b16 %v1819, %v1811
    %v2060 = vpack.c.b16 %v1820, %v1812
    %v2061 = vpack.c.b16 %v1821, %v1813
    %v2062 = vpack.c.b16 %v1830, %v1822
    %v2063 = vpack.c.b16 %v1831, %v1823
    %v2064 = vpack.c.b16 %v1832, %v1824
    %v2065 = vpack.c.b16 %v1833, %v1825
    %v2066 = vpack.c.b16 %v1834, %v1826
    %v2067 = vpack.c.b16 %v1835, %v1827
    %v2068 = vpack.c.b16 %v1836, %v1828
    %v2069 = vpack.c.b16 %v1837, %v1829
    %v2070 = vpack.c.b16 %v1846, %v1838
    %v2071 = vpack.c.b16 %v1847, %v1839
    %v2072 = vpack.c.b16 %v1848, %v1840
    %v2073 = vpack.c.b16 %v1849, %v1841
    %v2074 = vpack.c.b16 %v1850, %v1842
    %v2075 = vpack.c.b16 %v1851, %v1843
    %v2076 = vpack.c.b16 %v1852, %v1844
    %v2077 = vpack.c.b16 %v1853, %v1845
    %v2078 = vpack.c.b16 %v1862, %v1854
    %v2079 = vpack.c.b16 %v1863, %v1855
    %v2080 = vpack.c.b16 %v1864, %v1856
    %v2081 = vpack.c.b16 %v1865, %v1857
    %v2082 = vpack.c.b16 %v1866, %v1858
    %v2083 = vpack.c.b16 %v1867, %v1859
    %v2084 = vpack.c.b16 %v1868, %v1860
    %v2085 = vpack.c.b16 %v1869, %v1861
    %v2086 = vpack.c.b16 %v1878, %v1870
    %v2087 = vpack.c.b16 %v1879, %v1871
    %v2088 = vpack.c.b16 %v1880, %v1872
    %v2089 = vpack.c.b16 %v1881, %v1873
    %v2090 = vpack.c.b16 %v1882, %v1874
    %v2091 = vpack.c.b16 %v1883, %v1875
    %v2092 = vpack.c.b16 %v1884, %v1876
    %v2093 = vpack.c.b16 %v1885, %v1877
    %v2094 = vpack.c.b16 %v1894, %v1886
    %v2095 = vpack.c.b16 %v1895, %v1887
    %v2096 = vpack.c.b16 %v1896, %v1888
    %v2097 = vpack.c.b16 %v1897, %v1889
    %v2098 = vpack.c.b16 %v1898, %v1890
    %v2099 = vpack.c.b16 %v1899, %v1891
    %v2100 = vpack.c.b16 %v1900, %v1892
    %v2101 = vpack.c.b16 %v1901, %v1893
    %v2102 = vpack.c.b16 %v1910, %v1902
    %v2103 = vpack.c.b16 %v1911, %v1903
    %v2104 = vpack.c.b16 %v1912, %v1904
    %v2105 = vpack.c.b16 %v1913, %v1905
    %v2106 = vpack.c.b16 %v1914, %v1906
    %v2107 = vpack.c.b16 %v1915, %v1907
    %v2108 = vpack.c.b16 %v1916, %v1908
    %v2109 = vpack.c.b16 %v1917, %v1909
    %v2110 = vpack.c.b16 %v1926, %v1918
    %v2111 = vpack.c.b16 %v1927, %v1919
    %v2112 = vpack.c.b16 %v1928, %v1920
    %v2113 = vpack.c.b16 %v1929, %v1921
    %v2114 = vpack.c.b16 %v1930, %v1922
    %v2115 = vpack.c.b16 %v1931, %v1923
    %v2116 = vpack.c.b16 %v1932, %v1924
    %v2117 = vpack.c.b16 %v1933, %v1925
    %v2118 = vpack.c.b16 %v1942, %v1934
    %v2119 = vpack.c.b16 %v1943, %v1935
    %v2120 = vpack.c.b16 %v1944, %v1936
    %v2121 = vpack.c.b16 %v1945, %v1937
    %v2122 = vpack.c.b16 %v1946, %v1938
    %v2123 = vpack.c.b16 %v1947, %v1939
    %v2124 = vpack.c.b16 %v1948, %v1940
    %v2125 = vpack.c.b16 %v1949, %v1941
    %v2126 = vpack.c.b16 %v1958, %v1950
    %v2127 = vpack.c.b16 %v1959, %v1951
    %v2128 = vpack.c.b16 %v1960, %v1952
    %v2129 = vpack.c.b16 %v1961, %v1953
    %v2130 = vpack.c.b16 %v1962, %v1954
    %v2131 = vpack.c.b16 %v1963, %v1955
    %v2132 = vpack.c.b16 %v1964, %v1956
    %v2133 = vpack.c.b16 %v1965, %v1957
    %v2134 = vpack.c.b16 %v1974, %v1966
    %v2135 = vpack.c.b16 %v1975, %v1967
    %v2136 = vpack.c.b16 %v1976, %v1968
    %v2137 = vpack.c.b16 %v1977, %v1969
    %v2138 = vpack.c.b16 %v1978, %v1970
    %v2139 = vpack.c.b16 %v1979, %v1971
    %v2140 = vpack.c.b16 %v1980, %v1972
    %v2141 = vpack.c.b16 %v1981, %v1973
    %v2142 = vpack.c.b16 %v1990, %v1982
    %v2143 = vpack.c.b16 %v1991, %v1983
    %v2144 = vpack.c.b16 %v1992, %v1984
    %v2145 = vpack.c.b16 %v1993, %v1985
    %v2146 = vpack.c.b16 %v1994, %v1986
    %v2147 = vpack.c.b16 %v1995, %v1987
    %v2148 = vpack.c.b16 %v1996, %v1988
    %v2149 = vpack.c.b16 %v1997, %v1989
    %v2150 = vpack.c.b16 %v2006, %v1998
    %v2151 = vpack.c.b16 %v2007, %v1999
    %v2152 = vpack.c.b16 %v2008, %v2000
    %v2153 = vpack.c.b16 %v2009, %v2001
    %v2154 = vpack.c.b16 %v2010, %v2002
    %v2155 = vpack.c.b16 %v2011, %v2003
    %v2156 = vpack.c.b16 %v2012, %v2004
    %v2157 = vpack.c.b16 %v2013, %v2005
    %v2158 = vpack.c.b16 %v2022, %v2014
    %v2159 = vpack.c.b16 %v2023, %v2015
    %v2160 = vpack.c.b16 %v2024, %v2016
    %v2161 = vpack.c.b16 %v2025, %v2017
    %v2162 = vpack.c.b16 %v2026, %v2018
    %v2163 = vpack.c.b16 %v2027, %v2019
    %v2164 = vpack.c.b16 %v2028, %v2020
    %v2165 = vpack.c.b16 %v2029, %v2021
    %v2166 = vpack.c.b16 %v2038, %v2030
    %v2167 = vpack.c.b16 %v2039, %v2031
    %v2168 = vpack.c.b16 %v2040, %v2032
    %v2169 = vpack.c.b16 %v2041, %v2033
    %v2170 = vpack.c.b16 %v2042, %v2034
    %v2171 = vpack.c.b16 %v2043, %v2035
    %v2172 = vpack.c.b16 %v2044, %v2036
    %v2173 = vpack.c.b16 %v2045, %v2037
    %2302 = vmatprep.subr.bf16.mxu0 %v2047
    %2303 = vmatpush1.bf16.msra.mxu0 %v2046
    %2304 = vmatprep.subr.bf16.mxu0 %v2055
    %2305 = vmatpush1.bf16.msra.mxu0 %v2054
    %2306 = vmatprep.subr.bf16.mxu0 %v2063
    %2307 = vmatpush1.bf16.msra.mxu0 %v2062
    %2308 = vmatprep.subr.bf16.mxu0 %v2071
    %2309 = vmatpush1.bf16.msra.mxu0 %v2070
    %2310 = vmatprep.subr.bf16.mxu0 %v2079
    %2311 = vmatpush1.bf16.msra.mxu0 %v2078
    %2312 = vmatprep.subr.bf16.mxu0 %v2087
    %2313 = vmatpush1.bf16.msra.mxu0 %v2086
    %2314 = vmatprep.subr.bf16.mxu0 %v2095
    %2315 = vmatpush1.bf16.msra.mxu0 %v2094
    %2316 = vmatprep.subr.bf16.mxu0 %v2103
    %2317 = vmatpush1.bf16.msra.mxu0 %v2102
    %2318 = vmatprep.subr.bf16.mxu0 %v2111
    %2319 = vmatpush1.bf16.msra.mxu0 %v2110
    %2320 = vmatprep.subr.bf16.mxu0 %v2119
    %2321 = vmatpush1.bf16.msra.mxu0 %v2118
    %2322 = vmatprep.subr.bf16.mxu0 %v2127
    %2323 = vmatpush1.bf16.msra.mxu0 %v2126
    %2324 = vmatprep.subr.bf16.mxu0 %v2135
    %2325 = vmatpush1.bf16.msra.mxu0 %v2134
    %2326 = vmatprep.subr.bf16.mxu0 %v2143
    %2327 = vmatpush1.bf16.msra.mxu0 %v2142
    %2328 = vmatprep.subr.bf16.mxu0 %v2151
    %2329 = vmatpush1.bf16.msra.mxu0 %v2150
    %2330 = vmatprep.subr.bf16.mxu0 %v2159
    %2331 = vmatpush1.bf16.msra.mxu0 %v2158
    %2332 = vmatprep.subr.bf16.mxu0 %v2167
    %2333 = vmatpush1.bf16.msra.mxu0 %v2166
    %2334 = vmatprep.mubr.bf16.mxu0 %v1659
    %2335 = vmatmul.mubr.bf16.gmra.mrb[0].mxu0 %v1658
    %v2336 = vpop.f32.mrb[0].mxu0
    %v2337 = vadd.f32 0.0, %v2336
    %v2338 = vpop.f32.mrb[0].mxu0
    %v2339 = vadd.f32 0.0, %v2338
    %v2340 = vpop.f32.mrb[0].mxu0
    %v2341 = vpop.f32.mrb[0].mxu0
    %2342 = vdwg.mxu0
    %2343 = vmatprep.subr.bf16.mxu0 %v2049
    %2344 = vmatpush1.bf16.msra.mxu0 %v2048
    %2345 = vmatprep.subr.bf16.mxu0 %v2057
    %2346 = vmatpush1.bf16.msra.mxu0 %v2056
    %2347 = vmatprep.subr.bf16.mxu0 %v2065
    %2348 = vmatpush1.bf16.msra.mxu0 %v2064
    %2349 = vmatprep.subr.bf16.mxu0 %v2073
    %2350 = vmatpush1.bf16.msra.mxu0 %v2072
    %2351 = vmatprep.subr.bf16.mxu0 %v2081
    %2352 = vmatpush1.bf16.msra.mxu0 %v2080
    %2353 = vmatprep.subr.bf16.mxu0 %v2089
    %2354 = vmatpush1.bf16.msra.mxu0 %v2088
    %2355 = vmatprep.subr.bf16.mxu0 %v2097
    %2356 = vmatpush1.bf16.msra.mxu0 %v2096
    %2357 = vmatprep.subr.bf16.mxu0 %v2105
    %2358 = vmatpush1.bf16.msra.mxu0 %v2104
    %2359 = vmatprep.subr.bf16.mxu0 %v2113
    %2360 = vmatpush1.bf16.msra.mxu0 %v2112
    %2361 = vmatprep.subr.bf16.mxu0 %v2121
    %2362 = vmatpush1.bf16.msra.mxu0 %v2120
    %2363 = vmatprep.subr.bf16.mxu0 %v2129
    %2364 = vmatpush1.bf16.msra.mxu0 %v2128
    %2365 = vmatprep.subr.bf16.mxu0 %v2137
    %2366 = vmatpush1.bf16.msra.mxu0 %v2136
    %2367 = vmatprep.subr.bf16.mxu0 %v2145
    %2368 = vmatpush1.bf16.msra.mxu0 %v2144
    %2369 = vmatprep.subr.bf16.mxu0 %v2153
    %2370 = vmatpush1.bf16.msra.mxu0 %v2152
    %2371 = vmatprep.subr.bf16.mxu0 %v2161
    %2372 = vmatpush1.bf16.msra.mxu0 %v2160
    %2373 = vmatprep.subr.bf16.mxu0 %v2169
    %2374 = vmatpush1.bf16.msra.mxu0 %v2168
    %2375 = vmatprep.mubr.bf16.mxu0 %v1659
    %2376 = vmatmul.mubr.bf16.gmra.mrb[0].mxu0 %v1658
    %v2377 = vpop.f32.mrb[0].mxu0
    %v2378 = vadd.f32 0.0, %v2377
    %v2379 = vpop.f32.mrb[0].mxu0
    %v2380 = vadd.f32 0.0, %v2379
    %v2381 = vpop.f32.mrb[0].mxu0
    %v2382 = vpop.f32.mrb[0].mxu0
    %2383 = vdwg.mxu0
    %2384 = vmatprep.subr.bf16.mxu0 %v2051
    %2385 = vmatpush1.bf16.msra.mxu0 %v2050
    %2386 = vmatprep.subr.bf16.mxu0 %v2059
    %2387 = vmatpush1.bf16.msra.mxu0 %v2058
    %2388 = vmatprep.subr.bf16.mxu0 %v2067
    %2389 = vmatpush1.bf16.msra.mxu0 %v2066
    %2390 = vmatprep.subr.bf16.mxu0 %v2075
    %2391 = vmatpush1.bf16.msra.mxu0 %v2074
    %2392 = vmatprep.subr.bf16.mxu0 %v2083
    %2393 = vmatpush1.bf16.msra.mxu0 %v2082
    %2394 = vmatprep.subr.bf16.mxu0 %v2091
    %2395 = vmatpush1.bf16.msra.mxu0 %v2090
    %2396 = vmatprep.subr.bf16.mxu0 %v2099
    %2397 = vmatpush1.bf16.msra.mxu0 %v2098
    %2398 = vmatprep.subr.bf16.mxu0 %v2107
    %2399 = vmatpush1.bf16.msra.mxu0 %v2106
    %2400 = vmatprep.subr.bf16.mxu0 %v2115
    %2401 = vmatpush1.bf16.msra.mxu0 %v2114
    %2402 = vmatprep.subr.bf16.mxu0 %v2123
    %2403 = vmatpush1.bf16.msra.mxu0 %v2122
    %2404 = vmatprep.subr.bf16.mxu0 %v2131
    %2405 = vmatpush1.bf16.msra.mxu0 %v2130
    %2406 = vmatprep.subr.bf16.mxu0 %v2139
    %2407 = vmatpush1.bf16.msra.mxu0 %v2138
    %2408 = vmatprep.subr.bf16.mxu0 %v2147
    %2409 = vmatpush1.bf16.msra.mxu0 %v2146
    %2410 = vmatprep.subr.bf16.mxu0 %v2155
    %2411 = vmatpush1.bf16.msra.mxu0 %v2154
    %2412 = vmatprep.subr.bf16.mxu0 %v2163
    %2413 = vmatpush1.bf16.msra.mxu0 %v2162
    %2414 = vmatprep.subr.bf16.mxu0 %v2171
    %2415 = vmatpush1.bf16.msra.mxu0 %v2170
    %2416 = vmatprep.mubr.bf16.mxu0 %v1659
    %2417 = vmatmul.mubr.bf16.gmra.mrb[0].mxu0 %v1658
    %v2418 = vpop.f32.mrb[0].mxu0
    %v2419 = vadd.f32 0.0, %v2418
    %v2420 = vpop.f32.mrb[0].mxu0
    %v2421 = vadd.f32 0.0, %v2420
    %v2422 = vpop.f32.mrb[0].mxu0
    %v2423 = vpop.f32.mrb[0].mxu0
    %2424 = vdwg.mxu0
    %2425 = vmatprep.subr.bf16.mxu0 %v2053
    %2426 = vmatpush1.bf16.msra.mxu0 %v2052
    %2427 = vmatprep.subr.bf16.mxu0 %v2061
    %2428 = vmatpush1.bf16.msra.mxu0 %v2060
    %2429 = vmatprep.subr.bf16.mxu0 %v2069
    %2430 = vmatpush1.bf16.msra.mxu0 %v2068
    %2431 = vmatprep.subr.bf16.mxu0 %v2077
    %2432 = vmatpush1.bf16.msra.mxu0 %v2076
    %2433 = vmatprep.subr.bf16.mxu0 %v2085
    %2434 = vmatpush1.bf16.msra.mxu0 %v2084
    %2435 = vmatprep.subr.bf16.mxu0 %v2093
    %2436 = vmatpush1.bf16.msra.mxu0 %v2092
    %2437 = vmatprep.subr.bf16.mxu0 %v2101
    %2438 = vmatpush1.bf16.msra.mxu0 %v2100
    %2439 = vmatprep.subr.bf16.mxu0 %v2109
    %2440 = vmatpush1.bf16.msra.mxu0 %v2108
    %2441 = vmatprep.subr.bf16.mxu0 %v2117
    %2442 = vmatpush1.bf16.msra.mxu0 %v2116
    %2443 = vmatprep.subr.bf16.mxu0 %v2125
    %2444 = vmatpush1.bf16.msra.mxu0 %v2124
    %2445 = vmatprep.subr.bf16.mxu0 %v2133
    %2446 = vmatpush1.bf16.msra.mxu0 %v2132
    %2447 = vmatprep.subr.bf16.mxu0 %v2141
    %2448 = vmatpush1.bf16.msra.mxu0 %v2140
    %2449 = vmatprep.subr.bf16.mxu0 %v2149
    %2450 = vmatpush1.bf16.msra.mxu0 %v2148
    %2451 = vmatprep.subr.bf16.mxu0 %v2157
    %2452 = vmatpush1.bf16.msra.mxu0 %v2156
    %2453 = vmatprep.subr.bf16.mxu0 %v2165
    %2454 = vmatpush1.bf16.msra.mxu0 %v2164
    %2455 = vmatprep.subr.bf16.mxu0 %v2173
    %2456 = vmatpush1.bf16.msra.mxu0 %v2172
    %2457 = vmatprep.mubr.bf16.mxu0 %v1659
    %2458 = vmatmul.mubr.bf16.gmra.mrb[0].mxu0 %v1658
    %v2459 = vpop.f32.mrb[0].mxu0
    %v2460 = vadd.f32 0.0, %v2459
    %v2461 = vpop.f32.mrb[0].mxu0
    %v2462 = vadd.f32 0.0, %v2461
    %v2463 = vpop.f32.mrb[0].mxu0
    %v2464 = vpop.f32.mrb[0].mxu0
    %2465 = vdwg.mxu0
    %s2466 = smul.u32 2, 4
    %s2467 = smul.addr %s2466, 8
    %s2468 = scalar_lea.vmem [#allocation2], %s2467
    %v2469 = vld [vmem:[%s2468] sm:$0xff]
    %v2470 = vld [vmem:[%s2468 + $0x8] sm:$0xff]
    %v2471 = vld [vmem:[%s2468 + $0x10] sm:$0xff]
    %v2472 = vld [vmem:[%s2468 + $0x18] sm:$0xff]
    %v2473 = vadd.f32 %v2469, %v2337
    %v2474 = vadd.f32 %v2470, %v2339
    %v2475 = vadd.f32 %v2471, %v2378
    %v2476 = vadd.f32 %v2472, %v2380
    %v2477 = vld [vmem:[#allocation4] sm:$0xff]
    %v2478 = vxor.u32 %v2473, 2147483648
    %v2479 = vxor.u32 %v2474, 2147483648
    %v2480 = vxor.u32 %v2475, 2147483648
    %v2481 = vmul.f32 %v2478, 1.442695
    %v2482 = vpow.pop %v2481
    %v2483 = vmul.f32 %v2479, 1.442695
    %v2484 = vpow.pop %v2483
    %v2485 = vmul.f32 %v2480, 1.442695
    %v2486 = vpow.pop %v2485
    %v2487 = vadd.f32 %v2482, 1.0
    %v2488 = vadd.f32 %v2484, 1.0
    %v2489 = vadd.f32 %v2486, 1.0
    %v2490 = vrcp.pop %v2487
    %v2491 = vmul.f32 1.0, %v2490
    %v2492 = vrcp.pop %v2488
    %v2493 = vmul.f32 1.0, %v2492
    %v2494 = vrcp.pop %v2489
    %v2495 = vmul.f32 1.0, %v2494
    %v2496 = vtanh.pop %v2476
    %v2497 = vmul.f32 %v2493, %v2477
    %v2498 = vmul.f32 %v2491, %v2496
    %v2499 = vadd.f32 %v2497, %v2498
    %v2500 = vtanh.pop %v2499
    %v2501 = vmul.f32 %v2495, %v2500
    %2502 = vst [vmem:[#allocation4] sm:$0xff] %v2499
    %v2503 = vpack.c.bf16 %v2501, %v2501
    %2504 = vst [vmem:[#allocation3] sm:$0xf] %v2503
    %v2505 = vadd.f32 %v2419, %v464
    %v2506 = vadd.f32 %v2421, %v468
    %v2507 = vadd.f32 %v2460, %v472
    %v2508 = vadd.f32 %v2462, %v476
    %v2509 = vld [vmem:[#allocation5] sm:$0xff]
    %v2510 = vxor.u32 %v2505, 2147483648
    %v2511 = vxor.u32 %v2506, 2147483648
    %v2512 = vxor.u32 %v2507, 2147483648
    %v2513 = vmul.f32 %v2510, 1.442695
    %v2514 = vpow.pop %v2513
    %v2515 = vmul.f32 %v2511, 1.442695
    %v2516 = vpow.pop %v2515
    %v2517 = vmul.f32 %v2512, 1.442695
    %v2518 = vpow.pop %v2517
    %v2519 = vadd.f32 %v2514, 1.0
    %v2520 = vadd.f32 %v2516, 1.0
    %v2521 = vadd.f32 %v2518, 1.0
    %v2522 = vrcp.pop %v2519
    %v2523 = vmul.f32 1.0, %v2522
    %v2524 = vrcp.pop %v2520
    %v2525 = vmul.f32 1.0, %v2524
    %v2526 = vrcp.pop %v2521
    %v2527 = vmul.f32 1.0, %v2526
    %v2528 = vtanh.pop %v2508
    %v2529 = vmul.f32 %v2525, %v2509
    %v2530 = vmul.f32 %v2523, %v2528
    %v2531 = vadd.f32 %v2529, %v2530
    %v2532 = vtanh.pop %v2531
    %v2533 = vmul.f32 %v2527, %v2532
    %2534 = vst [vmem:[#allocation5] sm:$0xff] %v2531
    %v2535 = vpack.c.bf16 %v2533, %v2533
    %2536 = vst [vmem:[#allocation3 + $0x4] sm:$0xf] %v2535
    %s2537 = scalar_lea.vmem %s5, 4
    %2538 = vst [vmem:[%s2537] sm:$0xf] %v2535
    %v2539 = vld [vmem:[#allocation3] sm:$0xff]
    %v2540 = vld [vmem:[#allocation6] sm:$0xff]
    %v2541 = vld [vmem:[#allocation6 + $0x8] sm:$0xff]
    %v2542 = vld [vmem:[#allocation6 + $0x10] sm:$0xff]
    %v2543 = vld [vmem:[#allocation6 + $0x18] sm:$0xff]
    %v2544 = vld [vmem:[#allocation6 + $0x20] sm:$0xff]
    %v2545 = vld [vmem:[#allocation6 + $0x28] sm:$0xff]
    %v2546 = vld [vmem:[#allocation6 + $0x30] sm:$0xff]
    %v2547 = vld [vmem:[#allocation6 + $0x38] sm:$0xff]
    %v2548 = vld [vmem:[#allocation6 + $0x40] sm:$0xff]
    %v2549 = vld [vmem:[#allocation6 + $0x48] sm:$0xff]
    %v2550 = vld [vmem:[#allocation6 + $0x50] sm:$0xff]
    %v2551 = vld [vmem:[#allocation6 + $0x58] sm:$0xff]
    %v2552 = vld [vmem:[#allocation6 + $0x60] sm:$0xff]
    %v2553 = vld [vmem:[#allocation6 + $0x68] sm:$0xff]
    %v2554 = vld [vmem:[#allocation6 + $0x70] sm:$0xff]
    %v2555 = vld [vmem:[#allocation6 + $0x78] sm:$0xff]
    %v2556 = vld [vmem:[#allocation6 + $0x80] sm:$0xff]
    %v2557 = vld [vmem:[#allocation6 + $0x88] sm:$0xff]
    %v2558 = vld [vmem:[#allocation6 + $0x90] sm:$0xff]
    %v2559 = vld [vmem:[#allocation6 + $0x98] sm:$0xff]
    %v2560 = vld [vmem:[#allocation6 + $0xa0] sm:$0xff]
    %v2561 = vld [vmem:[#allocation6 + $0xa8] sm:$0xff]
    %v2562 = vld [vmem:[#allocation6 + $0xb0] sm:$0xff]
    %v2563 = vld [vmem:[#allocation6 + $0xb8] sm:$0xff]
    %v2564 = vld [vmem:[#allocation6 + $0xc0] sm:$0xff]
    %v2565 = vld [vmem:[#allocation6 + $0xc8] sm:$0xff]
    %v2566 = vld [vmem:[#allocation6 + $0xd0] sm:$0xff]
    %v2567 = vld [vmem:[#allocation6 + $0xd8] sm:$0xff]
    %v2568 = vld [vmem:[#allocation6 + $0xe0] sm:$0xff]
    %v2569 = vld [vmem:[#allocation6 + $0xe8] sm:$0xff]
    %v2570 = vld [vmem:[#allocation6 + $0xf0] sm:$0xff]
    %v2571 = vld [vmem:[#allocation6 + $0xf8] sm:$0xff]
    %v2572 = vld [vmem:[#allocation6 + $0x100] sm:$0xff]
    %v2573 = vld [vmem:[#allocation6 + $0x108] sm:$0xff]
    %v2574 = vld [vmem:[#allocation6 + $0x110] sm:$0xff]
    %v2575 = vld [vmem:[#allocation6 + $0x118] sm:$0xff]
    %v2576 = vld [vmem:[#allocation6 + $0x120] sm:$0xff]
    %v2577 = vld [vmem:[#allocation6 + $0x128] sm:$0xff]
    %v2578 = vld [vmem:[#allocation6 + $0x130] sm:$0xff]
    %v2579 = vld [vmem:[#allocation6 + $0x138] sm:$0xff]
    %v2580 = vld [vmem:[#allocation6 + $0x140] sm:$0xff]
    %v2581 = vld [vmem:[#allocation6 + $0x148] sm:$0xff]
    %v2582 = vld [vmem:[#allocation6 + $0x150] sm:$0xff]
    %v2583 = vld [vmem:[#allocation6 + $0x158] sm:$0xff]
    %v2584 = vld [vmem:[#allocation6 + $0x160] sm:$0xff]
    %v2585 = vld [vmem:[#allocation6 + $0x168] sm:$0xff]
    %v2586 = vld [vmem:[#allocation6 + $0x170] sm:$0xff]
    %v2587 = vld [vmem:[#allocation6 + $0x178] sm:$0xff]
    %v2588 = vld [vmem:[#allocation6 + $0x180] sm:$0xff]
    %v2589 = vld [vmem:[#allocation6 + $0x188] sm:$0xff]
    %v2590 = vld [vmem:[#allocation6 + $0x190] sm:$0xff]
    %v2591 = vld [vmem:[#allocation6 + $0x198] sm:$0xff]
    %v2592 = vld [vmem:[#allocation6 + $0x1a0] sm:$0xff]
    %v2593 = vld [vmem:[#allocation6 + $0x1a8] sm:$0xff]
    %v2594 = vld [vmem:[#allocation6 + $0x1b0] sm:$0xff]
    %v2595 = vld [vmem:[#allocation6 + $0x1b8] sm:$0xff]
    %v2596 = vld [vmem:[#allocation6 + $0x1c0] sm:$0xff]
    %v2597 = vld [vmem:[#allocation6 + $0x1c8] sm:$0xff]
    %v2598 = vld [vmem:[#allocation6 + $0x1d0] sm:$0xff]
    %v2599 = vld [vmem:[#allocation6 + $0x1d8] sm:$0xff]
    %v2600 = vld [vmem:[#allocation6 + $0x1e0] sm:$0xff]
    %v2601 = vld [vmem:[#allocation6 + $0x1e8] sm:$0xff]
    %v2602 = vld [vmem:[#allocation6 + $0x1f0] sm:$0xff]
    %v2603 = vld [vmem:[#allocation6 + $0x1f8] sm:$0xff]
    %v2604 = vld [vmem:[#allocation6 + $0x200] sm:$0xff]
    %v2605 = vld [vmem:[#allocation6 + $0x208] sm:$0xff]
    %v2606 = vld [vmem:[#allocation6 + $0x210] sm:$0xff]
    %v2607 = vld [vmem:[#allocation6 + $0x218] sm:$0xff]
    %v2608 = vld [vmem:[#allocation6 + $0x220] sm:$0xff]
    %v2609 = vld [vmem:[#allocation6 + $0x228] sm:$0xff]
    %v2610 = vld [vmem:[#allocation6 + $0x230] sm:$0xff]
    %v2611 = vld [vmem:[#allocation6 + $0x238] sm:$0xff]
    %v2612 = vld [vmem:[#allocation6 + $0x240] sm:$0xff]
    %v2613 = vld [vmem:[#allocation6 + $0x248] sm:$0xff]
    %v2614 = vld [vmem:[#allocation6 + $0x250] sm:$0xff]
    %v2615 = vld [vmem:[#allocation6 + $0x258] sm:$0xff]
    %v2616 = vld [vmem:[#allocation6 + $0x260] sm:$0xff]
    %v2617 = vld [vmem:[#allocation6 + $0x268] sm:$0xff]
    %v2618 = vld [vmem:[#allocation6 + $0x270] sm:$0xff]
    %v2619 = vld [vmem:[#allocation6 + $0x278] sm:$0xff]
    %v2620 = vld [vmem:[#allocation6 + $0x280] sm:$0xff]
    %v2621 = vld [vmem:[#allocation6 + $0x288] sm:$0xff]
    %v2622 = vld [vmem:[#allocation6 + $0x290] sm:$0xff]
    %v2623 = vld [vmem:[#allocation6 + $0x298] sm:$0xff]
    %v2624 = vld [vmem:[#allocation6 + $0x2a0] sm:$0xff]
    %v2625 = vld [vmem:[#allocation6 + $0x2a8] sm:$0xff]
    %v2626 = vld [vmem:[#allocation6 + $0x2b0] sm:$0xff]
    %v2627 = vld [vmem:[#allocation6 + $0x2b8] sm:$0xff]
    %v2628 = vld [vmem:[#allocation6 + $0x2c0] sm:$0xff]
    %v2629 = vld [vmem:[#allocation6 + $0x2c8] sm:$0xff]
    %v2630 = vld [vmem:[#allocation6 + $0x2d0] sm:$0xff]
    %v2631 = vld [vmem:[#allocation6 + $0x2d8] sm:$0xff]
    %v2632 = vld [vmem:[#allocation6 + $0x2e0] sm:$0xff]
    %v2633 = vld [vmem:[#allocation6 + $0x2e8] sm:$0xff]
    %v2634 = vld [vmem:[#allocation6 + $0x2f0] sm:$0xff]
    %v2635 = vld [vmem:[#allocation6 + $0x2f8] sm:$0xff]
    %v2636 = vld [vmem:[#allocation6 + $0x300] sm:$0xff]
    %v2637 = vld [vmem:[#allocation6 + $0x308] sm:$0xff]
    %v2638 = vld [vmem:[#allocation6 + $0x310] sm:$0xff]
    %v2639 = vld [vmem:[#allocation6 + $0x318] sm:$0xff]
    %v2640 = vld [vmem:[#allocation6 + $0x320] sm:$0xff]
    %v2641 = vld [vmem:[#allocation6 + $0x328] sm:$0xff]
    %v2642 = vld [vmem:[#allocation6 + $0x330] sm:$0xff]
    %v2643 = vld [vmem:[#allocation6 + $0x338] sm:$0xff]
    %v2644 = vld [vmem:[#allocation6 + $0x340] sm:$0xff]
    %v2645 = vld [vmem:[#allocation6 + $0x348] sm:$0xff]
    %v2646 = vld [vmem:[#allocation6 + $0x350] sm:$0xff]
    %v2647 = vld [vmem:[#allocation6 + $0x358] sm:$0xff]
    %v2648 = vld [vmem:[#allocation6 + $0x360] sm:$0xff]
    %v2649 = vld [vmem:[#allocation6 + $0x368] sm:$0xff]
    %v2650 = vld [vmem:[#allocation6 + $0x370] sm:$0xff]
    %v2651 = vld [vmem:[#allocation6 + $0x378] sm:$0xff]
    %v2652 = vld [vmem:[#allocation6 + $0x380] sm:$0xff]
    %v2653 = vld [vmem:[#allocation6 + $0x388] sm:$0xff]
    %v2654 = vld [vmem:[#allocation6 + $0x390] sm:$0xff]
    %v2655 = vld [vmem:[#allocation6 + $0x398] sm:$0xff]
    %v2656 = vld [vmem:[#allocation6 + $0x3a0] sm:$0xff]
    %v2657 = vld [vmem:[#allocation6 + $0x3a8] sm:$0xff]
    %v2658 = vld [vmem:[#allocation6 + $0x3b0] sm:$0xff]
    %v2659 = vld [vmem:[#allocation6 + $0x3b8] sm:$0xff]
    %v2660 = vld [vmem:[#allocation6 + $0x3c0] sm:$0xff]
    %v2661 = vld [vmem:[#allocation6 + $0x3c8] sm:$0xff]
    %v2662 = vld [vmem:[#allocation6 + $0x3d0] sm:$0xff]
    %v2663 = vld [vmem:[#allocation6 + $0x3d8] sm:$0xff]
    %v2664 = vld [vmem:[#allocation6 + $0x3e0] sm:$0xff]
    %v2665 = vld [vmem:[#allocation6 + $0x3e8] sm:$0xff]
    %v2666 = vld [vmem:[#allocation6 + $0x3f0] sm:$0xff]
    %v2667 = vld [vmem:[#allocation6 + $0x3f8] sm:$0xff]
    %v2669 = vunpack.c.l.b16 %v2539
    %v2670 = vunpack.c.h.b16 %v2539
    %v2671 = vpack.c.b16 %v2669, %v2669
    %v2672 = vpack.c.b16 %v2670, %v2670
    %v2803 = vunpack.c.l.b16 %v2540
    %v2804 = vunpack.c.h.b16 %v2540
    %v2805 = vunpack.c.l.b16 %v2541
    %v2806 = vunpack.c.h.b16 %v2541
    %v2807 = vunpack.c.l.b16 %v2542
    %v2808 = vunpack.c.h.b16 %v2542
    %v2809 = vunpack.c.l.b16 %v2543
    %v2810 = vunpack.c.h.b16 %v2543
    %v2811 = vunpack.c.l.b16 %v2544
    %v2812 = vunpack.c.h.b16 %v2544
    %v2813 = vunpack.c.l.b16 %v2545
    %v2814 = vunpack.c.h.b16 %v2545
    %v2815 = vunpack.c.l.b16 %v2546
    %v2816 = vunpack.c.h.b16 %v2546
    %v2817 = vunpack.c.l.b16 %v2547
    %v2818 = vunpack.c.h.b16 %v2547
    %v2819 = vunpack.c.l.b16 %v2548
    %v2820 = vunpack.c.h.b16 %v2548
    %v2821 = vunpack.c.l.b16 %v2549
    %v2822 = vunpack.c.h.b16 %v2549
    %v2823 = vunpack.c.l.b16 %v2550
    %v2824 = vunpack.c.h.b16 %v2550
    %v2825 = vunpack.c.l.b16 %v2551
    %v2826 = vunpack.c.h.b16 %v2551
    %v2827 = vunpack.c.l.b16 %v2552
    %v2828 = vunpack.c.h.b16 %v2552
    %v2829 = vunpack.c.l.b16 %v2553
    %v2830 = vunpack.c.h.b16 %v2553
    %v2831 = vunpack.c.l.b16 %v2554
    %v2832 = vunpack.c.h.b16 %v2554
    %v2833 = vunpack.c.l.b16 %v2555
    %v2834 = vunpack.c.h.b16 %v2555
    %v2835 = vunpack.c.l.b16 %v2556
    %v2836 = vunpack.c.h.b16 %v2556
    %v2837 = vunpack.c.l.b16 %v2557
    %v2838 = vunpack.c.h.b16 %v2557
    %v2839 = vunpack.c.l.b16 %v2558
    %v2840 = vunpack.c.h.b16 %v2558
    %v2841 = vunpack.c.l.b16 %v2559
    %v2842 = vunpack.c.h.b16 %v2559
    %v2843 = vunpack.c.l.b16 %v2560
    %v2844 = vunpack.c.h.b16 %v2560
    %v2845 = vunpack.c.l.b16 %v2561
    %v2846 = vunpack.c.h.b16 %v2561
    %v2847 = vunpack.c.l.b16 %v2562
    %v2848 = vunpack.c.h.b16 %v2562
    %v2849 = vunpack.c.l.b16 %v2563
    %v2850 = vunpack.c.h.b16 %v2563
    %v2851 = vunpack.c.l.b16 %v2564
    %v2852 = vunpack.c.h.b16 %v2564
    %v2853 = vunpack.c.l.b16 %v2565
    %v2854 = vunpack.c.h.b16 %v2565
    %v2855 = vunpack.c.l.b16 %v2566
    %v2856 = vunpack.c.h.b16 %v2566
    %v2857 = vunpack.c.l.b16 %v2567
    %v2858 = vunpack.c.h.b16 %v2567
    %v2859 = vunpack.c.l.b16 %v2568
    %v2860 = vunpack.c.h.b16 %v2568
    %v2861 = vunpack.c.l.b16 %v2569
    %v2862 = vunpack.c.h.b16 %v2569
    %v2863 = vunpack.c.l.b16 %v2570
    %v2864 = vunpack.c.h.b16 %v2570
    %v2865 = vunpack.c.l.b16 %v2571
    %v2866 = vunpack.c.h.b16 %v2571
    %v2867 = vunpack.c.l.b16 %v2572
    %v2868 = vunpack.c.h.b16 %v2572
    %v2869 = vunpack.c.l.b16 %v2573
    %v2870 = vunpack.c.h.b16 %v2573
    %v2871 = vunpack.c.l.b16 %v2574
    %v2872 = vunpack.c.h.b16 %v2574
    %v2873 = vunpack.c.l.b16 %v2575
    %v2874 = vunpack.c.h.b16 %v2575
    %v2875 = vunpack.c.l.b16 %v2576
    %v2876 = vunpack.c.h.b16 %v2576
    %v2877 = vunpack.c.l.b16 %v2577
    %v2878 = vunpack.c.h.b16 %v2577
    %v2879 = vunpack.c.l.b16 %v2578
    %v2880 = vunpack.c.h.b16 %v2578
    %v2881 = vunpack.c.l.b16 %v2579
    %v2882 = vunpack.c.h.b16 %v2579
    %v2883 = vunpack.c.l.b16 %v2580
    %v2884 = vunpack.c.h.b16 %v2580
    %v2885 = vunpack.c.l.b16 %v2581
    %v2886 = vunpack.c.h.b16 %v2581
    %v2887 = vunpack.c.l.b16 %v2582
    %v2888 = vunpack.c.h.b16 %v2582
    %v2889 = vunpack.c.l.b16 %v2583
    %v2890 = vunpack.c.h.b16 %v2583
    %v2891 = vunpack.c.l.b16 %v2584
    %v2892 = vunpack.c.h.b16 %v2584
    %v2893 = vunpack.c.l.b16 %v2585
    %v2894 = vunpack.c.h.b16 %v2585
    %v2895 = vunpack.c.l.b16 %v2586
    %v2896 = vunpack.c.h.b16 %v2586
    %v2897 = vunpack.c.l.b16 %v2587
    %v2898 = vunpack.c.h.b16 %v2587
    %v2899 = vunpack.c.l.b16 %v2588
    %v2900 = vunpack.c.h.b16 %v2588
    %v2901 = vunpack.c.l.b16 %v2589
    %v2902 = vunpack.c.h.b16 %v2589
    %v2903 = vunpack.c.l.b16 %v2590
    %v2904 = vunpack.c.h.b16 %v2590
    %v2905 = vunpack.c.l.b16 %v2591
    %v2906 = vunpack.c.h.b16 %v2591
    %v2907 = vunpack.c.l.b16 %v2592
    %v2908 = vunpack.c.h.b16 %v2592
    %v2909 = vunpack.c.l.b16 %v2593
    %v2910 = vunpack.c.h.b16 %v2593
    %v2911 = vunpack.c.l.b16 %v2594
    %v2912 = vunpack.c.h.b16 %v2594
    %v2913 = vunpack.c.l.b16 %v2595
    %v2914 = vunpack.c.h.b16 %v2595
    %v2915 = vunpack.c.l.b16 %v2596
    %v2916 = vunpack.c.h.b16 %v2596
    %v2917 = vunpack.c.l.b16 %v2597
    %v2918 = vunpack.c.h.b16 %v2597
    %v2919 = vunpack.c.l.b16 %v2598
    %v2920 = vunpack.c.h.b16 %v2598
    %v2921 = vunpack.c.l.b16 %v2599
    %v2922 = vunpack.c.h.b16 %v2599
    %v2923 = vunpack.c.l.b16 %v2600
    %v2924 = vunpack.c.h.b16 %v2600
    %v2925 = vunpack.c.l.b16 %v2601
    %v2926 = vunpack.c.h.b16 %v2601
    %v2927 = vunpack.c.l.b16 %v2602
    %v2928 = vunpack.c.h.b16 %v2602
    %v2929 = vunpack.c.l.b16 %v2603
    %v2930 = vunpack.c.h.b16 %v2603
    %v2931 = vunpack.c.l.b16 %v2604
    %v2932 = vunpack.c.h.b16 %v2604
    %v2933 = vunpack.c.l.b16 %v2605
    %v2934 = vunpack.c.h.b16 %v2605
    %v2935 = vunpack.c.l.b16 %v2606
    %v2936 = vunpack.c.h.b16 %v2606
    %v2937 = vunpack.c.l.b16 %v2607
    %v2938 = vunpack.c.h.b16 %v2607
    %v2939 = vunpack.c.l.b16 %v2608
    %v2940 = vunpack.c.h.b16 %v2608
    %v2941 = vunpack.c.l.b16 %v2609
    %v2942 = vunpack.c.h.b16 %v2609
    %v2943 = vunpack.c.l.b16 %v2610
    %v2944 = vunpack.c.h.b16 %v2610
    %v2945 = vunpack.c.l.b16 %v2611
    %v2946 = vunpack.c.h.b16 %v2611
    %v2947 = vunpack.c.l.b16 %v2612
    %v2948 = vunpack.c.h.b16 %v2612
    %v2949 = vunpack.c.l.b16 %v2613
    %v2950 = vunpack.c.h.b16 %v2613
    %v2951 = vunpack.c.l.b16 %v2614
    %v2952 = vunpack.c.h.b16 %v2614
    %v2953 = vunpack.c.l.b16 %v2615
    %v2954 = vunpack.c.h.b16 %v2615
    %v2955 = vunpack.c.l.b16 %v2616
    %v2956 = vunpack.c.h.b16 %v2616
    %v2957 = vunpack.c.l.b16 %v2617
    %v2958 = vunpack.c.h.b16 %v2617
    %v2959 = vunpack.c.l.b16 %v2618
    %v2960 = vunpack.c.h.b16 %v2618
    %v2961 = vunpack.c.l.b16 %v2619
    %v2962 = vunpack.c.h.b16 %v2619
    %v2963 = vunpack.c.l.b16 %v2620
    %v2964 = vunpack.c.h.b16 %v2620
    %v2965 = vunpack.c.l.b16 %v2621
    %v2966 = vunpack.c.h.b16 %v2621
    %v2967 = vunpack.c.l.b16 %v2622
    %v2968 = vunpack.c.h.b16 %v2622
    %v2969 = vunpack.c.l.b16 %v2623
    %v2970 = vunpack.c.h.b16 %v2623
    %v2971 = vunpack.c.l.b16 %v2624
    %v2972 = vunpack.c.h.b16 %v2624
    %v2973 = vunpack.c.l.b16 %v2625
    %v2974 = vunpack.c.h.b16 %v2625
    %v2975 = vunpack.c.l.b16 %v2626
    %v2976 = vunpack.c.h.b16 %v2626
    %v2977 = vunpack.c.l.b16 %v2627
    %v2978 = vunpack.c.h.b16 %v2627
    %v2979 = vunpack.c.l.b16 %v2628
    %v2980 = vunpack.c.h.b16 %v2628
    %v2981 = vunpack.c.l.b16 %v2629
    %v2982 = vunpack.c.h.b16 %v2629
    %v2983 = vunpack.c.l.b16 %v2630
    %v2984 = vunpack.c.h.b16 %v2630
    %v2985 = vunpack.c.l.b16 %v2631
    %v2986 = vunpack.c.h.b16 %v2631
    %v2987 = vunpack.c.l.b16 %v2632
    %v2988 = vunpack.c.h.b16 %v2632
    %v2989 = vunpack.c.l.b16 %v2633
    %v2990 = vunpack.c.h.b16 %v2633
    %v2991 = vunpack.c.l.b16 %v2634
    %v2992 = vunpack.c.h.b16 %v2634
    %v2993 = vunpack.c.l.b16 %v2635
    %v2994 = vunpack.c.h.b16 %v2635
    %v2995 = vunpack.c.l.b16 %v2636
    %v2996 = vunpack.c.h.b16 %v2636
    %v2997 = vunpack.c.l.b16 %v2637
    %v2998 = vunpack.c.h.b16 %v2637
    %v2999 = vunpack.c.l.b16 %v2638
    %v3000 = vunpack.c.h.b16 %v2638
    %v3001 = vunpack.c.l.b16 %v2639
    %v3002 = vunpack.c.h.b16 %v2639
    %v3003 = vunpack.c.l.b16 %v2640
    %v3004 = vunpack.c.h.b16 %v2640
    %v3005 = vunpack.c.l.b16 %v2641
    %v3006 = vunpack.c.h.b16 %v2641
    %v3007 = vunpack.c.l.b16 %v2642
    %v3008 = vunpack.c.h.b16 %v2642
    %v3009 = vunpack.c.l.b16 %v2643
    %v3010 = vunpack.c.h.b16 %v2643
    %v3011 = vunpack.c.l.b16 %v2644
    %v3012 = vunpack.c.h.b16 %v2644
    %v3013 = vunpack.c.l.b16 %v2645
    %v3014 = vunpack.c.h.b16 %v2645
    %v3015 = vunpack.c.l.b16 %v2646
    %v3016 = vunpack.c.h.b16 %v2646
    %v3017 = vunpack.c.l.b16 %v2647
    %v3018 = vunpack.c.h.b16 %v2647
    %v3019 = vunpack.c.l.b16 %v2648
    %v3020 = vunpack.c.h.b16 %v2648
    %v3021 = vunpack.c.l.b16 %v2649
    %v3022 = vunpack.c.h.b16 %v2649
    %v3023 = vunpack.c.l.b16 %v2650
    %v3024 = vunpack.c.h.b16 %v2650
    %v3025 = vunpack.c.l.b16 %v2651
    %v3026 = vunpack.c.h.b16 %v2651
    %v3027 = vunpack.c.l.b16 %v2652
    %v3028 = vunpack.c.h.b16 %v2652
    %v3029 = vunpack.c.l.b16 %v2653
    %v3030 = vunpack.c.h.b16 %v2653
    %v3031 = vunpack.c.l.b16 %v2654
    %v3032 = vunpack.c.h.b16 %v2654
    %v3033 = vunpack.c.l.b16 %v2655
    %v3034 = vunpack.c.h.b16 %v2655
    %v3035 = vunpack.c.l.b16 %v2656
    %v3036 = vunpack.c.h.b16 %v2656
    %v3037 = vunpack.c.l.b16 %v2657
    %v3038 = vunpack.c.h.b16 %v2657
    %v3039 = vunpack.c.l.b16 %v2658
    %v3040 = vunpack.c.h.b16 %v2658
    %v3041 = vunpack.c.l.b16 %v2659
    %v3042 = vunpack.c.h.b16 %v2659
    %v3043 = vunpack.c.l.b16 %v2660
    %v3044 = vunpack.c.h.b16 %v2660
    %v3045 = vunpack.c.l.b16 %v2661
    %v3046 = vunpack.c.h.b16 %v2661
    %v3047 = vunpack.c.l.b16 %v2662
    %v3048 = vunpack.c.h.b16 %v2662
    %v3049 = vunpack.c.l.b16 %v2663
    %v3050 = vunpack.c.h.b16 %v2663
    %v3051 = vunpack.c.l.b16 %v2664
    %v3052 = vunpack.c.h.b16 %v2664
    %v3053 = vunpack.c.l.b16 %v2665
    %v3054 = vunpack.c.h.b16 %v2665
    %v3055 = vunpack.c.l.b16 %v2666
    %v3056 = vunpack.c.h.b16 %v2666
    %v3057 = vunpack.c.l.b16 %v2667
    %v3058 = vunpack.c.h.b16 %v2667
    %v3059 = vpack.c.b16 %v2811, %v2803
    %v3060 = vpack.c.b16 %v2812, %v2804
    %v3061 = vpack.c.b16 %v2813, %v2805
    %v3062 = vpack.c.b16 %v2814, %v2806
    %v3063 = vpack.c.b16 %v2815, %v2807
    %v3064 = vpack.c.b16 %v2816, %v2808
    %v3065 = vpack.c.b16 %v2817, %v2809
    %v3066 = vpack.c.b16 %v2818, %v2810
    %v3067 = vpack.c.b16 %v2827, %v2819
    %v3068 = vpack.c.b16 %v2828, %v2820
    %v3069 = vpack.c.b16 %v2829, %v2821
    %v3070 = vpack.c.b16 %v2830, %v2822
    %v3071 = vpack.c.b16 %v2831, %v2823
    %v3072 = vpack.c.b16 %v2832, %v2824
    %v3073 = vpack.c.b16 %v2833, %v2825
    %v3074 = vpack.c.b16 %v2834, %v2826
    %v3075 = vpack.c.b16 %v2843, %v2835
    %v3076 = vpack.c.b16 %v2844, %v2836
    %v3077 = vpack.c.b16 %v2845, %v2837
    %v3078 = vpack.c.b16 %v2846, %v2838
    %v3079 = vpack.c.b16 %v2847, %v2839
    %v3080 = vpack.c.b16 %v2848, %v2840
    %v3081 = vpack.c.b16 %v2849, %v2841
    %v3082 = vpack.c.b16 %v2850, %v2842
    %v3083 = vpack.c.b16 %v2859, %v2851
    %v3084 = vpack.c.b16 %v2860, %v2852
    %v3085 = vpack.c.b16 %v2861, %v2853
    %v3086 = vpack.c.b16 %v2862, %v2854
    %v3087 = vpack.c.b16 %v2863, %v2855
    %v3088 = vpack.c.b16 %v2864, %v2856
    %v3089 = vpack.c.b16 %v2865, %v2857
    %v3090 = vpack.c.b16 %v2866, %v2858
    %v3091 = vpack.c.b16 %v2875, %v2867
    %v3092 = vpack.c.b16 %v2876, %v2868
    %v3093 = vpack.c.b16 %v2877, %v2869
    %v3094 = vpack.c.b16 %v2878, %v2870
    %v3095 = vpack.c.b16 %v2879, %v2871
    %v3096 = vpack.c.b16 %v2880, %v2872
    %v3097 = vpack.c.b16 %v2881, %v2873
    %v3098 = vpack.c.b16 %v2882, %v2874
    %v3099 = vpack.c.b16 %v2891, %v2883
    %v3100 = vpack.c.b16 %v2892, %v2884
    %v3101 = vpack.c.b16 %v2893, %v2885
    %v3102 = vpack.c.b16 %v2894, %v2886
    %v3103 = vpack.c.b16 %v2895, %v2887
    %v3104 = vpack.c.b16 %v2896, %v2888
    %v3105 = vpack.c.b16 %v2897, %v2889
    %v3106 = vpack.c.b16 %v2898, %v2890
    %v3107 = vpack.c.b16 %v2907, %v2899
    %v3108 = vpack.c.b16 %v2908, %v2900
    %v3109 = vpack.c.b16 %v2909, %v2901
    %v3110 = vpack.c.b16 %v2910, %v2902
    %v3111 = vpack.c.b16 %v2911, %v2903
    %v3112 = vpack.c.b16 %v2912, %v2904
    %v3113 = vpack.c.b16 %v2913, %v2905
    %v3114 = vpack.c.b16 %v2914, %v2906
    %v3115 = vpack.c.b16 %v2923, %v2915
    %v3116 = vpack.c.b16 %v2924, %v2916
    %v3117 = vpack.c.b16 %v2925, %v2917
    %v3118 = vpack.c.b16 %v2926, %v2918
    %v3119 = vpack.c.b16 %v2927, %v2919
    %v3120 = vpack.c.b16 %v2928, %v2920
    %v3121 = vpack.c.b16 %v2929, %v2921
    %v3122 = vpack.c.b16 %v2930, %v2922
    %v3123 = vpack.c.b16 %v2939, %v2931
    %v3124 = vpack.c.b16 %v2940, %v2932
    %v3125 = vpack.c.b16 %v2941, %v2933
    %v3126 = vpack.c.b16 %v2942, %v2934
    %v3127 = vpack.c.b16 %v2943, %v2935
    %v3128 = vpack.c.b16 %v2944, %v2936
    %v3129 = vpack.c.b16 %v2945, %v2937
    %v3130 = vpack.c.b16 %v2946, %v2938
    %v3131 = vpack.c.b16 %v2955, %v2947
    %v3132 = vpack.c.b16 %v2956, %v2948
    %v3133 = vpack.c.b16 %v2957, %v2949
    %v3134 = vpack.c.b16 %v2958, %v2950
    %v3135 = vpack.c.b16 %v2959, %v2951
    %v3136 = vpack.c.b16 %v2960, %v2952
    %v3137 = vpack.c.b16 %v2961, %v2953
    %v3138 = vpack.c.b16 %v2962, %v2954
    %v3139 = vpack.c.b16 %v2971, %v2963
    %v3140 = vpack.c.b16 %v2972, %v2964
    %v3141 = vpack.c.b16 %v2973, %v2965
    %v3142 = vpack.c.b16 %v2974, %v2966
    %v3143 = vpack.c.b16 %v2975, %v2967
    %v3144 = vpack.c.b16 %v2976, %v2968
    %v3145 = vpack.c.b16 %v2977, %v2969
    %v3146 = vpack.c.b16 %v2978, %v2970
    %v3147 = vpack.c.b16 %v2987, %v2979
    %v3148 = vpack.c.b16 %v2988, %v2980
    %v3149 = vpack.c.b16 %v2989, %v2981
    %v3150 = vpack.c.b16 %v2990, %v2982
    %v3151 = vpack.c.b16 %v2991, %v2983
    %v3152 = vpack.c.b16 %v2992, %v2984
    %v3153 = vpack.c.b16 %v2993, %v2985
    %v3154 = vpack.c.b16 %v2994, %v2986
    %v3155 = vpack.c.b16 %v3003, %v2995
    %v3156 = vpack.c.b16 %v3004, %v2996
    %v3157 = vpack.c.b16 %v3005, %v2997
    %v3158 = vpack.c.b16 %v3006, %v2998
    %v3159 = vpack.c.b16 %v3007, %v2999
    %v3160 = vpack.c.b16 %v3008, %v3000
    %v3161 = vpack.c.b16 %v3009, %v3001
    %v3162 = vpack.c.b16 %v3010, %v3002
    %v3163 = vpack.c.b16 %v3019, %v3011
    %v3164 = vpack.c.b16 %v3020, %v3012
    %v3165 = vpack.c.b16 %v3021, %v3013
    %v3166 = vpack.c.b16 %v3022, %v3014
    %v3167 = vpack.c.b16 %v3023, %v3015
    %v3168 = vpack.c.b16 %v3024, %v3016
    %v3169 = vpack.c.b16 %v3025, %v3017
    %v3170 = vpack.c.b16 %v3026, %v3018
    %v3171 = vpack.c.b16 %v3035, %v3027
    %v3172 = vpack.c.b16 %v3036, %v3028
    %v3173 = vpack.c.b16 %v3037, %v3029
    %v3174 = vpack.c.b16 %v3038, %v3030
    %v3175 = vpack.c.b16 %v3039, %v3031
    %v3176 = vpack.c.b16 %v3040, %v3032
    %v3177 = vpack.c.b16 %v3041, %v3033
    %v3178 = vpack.c.b16 %v3042, %v3034
    %v3179 = vpack.c.b16 %v3051, %v3043
    %v3180 = vpack.c.b16 %v3052, %v3044
    %v3181 = vpack.c.b16 %v3053, %v3045
    %v3182 = vpack.c.b16 %v3054, %v3046
    %v3183 = vpack.c.b16 %v3055, %v3047
    %v3184 = vpack.c.b16 %v3056, %v3048
    %v3185 = vpack.c.b16 %v3057, %v3049
    %v3186 = vpack.c.b16 %v3058, %v3050
    %3315 = vmatprep.subr.bf16.mxu0 %v3060
    %3316 = vmatpush1.bf16.msra.mxu0 %v3059
    %3317 = vmatprep.subr.bf16.mxu0 %v3068
    %3318 = vmatpush1.bf16.msra.mxu0 %v3067
    %3319 = vmatprep.subr.bf16.mxu0 %v3076
    %3320 = vmatpush1.bf16.msra.mxu0 %v3075
    %3321 = vmatprep.subr.bf16.mxu0 %v3084
    %3322 = vmatpush1.bf16.msra.mxu0 %v3083
    %3323 = vmatprep.subr.bf16.mxu0 %v3092
    %3324 = vmatpush1.bf16.msra.mxu0 %v3091
    %3325 = vmatprep.subr.bf16.mxu0 %v3100
    %3326 = vmatpush1.bf16.msra.mxu0 %v3099
    %3327 = vmatprep.subr.bf16.mxu0 %v3108
    %3328 = vmatpush1.bf16.msra.mxu0 %v3107
    %3329 = vmatprep.subr.bf16.mxu0 %v3116
    %3330 = vmatpush1.bf16.msra.mxu0 %v3115
    %3331 = vmatprep.subr.bf16.mxu0 %v3124
    %3332 = vmatpush1.bf16.msra.mxu0 %v3123
    %3333 = vmatprep.subr.bf16.mxu0 %v3132
    %3334 = vmatpush1.bf16.msra.mxu0 %v3131
    %3335 = vmatprep.subr.bf16.mxu0 %v3140
    %3336 = vmatpush1.bf16.msra.mxu0 %v3139
    %3337 = vmatprep.subr.bf16.mxu0 %v3148
    %3338 = vmatpush1.bf16.msra.mxu0 %v3147
    %3339 = vmatprep.subr.bf16.mxu0 %v3156
    %3340 = vmatpush1.bf16.msra.mxu0 %v3155
    %3341 = vmatprep.subr.bf16.mxu0 %v3164
    %3342 = vmatpush1.bf16.msra.mxu0 %v3163
    %3343 = vmatprep.subr.bf16.mxu0 %v3172
    %3344 = vmatpush1.bf16.msra.mxu0 %v3171
    %3345 = vmatprep.subr.bf16.mxu0 %v3180
    %3346 = vmatpush1.bf16.msra.mxu0 %v3179
    %3347 = vmatprep.mubr.bf16.mxu0 %v2672
    %3348 = vmatmul.mubr.bf16.gmra.mrb[0].mxu0 %v2671
    %v3349 = vpop.f32.mrb[0].mxu0
    %v3350 = vadd.f32 0.0, %v3349
    %v3351 = vpop.f32.mrb[0].mxu0
    %v3352 = vadd.f32 0.0, %v3351
    %v3353 = vpop.f32.mrb[0].mxu0
    %v3354 = vpop.f32.mrb[0].mxu0
    %3355 = vdwg.mxu0
    %3356 = vmatprep.subr.bf16.mxu0 %v3062
    %3357 = vmatpush1.bf16.msra.mxu0 %v3061
    %3358 = vmatprep.subr.bf16.mxu0 %v3070
    %3359 = vmatpush1.bf16.msra.mxu0 %v3069
    %3360 = vmatprep.subr.bf16.mxu0 %v3078
    %3361 = vmatpush1.bf16.msra.mxu0 %v3077
    %3362 = vmatprep.subr.bf16.mxu0 %v3086
    %3363 = vmatpush1.bf16.msra.mxu0 %v3085
    %3364 = vmatprep.subr.bf16.mxu0 %v3094
    %3365 = vmatpush1.bf16.msra.mxu0 %v3093
    %3366 = vmatprep.subr.bf16.mxu0 %v3102
    %3367 = vmatpush1.bf16.msra.mxu0 %v3101
    %3368 = vmatprep.subr.bf16.mxu0 %v3110
    %3369 = vmatpush1.bf16.msra.mxu0 %v3109
    %3370 = vmatprep.subr.bf16.mxu0 %v3118
    %3371 = vmatpush1.bf16.msra.mxu0 %v3117
    %3372 = vmatprep.subr.bf16.mxu0 %v3126
    %3373 = vmatpush1.bf16.msra.mxu0 %v3125
    %3374 = vmatprep.subr.bf16.mxu0 %v3134
    %3375 = vmatpush1.bf16.msra.mxu0 %v3133
    %3376 = vmatprep.subr.bf16.mxu0 %v3142
    %3377 = vmatpush1.bf16.msra.mxu0 %v3141
    %3378 = vmatprep.subr.bf16.mxu0 %v3150
    %3379 = vmatpush1.bf16.msra.mxu0 %v3149
    %3380 = vmatprep.subr.bf16.mxu0 %v3158
    %3381 = vmatpush1.bf16.msra.mxu0 %v3157
    %3382 = vmatprep.subr.bf16.mxu0 %v3166
    %3383 = vmatpush1.bf16.msra.mxu0 %v3165
    %3384 = vmatprep.subr.bf16.mxu0 %v3174
    %3385 = vmatpush1.bf16.msra.mxu0 %v3173
    %3386 = vmatprep.subr.bf16.mxu0 %v3182
    %3387 = vmatpush1.bf16.msra.mxu0 %v3181
    %3388 = vmatprep.mubr.bf16.mxu0 %v2672
    %3389 = vmatmul.mubr.bf16.gmra.mrb[0].mxu0 %v2671
    %v3390 = vpop.f32.mrb[0].mxu0
    %v3391 = vadd.f32 0.0, %v3390
    %v3392 = vpop.f32.mrb[0].mxu0
    %v3393 = vadd.f32 0.0, %v3392
    %v3394 = vpop.f32.mrb[0].mxu0
    %v3395 = vpop.f32.mrb[0].mxu0
    %3396 = vdwg.mxu0
    %3397 = vmatprep.subr.bf16.mxu0 %v3064
    %3398 = vmatpush1.bf16.msra.mxu0 %v3063
    %3399 = vmatprep.subr.bf16.mxu0 %v3072
    %3400 = vmatpush1.bf16.msra.mxu0 %v3071
    %3401 = vmatprep.subr.bf16.mxu0 %v3080
    %3402 = vmatpush1.bf16.msra.mxu0 %v3079
    %3403 = vmatprep.subr.bf16.mxu0 %v3088
    %3404 = vmatpush1.bf16.msra.mxu0 %v3087
    %3405 = vmatprep.subr.bf16.mxu0 %v3096
    %3406 = vmatpush1.bf16.msra.mxu0 %v3095
    %3407 = vmatprep.subr.bf16.mxu0 %v3104
    %3408 = vmatpush1.bf16.msra.mxu0 %v3103
    %3409 = vmatprep.subr.bf16.mxu0 %v3112
    %3410 = vmatpush1.bf16.msra.mxu0 %v3111
    %3411 = vmatprep.subr.bf16.mxu0 %v3120
    %3412 = vmatpush1.bf16.msra.mxu0 %v3119
    %3413 = vmatprep.subr.bf16.mxu0 %v3128
    %3414 = vmatpush1.bf16.msra.mxu0 %v3127
    %3415 = vmatprep.subr.bf16.mxu0 %v3136
    %3416 = vmatpush1.bf16.msra.mxu0 %v3135
    %3417 = vmatprep.subr.bf16.mxu0 %v3144
    %3418 = vmatpush1.bf16.msra.mxu0 %v3143
    %3419 = vmatprep.subr.bf16.mxu0 %v3152
    %3420 = vmatpush1.bf16.msra.mxu0 %v3151
    %3421 = vmatprep.subr.bf16.mxu0 %v3160
    %3422 = vmatpush1.bf16.msra.mxu0 %v3159
    %3423 = vmatprep.subr.bf16.mxu0 %v3168
    %3424 = vmatpush1.bf16.msra.mxu0 %v3167
    %3425 = vmatprep.subr.bf16.mxu0 %v3176
    %3426 = vmatpush1.bf16.msra.mxu0 %v3175
    %3427 = vmatprep.subr.bf16.mxu0 %v3184
    %3428 = vmatpush1.bf16.msra.mxu0 %v3183
    %3429 = vmatprep.mubr.bf16.mxu0 %v2672
    %3430 = vmatmul.mubr.bf16.gmra.mrb[0].mxu0 %v2671
    %v3431 = vpop.f32.mrb[0].mxu0
    %v3432 = vadd.f32 0.0, %v3431
    %v3433 = vpop.f32.mrb[0].mxu0
    %v3434 = vadd.f32 0.0, %v3433
    %v3435 = vpop.f32.mrb[0].mxu0
    %v3436 = vpop.f32.mrb[0].mxu0
    %3437 = vdwg.mxu0
    %3438 = vmatprep.subr.bf16.mxu0 %v3066
    %3439 = vmatpush1.bf16.msra.mxu0 %v3065
    %3440 = vmatprep.subr.bf16.mxu0 %v3074
    %3441 = vmatpush1.bf16.msra.mxu0 %v3073
    %3442 = vmatprep.subr.bf16.mxu0 %v3082
    %3443 = vmatpush1.bf16.msra.mxu0 %v3081
    %3444 = vmatprep.subr.bf16.mxu0 %v3090
    %3445 = vmatpush1.bf16.msra.mxu0 %v3089
    %3446 = vmatprep.subr.bf16.mxu0 %v3098
    %3447 = vmatpush1.bf16.msra.mxu0 %v3097
    %3448 = vmatprep.subr.bf16.mxu0 %v3106
    %3449 = vmatpush1.bf16.msra.mxu0 %v3105
    %3450 = vmatprep.subr.bf16.mxu0 %v3114
    %3451 = vmatpush1.bf16.msra.mxu0 %v3113
    %3452 = vmatprep.subr.bf16.mxu0 %v3122
    %3453 = vmatpush1.bf16.msra.mxu0 %v3121
    %3454 = vmatprep.subr.bf16.mxu0 %v3130
    %3455 = vmatpush1.bf16.msra.mxu0 %v3129
    %3456 = vmatprep.subr.bf16.mxu0 %v3138
    %3457 = vmatpush1.bf16.msra.mxu0 %v3137
    %3458 = vmatprep.subr.bf16.mxu0 %v3146
    %3459 = vmatpush1.bf16.msra.mxu0 %v3145
    %3460 = vmatprep.subr.bf16.mxu0 %v3154
    %3461 = vmatpush1.bf16.msra.mxu0 %v3153
    %3462 = vmatprep.subr.bf16.mxu0 %v3162
    %3463 = vmatpush1.bf16.msra.mxu0 %v3161
    %3464 = vmatprep.subr.bf16.mxu0 %v3170
    %3465 = vmatpush1.bf16.msra.mxu0 %v3169
    %3466 = vmatprep.subr.bf16.mxu0 %v3178
    %3467 = vmatpush1.bf16.msra.mxu0 %v3177
    %3468 = vmatprep.subr.bf16.mxu0 %v3186
    %3469 = vmatpush1.bf16.msra.mxu0 %v3185
    %3470 = vmatprep.mubr.bf16.mxu0 %v2672
    %3471 = vmatmul.mubr.bf16.gmra.mrb[0].mxu0 %v2671
    %v3472 = vpop.f32.mrb[0].mxu0
    %v3473 = vadd.f32 0.0, %v3472
    %v3474 = vpop.f32.mrb[0].mxu0
    %v3475 = vadd.f32 0.0, %v3474
    %v3476 = vpop.f32.mrb[0].mxu0
    %v3477 = vpop.f32.mrb[0].mxu0
    %3478 = vdwg.mxu0
    %s3479 = smul.u32 3, 4
    %s3480 = smul.addr %s3479, 8
    %s3481 = scalar_lea.vmem [#allocation2], %s3480
    %v3482 = vld [vmem:[%s3481] sm:$0xff]
    %v3483 = vld [vmem:[%s3481 + $0x8] sm:$0xff]
    %v3484 = vld [vmem:[%s3481 + $0x10] sm:$0xff]
    %v3485 = vld [vmem:[%s3481 + $0x18] sm:$0xff]
    %v3486 = vadd.f32 %v3482, %v3350
    %v3487 = vadd.f32 %v3483, %v3352
    %v3488 = vadd.f32 %v3484, %v3391
    %v3489 = vadd.f32 %v3485, %v3393
    %v3490 = vld [vmem:[#allocation4] sm:$0xff]
    %v3491 = vxor.u32 %v3486, 2147483648
    %v3492 = vxor.u32 %v3487, 2147483648
    %v3493 = vxor.u32 %v3488, 2147483648
    %v3494 = vmul.f32 %v3491, 1.442695
    %v3495 = vpow.pop %v3494
    %v3496 = vmul.f32 %v3492, 1.442695
    %v3497 = vpow.pop %v3496
    %v3498 = vmul.f32 %v3493, 1.442695
    %v3499 = vpow.pop %v3498
    %v3500 = vadd.f32 %v3495, 1.0
    %v3501 = vadd.f32 %v3497, 1.0
    %v3502 = vadd.f32 %v3499, 1.0
    %v3503 = vrcp.pop %v3500
    %v3504 = vmul.f32 1.0, %v3503
    %v3505 = vrcp.pop %v3501
    %v3506 = vmul.f32 1.0, %v3505
    %v3507 = vrcp.pop %v3502
    %v3508 = vmul.f32 1.0, %v3507
    %v3509 = vtanh.pop %v3489
    %v3510 = vmul.f32 %v3506, %v3490
    %v3511 = vmul.f32 %v3504, %v3509
    %v3512 = vadd.f32 %v3510, %v3511
    %v3513 = vtanh.pop %v3512
    %v3514 = vmul.f32 %v3508, %v3513
    %3515 = vst [vmem:[#allocation4] sm:$0xff] %v3512
    %v3516 = vpack.c.bf16 %v3514, %v3514
    %3517 = vst [vmem:[#allocation3] sm:$0xf] %v3516
    %v3518 = vadd.f32 %v3432, %v464
    %v3519 = vadd.f32 %v3434, %v468
    %v3520 = vadd.f32 %v3473, %v472
    %v3521 = vadd.f32 %v3475, %v476
    %v3522 = vld [vmem:[#allocation5] sm:$0xff]
    %v3523 = vxor.u32 %v3518, 2147483648
    %v3524 = vxor.u32 %v3519, 2147483648
    %v3525 = vxor.u32 %v3520, 2147483648
    %v3526 = vmul.f32 %v3523, 1.442695
    %v3527 = vpow.pop %v3526
    %v3528 = vmul.f32 %v3524, 1.442695
    %v3529 = vpow.pop %v3528
    %v3530 = vmul.f32 %v3525, 1.442695
    %v3531 = vpow.pop %v3530
    %v3532 = vadd.f32 %v3527, 1.0
    %v3533 = vadd.f32 %v3529, 1.0
    %v3534 = vadd.f32 %v3531, 1.0
    %v3535 = vrcp.pop %v3532
    %v3536 = vmul.f32 1.0, %v3535
    %v3537 = vrcp.pop %v3533
    %v3538 = vmul.f32 1.0, %v3537
    %v3539 = vrcp.pop %v3534
    %v3540 = vmul.f32 1.0, %v3539
    %v3541 = vtanh.pop %v3521
    %v3542 = vmul.f32 %v3538, %v3522
    %v3543 = vmul.f32 %v3536, %v3541
    %v3544 = vadd.f32 %v3542, %v3543
    %v3545 = vtanh.pop %v3544
    %v3546 = vmul.f32 %v3540, %v3545
    %3547 = vst [vmem:[#allocation5] sm:$0xff] %v3544
    %v3548 = vpack.c.bf16 %v3546, %v3546
    %3549 = vst [vmem:[#allocation3 + $0x4] sm:$0xf] %v3548
    %s3550 = scalar_lea.vmem %s5, 8
    %3551 = vst [vmem:[%s3550] sm:$0xf] %v3548
    %v3552 = vld [vmem:[#allocation3] sm:$0xff]
    %v3553 = vld [vmem:[#allocation6] sm:$0xff]
    %v3554 = vld [vmem:[#allocation6 + $0x8] sm:$0xff]
    %v3555 = vld [vmem:[#allocation6 + $0x10] sm:$0xff]
    %v3556 = vld [vmem:[#allocation6 + $0x18] sm:$0xff]
    %v3557 = vld [vmem:[#allocation6 + $0x20] sm:$0xff]
    %v3558 = vld [vmem:[#allocation6 + $0x28] sm:$0xff]
    %v3559 = vld [vmem:[#allocation6 + $0x30] sm:$0xff]
    %v3560 = vld [vmem:[#allocation6 + $0x38] sm:$0xff]
    %v3561 = vld [vmem:[#allocation6 + $0x40] sm:$0xff]
    %v3562 = vld [vmem:[#allocation6 + $0x48] sm:$0xff]
    %v3563 = vld [vmem:[#allocation6 + $0x50] sm:$0xff]
    %v3564 = vld [vmem:[#allocation6 + $0x58] sm:$0xff]
    %v3565 = vld [vmem:[#allocation6 + $0x60] sm:$0xff]
    %v3566 = vld [vmem:[#allocation6 + $0x68] sm:$0xff]
    %v3567 = vld [vmem:[#allocation6 + $0x70] sm:$0xff]
    %v3568 = vld [vmem:[#allocation6 + $0x78] sm:$0xff]
    %v3569 = vld [vmem:[#allocation6 + $0x80] sm:$0xff]
    %v3570 = vld [vmem:[#allocation6 + $0x88] sm:$0xff]
    %v3571 = vld [vmem:[#allocation6 + $0x90] sm:$0xff]
    %v3572 = vld [vmem:[#allocation6 + $0x98] sm:$0xff]
    %v3573 = vld [vmem:[#allocation6 + $0xa0] sm:$0xff]
    %v3574 = vld [vmem:[#allocation6 + $0xa8] sm:$0xff]
    %v3575 = vld [vmem:[#allocation6 + $0xb0] sm:$0xff]
    %v3576 = vld [vmem:[#allocation6 + $0xb8] sm:$0xff]
    %v3577 = vld [vmem:[#allocation6 + $0xc0] sm:$0xff]
    %v3578 = vld [vmem:[#allocation6 + $0xc8] sm:$0xff]
    %v3579 = vld [vmem:[#allocation6 + $0xd0] sm:$0xff]
    %v3580 = vld [vmem:[#allocation6 + $0xd8] sm:$0xff]
    %v3581 = vld [vmem:[#allocation6 + $0xe0] sm:$0xff]
    %v3582 = vld [vmem:[#allocation6 + $0xe8] sm:$0xff]
    %v3583 = vld [vmem:[#allocation6 + $0xf0] sm:$0xff]
    %v3584 = vld [vmem:[#allocation6 + $0xf8] sm:$0xff]
    %v3585 = vld [vmem:[#allocation6 + $0x100] sm:$0xff]
    %v3586 = vld [vmem:[#allocation6 + $0x108] sm:$0xff]
    %v3587 = vld [vmem:[#allocation6 + $0x110] sm:$0xff]
    %v3588 = vld [vmem:[#allocation6 + $0x118] sm:$0xff]
    %v3589 = vld [vmem:[#allocation6 + $0x120] sm:$0xff]
    %v3590 = vld [vmem:[#allocation6 + $0x128] sm:$0xff]
    %v3591 = vld [vmem:[#allocation6 + $0x130] sm:$0xff]
    %v3592 = vld [vmem:[#allocation6 + $0x138] sm:$0xff]
    %v3593 = vld [vmem:[#allocation6 + $0x140] sm:$0xff]
    %v3594 = vld [vmem:[#allocation6 + $0x148] sm:$0xff]
    %v3595 = vld [vmem:[#allocation6 + $0x150] sm:$0xff]
    %v3596 = vld [vmem:[#allocation6 + $0x158] sm:$0xff]
    %v3597 = vld [vmem:[#allocation6 + $0x160] sm:$0xff]
    %v3598 = vld [vmem:[#allocation6 + $0x168] sm:$0xff]
    %v3599 = vld [vmem:[#allocation6 + $0x170] sm:$0xff]
    %v3600 = vld [vmem:[#allocation6 + $0x178] sm:$0xff]
    %v3601 = vld [vmem:[#allocation6 + $0x180] sm:$0xff]
    %v3602 = vld [vmem:[#allocation6 + $0x188] sm:$0xff]
    %v3603 = vld [vmem:[#allocation6 + $0x190] sm:$0xff]
    %v3604 = vld [vmem:[#allocation6 + $0x198] sm:$0xff]
    %v3605 = vld [vmem:[#allocation6 + $0x1a0] sm:$0xff]
    %v3606 = vld [vmem:[#allocation6 + $0x1a8] sm:$0xff]
    %v3607 = vld [vmem:[#allocation6 + $0x1b0] sm:$0xff]
    %v3608 = vld [vmem:[#allocation6 + $0x1b8] sm:$0xff]
    %v3609 = vld [vmem:[#allocation6 + $0x1c0] sm:$0xff]
    %v3610 = vld [vmem:[#allocation6 + $0x1c8] sm:$0xff]
    %v3611 = vld [vmem:[#allocation6 + $0x1d0] sm:$0xff]
    %v3612 = vld [vmem:[#allocation6 + $0x1d8] sm:$0xff]
    %v3613 = vld [vmem:[#allocation6 + $0x1e0] sm:$0xff]
    %v3614 = vld [vmem:[#allocation6 + $0x1e8] sm:$0xff]
    %v3615 = vld [vmem:[#allocation6 + $0x1f0] sm:$0xff]
    %v3616 = vld [vmem:[#allocation6 + $0x1f8] sm:$0xff]
    %v3617 = vld [vmem:[#allocation6 + $0x200] sm:$0xff]
    %v3618 = vld [vmem:[#allocation6 + $0x208] sm:$0xff]
    %v3619 = vld [vmem:[#allocation6 + $0x210] sm:$0xff]
    %v3620 = vld [vmem:[#allocation6 + $0x218] sm:$0xff]
    %v3621 = vld [vmem:[#allocation6 + $0x220] sm:$0xff]
    %v3622 = vld [vmem:[#allocation6 + $0x228] sm:$0xff]
    %v3623 = vld [vmem:[#allocation6 + $0x230] sm:$0xff]
    %v3624 = vld [vmem:[#allocation6 + $0x238] sm:$0xff]
    %v3625 = vld [vmem:[#allocation6 + $0x240] sm:$0xff]
    %v3626 = vld [vmem:[#allocation6 + $0x248] sm:$0xff]
    %v3627 = vld [vmem:[#allocation6 + $0x250] sm:$0xff]
    %v3628 = vld [vmem:[#allocation6 + $0x258] sm:$0xff]
    %v3629 = vld [vmem:[#allocation6 + $0x260] sm:$0xff]
    %v3630 = vld [vmem:[#allocation6 + $0x268] sm:$0xff]
    %v3631 = vld [vmem:[#allocation6 + $0x270] sm:$0xff]
    %v3632 = vld [vmem:[#allocation6 + $0x278] sm:$0xff]
    %v3633 = vld [vmem:[#allocation6 + $0x280] sm:$0xff]
    %v3634 = vld [vmem:[#allocation6 + $0x288] sm:$0xff]
    %v3635 = vld [vmem:[#allocation6 + $0x290] sm:$0xff]
    %v3636 = vld [vmem:[#allocation6 + $0x298] sm:$0xff]
    %v3637 = vld [vmem:[#allocation6 + $0x2a0] sm:$0xff]
    %v3638 = vld [vmem:[#allocation6 + $0x2a8] sm:$0xff]
    %v3639 = vld [vmem:[#allocation6 + $0x2b0] sm:$0xff]
    %v3640 = vld [vmem:[#allocation6 + $0x2b8] sm:$0xff]
    %v3641 = vld [vmem:[#allocation6 + $0x2c0] sm:$0xff]
    %v3642 = vld [vmem:[#allocation6 + $0x2c8] sm:$0xff]
    %v3643 = vld [vmem:[#allocation6 + $0x2d0] sm:$0xff]
    %v3644 = vld [vmem:[#allocation6 + $0x2d8] sm:$0xff]
    %v3645 = vld [vmem:[#allocation6 + $0x2e0] sm:$0xff]
    %v3646 = vld [vmem:[#allocation6 + $0x2e8] sm:$0xff]
    %v3647 = vld [vmem:[#allocation6 + $0x2f0] sm:$0xff]
    %v3648 = vld [vmem:[#allocation6 + $0x2f8] sm:$0xff]
    %v3649 = vld [vmem:[#allocation6 + $0x300] sm:$0xff]
    %v3650 = vld [vmem:[#allocation6 + $0x308] sm:$0xff]
    %v3651 = vld [vmem:[#allocation6 + $0x310] sm:$0xff]
    %v3652 = vld [vmem:[#allocation6 + $0x318] sm:$0xff]
    %v3653 = vld [vmem:[#allocation6 + $0x320] sm:$0xff]
    %v3654 = vld [vmem:[#allocation6 + $0x328] sm:$0xff]
    %v3655 = vld [vmem:[#allocation6 + $0x330] sm:$0xff]
    %v3656 = vld [vmem:[#allocation6 + $0x338] sm:$0xff]
    %v3657 = vld [vmem:[#allocation6 + $0x340] sm:$0xff]
    %v3658 = vld [vmem:[#allocation6 + $0x348] sm:$0xff]
    %v3659 = vld [vmem:[#allocation6 + $0x350] sm:$0xff]
    %v3660 = vld [vmem:[#allocation6 + $0x358] sm:$0xff]
    %v3661 = vld [vmem:[#allocation6 + $0x360] sm:$0xff]
    %v3662 = vld [vmem:[#allocation6 + $0x368] sm:$0xff]
    %v3663 = vld [vmem:[#allocation6 + $0x370] sm:$0xff]
    %v3664 = vld [vmem:[#allocation6 + $0x378] sm:$0xff]
    %v3665 = vld [vmem:[#allocation6 + $0x380] sm:$0xff]
    %v3666 = vld [vmem:[#allocation6 + $0x388] sm:$0xff]
    %v3667 = vld [vmem:[#allocation6 + $0x390] sm:$0xff]
    %v3668 = vld [vmem:[#allocation6 + $0x398] sm:$0xff]
    %v3669 = vld [vmem:[#allocation6 + $0x3a0] sm:$0xff]
    %v3670 = vld [vmem:[#allocation6 + $0x3a8] sm:$0xff]
    %v3671 = vld [vmem:[#allocation6 + $0x3b0] sm:$0xff]
    %v3672 = vld [vmem:[#allocation6 + $0x3b8] sm:$0xff]
    %v3673 = vld [vmem:[#allocation6 + $0x3c0] sm:$0xff]
    %v3674 = vld [vmem:[#allocation6 + $0x3c8] sm:$0xff]
    %v3675 = vld [vmem:[#allocation6 + $0x3d0] sm:$0xff]
    %v3676 = vld [vmem:[#allocation6 + $0x3d8] sm:$0xff]
    %v3677 = vld [vmem:[#allocation6 + $0x3e0] sm:$0xff]
    %v3678 = vld [vmem:[#allocation6 + $0x3e8] sm:$0xff]
    %v3679 = vld [vmem:[#allocation6 + $0x3f0] sm:$0xff]
    %v3680 = vld [vmem:[#allocation6 + $0x3f8] sm:$0xff]
    %v3682 = vunpack.c.l.b16 %v3552
    %v3683 = vunpack.c.h.b16 %v3552
    %v3684 = vpack.c.b16 %v3682, %v3682
    %v3685 = vpack.c.b16 %v3683, %v3683
    %v3816 = vunpack.c.l.b16 %v3553
    %v3817 = vunpack.c.h.b16 %v3553
    %v3818 = vunpack.c.l.b16 %v3554
    %v3819 = vunpack.c.h.b16 %v3554
    %v3820 = vunpack.c.l.b16 %v3555
    %v3821 = vunpack.c.h.b16 %v3555
    %v3822 = vunpack.c.l.b16 %v3556
    %v3823 = vunpack.c.h.b16 %v3556
    %v3824 = vunpack.c.l.b16 %v3557
    %v3825 = vunpack.c.h.b16 %v3557
    %v3826 = vunpack.c.l.b16 %v3558
    %v3827 = vunpack.c.h.b16 %v3558
    %v3828 = vunpack.c.l.b16 %v3559
    %v3829 = vunpack.c.h.b16 %v3559
    %v3830 = vunpack.c.l.b16 %v3560
    %v3831 = vunpack.c.h.b16 %v3560
    %v3832 = vunpack.c.l.b16 %v3561
    %v3833 = vunpack.c.h.b16 %v3561
    %v3834 = vunpack.c.l.b16 %v3562
    %v3835 = vunpack.c.h.b16 %v3562
    %v3836 = vunpack.c.l.b16 %v3563
    %v3837 = vunpack.c.h.b16 %v3563
    %v3838 = vunpack.c.l.b16 %v3564
    %v3839 = vunpack.c.h.b16 %v3564
    %v3840 = vunpack.c.l.b16 %v3565
    %v3841 = vunpack.c.h.b16 %v3565
    %v3842 = vunpack.c.l.b16 %v3566
    %v3843 = vunpack.c.h.b16 %v3566
    %v3844 = vunpack.c.l.b16 %v3567
    %v3845 = vunpack.c.h.b16 %v3567
    %v3846 = vunpack.c.l.b16 %v3568
    %v3847 = vunpack.c.h.b16 %v3568
    %v3848 = vunpack.c.l.b16 %v3569
    %v3849 = vunpack.c.h.b16 %v3569
    %v3850 = vunpack.c.l.b16 %v3570
    %v3851 = vunpack.c.h.b16 %v3570
    %v3852 = vunpack.c.l.b16 %v3571
    %v3853 = vunpack.c.h.b16 %v3571
    %v3854 = vunpack.c.l.b16 %v3572
    %v3855 = vunpack.c.h.b16 %v3572
    %v3856 = vunpack.c.l.b16 %v3573
    %v3857 = vunpack.c.h.b16 %v3573
    %v3858 = vunpack.c.l.b16 %v3574
    %v3859 = vunpack.c.h.b16 %v3574
    %v3860 = vunpack.c.l.b16 %v3575
    %v3861 = vunpack.c.h.b16 %v3575
    %v3862 = vunpack.c.l.b16 %v3576
    %v3863 = vunpack.c.h.b16 %v3576
    %v3864 = vunpack.c.l.b16 %v3577
    %v3865 = vunpack.c.h.b16 %v3577
    %v3866 = vunpack.c.l.b16 %v3578
    %v3867 = vunpack.c.h.b16 %v3578
    %v3868 = vunpack.c.l.b16 %v3579
    %v3869 = vunpack.c.h.b16 %v3579
    %v3870 = vunpack.c.l.b16 %v3580
    %v3871 = vunpack.c.h.b16 %v3580
    %v3872 = vunpack.c.l.b16 %v3581
    %v3873 = vunpack.c.h.b16 %v3581
    %v3874 = vunpack.c.l.b16 %v3582
    %v3875 = vunpack.c.h.b16 %v3582
    %v3876 = vunpack.c.l.b16 %v3583
    %v3877 = vunpack.c.h.b16 %v3583
    %v3878 = vunpack.c.l.b16 %v3584
    %v3879 = vunpack.c.h.b16 %v3584
    %v3880 = vunpack.c.l.b16 %v3585
    %v3881 = vunpack.c.h.b16 %v3585
    %v3882 = vunpack.c.l.b16 %v3586
    %v3883 = vunpack.c.h.b16 %v3586
    %v3884 = vunpack.c.l.b16 %v3587
    %v3885 = vunpack.c.h.b16 %v3587
    %v3886 = vunpack.c.l.b16 %v3588
    %v3887 = vunpack.c.h.b16 %v3588
    %v3888 = vunpack.c.l.b16 %v3589
    %v3889 = vunpack.c.h.b16 %v3589
    %v3890 = vunpack.c.l.b16 %v3590
    %v3891 = vunpack.c.h.b16 %v3590
    %v3892 = vunpack.c.l.b16 %v3591
    %v3893 = vunpack.c.h.b16 %v3591
    %v3894 = vunpack.c.l.b16 %v3592
    %v3895 = vunpack.c.h.b16 %v3592
    %v3896 = vunpack.c.l.b16 %v3593
    %v3897 = vunpack.c.h.b16 %v3593
    %v3898 = vunpack.c.l.b16 %v3594
    %v3899 = vunpack.c.h.b16 %v3594
    %v3900 = vunpack.c.l.b16 %v3595
    %v3901 = vunpack.c.h.b16 %v3595
    %v3902 = vunpack.c.l.b16 %v3596
    %v3903 = vunpack.c.h.b16 %v3596
    %v3904 = vunpack.c.l.b16 %v3597
    %v3905 = vunpack.c.h.b16 %v3597
    %v3906 = vunpack.c.l.b16 %v3598
    %v3907 = vunpack.c.h.b16 %v3598
    %v3908 = vunpack.c.l.b16 %v3599
    %v3909 = vunpack.c.h.b16 %v3599
    %v3910 = vunpack.c.l.b16 %v3600
    %v3911 = vunpack.c.h.b16 %v3600
    %v3912 = vunpack.c.l.b16 %v3601
    %v3913 = vunpack.c.h.b16 %v3601
    %v3914 = vunpack.c.l.b16 %v3602
    %v3915 = vunpack.c.h.b16 %v3602
    %v3916 = vunpack.c.l.b16 %v3603
    %v3917 = vunpack.c.h.b16 %v3603
    %v3918 = vunpack.c.l.b16 %v3604
    %v3919 = vunpack.c.h.b16 %v3604
    %v3920 = vunpack.c.l.b16 %v3605
    %v3921 = vunpack.c.h.b16 %v3605
    %v3922 = vunpack.c.l.b16 %v3606
    %v3923 = vunpack.c.h.b16 %v3606
    %v3924 = vunpack.c.l.b16 %v3607
    %v3925 = vunpack.c.h.b16 %v3607
    %v3926 = vunpack.c.l.b16 %v3608
    %v3927 = vunpack.c.h.b16 %v3608
    %v3928 = vunpack.c.l.b16 %v3609
    %v3929 = vunpack.c.h.b16 %v3609
    %v3930 = vunpack.c.l.b16 %v3610
    %v3931 = vunpack.c.h.b16 %v3610
    %v3932 = vunpack.c.l.b16 %v3611
    %v3933 = vunpack.c.h.b16 %v3611
    %v3934 = vunpack.c.l.b16 %v3612
    %v3935 = vunpack.c.h.b16 %v3612
    %v3936 = vunpack.c.l.b16 %v3613
    %v3937 = vunpack.c.h.b16 %v3613
    %v3938 = vunpack.c.l.b16 %v3614
    %v3939 = vunpack.c.h.b16 %v3614
    %v3940 = vunpack.c.l.b16 %v3615
    %v3941 = vunpack.c.h.b16 %v3615
    %v3942 = vunpack.c.l.b16 %v3616
    %v3943 = vunpack.c.h.b16 %v3616
    %v3944 = vunpack.c.l.b16 %v3617
    %v3945 = vunpack.c.h.b16 %v3617
    %v3946 = vunpack.c.l.b16 %v3618
    %v3947 = vunpack.c.h.b16 %v3618
    %v3948 = vunpack.c.l.b16 %v3619
    %v3949 = vunpack.c.h.b16 %v3619
    %v3950 = vunpack.c.l.b16 %v3620
    %v3951 = vunpack.c.h.b16 %v3620
    %v3952 = vunpack.c.l.b16 %v3621
    %v3953 = vunpack.c.h.b16 %v3621
    %v3954 = vunpack.c.l.b16 %v3622
    %v3955 = vunpack.c.h.b16 %v3622
    %v3956 = vunpack.c.l.b16 %v3623
    %v3957 = vunpack.c.h.b16 %v3623
    %v3958 = vunpack.c.l.b16 %v3624
    %v3959 = vunpack.c.h.b16 %v3624
    %v3960 = vunpack.c.l.b16 %v3625
    %v3961 = vunpack.c.h.b16 %v3625
    %v3962 = vunpack.c.l.b16 %v3626
    %v3963 = vunpack.c.h.b16 %v3626
    %v3964 = vunpack.c.l.b16 %v3627
    %v3965 = vunpack.c.h.b16 %v3627
    %v3966 = vunpack.c.l.b16 %v3628
    %v3967 = vunpack.c.h.b16 %v3628
    %v3968 = vunpack.c.l.b16 %v3629
    %v3969 = vunpack.c.h.b16 %v3629
    %v3970 = vunpack.c.l.b16 %v3630
    %v3971 = vunpack.c.h.b16 %v3630
    %v3972 = vunpack.c.l.b16 %v3631
    %v3973 = vunpack.c.h.b16 %v3631
    %v3974 = vunpack.c.l.b16 %v3632
    %v3975 = vunpack.c.h.b16 %v3632
    %v3976 = vunpack.c.l.b16 %v3633
    %v3977 = vunpack.c.h.b16 %v3633
    %v3978 = vunpack.c.l.b16 %v3634
    %v3979 = vunpack.c.h.b16 %v3634
    %v3980 = vunpack.c.l.b16 %v3635
    %v3981 = vunpack.c.h.b16 %v3635
    %v3982 = vunpack.c.l.b16 %v3636
    %v3983 = vunpack.c.h.b16 %v3636
    %v3984 = vunpack.c.l.b16 %v3637
    %v3985 = vunpack.c.h.b16 %v3637
    %v3986 = vunpack.c.l.b16 %v3638
    %v3987 = vunpack.c.h.b16 %v3638
    %v3988 = vunpack.c.l.b16 %v3639
    %v3989 = vunpack.c.h.b16 %v3639
    %v3990 = vunpack.c.l.b16 %v3640
    %v3991 = vunpack.c.h.b16 %v3640
    %v3992 = vunpack.c.l.b16 %v3641
    %v3993 = vunpack.c.h.b16 %v3641
    %v3994 = vunpack.c.l.b16 %v3642
    %v3995 = vunpack.c.h.b16 %v3642
    %v3996 = vunpack.c.l.b16 %v3643
    %v3997 = vunpack.c.h.b16 %v3643
    %v3998 = vunpack.c.l.b16 %v3644
    %v3999 = vunpack.c.h.b16 %v3644
    %v4000 = vunpack.c.l.b16 %v3645
    %v4001 = vunpack.c.h.b16 %v3645
    %v4002 = vunpack.c.l.b16 %v3646
    %v4003 = vunpack.c.h.b16 %v3646
    %v4004 = vunpack.c.l.b16 %v3647
    %v4005 = vunpack.c.h.b16 %v3647
    %v4006 = vunpack.c.l.b16 %v3648
    %v4007 = vunpack.c.h.b16 %v3648
    %v4008 = vunpack.c.l.b16 %v3649
    %v4009 = vunpack.c.h.b16 %v3649
    %v4010 = vunpack.c.l.b16 %v3650
    %v4011 = vunpack.c.h.b16 %v3650
    %v4012 = vunpack.c.l.b16 %v3651
    %v4013 = vunpack.c.h.b16 %v3651
    %v4014 = vunpack.c.l.b16 %v3652
    %v4015 = vunpack.c.h.b16 %v3652
    %v4016 = vunpack.c.l.b16 %v3653
    %v4017 = vunpack.c.h.b16 %v3653
    %v4018 = vunpack.c.l.b16 %v3654
    %v4019 = vunpack.c.h.b16 %v3654
    %v4020 = vunpack.c.l.b16 %v3655
    %v4021 = vunpack.c.h.b16 %v3655
    %v4022 = vunpack.c.l.b16 %v3656
    %v4023 = vunpack.c.h.b16 %v3656
    %v4024 = vunpack.c.l.b16 %v3657
    %v4025 = vunpack.c.h.b16 %v3657
    %v4026 = vunpack.c.l.b16 %v3658
    %v4027 = vunpack.c.h.b16 %v3658
    %v4028 = vunpack.c.l.b16 %v3659
    %v4029 = vunpack.c.h.b16 %v3659
    %v4030 = vunpack.c.l.b16 %v3660
    %v4031 = vunpack.c.h.b16 %v3660
    %v4032 = vunpack.c.l.b16 %v3661
    %v4033 = vunpack.c.h.b16 %v3661
    %v4034 = vunpack.c.l.b16 %v3662
    %v4035 = vunpack.c.h.b16 %v3662
    %v4036 = vunpack.c.l.b16 %v3663
    %v4037 = vunpack.c.h.b16 %v3663
    %v4038 = vunpack.c.l.b16 %v3664
    %v4039 = vunpack.c.h.b16 %v3664
    %v4040 = vunpack.c.l.b16 %v3665
    %v4041 = vunpack.c.h.b16 %v3665
    %v4042 = vunpack.c.l.b16 %v3666
    %v4043 = vunpack.c.h.b16 %v3666
    %v4044 = vunpack.c.l.b16 %v3667
    %v4045 = vunpack.c.h.b16 %v3667
    %v4046 = vunpack.c.l.b16 %v3668
    %v4047 = vunpack.c.h.b16 %v3668
    %v4048 = vunpack.c.l.b16 %v3669
    %v4049 = vunpack.c.h.b16 %v3669
    %v4050 = vunpack.c.l.b16 %v3670
    %v4051 = vunpack.c.h.b16 %v3670
    %v4052 = vunpack.c.l.b16 %v3671
    %v4053 = vunpack.c.h.b16 %v3671
    %v4054 = vunpack.c.l.b16 %v3672
    %v4055 = vunpack.c.h.b16 %v3672
    %v4056 = vunpack.c.l.b16 %v3673
    %v4057 = vunpack.c.h.b16 %v3673
    %v4058 = vunpack.c.l.b16 %v3674
    %v4059 = vunpack.c.h.b16 %v3674
    %v4060 = vunpack.c.l.b16 %v3675
    %v4061 = vunpack.c.h.b16 %v3675
    %v4062 = vunpack.c.l.b16 %v3676
    %v4063 = vunpack.c.h.b16 %v3676
    %v4064 = vunpack.c.l.b16 %v3677
    %v4065 = vunpack.c.h.b16 %v3677
    %v4066 = vunpack.c.l.b16 %v3678
    %v4067 = vunpack.c.h.b16 %v3678
    %v4068 = vunpack.c.l.b16 %v3679
    %v4069 = vunpack.c.h.b16 %v3679
    %v4070 = vunpack.c.l.b16 %v3680
    %v4071 = vunpack.c.h.b16 %v3680
    %v4072 = vpack.c.b16 %v3824, %v3816
    %v4073 = vpack.c.b16 %v3825, %v3817
    %v4074 = vpack.c.b16 %v3826, %v3818
    %v4075 = vpack.c.b16 %v3827, %v3819
    %v4076 = vpack.c.b16 %v3828, %v3820
    %v4077 = vpack.c.b16 %v3829, %v3821
    %v4078 = vpack.c.b16 %v3830, %v3822
    %v4079 = vpack.c.b16 %v3831, %v3823
    %v4080 = vpack.c.b16 %v3840, %v3832
    %v4081 = vpack.c.b16 %v3841, %v3833
    %v4082 = vpack.c.b16 %v3842, %v3834
    %v4083 = vpack.c.b16 %v3843, %v3835
    %v4084 = vpack.c.b16 %v3844, %v3836
    %v4085 = vpack.c.b16 %v3845, %v3837
    %v4086 = vpack.c.b16 %v3846, %v3838
    %v4087 = vpack.c.b16 %v3847, %v3839
    %v4088 = vpack.c.b16 %v3856, %v3848
    %v4089 = vpack.c.b16 %v3857, %v3849
    %v4090 = vpack.c.b16 %v3858, %v3850
    %v4091 = vpack.c.b16 %v3859, %v3851
    %v4092 = vpack.c.b16 %v3860, %v3852
    %v4093 = vpack.c.b16 %v3861, %v3853
    %v4094 = vpack.c.b16 %v3862, %v3854
    %v4095 = vpack.c.b16 %v3863, %v3855
    %v4096 = vpack.c.b16 %v3872, %v3864
    %v4097 = vpack.c.b16 %v3873, %v3865
    %v4098 = vpack.c.b16 %v3874, %v3866
    %v4099 = vpack.c.b16 %v3875, %v3867
    %v4100 = vpack.c.b16 %v3876, %v3868
    %v4101 = vpack.c.b16 %v3877, %v3869
    %v4102 = vpack.c.b16 %v3878, %v3870
    %v4103 = vpack.c.b16 %v3879, %v3871
    %v4104 = vpack.c.b16 %v3888, %v3880
    %v4105 = vpack.c.b16 %v3889, %v3881
    %v4106 = vpack.c.b16 %v3890, %v3882
    %v4107 = vpack.c.b16 %v3891, %v3883
    %v4108 = vpack.c.b16 %v3892, %v3884
    %v4109 = vpack.c.b16 %v3893, %v3885
    %v4110 = vpack.c.b16 %v3894, %v3886
    %v4111 = vpack.c.b16 %v3895, %v3887
    %v4112 = vpack.c.b16 %v3904, %v3896
    %v4113 = vpack.c.b16 %v3905, %v3897
    %v4114 = vpack.c.b16 %v3906, %v3898
    %v4115 = vpack.c.b16 %v3907, %v3899
    %v4116 = vpack.c.b16 %v3908, %v3900
    %v4117 = vpack.c.b16 %v3909, %v3901
    %v4118 = vpack.c.b16 %v3910, %v3902
    %v4119 = vpack.c.b16 %v3911, %v3903
    %v4120 = vpack.c.b16 %v3920, %v3912
    %v4121 = vpack.c.b16 %v3921, %v3913
    %v4122 = vpack.c.b16 %v3922, %v3914
    %v4123 = vpack.c.b16 %v3923, %v3915
    %v4124 = vpack.c.b16 %v3924, %v3916
    %v4125 = vpack.c.b16 %v3925, %v3917
    %v4126 = vpack.c.b16 %v3926, %v3918
    %v4127 = vpack.c.b16 %v3927, %v3919
    %v4128 = vpack.c.b16 %v3936, %v3928
    %v4129 = vpack.c.b16 %v3937, %v3929
    %v4130 = vpack.c.b16 %v3938, %v3930
    %v4131 = vpack.c.b16 %v3939, %v3931
    %v4132 = vpack.c.b16 %v3940, %v3932
    %v4133 = vpack.c.b16 %v3941, %v3933
    %v4134 = vpack.c.b16 %v3942, %v3934
    %v4135 = vpack.c.b16 %v3943, %v3935
    %v4136 = vpack.c.b16 %v3952, %v3944
    %v4137 = vpack.c.b16 %v3953, %v3945
    %v4138 = vpack.c.b16 %v3954, %v3946
    %v4139 = vpack.c.b16 %v3955, %v3947
    %v4140 = vpack.c.b16 %v3956, %v3948
    %v4141 = vpack.c.b16 %v3957, %v3949
    %v4142 = vpack.c.b16 %v3958, %v3950
    %v4143 = vpack.c.b16 %v3959, %v3951
    %v4144 = vpack.c.b16 %v3968, %v3960
    %v4145 = vpack.c.b16 %v3969, %v3961
    %v4146 = vpack.c.b16 %v3970, %v3962
    %v4147 = vpack.c.b16 %v3971, %v3963
    %v4148 = vpack.c.b16 %v3972, %v3964
    %v4149 = vpack.c.b16 %v3973, %v3965
    %v4150 = vpack.c.b16 %v3974, %v3966
    %v4151 = vpack.c.b16 %v3975, %v3967
    %v4152 = vpack.c.b16 %v3984, %v3976
    %v4153 = vpack.c.b16 %v3985, %v3977
    %v4154 = vpack.c.b16 %v3986, %v3978
    %v4155 = vpack.c.b16 %v3987, %v3979
    %v4156 = vpack.c.b16 %v3988, %v3980
    %v4157 = vpack.c.b16 %v3989, %v3981
    %v4158 = vpack.c.b16 %v3990, %v3982
    %v4159 = vpack.c.b16 %v3991, %v3983
    %v4160 = vpack.c.b16 %v4000, %v3992
    %v4161 = vpack.c.b16 %v4001, %v3993
    %v4162 = vpack.c.b16 %v4002, %v3994
    %v4163 = vpack.c.b16 %v4003, %v3995
    %v4164 = vpack.c.b16 %v4004, %v3996
    %v4165 = vpack.c.b16 %v4005, %v3997
    %v4166 = vpack.c.b16 %v4006, %v3998
    %v4167 = vpack.c.b16 %v4007, %v3999
    %v4168 = vpack.c.b16 %v4016, %v4008
    %v4169 = vpack.c.b16 %v4017, %v4009
    %v4170 = vpack.c.b16 %v4018, %v4010
    %v4171 = vpack.c.b16 %v4019, %v4011
    %v4172 = vpack.c.b16 %v4020, %v4012
    %v4173 = vpack.c.b16 %v4021, %v4013
    %v4174 = vpack.c.b16 %v4022, %v4014
    %v4175 = vpack.c.b16 %v4023, %v4015
    %v4176 = vpack.c.b16 %v4032, %v4024
    %v4177 = vpack.c.b16 %v4033, %v4025
    %v4178 = vpack.c.b16 %v4034, %v4026
    %v4179 = vpack.c.b16 %v4035, %v4027
    %v4180 = vpack.c.b16 %v4036, %v4028
    %v4181 = vpack.c.b16 %v4037, %v4029
    %v4182 = vpack.c.b16 %v4038, %v4030
    %v4183 = vpack.c.b16 %v4039, %v4031
    %v4184 = vpack.c.b16 %v4048, %v4040
    %v4185 = vpack.c.b16 %v4049, %v4041
    %v4186 = vpack.c.b16 %v4050, %v4042
    %v4187 = vpack.c.b16 %v4051, %v4043
    %v4188 = vpack.c.b16 %v4052, %v4044
    %v4189 = vpack.c.b16 %v4053, %v4045
    %v4190 = vpack.c.b16 %v4054, %v4046
    %v4191 = vpack.c.b16 %v4055, %v4047
    %v4192 = vpack.c.b16 %v4064, %v4056
    %v4193 = vpack.c.b16 %v4065, %v4057
    %v4194 = vpack.c.b16 %v4066, %v4058
    %v4195 = vpack.c.b16 %v4067, %v4059
    %v4196 = vpack.c.b16 %v4068, %v4060
    %v4197 = vpack.c.b16 %v4069, %v4061
    %v4198 = vpack.c.b16 %v4070, %v4062
    %v4199 = vpack.c.b16 %v4071, %v4063
    %4328 = vmatprep.subr.bf16.mxu0 %v4073
    %4329 = vmatpush1.bf16.msra.mxu0 %v4072
    %4330 = vmatprep.subr.bf16.mxu0 %v4081
    %4331 = vmatpush1.bf16.msra.mxu0 %v4080
    %4332 = vmatprep.subr.bf16.mxu0 %v4089
    %4333 = vmatpush1.bf16.msra.mxu0 %v4088
    %4334 = vmatprep.subr.bf16.mxu0 %v4097
    %4335 = vmatpush1.bf16.msra.mxu0 %v4096
    %4336 = vmatprep.subr.bf16.mxu0 %v4105
    %4337 = vmatpush1.bf16.msra.mxu0 %v4104
    %4338 = vmatprep.subr.bf16.mxu0 %v4113
    %4339 = vmatpush1.bf16.msra.mxu0 %v4112
    %4340 = vmatprep.subr.bf16.mxu0 %v4121
    %4341 = vmatpush1.bf16.msra.mxu0 %v4120
    %4342 = vmatprep.subr.bf16.mxu0 %v4129
    %4343 = vmatpush1.bf16.msra.mxu0 %v4128
    %4344 = vmatprep.subr.bf16.mxu0 %v4137
    %4345 = vmatpush1.bf16.msra.mxu0 %v4136
    %4346 = vmatprep.subr.bf16.mxu0 %v4145
    %4347 = vmatpush1.bf16.msra.mxu0 %v4144
    %4348 = vmatprep.subr.bf16.mxu0 %v4153
    %4349 = vmatpush1.bf16.msra.mxu0 %v4152
    %4350 = vmatprep.subr.bf16.mxu0 %v4161
    %4351 = vmatpush1.bf16.msra.mxu0 %v4160
    %4352 = vmatprep.subr.bf16.mxu0 %v4169
    %4353 = vmatpush1.bf16.msra.mxu0 %v4168
    %4354 = vmatprep.subr.bf16.mxu0 %v4177
    %4355 = vmatpush1.bf16.msra.mxu0 %v4176
    %4356 = vmatprep.subr.bf16.mxu0 %v4185
    %4357 = vmatpush1.bf16.msra.mxu0 %v4184
    %4358 = vmatprep.subr.bf16.mxu0 %v4193
    %4359 = vmatpush1.bf16.msra.mxu0 %v4192
    %4360 = vmatprep.mubr.bf16.mxu0 %v3685
    %4361 = vmatmul.mubr.bf16.gmra.mrb[0].mxu0 %v3684
    %v4362 = vpop.f32.mrb[0].mxu0
    %v4363 = vadd.f32 0.0, %v4362
    %v4364 = vpop.f32.mrb[0].mxu0
    %v4365 = vadd.f32 0.0, %v4364
    %v4366 = vpop.f32.mrb[0].mxu0
    %v4367 = vpop.f32.mrb[0].mxu0
    %4368 = vdwg.mxu0
    %4369 = vmatprep.subr.bf16.mxu0 %v4075
    %4370 = vmatpush1.bf16.msra.mxu0 %v4074
    %4371 = vmatprep.subr.bf16.mxu0 %v4083
    %4372 = vmatpush1.bf16.msra.mxu0 %v4082
    %4373 = vmatprep.subr.bf16.mxu0 %v4091
    %4374 = vmatpush1.bf16.msra.mxu0 %v4090
    %4375 = vmatprep.subr.bf16.mxu0 %v4099
    %4376 = vmatpush1.bf16.msra.mxu0 %v4098
    %4377 = vmatprep.subr.bf16.mxu0 %v4107
    %4378 = vmatpush1.bf16.msra.mxu0 %v4106
    %4379 = vmatprep.subr.bf16.mxu0 %v4115
    %4380 = vmatpush1.bf16.msra.mxu0 %v4114
    %4381 = vmatprep.subr.bf16.mxu0 %v4123
    %4382 = vmatpush1.bf16.msra.mxu0 %v4122
    %4383 = vmatprep.subr.bf16.mxu0 %v4131
    %4384 = vmatpush1.bf16.msra.mxu0 %v4130
    %4385 = vmatprep.subr.bf16.mxu0 %v4139
    %4386 = vmatpush1.bf16.msra.mxu0 %v4138
    %4387 = vmatprep.subr.bf16.mxu0 %v4147
    %4388 = vmatpush1.bf16.msra.mxu0 %v4146
    %4389 = vmatprep.subr.bf16.mxu0 %v4155
    %4390 = vmatpush1.bf16.msra.mxu0 %v4154
    %4391 = vmatprep.subr.bf16.mxu0 %v4163
    %4392 = vmatpush1.bf16.msra.mxu0 %v4162
    %4393 = vmatprep.subr.bf16.mxu0 %v4171
    %4394 = vmatpush1.bf16.msra.mxu0 %v4170
    %4395 = vmatprep.subr.bf16.mxu0 %v4179
    %4396 = vmatpush1.bf16.msra.mxu0 %v4178
    %4397 = vmatprep.subr.bf16.mxu0 %v4187
    %4398 = vmatpush1.bf16.msra.mxu0 %v4186
    %4399 = vmatprep.subr.bf16.mxu0 %v4195
    %4400 = vmatpush1.bf16.msra.mxu0 %v4194
    %4401 = vmatprep.mubr.bf16.mxu0 %v3685
    %4402 = vmatmul.mubr.bf16.gmra.mrb[0].mxu0 %v3684
    %v4403 = vpop.f32.mrb[0].mxu0
    %v4404 = vadd.f32 0.0, %v4403
    %v4405 = vpop.f32.mrb[0].mxu0
    %v4406 = vadd.f32 0.0, %v4405
    %v4407 = vpop.f32.mrb[0].mxu0
    %v4408 = vpop.f32.mrb[0].mxu0
    %4409 = vdwg.mxu0
    %4410 = vmatprep.subr.bf16.mxu0 %v4077
    %4411 = vmatpush1.bf16.msra.mxu0 %v4076
    %4412 = vmatprep.subr.bf16.mxu0 %v4085
    %4413 = vmatpush1.bf16.msra.mxu0 %v4084
    %4414 = vmatprep.subr.bf16.mxu0 %v4093
    %4415 = vmatpush1.bf16.msra.mxu0 %v4092
    %4416 = vmatprep.subr.bf16.mxu0 %v4101
    %4417 = vmatpush1.bf16.msra.mxu0 %v4100
    %4418 = vmatprep.subr.bf16.mxu0 %v4109
    %4419 = vmatpush1.bf16.msra.mxu0 %v4108
    %4420 = vmatprep.subr.bf16.mxu0 %v4117
    %4421 = vmatpush1.bf16.msra.mxu0 %v4116
    %4422 = vmatprep.subr.bf16.mxu0 %v4125
    %4423 = vmatpush1.bf16.msra.mxu0 %v4124
    %4424 = vmatprep.subr.bf16.mxu0 %v4133
    %4425 = vmatpush1.bf16.msra.mxu0 %v4132
    %4426 = vmatprep.subr.bf16.mxu0 %v4141
    %4427 = vmatpush1.bf16.msra.mxu0 %v4140
    %4428 = vmatprep.subr.bf16.mxu0 %v4149
    %4429 = vmatpush1.bf16.msra.mxu0 %v4148
    %4430 = vmatprep.subr.bf16.mxu0 %v4157
    %4431 = vmatpush1.bf16.msra.mxu0 %v4156
    %4432 = vmatprep.subr.bf16.mxu0 %v4165
    %4433 = vmatpush1.bf16.msra.mxu0 %v4164
    %4434 = vmatprep.subr.bf16.mxu0 %v4173
    %4435 = vmatpush1.bf16.msra.mxu0 %v4172
    %4436 = vmatprep.subr.bf16.mxu0 %v4181
    %4437 = vmatpush1.bf16.msra.mxu0 %v4180
    %4438 = vmatprep.subr.bf16.mxu0 %v4189
    %4439 = vmatpush1.bf16.msra.mxu0 %v4188
    %4440 = vmatprep.subr.bf16.mxu0 %v4197
    %4441 = vmatpush1.bf16.msra.mxu0 %v4196
    %4442 = vmatprep.mubr.bf16.mxu0 %v3685
    %4443 = vmatmul.mubr.bf16.gmra.mrb[0].mxu0 %v3684
    %v4444 = vpop.f32.mrb[0].mxu0
    %v4445 = vadd.f32 0.0, %v4444
    %v4446 = vpop.f32.mrb[0].mxu0
    %v4447 = vadd.f32 0.0, %v4446
    %v4448 = vpop.f32.mrb[0].mxu0
    %v4449 = vpop.f32.mrb[0].mxu0
    %4450 = vdwg.mxu0
    %4451 = vmatprep.subr.bf16.mxu0 %v4079
    %4452 = vmatpush1.bf16.msra.mxu0 %v4078
    %4453 = vmatprep.subr.bf16.mxu0 %v4087
    %4454 = vmatpush1.bf16.msra.mxu0 %v4086
    %4455 = vmatprep.subr.bf16.mxu0 %v4095
    %4456 = vmatpush1.bf16.msra.mxu0 %v4094
    %4457 = vmatprep.subr.bf16.mxu0 %v4103
    %4458 = vmatpush1.bf16.msra.mxu0 %v4102
    %4459 = vmatprep.subr.bf16.mxu0 %v4111
    %4460 = vmatpush1.bf16.msra.mxu0 %v4110
    %4461 = vmatprep.subr.bf16.mxu0 %v4119
    %4462 = vmatpush1.bf16.msra.mxu0 %v4118
    %4463 = vmatprep.subr.bf16.mxu0 %v4127
    %4464 = vmatpush1.bf16.msra.mxu0 %v4126
    %4465 = vmatprep.subr.bf16.mxu0 %v4135
    %4466 = vmatpush1.bf16.msra.mxu0 %v4134
    %4467 = vmatprep.subr.bf16.mxu0 %v4143
    %4468 = vmatpush1.bf16.msra.mxu0 %v4142
    %4469 = vmatprep.subr.bf16.mxu0 %v4151
    %4470 = vmatpush1.bf16.msra.mxu0 %v4150
    %4471 = vmatprep.subr.bf16.mxu0 %v4159
    %4472 = vmatpush1.bf16.msra.mxu0 %v4158
    %4473 = vmatprep.subr.bf16.mxu0 %v4167
    %4474 = vmatpush1.bf16.msra.mxu0 %v4166
    %4475 = vmatprep.subr.bf16.mxu0 %v4175
    %4476 = vmatpush1.bf16.msra.mxu0 %v4174
    %4477 = vmatprep.subr.bf16.mxu0 %v4183
    %4478 = vmatpush1.bf16.msra.mxu0 %v4182
    %4479 = vmatprep.subr.bf16.mxu0 %v4191
    %4480 = vmatpush1.bf16.msra.mxu0 %v4190
    %4481 = vmatprep.subr.bf16.mxu0 %v4199
    %4482 = vmatpush1.bf16.msra.mxu0 %v4198
    %4483 = vmatprep.mubr.bf16.mxu0 %v3685
    %4484 = vmatmul.mubr.bf16.gmra.mrb[0].mxu0 %v3684
    %v4485 = vpop.f32.mrb[0].mxu0
    %v4486 = vadd.f32 0.0, %v4485
    %v4487 = vpop.f32.mrb[0].mxu0
    %v4488 = vadd.f32 0.0, %v4487
    %v4489 = vpop.f32.mrb[0].mxu0
    %v4490 = vpop.f32.mrb[0].mxu0
    %4491 = vdwg.mxu0
    %s4492 = smul.u32 4, 4
    %s4493 = smul.addr %s4492, 8
    %s4494 = scalar_lea.vmem [#allocation2], %s4493
    %v4495 = vld [vmem:[%s4494] sm:$0xff]
    %v4496 = vld [vmem:[%s4494 + $0x8] sm:$0xff]
    %v4497 = vld [vmem:[%s4494 + $0x10] sm:$0xff]
    %v4498 = vld [vmem:[%s4494 + $0x18] sm:$0xff]
    %v4499 = vadd.f32 %v4495, %v4363
    %v4500 = vadd.f32 %v4496, %v4365
    %v4501 = vadd.f32 %v4497, %v4404
    %v4502 = vadd.f32 %v4498, %v4406
    %v4503 = vld [vmem:[#allocation4] sm:$0xff]
    %v4504 = vxor.u32 %v4499, 2147483648
    %v4505 = vxor.u32 %v4500, 2147483648
    %v4506 = vxor.u32 %v4501, 2147483648
    %v4507 = vmul.f32 %v4504, 1.442695
    %v4508 = vpow.pop %v4507
    %v4509 = vmul.f32 %v4505, 1.442695
    %v4510 = vpow.pop %v4509
    %v4511 = vmul.f32 %v4506, 1.442695
    %v4512 = vpow.pop %v4511
    %v4513 = vadd.f32 %v4508, 1.0
    %v4514 = vadd.f32 %v4510, 1.0
    %v4515 = vadd.f32 %v4512, 1.0
    %v4516 = vrcp.pop %v4513
    %v4517 = vmul.f32 1.0, %v4516
    %v4518 = vrcp.pop %v4514
    %v4519 = vmul.f32 1.0, %v4518
    %v4520 = vrcp.pop %v4515
    %v4521 = vmul.f32 1.0, %v4520
    %v4522 = vtanh.pop %v4502
    %v4523 = vmul.f32 %v4519, %v4503
    %v4524 = vmul.f32 %v4517, %v4522
    %v4525 = vadd.f32 %v4523, %v4524
    %v4526 = vtanh.pop %v4525
    %v4527 = vmul.f32 %v4521, %v4526
    %4528 = vst [vmem:[#allocation4] sm:$0xff] %v4525
    %v4529 = vpack.c.bf16 %v4527, %v4527
    %4530 = vst [vmem:[#allocation3] sm:$0xf] %v4529
    %v4531 = vadd.f32 %v4445, %v464
    %v4532 = vadd.f32 %v4447, %v468
    %v4533 = vadd.f32 %v4486, %v472
    %v4534 = vadd.f32 %v4488, %v476
    %v4535 = vld [vmem:[#allocation5] sm:$0xff]
    %v4536 = vxor.u32 %v4531, 2147483648
    %v4537 = vxor.u32 %v4532, 2147483648
    %v4538 = vxor.u32 %v4533, 2147483648
    %v4539 = vmul.f32 %v4536, 1.442695
    %v4540 = vpow.pop %v4539
    %v4541 = vmul.f32 %v4537, 1.442695
    %v4542 = vpow.pop %v4541
    %v4543 = vmul.f32 %v4538, 1.442695
    %v4544 = vpow.pop %v4543
    %v4545 = vadd.f32 %v4540, 1.0
    %v4546 = vadd.f32 %v4542, 1.0
    %v4547 = vadd.f32 %v4544, 1.0
    %v4548 = vrcp.pop %v4545
    %v4549 = vmul.f32 1.0, %v4548
    %v4550 = vrcp.pop %v4546
    %v4551 = vmul.f32 1.0, %v4550
    %v4552 = vrcp.pop %v4547
    %v4553 = vmul.f32 1.0, %v4552
    %v4554 = vtanh.pop %v4534
    %v4555 = vmul.f32 %v4551, %v4535
    %v4556 = vmul.f32 %v4549, %v4554
    %v4557 = vadd.f32 %v4555, %v4556
    %v4558 = vtanh.pop %v4557
    %v4559 = vmul.f32 %v4553, %v4558
    %4560 = vst [vmem:[#allocation5] sm:$0xff] %v4557
    %v4561 = vpack.c.bf16 %v4559, %v4559
    %4562 = vst [vmem:[#allocation3 + $0x4] sm:$0xf] %v4561
    %s4563 = scalar_lea.vmem %s5, 12
    %4564 = vst [vmem:[%s4563] sm:$0xf] %v4561
    %v4565 = vld [vmem:[#allocation3] sm:$0xff]
    %v4566 = vld [vmem:[#allocation6] sm:$0xff]
    %v4567 = vld [vmem:[#allocation6 + $0x8] sm:$0xff]
    %v4568 = vld [vmem:[#allocation6 + $0x10] sm:$0xff]
    %v4569 = vld [vmem:[#allocation6 + $0x18] sm:$0xff]
    %v4570 = vld [vmem:[#allocation6 + $0x20] sm:$0xff]
    %v4571 = vld [vmem:[#allocation6 + $0x28] sm:$0xff]
    %v4572 = vld [vmem:[#allocation6 + $0x30] sm:$0xff]
    %v4573 = vld [vmem:[#allocation6 + $0x38] sm:$0xff]
    %v4574 = vld [vmem:[#allocation6 + $0x40] sm:$0xff]
    %v4575 = vld [vmem:[#allocation6 + $0x48] sm:$0xff]
    %v4576 = vld [vmem:[#allocation6 + $0x50] sm:$0xff]
    %v4577 = vld [vmem:[#allocation6 + $0x58] sm:$0xff]
    %v4578 = vld [vmem:[#allocation6 + $0x60] sm:$0xff]
    %v4579 = vld [vmem:[#allocation6 + $0x68] sm:$0xff]
    %v4580 = vld [vmem:[#allocation6 + $0x70] sm:$0xff]
    %v4581 = vld [vmem:[#allocation6 + $0x78] sm:$0xff]
    %v4582 = vld [vmem:[#allocation6 + $0x80] sm:$0xff]
    %v4583 = vld [vmem:[#allocation6 + $0x88] sm:$0xff]
    %v4584 = vld [vmem:[#allocation6 + $0x90] sm:$0xff]
    %v4585 = vld [vmem:[#allocation6 + $0x98] sm:$0xff]
    %v4586 = vld [vmem:[#allocation6 + $0xa0] sm:$0xff]
    %v4587 = vld [vmem:[#allocation6 + $0xa8] sm:$0xff]
    %v4588 = vld [vmem:[#allocation6 + $0xb0] sm:$0xff]
    %v4589 = vld [vmem:[#allocation6 + $0xb8] sm:$0xff]
    %v4590 = vld [vmem:[#allocation6 + $0xc0] sm:$0xff]
    %v4591 = vld [vmem:[#allocation6 + $0xc8] sm:$0xff]
    %v4592 = vld [vmem:[#allocation6 + $0xd0] sm:$0xff]
    %v4593 = vld [vmem:[#allocation6 + $0xd8] sm:$0xff]
    %v4594 = vld [vmem:[#allocation6 + $0xe0] sm:$0xff]
    %v4595 = vld [vmem:[#allocation6 + $0xe8] sm:$0xff]
    %v4596 = vld [vmem:[#allocation6 + $0xf0] sm:$0xff]
    %v4597 = vld [vmem:[#allocation6 + $0xf8] sm:$0xff]
    %v4598 = vld [vmem:[#allocation6 + $0x100] sm:$0xff]
    %v4599 = vld [vmem:[#allocation6 + $0x108] sm:$0xff]
    %v4600 = vld [vmem:[#allocation6 + $0x110] sm:$0xff]
    %v4601 = vld [vmem:[#allocation6 + $0x118] sm:$0xff]
    %v4602 = vld [vmem:[#allocation6 + $0x120] sm:$0xff]
    %v4603 = vld [vmem:[#allocation6 + $0x128] sm:$0xff]
    %v4604 = vld [vmem:[#allocation6 + $0x130] sm:$0xff]
    %v4605 = vld [vmem:[#allocation6 + $0x138] sm:$0xff]
    %v4606 = vld [vmem:[#allocation6 + $0x140] sm:$0xff]
    %v4607 = vld [vmem:[#allocation6 + $0x148] sm:$0xff]
    %v4608 = vld [vmem:[#allocation6 + $0x150] sm:$0xff]
    %v4609 = vld [vmem:[#allocation6 + $0x158] sm:$0xff]
    %v4610 = vld [vmem:[#allocation6 + $0x160] sm:$0xff]
    %v4611 = vld [vmem:[#allocation6 + $0x168] sm:$0xff]
    %v4612 = vld [vmem:[#allocation6 + $0x170] sm:$0xff]
    %v4613 = vld [vmem:[#allocation6 + $0x178] sm:$0xff]
    %v4614 = vld [vmem:[#allocation6 + $0x180] sm:$0xff]
    %v4615 = vld [vmem:[#allocation6 + $0x188] sm:$0xff]
    %v4616 = vld [vmem:[#allocation6 + $0x190] sm:$0xff]
    %v4617 = vld [vmem:[#allocation6 + $0x198] sm:$0xff]
    %v4618 = vld [vmem:[#allocation6 + $0x1a0] sm:$0xff]
    %v4619 = vld [vmem:[#allocation6 + $0x1a8] sm:$0xff]
    %v4620 = vld [vmem:[#allocation6 + $0x1b0] sm:$0xff]
    %v4621 = vld [vmem:[#allocation6 + $0x1b8] sm:$0xff]
    %v4622 = vld [vmem:[#allocation6 + $0x1c0] sm:$0xff]
    %v4623 = vld [vmem:[#allocation6 + $0x1c8] sm:$0xff]
    %v4624 = vld [vmem:[#allocation6 + $0x1d0] sm:$0xff]
    %v4625 = vld [vmem:[#allocation6 + $0x1d8] sm:$0xff]
    %v4626 = vld [vmem:[#allocation6 + $0x1e0] sm:$0xff]
    %v4627 = vld [vmem:[#allocation6 + $0x1e8] sm:$0xff]
    %v4628 = vld [vmem:[#allocation6 + $0x1f0] sm:$0xff]
    %v4629 = vld [vmem:[#allocation6 + $0x1f8] sm:$0xff]
    %v4630 = vld [vmem:[#allocation6 + $0x200] sm:$0xff]
    %v4631 = vld [vmem:[#allocation6 + $0x208] sm:$0xff]
    %v4632 = vld [vmem:[#allocation6 + $0x210] sm:$0xff]
    %v4633 = vld [vmem:[#allocation6 + $0x218] sm:$0xff]
    %v4634 = vld [vmem:[#allocation6 + $0x220] sm:$0xff]
    %v4635 = vld [vmem:[#allocation6 + $0x228] sm:$0xff]
    %v4636 = vld [vmem:[#allocation6 + $0x230] sm:$0xff]
    %v4637 = vld [vmem:[#allocation6 + $0x238] sm:$0xff]
    %v4638 = vld [vmem:[#allocation6 + $0x240] sm:$0xff]
    %v4639 = vld [vmem:[#allocation6 + $0x248] sm:$0xff]
    %v4640 = vld [vmem:[#allocation6 + $0x250] sm:$0xff]
    %v4641 = vld [vmem:[#allocation6 + $0x258] sm:$0xff]
    %v4642 = vld [vmem:[#allocation6 + $0x260] sm:$0xff]
    %v4643 = vld [vmem:[#allocation6 + $0x268] sm:$0xff]
    %v4644 = vld [vmem:[#allocation6 + $0x270] sm:$0xff]
    %v4645 = vld [vmem:[#allocation6 + $0x278] sm:$0xff]
    %v4646 = vld [vmem:[#allocation6 + $0x280] sm:$0xff]
    %v4647 = vld [vmem:[#allocation6 + $0x288] sm:$0xff]
    %v4648 = vld [vmem:[#allocation6 + $0x290] sm:$0xff]
    %v4649 = vld [vmem:[#allocation6 + $0x298] sm:$0xff]
    %v4650 = vld [vmem:[#allocation6 + $0x2a0] sm:$0xff]
    %v4651 = vld [vmem:[#allocation6 + $0x2a8] sm:$0xff]
    %v4652 = vld [vmem:[#allocation6 + $0x2b0] sm:$0xff]
    %v4653 = vld [vmem:[#allocation6 + $0x2b8] sm:$0xff]
    %v4654 = vld [vmem:[#allocation6 + $0x2c0] sm:$0xff]
    %v4655 = vld [vmem:[#allocation6 + $0x2c8] sm:$0xff]
    %v4656 = vld [vmem:[#allocation6 + $0x2d0] sm:$0xff]
    %v4657 = vld [vmem:[#allocation6 + $0x2d8] sm:$0xff]
    %v4658 = vld [vmem:[#allocation6 + $0x2e0] sm:$0xff]
    %v4659 = vld [vmem:[#allocation6 + $0x2e8] sm:$0xff]
    %v4660 = vld [vmem:[#allocation6 + $0x2f0] sm:$0xff]
    %v4661 = vld [vmem:[#allocation6 + $0x2f8] sm:$0xff]
    %v4662 = vld [vmem:[#allocation6 + $0x300] sm:$0xff]
    %v4663 = vld [vmem:[#allocation6 + $0x308] sm:$0xff]
    %v4664 = vld [vmem:[#allocation6 + $0x310] sm:$0xff]
    %v4665 = vld [vmem:[#allocation6 + $0x318] sm:$0xff]
    %v4666 = vld [vmem:[#allocation6 + $0x320] sm:$0xff]
    %v4667 = vld [vmem:[#allocation6 + $0x328] sm:$0xff]
    %v4668 = vld [vmem:[#allocation6 + $0x330] sm:$0xff]
    %v4669 = vld [vmem:[#allocation6 + $0x338] sm:$0xff]
    %v4670 = vld [vmem:[#allocation6 + $0x340] sm:$0xff]
    %v4671 = vld [vmem:[#allocation6 + $0x348] sm:$0xff]
    %v4672 = vld [vmem:[#allocation6 + $0x350] sm:$0xff]
    %v4673 = vld [vmem:[#allocation6 + $0x358] sm:$0xff]
    %v4674 = vld [vmem:[#allocation6 + $0x360] sm:$0xff]
    %v4675 = vld [vmem:[#allocation6 + $0x368] sm:$0xff]
    %v4676 = vld [vmem:[#allocation6 + $0x370] sm:$0xff]
    %v4677 = vld [vmem:[#allocation6 + $0x378] sm:$0xff]
    %v4678 = vld [vmem:[#allocation6 + $0x380] sm:$0xff]
    %v4679 = vld [vmem:[#allocation6 + $0x388] sm:$0xff]
    %v4680 = vld [vmem:[#allocation6 + $0x390] sm:$0xff]
    %v4681 = vld [vmem:[#allocation6 + $0x398] sm:$0xff]
    %v4682 = vld [vmem:[#allocation6 + $0x3a0] sm:$0xff]
    %v4683 = vld [vmem:[#allocation6 + $0x3a8] sm:$0xff]
    %v4684 = vld [vmem:[#allocation6 + $0x3b0] sm:$0xff]
    %v4685 = vld [vmem:[#allocation6 + $0x3b8] sm:$0xff]
    %v4686 = vld [vmem:[#allocation6 + $0x3c0] sm:$0xff]
    %v4687 = vld [vmem:[#allocation6 + $0x3c8] sm:$0xff]
    %v4688 = vld [vmem:[#allocation6 + $0x3d0] sm:$0xff]
    %v4689 = vld [vmem:[#allocation6 + $0x3d8] sm:$0xff]
    %v4690 = vld [vmem:[#allocation6 + $0x3e0] sm:$0xff]
    %v4691 = vld [vmem:[#allocation6 + $0x3e8] sm:$0xff]
    %v4692 = vld [vmem:[#allocation6 + $0x3f0] sm:$0xff]
    %v4693 = vld [vmem:[#allocation6 + $0x3f8] sm:$0xff]
    %v4695 = vunpack.c.l.b16 %v4565
    %v4696 = vunpack.c.h.b16 %v4565
    %v4697 = vpack.c.b16 %v4695, %v4695
    %v4698 = vpack.c.b16 %v4696, %v4696
    %v4829 = vunpack.c.l.b16 %v4566
    %v4830 = vunpack.c.h.b16 %v4566
    %v4831 = vunpack.c.l.b16 %v4567
    %v4832 = vunpack.c.h.b16 %v4567
    %v4833 = vunpack.c.l.b16 %v4568
    %v4834 = vunpack.c.h.b16 %v4568
    %v4835 = vunpack.c.l.b16 %v4569
    %v4836 = vunpack.c.h.b16 %v4569
    %v4837 = vunpack.c.l.b16 %v4570
    %v4838 = vunpack.c.h.b16 %v4570
    %v4839 = vunpack.c.l.b16 %v4571
    %v4840 = vunpack.c.h.b16 %v4571
    %v4841 = vunpack.c.l.b16 %v4572
    %v4842 = vunpack.c.h.b16 %v4572
    %v4843 = vunpack.c.l.b16 %v4573
    %v4844 = vunpack.c.h.b16 %v4573
    %v4845 = vunpack.c.l.b16 %v4574
    %v4846 = vunpack.c.h.b16 %v4574
    %v4847 = vunpack.c.l.b16 %v4575
    %v4848 = vunpack.c.h.b16 %v4575
    %v4849 = vunpack.c.l.b16 %v4576
    %v4850 = vunpack.c.h.b16 %v4576
    %v4851 = vunpack.c.l.b16 %v4577
    %v4852 = vunpack.c.h.b16 %v4577
    %v4853 = vunpack.c.l.b16 %v4578
    %v4854 = vunpack.c.h.b16 %v4578
    %v4855 = vunpack.c.l.b16 %v4579
    %v4856 = vunpack.c.h.b16 %v4579
    %v4857 = vunpack.c.l.b16 %v4580
    %v4858 = vunpack.c.h.b16 %v4580
    %v4859 = vunpack.c.l.b16 %v4581
    %v4860 = vunpack.c.h.b16 %v4581
    %v4861 = vunpack.c.l.b16 %v4582
    %v4862 = vunpack.c.h.b16 %v4582
    %v4863 = vunpack.c.l.b16 %v4583
    %v4864 = vunpack.c.h.b16 %v4583
    %v4865 = vunpack.c.l.b16 %v4584
    %v4866 = vunpack.c.h.b16 %v4584
    %v4867 = vunpack.c.l.b16 %v4585
    %v4868 = vunpack.c.h.b16 %v4585
    %v4869 = vunpack.c.l.b16 %v4586
    %v4870 = vunpack.c.h.b16 %v4586
    %v4871 = vunpack.c.l.b16 %v4587
    %v4872 = vunpack.c.h.b16 %v4587
    %v4873 = vunpack.c.l.b16 %v4588
    %v4874 = vunpack.c.h.b16 %v4588
    %v4875 = vunpack.c.l.b16 %v4589
    %v4876 = vunpack.c.h.b16 %v4589
    %v4877 = vunpack.c.l.b16 %v4590
    %v4878 = vunpack.c.h.b16 %v4590
    %v4879 = vunpack.c.l.b16 %v4591
    %v4880 = vunpack.c.h.b16 %v4591
    %v4881 = vunpack.c.l.b16 %v4592
    %v4882 = vunpack.c.h.b16 %v4592
    %v4883 = vunpack.c.l.b16 %v4593
    %v4884 = vunpack.c.h.b16 %v4593
    %v4885 = vunpack.c.l.b16 %v4594
    %v4886 = vunpack.c.h.b16 %v4594
    %v4887 = vunpack.c.l.b16 %v4595
    %v4888 = vunpack.c.h.b16 %v4595
    %v4889 = vunpack.c.l.b16 %v4596
    %v4890 = vunpack.c.h.b16 %v4596
    %v4891 = vunpack.c.l.b16 %v4597
    %v4892 = vunpack.c.h.b16 %v4597
    %v4893 = vunpack.c.l.b16 %v4598
    %v4894 = vunpack.c.h.b16 %v4598
    %v4895 = vunpack.c.l.b16 %v4599
    %v4896 = vunpack.c.h.b16 %v4599
    %v4897 = vunpack.c.l.b16 %v4600
    %v4898 = vunpack.c.h.b16 %v4600
    %v4899 = vunpack.c.l.b16 %v4601
    %v4900 = vunpack.c.h.b16 %v4601
    %v4901 = vunpack.c.l.b16 %v4602
    %v4902 = vunpack.c.h.b16 %v4602
    %v4903 = vunpack.c.l.b16 %v4603
    %v4904 = vunpack.c.h.b16 %v4603
    %v4905 = vunpack.c.l.b16 %v4604
    %v4906 = vunpack.c.h.b16 %v4604
    %v4907 = vunpack.c.l.b16 %v4605
    %v4908 = vunpack.c.h.b16 %v4605
    %v4909 = vunpack.c.l.b16 %v4606
    %v4910 = vunpack.c.h.b16 %v4606
    %v4911 = vunpack.c.l.b16 %v4607
    %v4912 = vunpack.c.h.b16 %v4607
    %v4913 = vunpack.c.l.b16 %v4608
    %v4914 = vunpack.c.h.b16 %v4608
    %v4915 = vunpack.c.l.b16 %v4609
    %v4916 = vunpack.c.h.b16 %v4609
    %v4917 = vunpack.c.l.b16 %v4610
    %v4918 = vunpack.c.h.b16 %v4610
    %v4919 = vunpack.c.l.b16 %v4611
    %v4920 = vunpack.c.h.b16 %v4611
    %v4921 = vunpack.c.l.b16 %v4612
    %v4922 = vunpack.c.h.b16 %v4612
    %v4923 = vunpack.c.l.b16 %v4613
    %v4924 = vunpack.c.h.b16 %v4613
    %v4925 = vunpack.c.l.b16 %v4614
    %v4926 = vunpack.c.h.b16 %v4614
    %v4927 = vunpack.c.l.b16 %v4615
    %v4928 = vunpack.c.h.b16 %v4615
    %v4929 = vunpack.c.l.b16 %v4616
    %v4930 = vunpack.c.h.b16 %v4616
    %v4931 = vunpack.c.l.b16 %v4617
    %v4932 = vunpack.c.h.b16 %v4617
    %v4933 = vunpack.c.l.b16 %v4618
    %v4934 = vunpack.c.h.b16 %v4618
    %v4935 = vunpack.c.l.b16 %v4619
    %v4936 = vunpack.c.h.b16 %v4619
    %v4937 = vunpack.c.l.b16 %v4620
    %v4938 = vunpack.c.h.b16 %v4620
    %v4939 = vunpack.c.l.b16 %v4621
    %v4940 = vunpack.c.h.b16 %v4621
    %v4941 = vunpack.c.l.b16 %v4622
    %v4942 = vunpack.c.h.b16 %v4622
    %v4943 = vunpack.c.l.b16 %v4623
    %v4944 = vunpack.c.h.b16 %v4623
    %v4945 = vunpack.c.l.b16 %v4624
    %v4946 = vunpack.c.h.b16 %v4624
    %v4947 = vunpack.c.l.b16 %v4625
    %v4948 = vunpack.c.h.b16 %v4625
    %v4949 = vunpack.c.l.b16 %v4626
    %v4950 = vunpack.c.h.b16 %v4626
    %v4951 = vunpack.c.l.b16 %v4627
    %v4952 = vunpack.c.h.b16 %v4627
    %v4953 = vunpack.c.l.b16 %v4628
    %v4954 = vunpack.c.h.b16 %v4628
    %v4955 = vunpack.c.l.b16 %v4629
    %v4956 = vunpack.c.h.b16 %v4629
    %v4957 = vunpack.c.l.b16 %v4630
    %v4958 = vunpack.c.h.b16 %v4630
    %v4959 = vunpack.c.l.b16 %v4631
    %v4960 = vunpack.c.h.b16 %v4631
    %v4961 = vunpack.c.l.b16 %v4632
    %v4962 = vunpack.c.h.b16 %v4632
    %v4963 = vunpack.c.l.b16 %v4633
    %v4964 = vunpack.c.h.b16 %v4633
    %v4965 = vunpack.c.l.b16 %v4634
    %v4966 = vunpack.c.h.b16 %v4634
    %v4967 = vunpack.c.l.b16 %v4635
    %v4968 = vunpack.c.h.b16 %v4635
    %v4969 = vunpack.c.l.b16 %v4636
    %v4970 = vunpack.c.h.b16 %v4636
    %v4971 = vunpack.c.l.b16 %v4637
    %v4972 = vunpack.c.h.b16 %v4637
    %v4973 = vunpack.c.l.b16 %v4638
    %v4974 = vunpack.c.h.b16 %v4638
    %v4975 = vunpack.c.l.b16 %v4639
    %v4976 = vunpack.c.h.b16 %v4639
    %v4977 = vunpack.c.l.b16 %v4640
    %v4978 = vunpack.c.h.b16 %v4640
    %v4979 = vunpack.c.l.b16 %v4641
    %v4980 = vunpack.c.h.b16 %v4641
    %v4981 = vunpack.c.l.b16 %v4642
    %v4982 = vunpack.c.h.b16 %v4642
    %v4983 = vunpack.c.l.b16 %v4643
    %v4984 = vunpack.c.h.b16 %v4643
    %v4985 = vunpack.c.l.b16 %v4644
    %v4986 = vunpack.c.h.b16 %v4644
    %v4987 = vunpack.c.l.b16 %v4645
    %v4988 = vunpack.c.h.b16 %v4645
    %v4989 = vunpack.c.l.b16 %v4646
    %v4990 = vunpack.c.h.b16 %v4646
    %v4991 = vunpack.c.l.b16 %v4647
    %v4992 = vunpack.c.h.b16 %v4647
    %v4993 = vunpack.c.l.b16 %v4648
    %v4994 = vunpack.c.h.b16 %v4648
    %v4995 = vunpack.c.l.b16 %v4649
    %v4996 = vunpack.c.h.b16 %v4649
    %v4997 = vunpack.c.l.b16 %v4650
    %v4998 = vunpack.c.h.b16 %v4650
    %v4999 = vunpack.c.l.b16 %v4651
    %v5000 = vunpack.c.h.b16 %v4651
    %v5001 = vunpack.c.l.b16 %v4652
    %v5002 = vunpack.c.h.b16 %v4652
    %v5003 = vunpack.c.l.b16 %v4653
    %v5004 = vunpack.c.h.b16 %v4653
    %v5005 = vunpack.c.l.b16 %v4654
    %v5006 = vunpack.c.h.b16 %v4654
    %v5007 = vunpack.c.l.b16 %v4655
    %v5008 = vunpack.c.h.b16 %v4655
    %v5009 = vunpack.c.l.b16 %v4656
    %v5010 = vunpack.c.h.b16 %v4656
    %v5011 = vunpack.c.l.b16 %v4657
    %v5012 = vunpack.c.h.b16 %v4657
    %v5013 = vunpack.c.l.b16 %v4658
    %v5014 = vunpack.c.h.b16 %v4658
    %v5015 = vunpack.c.l.b16 %v4659
    %v5016 = vunpack.c.h.b16 %v4659
    %v5017 = vunpack.c.l.b16 %v4660
    %v5018 = vunpack.c.h.b16 %v4660
    %v5019 = vunpack.c.l.b16 %v4661
    %v5020 = vunpack.c.h.b16 %v4661
    %v5021 = vunpack.c.l.b16 %v4662
    %v5022 = vunpack.c.h.b16 %v4662
    %v5023 = vunpack.c.l.b16 %v4663
    %v5024 = vunpack.c.h.b16 %v4663
    %v5025 = vunpack.c.l.b16 %v4664
    %v5026 = vunpack.c.h.b16 %v4664
    %v5027 = vunpack.c.l.b16 %v4665
    %v5028 = vunpack.c.h.b16 %v4665
    %v5029 = vunpack.c.l.b16 %v4666
    %v5030 = vunpack.c.h.b16 %v4666
    %v5031 = vunpack.c.l.b16 %v4667
    %v5032 = vunpack.c.h.b16 %v4667
    %v5033 = vunpack.c.l.b16 %v4668
    %v5034 = vunpack.c.h.b16 %v4668
    %v5035 = vunpack.c.l.b16 %v4669
    %v5036 = vunpack.c.h.b16 %v4669
    %v5037 = vunpack.c.l.b16 %v4670
    %v5038 = vunpack.c.h.b16 %v4670
    %v5039 = vunpack.c.l.b16 %v4671
    %v5040 = vunpack.c.h.b16 %v4671
    %v5041 = vunpack.c.l.b16 %v4672
    %v5042 = vunpack.c.h.b16 %v4672
    %v5043 = vunpack.c.l.b16 %v4673
    %v5044 = vunpack.c.h.b16 %v4673
    %v5045 = vunpack.c.l.b16 %v4674
    %v5046 = vunpack.c.h.b16 %v4674
    %v5047 = vunpack.c.l.b16 %v4675
    %v5048 = vunpack.c.h.b16 %v4675
    %v5049 = vunpack.c.l.b16 %v4676
    %v5050 = vunpack.c.h.b16 %v4676
    %v5051 = vunpack.c.l.b16 %v4677
    %v5052 = vunpack.c.h.b16 %v4677
    %v5053 = vunpack.c.l.b16 %v4678
    %v5054 = vunpack.c.h.b16 %v4678
    %v5055 = vunpack.c.l.b16 %v4679
    %v5056 = vunpack.c.h.b16 %v4679
    %v5057 = vunpack.c.l.b16 %v4680
    %v5058 = vunpack.c.h.b16 %v4680
    %v5059 = vunpack.c.l.b16 %v4681
    %v5060 = vunpack.c.h.b16 %v4681
    %v5061 = vunpack.c.l.b16 %v4682
    %v5062 = vunpack.c.h.b16 %v4682
    %v5063 = vunpack.c.l.b16 %v4683
    %v5064 = vunpack.c.h.b16 %v4683
    %v5065 = vunpack.c.l.b16 %v4684
    %v5066 = vunpack.c.h.b16 %v4684
    %v5067 = vunpack.c.l.b16 %v4685
    %v5068 = vunpack.c.h.b16 %v4685
    %v5069 = vunpack.c.l.b16 %v4686
    %v5070 = vunpack.c.h.b16 %v4686
    %v5071 = vunpack.c.l.b16 %v4687
    %v5072 = vunpack.c.h.b16 %v4687
    %v5073 = vunpack.c.l.b16 %v4688
    %v5074 = vunpack.c.h.b16 %v4688
    %v5075 = vunpack.c.l.b16 %v4689
    %v5076 = vunpack.c.h.b16 %v4689
    %v5077 = vunpack.c.l.b16 %v4690
    %v5078 = vunpack.c.h.b16 %v4690
    %v5079 = vunpack.c.l.b16 %v4691
    %v5080 = vunpack.c.h.b16 %v4691
    %v5081 = vunpack.c.l.b16 %v4692
    %v5082 = vunpack.c.h.b16 %v4692
    %v5083 = vunpack.c.l.b16 %v4693
    %v5084 = vunpack.c.h.b16 %v4693
    %v5085 = vpack.c.b16 %v4837, %v4829
    %v5086 = vpack.c.b16 %v4838, %v4830
    %v5087 = vpack.c.b16 %v4839, %v4831
    %v5088 = vpack.c.b16 %v4840, %v4832
    %v5089 = vpack.c.b16 %v4841, %v4833
    %v5090 = vpack.c.b16 %v4842, %v4834
    %v5091 = vpack.c.b16 %v4843, %v4835
    %v5092 = vpack.c.b16 %v4844, %v4836
    %v5093 = vpack.c.b16 %v4853, %v4845
    %v5094 = vpack.c.b16 %v4854, %v4846
    %v5095 = vpack.c.b16 %v4855, %v4847
    %v5096 = vpack.c.b16 %v4856, %v4848
    %v5097 = vpack.c.b16 %v4857, %v4849
    %v5098 = vpack.c.b16 %v4858, %v4850
    %v5099 = vpack.c.b16 %v4859, %v4851
    %v5100 = vpack.c.b16 %v4860, %v4852
    %v5101 = vpack.c.b16 %v4869, %v4861
    %v5102 = vpack.c.b16 %v4870, %v4862
    %v5103 = vpack.c.b16 %v4871, %v4863
    %v5104 = vpack.c.b16 %v4872, %v4864
    %v5105 = vpack.c.b16 %v4873, %v4865
    %v5106 = vpack.c.b16 %v4874, %v4866
    %v5107 = vpack.c.b16 %v4875, %v4867
    %v5108 = vpack.c.b16 %v4876, %v4868
    %v5109 = vpack.c.b16 %v4885, %v4877
    %v5110 = vpack.c.b16 %v4886, %v4878
    %v5111 = vpack.c.b16 %v4887, %v4879
    %v5112 = vpack.c.b16 %v4888, %v4880
    %v5113 = vpack.c.b16 %v4889, %v4881
    %v5114 = vpack.c.b16 %v4890, %v4882
    %v5115 = vpack.c.b16 %v4891, %v4883
    %v5116 = vpack.c.b16 %v4892, %v4884
    %v5117 = vpack.c.b16 %v4901, %v4893
    %v5118 = vpack.c.b16 %v4902, %v4894
    %v5119 = vpack.c.b16 %v4903, %v4895
    %v5120 = vpack.c.b16 %v4904, %v4896
    %v5121 = vpack.c.b16 %v4905, %v4897
    %v5122 = vpack.c.b16 %v4906, %v4898
    %v5123 = vpack.c.b16 %v4907, %v4899
    %v5124 = vpack.c.b16 %v4908, %v4900
    %v5125 = vpack.c.b16 %v4917, %v4909
    %v5126 = vpack.c.b16 %v4918, %v4910
    %v5127 = vpack.c.b16 %v4919, %v4911
    %v5128 = vpack.c.b16 %v4920, %v4912
    %v5129 = vpack.c.b16 %v4921, %v4913
    %v5130 = vpack.c.b16 %v4922, %v4914
    %v5131 = vpack.c.b16 %v4923, %v4915
    %v5132 = vpack.c.b16 %v4924, %v4916
    %v5133 = vpack.c.b16 %v4933, %v4925
    %v5134 = vpack.c.b16 %v4934, %v4926
    %v5135 = vpack.c.b16 %v4935, %v4927
    %v5136 = vpack.c.b16 %v4936, %v4928
    %v5137 = vpack.c.b16 %v4937, %v4929
    %v5138 = vpack.c.b16 %v4938, %v4930
    %v5139 = vpack.c.b16 %v4939, %v4931
    %v5140 = vpack.c.b16 %v4940, %v4932
    %v5141 = vpack.c.b16 %v4949, %v4941
    %v5142 = vpack.c.b16 %v4950, %v4942
    %v5143 = vpack.c.b16 %v4951, %v4943
    %v5144 = vpack.c.b16 %v4952, %v4944
    %v5145 = vpack.c.b16 %v4953, %v4945
    %v5146 = vpack.c.b16 %v4954, %v4946
    %v5147 = vpack.c.b16 %v4955, %v4947
    %v5148 = vpack.c.b16 %v4956, %v4948
    %v5149 = vpack.c.b16 %v4965, %v4957
    %v5150 = vpack.c.b16 %v4966, %v4958
    %v5151 = vpack.c.b16 %v4967, %v4959
    %v5152 = vpack.c.b16 %v4968, %v4960
    %v5153 = vpack.c.b16 %v4969, %v4961
    %v5154 = vpack.c.b16 %v4970, %v4962
    %v5155 = vpack.c.b16 %v4971, %v4963
    %v5156 = vpack.c.b16 %v4972, %v4964
    %v5157 = vpack.c.b16 %v4981, %v4973
    %v5158 = vpack.c.b16 %v4982, %v4974
    %v5159 = vpack.c.b16 %v4983, %v4975
    %v5160 = vpack.c.b16 %v4984, %v4976
    %v5161 = vpack.c.b16 %v4985, %v4977
    %v5162 = vpack.c.b16 %v4986, %v4978
    %v5163 = vpack.c.b16 %v4987, %v4979
    %v5164 = vpack.c.b16 %v4988, %v4980
    %v5165 = vpack.c.b16 %v4997, %v4989
    %v5166 = vpack.c.b16 %v4998, %v4990
    %v5167 = vpack.c.b16 %v4999, %v4991
    %v5168 = vpack.c.b16 %v5000, %v4992
    %v5169 = vpack.c.b16 %v5001, %v4993
    %v5170 = vpack.c.b16 %v5002, %v4994
    %v5171 = vpack.c.b16 %v5003, %v4995
    %v5172 = vpack.c.b16 %v5004, %v4996
    %v5173 = vpack.c.b16 %v5013, %v5005
    %v5174 = vpack.c.b16 %v5014, %v5006
    %v5175 = vpack.c.b16 %v5015, %v5007
    %v5176 = vpack.c.b16 %v5016, %v5008
    %v5177 = vpack.c.b16 %v5017, %v5009
    %v5178 = vpack.c.b16 %v5018, %v5010
    %v5179 = vpack.c.b16 %v5019, %v5011
    %v5180 = vpack.c.b16 %v5020, %v5012
    %v5181 = vpack.c.b16 %v5029, %v5021
    %v5182 = vpack.c.b16 %v5030, %v5022
    %v5183 = vpack.c.b16 %v5031, %v5023
    %v5184 = vpack.c.b16 %v5032, %v5024
    %v5185 = vpack.c.b16 %v5033, %v5025
    %v5186 = vpack.c.b16 %v5034, %v5026
    %v5187 = vpack.c.b16 %v5035, %v5027
    %v5188 = vpack.c.b16 %v5036, %v5028
    %v5189 = vpack.c.b16 %v5045, %v5037
    %v5190 = vpack.c.b16 %v5046, %v5038
    %v5191 = vpack.c.b16 %v5047, %v5039
    %v5192 = vpack.c.b16 %v5048, %v5040
    %v5193 = vpack.c.b16 %v5049, %v5041
    %v5194 = vpack.c.b16 %v5050, %v5042
    %v5195 = vpack.c.b16 %v5051, %v5043
    %v5196 = vpack.c.b16 %v5052, %v5044
    %v5197 = vpack.c.b16 %v5061, %v5053
    %v5198 = vpack.c.b16 %v5062, %v5054
    %v5199 = vpack.c.b16 %v5063, %v5055
    %v5200 = vpack.c.b16 %v5064, %v5056
    %v5201 = vpack.c.b16 %v5065, %v5057
    %v5202 = vpack.c.b16 %v5066, %v5058
    %v5203 = vpack.c.b16 %v5067, %v5059
    %v5204 = vpack.c.b16 %v5068, %v5060
    %v5205 = vpack.c.b16 %v5077, %v5069
    %v5206 = vpack.c.b16 %v5078, %v5070
    %v5207 = vpack.c.b16 %v5079, %v5071
    %v5208 = vpack.c.b16 %v5080, %v5072
    %v5209 = vpack.c.b16 %v5081, %v5073
    %v5210 = vpack.c.b16 %v5082, %v5074
    %v5211 = vpack.c.b16 %v5083, %v5075
    %v5212 = vpack.c.b16 %v5084, %v5076
    %5341 = vmatprep.subr.bf16.mxu0 %v5086
    %5342 = vmatpush1.bf16.msra.mxu0 %v5085
    %5343 = vmatprep.subr.bf16.mxu0 %v5094
    %5344 = vmatpush1.bf16.msra.mxu0 %v5093
    %5345 = vmatprep.subr.bf16.mxu0 %v5102
    %5346 = vmatpush1.bf16.msra.mxu0 %v5101
    %5347 = vmatprep.subr.bf16.mxu0 %v5110
    %5348 = vmatpush1.bf16.msra.mxu0 %v5109
    %5349 = vmatprep.subr.bf16.mxu0 %v5118
    %5350 = vmatpush1.bf16.msra.mxu0 %v5117
    %5351 = vmatprep.subr.bf16.mxu0 %v5126
    %5352 = vmatpush1.bf16.msra.mxu0 %v5125
    %5353 = vmatprep.subr.bf16.mxu0 %v5134
    %5354 = vmatpush1.bf16.msra.mxu0 %v5133
    %5355 = vmatprep.subr.bf16.mxu0 %v5142
    %5356 = vmatpush1.bf16.msra.mxu0 %v5141
    %5357 = vmatprep.subr.bf16.mxu0 %v5150
    %5358 = vmatpush1.bf16.msra.mxu0 %v5149
    %5359 = vmatprep.subr.bf16.mxu0 %v5158
    %5360 = vmatpush1.bf16.msra.mxu0 %v5157
    %5361 = vmatprep.subr.bf16.mxu0 %v5166
    %5362 = vmatpush1.bf16.msra.mxu0 %v5165
    %5363 = vmatprep.subr.bf16.mxu0 %v5174
    %5364 = vmatpush1.bf16.msra.mxu0 %v5173
    %5365 = vmatprep.subr.bf16.mxu0 %v5182
    %5366 = vmatpush1.bf16.msra.mxu0 %v5181
    %5367 = vmatprep.subr.bf16.mxu0 %v5190
    %5368 = vmatpush1.bf16.msra.mxu0 %v5189
    %5369 = vmatprep.subr.bf16.mxu0 %v5198
    %5370 = vmatpush1.bf16.msra.mxu0 %v5197
    %5371 = vmatprep.subr.bf16.mxu0 %v5206
    %5372 = vmatpush1.bf16.msra.mxu0 %v5205
    %5373 = vmatprep.mubr.bf16.mxu0 %v4698
    %5374 = vmatmul.mubr.bf16.gmra.mrb[0].mxu0 %v4697
    %v5375 = vpop.f32.mrb[0].mxu0
    %v5376 = vadd.f32 0.0, %v5375
    %v5377 = vpop.f32.mrb[0].mxu0
    %v5378 = vadd.f32 0.0, %v5377
    %v5379 = vpop.f32.mrb[0].mxu0
    %v5380 = vpop.f32.mrb[0].mxu0
    %5381 = vdwg.mxu0
    %5382 = vmatprep.subr.bf16.mxu0 %v5088
    %5383 = vmatpush1.bf16.msra.mxu0 %v5087
    %5384 = vmatprep.subr.bf16.mxu0 %v5096
    %5385 = vmatpush1.bf16.msra.mxu0 %v5095
    %5386 = vmatprep.subr.bf16.mxu0 %v5104
    %5387 = vmatpush1.bf16.msra.mxu0 %v5103
    %5388 = vmatprep.subr.bf16.mxu0 %v5112
    %5389 = vmatpush1.bf16.msra.mxu0 %v5111
    %5390 = vmatprep.subr.bf16.mxu0 %v5120
    %5391 = vmatpush1.bf16.msra.mxu0 %v5119
    %5392 = vmatprep.subr.bf16.mxu0 %v5128
    %5393 = vmatpush1.bf16.msra.mxu0 %v5127
    %5394 = vmatprep.subr.bf16.mxu0 %v5136
    %5395 = vmatpush1.bf16.msra.mxu0 %v5135
    %5396 = vmatprep.subr.bf16.mxu0 %v5144
    %5397 = vmatpush1.bf16.msra.mxu0 %v5143
    %5398 = vmatprep.subr.bf16.mxu0 %v5152
    %5399 = vmatpush1.bf16.msra.mxu0 %v5151
    %5400 = vmatprep.subr.bf16.mxu0 %v5160
    %5401 = vmatpush1.bf16.msra.mxu0 %v5159
    %5402 = vmatprep.subr.bf16.mxu0 %v5168
    %5403 = vmatpush1.bf16.msra.mxu0 %v5167
    %5404 = vmatprep.subr.bf16.mxu0 %v5176
    %5405 = vmatpush1.bf16.msra.mxu0 %v5175
    %5406 = vmatprep.subr.bf16.mxu0 %v5184
    %5407 = vmatpush1.bf16.msra.mxu0 %v5183
    %5408 = vmatprep.subr.bf16.mxu0 %v5192
    %5409 = vmatpush1.bf16.msra.mxu0 %v5191
    %5410 = vmatprep.subr.bf16.mxu0 %v5200
    %5411 = vmatpush1.bf16.msra.mxu0 %v5199
    %5412 = vmatprep.subr.bf16.mxu0 %v5208
    %5413 = vmatpush1.bf16.msra.mxu0 %v5207
    %5414 = vmatprep.mubr.bf16.mxu0 %v4698
    %5415 = vmatmul.mubr.bf16.gmra.mrb[0].mxu0 %v4697
    %v5416 = vpop.f32.mrb[0].mxu0
    %v5417 = vadd.f32 0.0, %v5416
    %v5418 = vpop.f32.mrb[0].mxu0
    %v5419 = vadd.f32 0.0, %v5418
    %v5420 = vpop.f32.mrb[0].mxu0
    %v5421 = vpop.f32.mrb[0].mxu0
    %5422 = vdwg.mxu0
    %5423 = vmatprep.subr.bf16.mxu0 %v5090
    %5424 = vmatpush1.bf16.msra.mxu0 %v5089
    %5425 = vmatprep.subr.bf16.mxu0 %v5098
    %5426 = vmatpush1.bf16.msra.mxu0 %v5097
    %5427 = vmatprep.subr.bf16.mxu0 %v5106
    %5428 = vmatpush1.bf16.msra.mxu0 %v5105
    %5429 = vmatprep.subr.bf16.mxu0 %v5114
    %5430 = vmatpush1.bf16.msra.mxu0 %v5113
    %5431 = vmatprep.subr.bf16.mxu0 %v5122
    %5432 = vmatpush1.bf16.msra.mxu0 %v5121
    %5433 = vmatprep.subr.bf16.mxu0 %v5130
    %5434 = vmatpush1.bf16.msra.mxu0 %v5129
    %5435 = vmatprep.subr.bf16.mxu0 %v5138
    %5436 = vmatpush1.bf16.msra.mxu0 %v5137
    %5437 = vmatprep.subr.bf16.mxu0 %v5146
    %5438 = vmatpush1.bf16.msra.mxu0 %v5145
    %5439 = vmatprep.subr.bf16.mxu0 %v5154
    %5440 = vmatpush1.bf16.msra.mxu0 %v5153
    %5441 = vmatprep.subr.bf16.mxu0 %v5162
    %5442 = vmatpush1.bf16.msra.mxu0 %v5161
    %5443 = vmatprep.subr.bf16.mxu0 %v5170
    %5444 = vmatpush1.bf16.msra.mxu0 %v5169
    %5445 = vmatprep.subr.bf16.mxu0 %v5178
    %5446 = vmatpush1.bf16.msra.mxu0 %v5177
    %5447 = vmatprep.subr.bf16.mxu0 %v5186
    %5448 = vmatpush1.bf16.msra.mxu0 %v5185
    %5449 = vmatprep.subr.bf16.mxu0 %v5194
    %5450 = vmatpush1.bf16.msra.mxu0 %v5193
    %5451 = vmatprep.subr.bf16.mxu0 %v5202
    %5452 = vmatpush1.bf16.msra.mxu0 %v5201
    %5453 = vmatprep.subr.bf16.mxu0 %v5210
    %5454 = vmatpush1.bf16.msra.mxu0 %v5209
    %5455 = vmatprep.mubr.bf16.mxu0 %v4698
    %5456 = vmatmul.mubr.bf16.gmra.mrb[0].mxu0 %v4697
    %v5457 = vpop.f32.mrb[0].mxu0
    %v5458 = vadd.f32 0.0, %v5457
    %v5459 = vpop.f32.mrb[0].mxu0
    %v5460 = vadd.f32 0.0, %v5459
    %v5461 = vpop.f32.mrb[0].mxu0
    %v5462 = vpop.f32.mrb[0].mxu0
    %5463 = vdwg.mxu0
    %5464 = vmatprep.subr.bf16.mxu0 %v5092
    %5465 = vmatpush1.bf16.msra.mxu0 %v5091
    %5466 = vmatprep.subr.bf16.mxu0 %v5100
    %5467 = vmatpush1.bf16.msra.mxu0 %v5099
    %5468 = vmatprep.subr.bf16.mxu0 %v5108
    %5469 = vmatpush1.bf16.msra.mxu0 %v5107
    %5470 = vmatprep.subr.bf16.mxu0 %v5116
    %5471 = vmatpush1.bf16.msra.mxu0 %v5115
    %5472 = vmatprep.subr.bf16.mxu0 %v5124
    %5473 = vmatpush1.bf16.msra.mxu0 %v5123
    %5474 = vmatprep.subr.bf16.mxu0 %v5132
    %5475 = vmatpush1.bf16.msra.mxu0 %v5131
    %5476 = vmatprep.subr.bf16.mxu0 %v5140
    %5477 = vmatpush1.bf16.msra.mxu0 %v5139
    %5478 = vmatprep.subr.bf16.mxu0 %v5148
    %5479 = vmatpush1.bf16.msra.mxu0 %v5147
    %5480 = vmatprep.subr.bf16.mxu0 %v5156
    %5481 = vmatpush1.bf16.msra.mxu0 %v5155
    %5482 = vmatprep.subr.bf16.mxu0 %v5164
    %5483 = vmatpush1.bf16.msra.mxu0 %v5163
    %5484 = vmatprep.subr.bf16.mxu0 %v5172
    %5485 = vmatpush1.bf16.msra.mxu0 %v5171
    %5486 = vmatprep.subr.bf16.mxu0 %v5180
    %5487 = vmatpush1.bf16.msra.mxu0 %v5179
    %5488 = vmatprep.subr.bf16.mxu0 %v5188
    %5489 = vmatpush1.bf16.msra.mxu0 %v5187
    %5490 = vmatprep.subr.bf16.mxu0 %v5196
    %5491 = vmatpush1.bf16.msra.mxu0 %v5195
    %5492 = vmatprep.subr.bf16.mxu0 %v5204
    %5493 = vmatpush1.bf16.msra.mxu0 %v5203
    %5494 = vmatprep.subr.bf16.mxu0 %v5212
    %5495 = vmatpush1.bf16.msra.mxu0 %v5211
    %5496 = vmatprep.mubr.bf16.mxu0 %v4698
    %5497 = vmatmul.mubr.bf16.gmra.mrb[0].mxu0 %v4697
    %v5498 = vpop.f32.mrb[0].mxu0
    %v5499 = vadd.f32 0.0, %v5498
    %v5500 = vpop.f32.mrb[0].mxu0
    %v5501 = vadd.f32 0.0, %v5500
    %v5502 = vpop.f32.mrb[0].mxu0
    %v5503 = vpop.f32.mrb[0].mxu0
    %5504 = vdwg.mxu0
    %s5505 = smul.u32 5, 4
    %s5506 = smul.addr %s5505, 8
    %s5507 = scalar_lea.vmem [#allocation2], %s5506
    %v5508 = vld [vmem:[%s5507] sm:$0xff]
    %v5509 = vld [vmem:[%s5507 + $0x8] sm:$0xff]
    %v5510 = vld [vmem:[%s5507 + $0x10] sm:$0xff]
    %v5511 = vld [vmem:[%s5507 + $0x18] sm:$0xff]
    %v5512 = vadd.f32 %v5508, %v5376
    %v5513 = vadd.f32 %v5509, %v5378
    %v5514 = vadd.f32 %v5510, %v5417
    %v5515 = vadd.f32 %v5511, %v5419
    %v5516 = vld [vmem:[#allocation4] sm:$0xff]
    %v5517 = vxor.u32 %v5512, 2147483648
    %v5518 = vxor.u32 %v5513, 2147483648
    %v5519 = vxor.u32 %v5514, 2147483648
    %v5520 = vmul.f32 %v5517, 1.442695
    %v5521 = vpow.pop %v5520
    %v5522 = vmul.f32 %v5518, 1.442695
    %v5523 = vpow.pop %v5522
    %v5524 = vmul.f32 %v5519, 1.442695
    %v5525 = vpow.pop %v5524
    %v5526 = vadd.f32 %v5521, 1.0
    %v5527 = vadd.f32 %v5523, 1.0
    %v5528 = vadd.f32 %v5525, 1.0
    %v5529 = vrcp.pop %v5526
    %v5530 = vmul.f32 1.0, %v5529
    %v5531 = vrcp.pop %v5527
    %v5532 = vmul.f32 1.0, %v5531
    %v5533 = vrcp.pop %v5528
    %v5534 = vmul.f32 1.0, %v5533
    %v5535 = vtanh.pop %v5515
    %v5536 = vmul.f32 %v5532, %v5516
    %v5537 = vmul.f32 %v5530, %v5535
    %v5538 = vadd.f32 %v5536, %v5537
    %v5539 = vtanh.pop %v5538
    %v5540 = vmul.f32 %v5534, %v5539
    %5541 = vst [vmem:[#allocation4] sm:$0xff] %v5538
    %v5542 = vpack.c.bf16 %v5540, %v5540
    %5543 = vst [vmem:[#allocation3] sm:$0xf] %v5542
    %v5544 = vadd.f32 %v5458, %v464
    %v5545 = vadd.f32 %v5460, %v468
    %v5546 = vadd.f32 %v5499, %v472
    %v5547 = vadd.f32 %v5501, %v476
    %v5548 = vld [vmem:[#allocation5] sm:$0xff]
    %v5549 = vxor.u32 %v5544, 2147483648
    %v5550 = vxor.u32 %v5545, 2147483648
    %v5551 = vxor.u32 %v5546, 2147483648
    %v5552 = vmul.f32 %v5549, 1.442695
    %v5553 = vpow.pop %v5552
    %v5554 = vmul.f32 %v5550, 1.442695
    %v5555 = vpow.pop %v5554
    %v5556 = vmul.f32 %v5551, 1.442695
    %v5557 = vpow.pop %v5556
    %v5558 = vadd.f32 %v5553, 1.0
    %v5559 = vadd.f32 %v5555, 1.0
    %v5560 = vadd.f32 %v5557, 1.0
    %v5561 = vrcp.pop %v5558
    %v5562 = vmul.f32 1.0, %v5561
    %v5563 = vrcp.pop %v5559
    %v5564 = vmul.f32 1.0, %v5563
    %v5565 = vrcp.pop %v5560
    %v5566 = vmul.f32 1.0, %v5565
    %v5567 = vtanh.pop %v5547
    %v5568 = vmul.f32 %v5564, %v5548
    %v5569 = vmul.f32 %v5562, %v5567
    %v5570 = vadd.f32 %v5568, %v5569
    %v5571 = vtanh.pop %v5570
    %v5572 = vmul.f32 %v5566, %v5571
    %5573 = vst [vmem:[#allocation5] sm:$0xff] %v5570
    %v5574 = vpack.c.bf16 %v5572, %v5572
    %5575 = vst [vmem:[#allocation3 + $0x4] sm:$0xf] %v5574
    %s5576 = scalar_lea.vmem %s5, 16
    %5577 = vst [vmem:[%s5576] sm:$0xf] %v5574
    %v5578 = vld [vmem:[#allocation3] sm:$0xff]
    %v5579 = vld [vmem:[#allocation6] sm:$0xff]
    %v5580 = vld [vmem:[#allocation6 + $0x8] sm:$0xff]
    %v5581 = vld [vmem:[#allocation6 + $0x10] sm:$0xff]
    %v5582 = vld [vmem:[#allocation6 + $0x18] sm:$0xff]
    %v5583 = vld [vmem:[#allocation6 + $0x20] sm:$0xff]
    %v5584 = vld [vmem:[#allocation6 + $0x28] sm:$0xff]
    %v5585 = vld [vmem:[#allocation6 + $0x30] sm:$0xff]
    %v5586 = vld [vmem:[#allocation6 + $0x38] sm:$0xff]
    %v5587 = vld [vmem:[#allocation6 + $0x40] sm:$0xff]
    %v5588 = vld [vmem:[#allocation6 + $0x48] sm:$0xff]
    %v5589 = vld [vmem:[#allocation6 + $0x50] sm:$0xff]
    %v5590 = vld [vmem:[#allocation6 + $0x58] sm:$0xff]
    %v5591 = vld [vmem:[#allocation6 + $0x60] sm:$0xff]
    %v5592 = vld [vmem:[#allocation6 + $0x68] sm:$0xff]
    %v5593 = vld [vmem:[#allocation6 + $0x70] sm:$0xff]
    %v5594 = vld [vmem:[#allocation6 + $0x78] sm:$0xff]
    %v5595 = vld [vmem:[#allocation6 + $0x80] sm:$0xff]
    %v5596 = vld [vmem:[#allocation6 + $0x88] sm:$0xff]
    %v5597 = vld [vmem:[#allocation6 + $0x90] sm:$0xff]
    %v5598 = vld [vmem:[#allocation6 + $0x98] sm:$0xff]
    %v5599 = vld [vmem:[#allocation6 + $0xa0] sm:$0xff]
    %v5600 = vld [vmem:[#allocation6 + $0xa8] sm:$0xff]
    %v5601 = vld [vmem:[#allocation6 + $0xb0] sm:$0xff]
    %v5602 = vld [vmem:[#allocation6 + $0xb8] sm:$0xff]
    %v5603 = vld [vmem:[#allocation6 + $0xc0] sm:$0xff]
    %v5604 = vld [vmem:[#allocation6 + $0xc8] sm:$0xff]
    %v5605 = vld [vmem:[#allocation6 + $0xd0] sm:$0xff]
    %v5606 = vld [vmem:[#allocation6 + $0xd8] sm:$0xff]
    %v5607 = vld [vmem:[#allocation6 + $0xe0] sm:$0xff]
    %v5608 = vld [vmem:[#allocation6 + $0xe8] sm:$0xff]
    %v5609 = vld [vmem:[#allocation6 + $0xf0] sm:$0xff]
    %v5610 = vld [vmem:[#allocation6 + $0xf8] sm:$0xff]
    %v5611 = vld [vmem:[#allocation6 + $0x100] sm:$0xff]
    %v5612 = vld [vmem:[#allocation6 + $0x108] sm:$0xff]
    %v5613 = vld [vmem:[#allocation6 + $0x110] sm:$0xff]
    %v5614 = vld [vmem:[#allocation6 + $0x118] sm:$0xff]
    %v5615 = vld [vmem:[#allocation6 + $0x120] sm:$0xff]
    %v5616 = vld [vmem:[#allocation6 + $0x128] sm:$0xff]
    %v5617 = vld [vmem:[#allocation6 + $0x130] sm:$0xff]
    %v5618 = vld [vmem:[#allocation6 + $0x138] sm:$0xff]
    %v5619 = vld [vmem:[#allocation6 + $0x140] sm:$0xff]
    %v5620 = vld [vmem:[#allocation6 + $0x148] sm:$0xff]
    %v5621 = vld [vmem:[#allocation6 + $0x150] sm:$0xff]
    %v5622 = vld [vmem:[#allocation6 + $0x158] sm:$0xff]
    %v5623 = vld [vmem:[#allocation6 + $0x160] sm:$0xff]
    %v5624 = vld [vmem:[#allocation6 + $0x168] sm:$0xff]
    %v5625 = vld [vmem:[#allocation6 + $0x170] sm:$0xff]
    %v5626 = vld [vmem:[#allocation6 + $0x178] sm:$0xff]
    %v5627 = vld [vmem:[#allocation6 + $0x180] sm:$0xff]
    %v5628 = vld [vmem:[#allocation6 + $0x188] sm:$0xff]
    %v5629 = vld [vmem:[#allocation6 + $0x190] sm:$0xff]
    %v5630 = vld [vmem:[#allocation6 + $0x198] sm:$0xff]
    %v5631 = vld [vmem:[#allocation6 + $0x1a0] sm:$0xff]
    %v5632 = vld [vmem:[#allocation6 + $0x1a8] sm:$0xff]
    %v5633 = vld [vmem:[#allocation6 + $0x1b0] sm:$0xff]
    %v5634 = vld [vmem:[#allocation6 + $0x1b8] sm:$0xff]
    %v5635 = vld [vmem:[#allocation6 + $0x1c0] sm:$0xff]
    %v5636 = vld [vmem:[#allocation6 + $0x1c8] sm:$0xff]
    %v5637 = vld [vmem:[#allocation6 + $0x1d0] sm:$0xff]
    %v5638 = vld [vmem:[#allocation6 + $0x1d8] sm:$0xff]
    %v5639 = vld [vmem:[#allocation6 + $0x1e0] sm:$0xff]
    %v5640 = vld [vmem:[#allocation6 + $0x1e8] sm:$0xff]
    %v5641 = vld [vmem:[#allocation6 + $0x1f0] sm:$0xff]
    %v5642 = vld [vmem:[#allocation6 + $0x1f8] sm:$0xff]
    %v5643 = vld [vmem:[#allocation6 + $0x200] sm:$0xff]
    %v5644 = vld [vmem:[#allocation6 + $0x208] sm:$0xff]
    %v5645 = vld [vmem:[#allocation6 + $0x210] sm:$0xff]
    %v5646 = vld [vmem:[#allocation6 + $0x218] sm:$0xff]
    %v5647 = vld [vmem:[#allocation6 + $0x220] sm:$0xff]
    %v5648 = vld [vmem:[#allocation6 + $0x228] sm:$0xff]
    %v5649 = vld [vmem:[#allocation6 + $0x230] sm:$0xff]
    %v5650 = vld [vmem:[#allocation6 + $0x238] sm:$0xff]
    %v5651 = vld [vmem:[#allocation6 + $0x240] sm:$0xff]
    %v5652 = vld [vmem:[#allocation6 + $0x248] sm:$0xff]
    %v5653 = vld [vmem:[#allocation6 + $0x250] sm:$0xff]
    %v5654 = vld [vmem:[#allocation6 + $0x258] sm:$0xff]
    %v5655 = vld [vmem:[#allocation6 + $0x260] sm:$0xff]
    %v5656 = vld [vmem:[#allocation6 + $0x268] sm:$0xff]
    %v5657 = vld [vmem:[#allocation6 + $0x270] sm:$0xff]
    %v5658 = vld [vmem:[#allocation6 + $0x278] sm:$0xff]
    %v5659 = vld [vmem:[#allocation6 + $0x280] sm:$0xff]
    %v5660 = vld [vmem:[#allocation6 + $0x288] sm:$0xff]
    %v5661 = vld [vmem:[#allocation6 + $0x290] sm:$0xff]
    %v5662 = vld [vmem:[#allocation6 + $0x298] sm:$0xff]
    %v5663 = vld [vmem:[#allocation6 + $0x2a0] sm:$0xff]
    %v5664 = vld [vmem:[#allocation6 + $0x2a8] sm:$0xff]
    %v5665 = vld [vmem:[#allocation6 + $0x2b0] sm:$0xff]
    %v5666 = vld [vmem:[#allocation6 + $0x2b8] sm:$0xff]
    %v5667 = vld [vmem:[#allocation6 + $0x2c0] sm:$0xff]
    %v5668 = vld [vmem:[#allocation6 + $0x2c8] sm:$0xff]
    %v5669 = vld [vmem:[#allocation6 + $0x2d0] sm:$0xff]
    %v5670 = vld [vmem:[#allocation6 + $0x2d8] sm:$0xff]
    %v5671 = vld [vmem:[#allocation6 + $0x2e0] sm:$0xff]
    %v5672 = vld [vmem:[#allocation6 + $0x2e8] sm:$0xff]
    %v5673 = vld [vmem:[#allocation6 + $0x2f0] sm:$0xff]
    %v5674 = vld [vmem:[#allocation6 + $0x2f8] sm:$0xff]
    %v5675 = vld [vmem:[#allocation6 + $0x300] sm:$0xff]
    %v5676 = vld [vmem:[#allocation6 + $0x308] sm:$0xff]
    %v5677 = vld [vmem:[#allocation6 + $0x310] sm:$0xff]
    %v5678 = vld [vmem:[#allocation6 + $0x318] sm:$0xff]
    %v5679 = vld [vmem:[#allocation6 + $0x320] sm:$0xff]
    %v5680 = vld [vmem:[#allocation6 + $0x328] sm:$0xff]
    %v5681 = vld [vmem:[#allocation6 + $0x330] sm:$0xff]
    %v5682 = vld [vmem:[#allocation6 + $0x338] sm:$0xff]
    %v5683 = vld [vmem:[#allocation6 + $0x340] sm:$0xff]
    %v5684 = vld [vmem:[#allocation6 + $0x348] sm:$0xff]
    %v5685 = vld [vmem:[#allocation6 + $0x350] sm:$0xff]
    %v5686 = vld [vmem:[#allocation6 + $0x358] sm:$0xff]
    %v5687 = vld [vmem:[#allocation6 + $0x360] sm:$0xff]
    %v5688 = vld [vmem:[#allocation6 + $0x368] sm:$0xff]
    %v5689 = vld [vmem:[#allocation6 + $0x370] sm:$0xff]
    %v5690 = vld [vmem:[#allocation6 + $0x378] sm:$0xff]
    %v5691 = vld [vmem:[#allocation6 + $0x380] sm:$0xff]
    %v5692 = vld [vmem:[#allocation6 + $0x388] sm:$0xff]
    %v5693 = vld [vmem:[#allocation6 + $0x390] sm:$0xff]
    %v5694 = vld [vmem:[#allocation6 + $0x398] sm:$0xff]
    %v5695 = vld [vmem:[#allocation6 + $0x3a0] sm:$0xff]
    %v5696 = vld [vmem:[#allocation6 + $0x3a8] sm:$0xff]
    %v5697 = vld [vmem:[#allocation6 + $0x3b0] sm:$0xff]
    %v5698 = vld [vmem:[#allocation6 + $0x3b8] sm:$0xff]
    %v5699 = vld [vmem:[#allocation6 + $0x3c0] sm:$0xff]
    %v5700 = vld [vmem:[#allocation6 + $0x3c8] sm:$0xff]
    %v5701 = vld [vmem:[#allocation6 + $0x3d0] sm:$0xff]
    %v5702 = vld [vmem:[#allocation6 + $0x3d8] sm:$0xff]
    %v5703 = vld [vmem:[#allocation6 + $0x3e0] sm:$0xff]
    %v5704 = vld [vmem:[#allocation6 + $0x3e8] sm:$0xff]
    %v5705 = vld [vmem:[#allocation6 + $0x3f0] sm:$0xff]
    %v5706 = vld [vmem:[#allocation6 + $0x3f8] sm:$0xff]
    %v5708 = vunpack.c.l.b16 %v5578
    %v5709 = vunpack.c.h.b16 %v5578
    %v5710 = vpack.c.b16 %v5708, %v5708
    %v5711 = vpack.c.b16 %v5709, %v5709
    %v5842 = vunpack.c.l.b16 %v5579
    %v5843 = vunpack.c.h.b16 %v5579
    %v5844 = vunpack.c.l.b16 %v5580
    %v5845 = vunpack.c.h.b16 %v5580
    %v5846 = vunpack.c.l.b16 %v5581
    %v5847 = vunpack.c.h.b16 %v5581
    %v5848 = vunpack.c.l.b16 %v5582
    %v5849 = vunpack.c.h.b16 %v5582
    %v5850 = vunpack.c.l.b16 %v5583
    %v5851 = vunpack.c.h.b16 %v5583
    %v5852 = vunpack.c.l.b16 %v5584
    %v5853 = vunpack.c.h.b16 %v5584
    %v5854 = vunpack.c.l.b16 %v5585
    %v5855 = vunpack.c.h.b16 %v5585
    %v5856 = vunpack.c.l.b16 %v5586
    %v5857 = vunpack.c.h.b16 %v5586
    %v5858 = vunpack.c.l.b16 %v5587
    %v5859 = vunpack.c.h.b16 %v5587
    %v5860 = vunpack.c.l.b16 %v5588
    %v5861 = vunpack.c.h.b16 %v5588
    %v5862 = vunpack.c.l.b16 %v5589
    %v5863 = vunpack.c.h.b16 %v5589
    %v5864 = vunpack.c.l.b16 %v5590
    %v5865 = vunpack.c.h.b16 %v5590
    %v5866 = vunpack.c.l.b16 %v5591
    %v5867 = vunpack.c.h.b16 %v5591
    %v5868 = vunpack.c.l.b16 %v5592
    %v5869 = vunpack.c.h.b16 %v5592
    %v5870 = vunpack.c.l.b16 %v5593
    %v5871 = vunpack.c.h.b16 %v5593
    %v5872 = vunpack.c.l.b16 %v5594
    %v5873 = vunpack.c.h.b16 %v5594
    %v5874 = vunpack.c.l.b16 %v5595
    %v5875 = vunpack.c.h.b16 %v5595
    %v5876 = vunpack.c.l.b16 %v5596
    %v5877 = vunpack.c.h.b16 %v5596
    %v5878 = vunpack.c.l.b16 %v5597
    %v5879 = vunpack.c.h.b16 %v5597
    %v5880 = vunpack.c.l.b16 %v5598
    %v5881 = vunpack.c.h.b16 %v5598
    %v5882 = vunpack.c.l.b16 %v5599
    %v5883 = vunpack.c.h.b16 %v5599
    %v5884 = vunpack.c.l.b16 %v5600
    %v5885 = vunpack.c.h.b16 %v5600
    %v5886 = vunpack.c.l.b16 %v5601
    %v5887 = vunpack.c.h.b16 %v5601
    %v5888 = vunpack.c.l.b16 %v5602
    %v5889 = vunpack.c.h.b16 %v5602
    %v5890 = vunpack.c.l.b16 %v5603
    %v5891 = vunpack.c.h.b16 %v5603
    %v5892 = vunpack.c.l.b16 %v5604
    %v5893 = vunpack.c.h.b16 %v5604
    %v5894 = vunpack.c.l.b16 %v5605
    %v5895 = vunpack.c.h.b16 %v5605
    %v5896 = vunpack.c.l.b16 %v5606
    %v5897 = vunpack.c.h.b16 %v5606
    %v5898 = vunpack.c.l.b16 %v5607
    %v5899 = vunpack.c.h.b16 %v5607
    %v5900 = vunpack.c.l.b16 %v5608
    %v5901 = vunpack.c.h.b16 %v5608
    %v5902 = vunpack.c.l.b16 %v5609
    %v5903 = vunpack.c.h.b16 %v5609
    %v5904 = vunpack.c.l.b16 %v5610
    %v5905 = vunpack.c.h.b16 %v5610
    %v5906 = vunpack.c.l.b16 %v5611
    %v5907 = vunpack.c.h.b16 %v5611
    %v5908 = vunpack.c.l.b16 %v5612
    %v5909 = vunpack.c.h.b16 %v5612
    %v5910 = vunpack.c.l.b16 %v5613
    %v5911 = vunpack.c.h.b16 %v5613
    %v5912 = vunpack.c.l.b16 %v5614
    %v5913 = vunpack.c.h.b16 %v5614
    %v5914 = vunpack.c.l.b16 %v5615
    %v5915 = vunpack.c.h.b16 %v5615
    %v5916 = vunpack.c.l.b16 %v5616
    %v5917 = vunpack.c.h.b16 %v5616
    %v5918 = vunpack.c.l.b16 %v5617
    %v5919 = vunpack.c.h.b16 %v5617
    %v5920 = vunpack.c.l.b16 %v5618
    %v5921 = vunpack.c.h.b16 %v5618
    %v5922 = vunpack.c.l.b16 %v5619
    %v5923 = vunpack.c.h.b16 %v5619
    %v5924 = vunpack.c.l.b16 %v5620
    %v5925 = vunpack.c.h.b16 %v5620
    %v5926 = vunpack.c.l.b16 %v5621
    %v5927 = vunpack.c.h.b16 %v5621
    %v5928 = vunpack.c.l.b16 %v5622
    %v5929 = vunpack.c.h.b16 %v5622
    %v5930 = vunpack.c.l.b16 %v5623
    %v5931 = vunpack.c.h.b16 %v5623
    %v5932 = vunpack.c.l.b16 %v5624
    %v5933 = vunpack.c.h.b16 %v5624
    %v5934 = vunpack.c.l.b16 %v5625
    %v5935 = vunpack.c.h.b16 %v5625
    %v5936 = vunpack.c.l.b16 %v5626
    %v5937 = vunpack.c.h.b16 %v5626
    %v5938 = vunpack.c.l.b16 %v5627
    %v5939 = vunpack.c.h.b16 %v5627
    %v5940 = vunpack.c.l.b16 %v5628
    %v5941 = vunpack.c.h.b16 %v5628
    %v5942 = vunpack.c.l.b16 %v5629
    %v5943 = vunpack.c.h.b16 %v5629
    %v5944 = vunpack.c.l.b16 %v5630
    %v5945 = vunpack.c.h.b16 %v5630
    %v5946 = vunpack.c.l.b16 %v5631
    %v5947 = vunpack.c.h.b16 %v5631
    %v5948 = vunpack.c.l.b16 %v5632
    %v5949 = vunpack.c.h.b16 %v5632
    %v5950 = vunpack.c.l.b16 %v5633
    %v5951 = vunpack.c.h.b16 %v5633
    %v5952 = vunpack.c.l.b16 %v5634
    %v5953 = vunpack.c.h.b16 %v5634
    %v5954 = vunpack.c.l.b16 %v5635
    %v5955 = vunpack.c.h.b16 %v5635
    %v5956 = vunpack.c.l.b16 %v5636
    %v5957 = vunpack.c.h.b16 %v5636
    %v5958 = vunpack.c.l.b16 %v5637
    %v5959 = vunpack.c.h.b16 %v5637
    %v5960 = vunpack.c.l.b16 %v5638
    %v5961 = vunpack.c.h.b16 %v5638
    %v5962 = vunpack.c.l.b16 %v5639
    %v5963 = vunpack.c.h.b16 %v5639
    %v5964 = vunpack.c.l.b16 %v5640
    %v5965 = vunpack.c.h.b16 %v5640
    %v5966 = vunpack.c.l.b16 %v5641
    %v5967 = vunpack.c.h.b16 %v5641
    %v5968 = vunpack.c.l.b16 %v5642
    %v5969 = vunpack.c.h.b16 %v5642
    %v5970 = vunpack.c.l.b16 %v5643
    %v5971 = vunpack.c.h.b16 %v5643
    %v5972 = vunpack.c.l.b16 %v5644
    %v5973 = vunpack.c.h.b16 %v5644
    %v5974 = vunpack.c.l.b16 %v5645
    %v5975 = vunpack.c.h.b16 %v5645
    %v5976 = vunpack.c.l.b16 %v5646
    %v5977 = vunpack.c.h.b16 %v5646
    %v5978 = vunpack.c.l.b16 %v5647
    %v5979 = vunpack.c.h.b16 %v5647
    %v5980 = vunpack.c.l.b16 %v5648
    %v5981 = vunpack.c.h.b16 %v5648
    %v5982 = vunpack.c.l.b16 %v5649
    %v5983 = vunpack.c.h.b16 %v5649
    %v5984 = vunpack.c.l.b16 %v5650
    %v5985 = vunpack.c.h.b16 %v5650
    %v5986 = vunpack.c.l.b16 %v5651
    %v5987 = vunpack.c.h.b16 %v5651
    %v5988 = vunpack.c.l.b16 %v5652
    %v5989 = vunpack.c.h.b16 %v5652
    %v5990 = vunpack.c.l.b16 %v5653
    %v5991 = vunpack.c.h.b16 %v5653
    %v5992 = vunpack.c.l.b16 %v5654
    %v5993 = vunpack.c.h.b16 %v5654
    %v5994 = vunpack.c.l.b16 %v5655
    %v5995 = vunpack.c.h.b16 %v5655
    %v5996 = vunpack.c.l.b16 %v5656
    %v5997 = vunpack.c.h.b16 %v5656
    %v5998 = vunpack.c.l.b16 %v5657
    %v5999 = vunpack.c.h.b16 %v5657
    %v6000 = vunpack.c.l.b16 %v5658
    %v6001 = vunpack.c.h.b16 %v5658
    %v6002 = vunpack.c.l.b16 %v5659
    %v6003 = vunpack.c.h.b16 %v5659
    %v6004 = vunpack.c.l.b16 %v5660
    %v6005 = vunpack.c.h.b16 %v5660
    %v6006 = vunpack.c.l.b16 %v5661
    %v6007 = vunpack.c.h.b16 %v5661
    %v6008 = vunpack.c.l.b16 %v5662
    %v6009 = vunpack.c.h.b16 %v5662
    %v6010 = vunpack.c.l.b16 %v5663
    %v6011 = vunpack.c.h.b16 %v5663
    %v6012 = vunpack.c.l.b16 %v5664
    %v6013 = vunpack.c.h.b16 %v5664
    %v6014 = vunpack.c.l.b16 %v5665
    %v6015 = vunpack.c.h.b16 %v5665
    %v6016 = vunpack.c.l.b16 %v5666
    %v6017 = vunpack.c.h.b16 %v5666
    %v6018 = vunpack.c.l.b16 %v5667
    %v6019 = vunpack.c.h.b16 %v5667
    %v6020 = vunpack.c.l.b16 %v5668
    %v6021 = vunpack.c.h.b16 %v5668
    %v6022 = vunpack.c.l.b16 %v5669
    %v6023 = vunpack.c.h.b16 %v5669
    %v6024 = vunpack.c.l.b16 %v5670
    %v6025 = vunpack.c.h.b16 %v5670
    %v6026 = vunpack.c.l.b16 %v5671
    %v6027 = vunpack.c.h.b16 %v5671
    %v6028 = vunpack.c.l.b16 %v5672
    %v6029 = vunpack.c.h.b16 %v5672
    %v6030 = vunpack.c.l.b16 %v5673
    %v6031 = vunpack.c.h.b16 %v5673
    %v6032 = vunpack.c.l.b16 %v5674
    %v6033 = vunpack.c.h.b16 %v5674
    %v6034 = vunpack.c.l.b16 %v5675
    %v6035 = vunpack.c.h.b16 %v5675
    %v6036 = vunpack.c.l.b16 %v5676
    %v6037 = vunpack.c.h.b16 %v5676
    %v6038 = vunpack.c.l.b16 %v5677
    %v6039 = vunpack.c.h.b16 %v5677
    %v6040 = vunpack.c.l.b16 %v5678
    %v6041 = vunpack.c.h.b16 %v5678
    %v6042 = vunpack.c.l.b16 %v5679
    %v6043 = vunpack.c.h.b16 %v5679
    %v6044 = vunpack.c.l.b16 %v5680
    %v6045 = vunpack.c.h.b16 %v5680
    %v6046 = vunpack.c.l.b16 %v5681
    %v6047 = vunpack.c.h.b16 %v5681
    %v6048 = vunpack.c.l.b16 %v5682
    %v6049 = vunpack.c.h.b16 %v5682
    %v6050 = vunpack.c.l.b16 %v5683
    %v6051 = vunpack.c.h.b16 %v5683
    %v6052 = vunpack.c.l.b16 %v5684
    %v6053 = vunpack.c.h.b16 %v5684
    %v6054 = vunpack.c.l.b16 %v5685
    %v6055 = vunpack.c.h.b16 %v5685
    %v6056 = vunpack.c.l.b16 %v5686
    %v6057 = vunpack.c.h.b16 %v5686
    %v6058 = vunpack.c.l.b16 %v5687
    %v6059 = vunpack.c.h.b16 %v5687
    %v6060 = vunpack.c.l.b16 %v5688
    %v6061 = vunpack.c.h.b16 %v5688
    %v6062 = vunpack.c.l.b16 %v5689
    %v6063 = vunpack.c.h.b16 %v5689
    %v6064 = vunpack.c.l.b16 %v5690
    %v6065 = vunpack.c.h.b16 %v5690
    %v6066 = vunpack.c.l.b16 %v5691
    %v6067 = vunpack.c.h.b16 %v5691
    %v6068 = vunpack.c.l.b16 %v5692
    %v6069 = vunpack.c.h.b16 %v5692
    %v6070 = vunpack.c.l.b16 %v5693
    %v6071 = vunpack.c.h.b16 %v5693
    %v6072 = vunpack.c.l.b16 %v5694
    %v6073 = vunpack.c.h.b16 %v5694
    %v6074 = vunpack.c.l.b16 %v5695
    %v6075 = vunpack.c.h.b16 %v5695
    %v6076 = vunpack.c.l.b16 %v5696
    %v6077 = vunpack.c.h.b16 %v5696
    %v6078 = vunpack.c.l.b16 %v5697
    %v6079 = vunpack.c.h.b16 %v5697
    %v6080 = vunpack.c.l.b16 %v5698
    %v6081 = vunpack.c.h.b16 %v5698
    %v6082 = vunpack.c.l.b16 %v5699
    %v6083 = vunpack.c.h.b16 %v5699
    %v6084 = vunpack.c.l.b16 %v5700
    %v6085 = vunpack.c.h.b16 %v5700
    %v6086 = vunpack.c.l.b16 %v5701
    %v6087 = vunpack.c.h.b16 %v5701
    %v6088 = vunpack.c.l.b16 %v5702
    %v6089 = vunpack.c.h.b16 %v5702
    %v6090 = vunpack.c.l.b16 %v5703
    %v6091 = vunpack.c.h.b16 %v5703
    %v6092 = vunpack.c.l.b16 %v5704
    %v6093 = vunpack.c.h.b16 %v5704
    %v6094 = vunpack.c.l.b16 %v5705
    %v6095 = vunpack.c.h.b16 %v5705
    %v6096 = vunpack.c.l.b16 %v5706
    %v6097 = vunpack.c.h.b16 %v5706
    %v6098 = vpack.c.b16 %v5850, %v5842
    %v6099 = vpack.c.b16 %v5851, %v5843
    %v6100 = vpack.c.b16 %v5852, %v5844
    %v6101 = vpack.c.b16 %v5853, %v5845
    %v6102 = vpack.c.b16 %v5854, %v5846
    %v6103 = vpack.c.b16 %v5855, %v5847
    %v6104 = vpack.c.b16 %v5856, %v5848
    %v6105 = vpack.c.b16 %v5857, %v5849
    %v6106 = vpack.c.b16 %v5866, %v5858
    %v6107 = vpack.c.b16 %v5867, %v5859
    %v6108 = vpack.c.b16 %v5868, %v5860
    %v6109 = vpack.c.b16 %v5869, %v5861
    %v6110 = vpack.c.b16 %v5870, %v5862
    %v6111 = vpack.c.b16 %v5871, %v5863
    %v6112 = vpack.c.b16 %v5872, %v5864
    %v6113 = vpack.c.b16 %v5873, %v5865
    %v6114 = vpack.c.b16 %v5882, %v5874
    %v6115 = vpack.c.b16 %v5883, %v5875
    %v6116 = vpack.c.b16 %v5884, %v5876
    %v6117 = vpack.c.b16 %v5885, %v5877
    %v6118 = vpack.c.b16 %v5886, %v5878
    %v6119 = vpack.c.b16 %v5887, %v5879
    %v6120 = vpack.c.b16 %v5888, %v5880
    %v6121 = vpack.c.b16 %v5889, %v5881
    %v6122 = vpack.c.b16 %v5898, %v5890
    %v6123 = vpack.c.b16 %v5899, %v5891
    %v6124 = vpack.c.b16 %v5900, %v5892
    %v6125 = vpack.c.b16 %v5901, %v5893
    %v6126 = vpack.c.b16 %v5902, %v5894
    %v6127 = vpack.c.b16 %v5903, %v5895
    %v6128 = vpack.c.b16 %v5904, %v5896
    %v6129 = vpack.c.b16 %v5905, %v5897
    %v6130 = vpack.c.b16 %v5914, %v5906
    %v6131 = vpack.c.b16 %v5915, %v5907
    %v6132 = vpack.c.b16 %v5916, %v5908
    %v6133 = vpack.c.b16 %v5917, %v5909
    %v6134 = vpack.c.b16 %v5918, %v5910
    %v6135 = vpack.c.b16 %v5919, %v5911
    %v6136 = vpack.c.b16 %v5920, %v5912
    %v6137 = vpack.c.b16 %v5921, %v5913
    %v6138 = vpack.c.b16 %v5930, %v5922
    %v6139 = vpack.c.b16 %v5931, %v5923
    %v6140 = vpack.c.b16 %v5932, %v5924
    %v6141 = vpack.c.b16 %v5933, %v5925
    %v6142 = vpack.c.b16 %v5934, %v5926
    %v6143 = vpack.c.b16 %v5935, %v5927
    %v6144 = vpack.c.b16 %v5936, %v5928
    %v6145 = vpack.c.b16 %v5937, %v5929
    %v6146 = vpack.c.b16 %v5946, %v5938
    %v6147 = vpack.c.b16 %v5947, %v5939
    %v6148 = vpack.c.b16 %v5948, %v5940
    %v6149 = vpack.c.b16 %v5949, %v5941
    %v6150 = vpack.c.b16 %v5950, %v5942
    %v6151 = vpack.c.b16 %v5951, %v5943
    %v6152 = vpack.c.b16 %v5952, %v5944
    %v6153 = vpack.c.b16 %v5953, %v5945
    %v6154 = vpack.c.b16 %v5962, %v5954
    %v6155 = vpack.c.b16 %v5963, %v5955
    %v6156 = vpack.c.b16 %v5964, %v5956
    %v6157 = vpack.c.b16 %v5965, %v5957
    %v6158 = vpack.c.b16 %v5966, %v5958
    %v6159 = vpack.c.b16 %v5967, %v5959
    %v6160 = vpack.c.b16 %v5968, %v5960
    %v6161 = vpack.c.b16 %v5969, %v5961
    %v6162 = vpack.c.b16 %v5978, %v5970
    %v6163 = vpack.c.b16 %v5979, %v5971
    %v6164 = vpack.c.b16 %v5980, %v5972
    %v6165 = vpack.c.b16 %v5981, %v5973
    %v6166 = vpack.c.b16 %v5982, %v5974
    %v6167 = vpack.c.b16 %v5983, %v5975
    %v6168 = vpack.c.b16 %v5984, %v5976
    %v6169 = vpack.c.b16 %v5985, %v5977
    %v6170 = vpack.c.b16 %v5994, %v5986
    %v6171 = vpack.c.b16 %v5995, %v5987
    %v6172 = vpack.c.b16 %v5996, %v5988
    %v6173 = vpack.c.b16 %v5997, %v5989
    %v6174 = vpack.c.b16 %v5998, %v5990
    %v6175 = vpack.c.b16 %v5999, %v5991
    %v6176 = vpack.c.b16 %v6000, %v5992
    %v6177 = vpack.c.b16 %v6001, %v5993
    %v6178 = vpack.c.b16 %v6010, %v6002
    %v6179 = vpack.c.b16 %v6011, %v6003
    %v6180 = vpack.c.b16 %v6012, %v6004
    %v6181 = vpack.c.b16 %v6013, %v6005
    %v6182 = vpack.c.b16 %v6014, %v6006
    %v6183 = vpack.c.b16 %v6015, %v6007
    %v6184 = vpack.c.b16 %v6016, %v6008
    %v6185 = vpack.c.b16 %v6017, %v6009
    %v6186 = vpack.c.b16 %v6026, %v6018
    %v6187 = vpack.c.b16 %v6027, %v6019
    %v6188 = vpack.c.b16 %v6028, %v6020
    %v6189 = vpack.c.b16 %v6029, %v6021
    %v6190 = vpack.c.b16 %v6030, %v6022
    %v6191 = vpack.c.b16 %v6031, %v6023
    %v6192 = vpack.c.b16 %v6032, %v6024
    %v6193 = vpack.c.b16 %v6033, %v6025
    %v6194 = vpack.c.b16 %v6042, %v6034
    %v6195 = vpack.c.b16 %v6043, %v6035
    %v6196 = vpack.c.b16 %v6044, %v6036
    %v6197 = vpack.c.b16 %v6045, %v6037
    %v6198 = vpack.c.b16 %v6046, %v6038
    %v6199 = vpack.c.b16 %v6047, %v6039
    %v6200 = vpack.c.b16 %v6048, %v6040
    %v6201 = vpack.c.b16 %v6049, %v6041
    %v6202 = vpack.c.b16 %v6058, %v6050
    %v6203 = vpack.c.b16 %v6059, %v6051
    %v6204 = vpack.c.b16 %v6060, %v6052
    %v6205 = vpack.c.b16 %v6061, %v6053
    %v6206 = vpack.c.b16 %v6062, %v6054
    %v6207 = vpack.c.b16 %v6063, %v6055
    %v6208 = vpack.c.b16 %v6064, %v6056
    %v6209 = vpack.c.b16 %v6065, %v6057
    %v6210 = vpack.c.b16 %v6074, %v6066
    %v6211 = vpack.c.b16 %v6075, %v6067
    %v6212 = vpack.c.b16 %v6076, %v6068
    %v6213 = vpack.c.b16 %v6077, %v6069
    %v6214 = vpack.c.b16 %v6078, %v6070
    %v6215 = vpack.c.b16 %v6079, %v6071
    %v6216 = vpack.c.b16 %v6080, %v6072
    %v6217 = vpack.c.b16 %v6081, %v6073
    %v6218 = vpack.c.b16 %v6090, %v6082
    %v6219 = vpack.c.b16 %v6091, %v6083
    %v6220 = vpack.c.b16 %v6092, %v6084
    %v6221 = vpack.c.b16 %v6093, %v6085
    %v6222 = vpack.c.b16 %v6094, %v6086
    %v6223 = vpack.c.b16 %v6095, %v6087
    %v6224 = vpack.c.b16 %v6096, %v6088
    %v6225 = vpack.c.b16 %v6097, %v6089
    %6354 = vmatprep.subr.bf16.mxu0 %v6099
    %6355 = vmatpush1.bf16.msra.mxu0 %v6098
    %6356 = vmatprep.subr.bf16.mxu0 %v6107
    %6357 = vmatpush1.bf16.msra.mxu0 %v6106
    %6358 = vmatprep.subr.bf16.mxu0 %v6115
    %6359 = vmatpush1.bf16.msra.mxu0 %v6114
    %6360 = vmatprep.subr.bf16.mxu0 %v6123
    %6361 = vmatpush1.bf16.msra.mxu0 %v6122
    %6362 = vmatprep.subr.bf16.mxu0 %v6131
    %6363 = vmatpush1.bf16.msra.mxu0 %v6130
    %6364 = vmatprep.subr.bf16.mxu0 %v6139
    %6365 = vmatpush1.bf16.msra.mxu0 %v6138
    %6366 = vmatprep.subr.bf16.mxu0 %v6147
    %6367 = vmatpush1.bf16.msra.mxu0 %v6146
    %6368 = vmatprep.subr.bf16.mxu0 %v6155
    %6369 = vmatpush1.bf16.msra.mxu0 %v6154
    %6370 = vmatprep.subr.bf16.mxu0 %v6163
    %6371 = vmatpush1.bf16.msra.mxu0 %v6162
    %6372 = vmatprep.subr.bf16.mxu0 %v6171
    %6373 = vmatpush1.bf16.msra.mxu0 %v6170
    %6374 = vmatprep.subr.bf16.mxu0 %v6179
    %6375 = vmatpush1.bf16.msra.mxu0 %v6178
    %6376 = vmatprep.subr.bf16.mxu0 %v6187
    %6377 = vmatpush1.bf16.msra.mxu0 %v6186
    %6378 = vmatprep.subr.bf16.mxu0 %v6195
    %6379 = vmatpush1.bf16.msra.mxu0 %v6194
    %6380 = vmatprep.subr.bf16.mxu0 %v6203
    %6381 = vmatpush1.bf16.msra.mxu0 %v6202
    %6382 = vmatprep.subr.bf16.mxu0 %v6211
    %6383 = vmatpush1.bf16.msra.mxu0 %v6210
    %6384 = vmatprep.subr.bf16.mxu0 %v6219
    %6385 = vmatpush1.bf16.msra.mxu0 %v6218
    %6386 = vmatprep.mubr.bf16.mxu0 %v5711
    %6387 = vmatmul.mubr.bf16.gmra.mrb[0].mxu0 %v5710
    %v6388 = vpop.f32.mrb[0].mxu0
    %v6389 = vadd.f32 0.0, %v6388
    %v6390 = vpop.f32.mrb[0].mxu0
    %v6391 = vadd.f32 0.0, %v6390
    %v6392 = vpop.f32.mrb[0].mxu0
    %v6393 = vpop.f32.mrb[0].mxu0
    %6394 = vdwg.mxu0
    %6395 = vmatprep.subr.bf16.mxu0 %v6101
    %6396 = vmatpush1.bf16.msra.mxu0 %v6100
    %6397 = vmatprep.subr.bf16.mxu0 %v6109
    %6398 = vmatpush1.bf16.msra.mxu0 %v6108
    %6399 = vmatprep.subr.bf16.mxu0 %v6117
    %6400 = vmatpush1.bf16.msra.mxu0 %v6116
    %6401 = vmatprep.subr.bf16.mxu0 %v6125
    %6402 = vmatpush1.bf16.msra.mxu0 %v6124
    %6403 = vmatprep.subr.bf16.mxu0 %v6133
    %6404 = vmatpush1.bf16.msra.mxu0 %v6132
    %6405 = vmatprep.subr.bf16.mxu0 %v6141
    %6406 = vmatpush1.bf16.msra.mxu0 %v6140
    %6407 = vmatprep.subr.bf16.mxu0 %v6149
    %6408 = vmatpush1.bf16.msra.mxu0 %v6148
    %6409 = vmatprep.subr.bf16.mxu0 %v6157
    %6410 = vmatpush1.bf16.msra.mxu0 %v6156
    %6411 = vmatprep.subr.bf16.mxu0 %v6165
    %6412 = vmatpush1.bf16.msra.mxu0 %v6164
    %6413 = vmatprep.subr.bf16.mxu0 %v6173
    %6414 = vmatpush1.bf16.msra.mxu0 %v6172
    %6415 = vmatprep.subr.bf16.mxu0 %v6181
    %6416 = vmatpush1.bf16.msra.mxu0 %v6180
    %6417 = vmatprep.subr.bf16.mxu0 %v6189
    %6418 = vmatpush1.bf16.msra.mxu0 %v6188
    %6419 = vmatprep.subr.bf16.mxu0 %v6197
    %6420 = vmatpush1.bf16.msra.mxu0 %v6196
    %6421 = vmatprep.subr.bf16.mxu0 %v6205
    %6422 = vmatpush1.bf16.msra.mxu0 %v6204
    %6423 = vmatprep.subr.bf16.mxu0 %v6213
    %6424 = vmatpush1.bf16.msra.mxu0 %v6212
    %6425 = vmatprep.subr.bf16.mxu0 %v6221
    %6426 = vmatpush1.bf16.msra.mxu0 %v6220
    %6427 = vmatprep.mubr.bf16.mxu0 %v5711
    %6428 = vmatmul.mubr.bf16.gmra.mrb[0].mxu0 %v5710
    %v6429 = vpop.f32.mrb[0].mxu0
    %v6430 = vadd.f32 0.0, %v6429
    %v6431 = vpop.f32.mrb[0].mxu0
    %v6432 = vadd.f32 0.0, %v6431
    %v6433 = vpop.f32.mrb[0].mxu0
    %v6434 = vpop.f32.mrb[0].mxu0
    %6435 = vdwg.mxu0
    %6436 = vmatprep.subr.bf16.mxu0 %v6103
    %6437 = vmatpush1.bf16.msra.mxu0 %v6102
    %6438 = vmatprep.subr.bf16.mxu0 %v6111
    %6439 = vmatpush1.bf16.msra.mxu0 %v6110
    %6440 = vmatprep.subr.bf16.mxu0 %v6119
    %6441 = vmatpush1.bf16.msra.mxu0 %v6118
    %6442 = vmatprep.subr.bf16.mxu0 %v6127
    %6443 = vmatpush1.bf16.msra.mxu0 %v6126
    %6444 = vmatprep.subr.bf16.mxu0 %v6135
    %6445 = vmatpush1.bf16.msra.mxu0 %v6134
    %6446 = vmatprep.subr.bf16.mxu0 %v6143
    %6447 = vmatpush1.bf16.msra.mxu0 %v6142
    %6448 = vmatprep.subr.bf16.mxu0 %v6151
    %6449 = vmatpush1.bf16.msra.mxu0 %v6150
    %6450 = vmatprep.subr.bf16.mxu0 %v6159
    %6451 = vmatpush1.bf16.msra.mxu0 %v6158
    %6452 = vmatprep.subr.bf16.mxu0 %v6167
    %6453 = vmatpush1.bf16.msra.mxu0 %v6166
    %6454 = vmatprep.subr.bf16.mxu0 %v6175
    %6455 = vmatpush1.bf16.msra.mxu0 %v6174
    %6456 = vmatprep.subr.bf16.mxu0 %v6183
    %6457 = vmatpush1.bf16.msra.mxu0 %v6182
    %6458 = vmatprep.subr.bf16.mxu0 %v6191
    %6459 = vmatpush1.bf16.msra.mxu0 %v6190
    %6460 = vmatprep.subr.bf16.mxu0 %v6199
    %6461 = vmatpush1.bf16.msra.mxu0 %v6198
    %6462 = vmatprep.subr.bf16.mxu0 %v6207
    %6463 = vmatpush1.bf16.msra.mxu0 %v6206
    %6464 = vmatprep.subr.bf16.mxu0 %v6215
    %6465 = vmatpush1.bf16.msra.mxu0 %v6214
    %6466 = vmatprep.subr.bf16.mxu0 %v6223
    %6467 = vmatpush1.bf16.msra.mxu0 %v6222
    %6468 = vmatprep.mubr.bf16.mxu0 %v5711
    %6469 = vmatmul.mubr.bf16.gmra.mrb[0].mxu0 %v5710
    %v6470 = vpop.f32.mrb[0].mxu0
    %v6471 = vadd.f32 0.0, %v6470
    %v6472 = vpop.f32.mrb[0].mxu0
    %v6473 = vadd.f32 0.0, %v6472
    %v6474 = vpop.f32.mrb[0].mxu0
    %v6475 = vpop.f32.mrb[0].mxu0
    %6476 = vdwg.mxu0
    %6477 = vmatprep.subr.bf16.mxu0 %v6105
    %6478 = vmatpush1.bf16.msra.mxu0 %v6104
    %6479 = vmatprep.subr.bf16.mxu0 %v6113
    %6480 = vmatpush1.bf16.msra.mxu0 %v6112
    %6481 = vmatprep.subr.bf16.mxu0 %v6121
    %6482 = vmatpush1.bf16.msra.mxu0 %v6120
    %6483 = vmatprep.subr.bf16.mxu0 %v6129
    %6484 = vmatpush1.bf16.msra.mxu0 %v6128
    %6485 = vmatprep.subr.bf16.mxu0 %v6137
    %6486 = vmatpush1.bf16.msra.mxu0 %v6136
    %6487 = vmatprep.subr.bf16.mxu0 %v6145
    %6488 = vmatpush1.bf16.msra.mxu0 %v6144
    %6489 = vmatprep.subr.bf16.mxu0 %v6153
    %6490 = vmatpush1.bf16.msra.mxu0 %v6152
    %6491 = vmatprep.subr.bf16.mxu0 %v6161
    %6492 = vmatpush1.bf16.msra.mxu0 %v6160
    %6493 = vmatprep.subr.bf16.mxu0 %v6169
    %6494 = vmatpush1.bf16.msra.mxu0 %v6168
    %6495 = vmatprep.subr.bf16.mxu0 %v6177
    %6496 = vmatpush1.bf16.msra.mxu0 %v6176
    %6497 = vmatprep.subr.bf16.mxu0 %v6185
    %6498 = vmatpush1.bf16.msra.mxu0 %v6184
    %6499 = vmatprep.subr.bf16.mxu0 %v6193
    %6500 = vmatpush1.bf16.msra.mxu0 %v6192
    %6501 = vmatprep.subr.bf16.mxu0 %v6201
    %6502 = vmatpush1.bf16.msra.mxu0 %v6200
    %6503 = vmatprep.subr.bf16.mxu0 %v6209
    %6504 = vmatpush1.bf16.msra.mxu0 %v6208
    %6505 = vmatprep.subr.bf16.mxu0 %v6217
    %6506 = vmatpush1.bf16.msra.mxu0 %v6216
    %6507 = vmatprep.subr.bf16.mxu0 %v6225
    %6508 = vmatpush1.bf16.msra.mxu0 %v6224
    %6509 = vmatprep.mubr.bf16.mxu0 %v5711
    %6510 = vmatmul.mubr.bf16.gmra.mrb[0].mxu0 %v5710
    %v6511 = vpop.f32.mrb[0].mxu0
    %v6512 = vadd.f32 0.0, %v6511
    %v6513 = vpop.f32.mrb[0].mxu0
    %v6514 = vadd.f32 0.0, %v6513
    %v6515 = vpop.f32.mrb[0].mxu0
    %v6516 = vpop.f32.mrb[0].mxu0
    %6517 = vdwg.mxu0
    %s6518 = smul.u32 6, 4
    %s6519 = smul.addr %s6518, 8
    %s6520 = scalar_lea.vmem [#allocation2], %s6519
    %v6521 = vld [vmem:[%s6520] sm:$0xff]
    %v6522 = vld [vmem:[%s6520 + $0x8] sm:$0xff]
    %v6523 = vld [vmem:[%s6520 + $0x10] sm:$0xff]
    %v6524 = vld [vmem:[%s6520 + $0x18] sm:$0xff]
    %v6525 = vadd.f32 %v6521, %v6389
    %v6526 = vadd.f32 %v6522, %v6391
    %v6527 = vadd.f32 %v6523, %v6430
    %v6528 = vadd.f32 %v6524, %v6432
    %v6529 = vld [vmem:[#allocation4] sm:$0xff]
    %v6530 = vxor.u32 %v6525, 2147483648
    %v6531 = vxor.u32 %v6526, 2147483648
    %v6532 = vxor.u32 %v6527, 2147483648
    %v6533 = vmul.f32 %v6530, 1.442695
    %v6534 = vpow.pop %v6533
    %v6535 = vmul.f32 %v6531, 1.442695
    %v6536 = vpow.pop %v6535
    %v6537 = vmul.f32 %v6532, 1.442695
    %v6538 = vpow.pop %v6537
    %v6539 = vadd.f32 %v6534, 1.0
    %v6540 = vadd.f32 %v6536, 1.0
    %v6541 = vadd.f32 %v6538, 1.0
    %v6542 = vrcp.pop %v6539
    %v6543 = vmul.f32 1.0, %v6542
    %v6544 = vrcp.pop %v6540
    %v6545 = vmul.f32 1.0, %v6544
    %v6546 = vrcp.pop %v6541
    %v6547 = vmul.f32 1.0, %v6546
    %v6548 = vtanh.pop %v6528
    %v6549 = vmul.f32 %v6545, %v6529
    %v6550 = vmul.f32 %v6543, %v6548
    %v6551 = vadd.f32 %v6549, %v6550
    %v6552 = vtanh.pop %v6551
    %v6553 = vmul.f32 %v6547, %v6552
    %6554 = vst [vmem:[#allocation4] sm:$0xff] %v6551
    %v6555 = vpack.c.bf16 %v6553, %v6553
    %6556 = vst [vmem:[#allocation3] sm:$0xf] %v6555
    %v6557 = vadd.f32 %v6471, %v464
    %v6558 = vadd.f32 %v6473, %v468
    %v6559 = vadd.f32 %v6512, %v472
    %v6560 = vadd.f32 %v6514, %v476
    %v6561 = vld [vmem:[#allocation5] sm:$0xff]
    %v6562 = vxor.u32 %v6557, 2147483648
    %v6563 = vxor.u32 %v6558, 2147483648
    %v6564 = vxor.u32 %v6559, 2147483648
    %v6565 = vmul.f32 %v6562, 1.442695
    %v6566 = vpow.pop %v6565
    %v6567 = vmul.f32 %v6563, 1.442695
    %v6568 = vpow.pop %v6567
    %v6569 = vmul.f32 %v6564, 1.442695
    %v6570 = vpow.pop %v6569
    %v6571 = vadd.f32 %v6566, 1.0
    %v6572 = vadd.f32 %v6568, 1.0
    %v6573 = vadd.f32 %v6570, 1.0
    %v6574 = vrcp.pop %v6571
    %v6575 = vmul.f32 1.0, %v6574
    %v6576 = vrcp.pop %v6572
    %v6577 = vmul.f32 1.0, %v6576
    %v6578 = vrcp.pop %v6573
    %v6579 = vmul.f32 1.0, %v6578
    %v6580 = vtanh.pop %v6560
    %v6581 = vmul.f32 %v6577, %v6561
    %v6582 = vmul.f32 %v6575, %v6580
    %v6583 = vadd.f32 %v6581, %v6582
    %v6584 = vtanh.pop %v6583
    %v6585 = vmul.f32 %v6579, %v6584
    %6586 = vst [vmem:[#allocation5] sm:$0xff] %v6583
    %v6587 = vpack.c.bf16 %v6585, %v6585
    %6588 = vst [vmem:[#allocation3 + $0x4] sm:$0xf] %v6587
    %s6589 = scalar_lea.vmem %s5, 20
    %6590 = vst [vmem:[%s6589] sm:$0xf] %v6587
    %v6591 = vld [vmem:[#allocation3] sm:$0xff]
    %v6592 = vld [vmem:[#allocation6] sm:$0xff]
    %v6593 = vld [vmem:[#allocation6 + $0x8] sm:$0xff]
    %v6594 = vld [vmem:[#allocation6 + $0x10] sm:$0xff]
    %v6595 = vld [vmem:[#allocation6 + $0x18] sm:$0xff]
    %v6596 = vld [vmem:[#allocation6 + $0x20] sm:$0xff]
    %v6597 = vld [vmem:[#allocation6 + $0x28] sm:$0xff]
    %v6598 = vld [vmem:[#allocation6 + $0x30] sm:$0xff]
    %v6599 = vld [vmem:[#allocation6 + $0x38] sm:$0xff]
    %v6600 = vld [vmem:[#allocation6 + $0x40] sm:$0xff]
    %v6601 = vld [vmem:[#allocation6 + $0x48] sm:$0xff]
    %v6602 = vld [vmem:[#allocation6 + $0x50] sm:$0xff]
    %v6603 = vld [vmem:[#allocation6 + $0x58] sm:$0xff]
    %v6604 = vld [vmem:[#allocation6 + $0x60] sm:$0xff]
    %v6605 = vld [vmem:[#allocation6 + $0x68] sm:$0xff]
    %v6606 = vld [vmem:[#allocation6 + $0x70] sm:$0xff]
    %v6607 = vld [vmem:[#allocation6 + $0x78] sm:$0xff]
    %v6608 = vld [vmem:[#allocation6 + $0x80] sm:$0xff]
    %v6609 = vld [vmem:[#allocation6 + $0x88] sm:$0xff]
    %v6610 = vld [vmem:[#allocation6 + $0x90] sm:$0xff]
    %v6611 = vld [vmem:[#allocation6 + $0x98] sm:$0xff]
    %v6612 = vld [vmem:[#allocation6 + $0xa0] sm:$0xff]
    %v6613 = vld [vmem:[#allocation6 + $0xa8] sm:$0xff]
    %v6614 = vld [vmem:[#allocation6 + $0xb0] sm:$0xff]
    %v6615 = vld [vmem:[#allocation6 + $0xb8] sm:$0xff]
    %v6616 = vld [vmem:[#allocation6 + $0xc0] sm:$0xff]
    %v6617 = vld [vmem:[#allocation6 + $0xc8] sm:$0xff]
    %v6618 = vld [vmem:[#allocation6 + $0xd0] sm:$0xff]
    %v6619 = vld [vmem:[#allocation6 + $0xd8] sm:$0xff]
    %v6620 = vld [vmem:[#allocation6 + $0xe0] sm:$0xff]
    %v6621 = vld [vmem:[#allocation6 + $0xe8] sm:$0xff]
    %v6622 = vld [vmem:[#allocation6 + $0xf0] sm:$0xff]
    %v6623 = vld [vmem:[#allocation6 + $0xf8] sm:$0xff]
    %v6624 = vld [vmem:[#allocation6 + $0x100] sm:$0xff]
    %v6625 = vld [vmem:[#allocation6 + $0x108] sm:$0xff]
    %v6626 = vld [vmem:[#allocation6 + $0x110] sm:$0xff]
    %v6627 = vld [vmem:[#allocation6 + $0x118] sm:$0xff]
    %v6628 = vld [vmem:[#allocation6 + $0x120] sm:$0xff]
    %v6629 = vld [vmem:[#allocation6 + $0x128] sm:$0xff]
    %v6630 = vld [vmem:[#allocation6 + $0x130] sm:$0xff]
    %v6631 = vld [vmem:[#allocation6 + $0x138] sm:$0xff]
    %v6632 = vld [vmem:[#allocation6 + $0x140] sm:$0xff]
    %v6633 = vld [vmem:[#allocation6 + $0x148] sm:$0xff]
    %v6634 = vld [vmem:[#allocation6 + $0x150] sm:$0xff]
    %v6635 = vld [vmem:[#allocation6 + $0x158] sm:$0xff]
    %v6636 = vld [vmem:[#allocation6 + $0x160] sm:$0xff]
    %v6637 = vld [vmem:[#allocation6 + $0x168] sm:$0xff]
    %v6638 = vld [vmem:[#allocation6 + $0x170] sm:$0xff]
    %v6639 = vld [vmem:[#allocation6 + $0x178] sm:$0xff]
    %v6640 = vld [vmem:[#allocation6 + $0x180] sm:$0xff]
    %v6641 = vld [vmem:[#allocation6 + $0x188] sm:$0xff]
    %v6642 = vld [vmem:[#allocation6 + $0x190] sm:$0xff]
    %v6643 = vld [vmem:[#allocation6 + $0x198] sm:$0xff]
    %v6644 = vld [vmem:[#allocation6 + $0x1a0] sm:$0xff]
    %v6645 = vld [vmem:[#allocation6 + $0x1a8] sm:$0xff]
    %v6646 = vld [vmem:[#allocation6 + $0x1b0] sm:$0xff]
    %v6647 = vld [vmem:[#allocation6 + $0x1b8] sm:$0xff]
    %v6648 = vld [vmem:[#allocation6 + $0x1c0] sm:$0xff]
    %v6649 = vld [vmem:[#allocation6 + $0x1c8] sm:$0xff]
    %v6650 = vld [vmem:[#allocation6 + $0x1d0] sm:$0xff]
    %v6651 = vld [vmem:[#allocation6 + $0x1d8] sm:$0xff]
    %v6652 = vld [vmem:[#allocation6 + $0x1e0] sm:$0xff]
    %v6653 = vld [vmem:[#allocation6 + $0x1e8] sm:$0xff]
    %v6654 = vld [vmem:[#allocation6 + $0x1f0] sm:$0xff]
    %v6655 = vld [vmem:[#allocation6 + $0x1f8] sm:$0xff]
    %v6656 = vld [vmem:[#allocation6 + $0x200] sm:$0xff]
    %v6657 = vld [vmem:[#allocation6 + $0x208] sm:$0xff]
    %v6658 = vld [vmem:[#allocation6 + $0x210] sm:$0xff]
    %v6659 = vld [vmem:[#allocation6 + $0x218] sm:$0xff]
    %v6660 = vld [vmem:[#allocation6 + $0x220] sm:$0xff]
    %v6661 = vld [vmem:[#allocation6 + $0x228] sm:$0xff]
    %v6662 = vld [vmem:[#allocation6 + $0x230] sm:$0xff]
    %v6663 = vld [vmem:[#allocation6 + $0x238] sm:$0xff]
    %v6664 = vld [vmem:[#allocation6 + $0x240] sm:$0xff]
    %v6665 = vld [vmem:[#allocation6 + $0x248] sm:$0xff]
    %v6666 = vld [vmem:[#allocation6 + $0x250] sm:$0xff]
    %v6667 = vld [vmem:[#allocation6 + $0x258] sm:$0xff]
    %v6668 = vld [vmem:[#allocation6 + $0x260] sm:$0xff]
    %v6669 = vld [vmem:[#allocation6 + $0x268] sm:$0xff]
    %v6670 = vld [vmem:[#allocation6 + $0x270] sm:$0xff]
    %v6671 = vld [vmem:[#allocation6 + $0x278] sm:$0xff]
    %v6672 = vld [vmem:[#allocation6 + $0x280] sm:$0xff]
    %v6673 = vld [vmem:[#allocation6 + $0x288] sm:$0xff]
    %v6674 = vld [vmem:[#allocation6 + $0x290] sm:$0xff]
    %v6675 = vld [vmem:[#allocation6 + $0x298] sm:$0xff]
    %v6676 = vld [vmem:[#allocation6 + $0x2a0] sm:$0xff]
    %v6677 = vld [vmem:[#allocation6 + $0x2a8] sm:$0xff]
    %v6678 = vld [vmem:[#allocation6 + $0x2b0] sm:$0xff]
    %v6679 = vld [vmem:[#allocation6 + $0x2b8] sm:$0xff]
    %v6680 = vld [vmem:[#allocation6 + $0x2c0] sm:$0xff]
    %v6681 = vld [vmem:[#allocation6 + $0x2c8] sm:$0xff]
    %v6682 = vld [vmem:[#allocation6 + $0x2d0] sm:$0xff]
    %v6683 = vld [vmem:[#allocation6 + $0x2d8] sm:$0xff]
    %v6684 = vld [vmem:[#allocation6 + $0x2e0] sm:$0xff]
    %v6685 = vld [vmem:[#allocation6 + $0x2e8] sm:$0xff]
    %v6686 = vld [vmem:[#allocation6 + $0x2f0] sm:$0xff]
    %v6687 = vld [vmem:[#allocation6 + $0x2f8] sm:$0xff]
    %v6688 = vld [vmem:[#allocation6 + $0x300] sm:$0xff]
    %v6689 = vld [vmem:[#allocation6 + $0x308] sm:$0xff]
    %v6690 = vld [vmem:[#allocation6 + $0x310] sm:$0xff]
    %v6691 = vld [vmem:[#allocation6 + $0x318] sm:$0xff]
    %v6692 = vld [vmem:[#allocation6 + $0x320] sm:$0xff]
    %v6693 = vld [vmem:[#allocation6 + $0x328] sm:$0xff]
    %v6694 = vld [vmem:[#allocation6 + $0x330] sm:$0xff]
    %v6695 = vld [vmem:[#allocation6 + $0x338] sm:$0xff]
    %v6696 = vld [vmem:[#allocation6 + $0x340] sm:$0xff]
    %v6697 = vld [vmem:[#allocation6 + $0x348] sm:$0xff]
    %v6698 = vld [vmem:[#allocation6 + $0x350] sm:$0xff]
    %v6699 = vld [vmem:[#allocation6 + $0x358] sm:$0xff]
    %v6700 = vld [vmem:[#allocation6 + $0x360] sm:$0xff]
    %v6701 = vld [vmem:[#allocation6 + $0x368] sm:$0xff]
    %v6702 = vld [vmem:[#allocation6 + $0x370] sm:$0xff]
    %v6703 = vld [vmem:[#allocation6 + $0x378] sm:$0xff]
    %v6704 = vld [vmem:[#allocation6 + $0x380] sm:$0xff]
    %v6705 = vld [vmem:[#allocation6 + $0x388] sm:$0xff]
    %v6706 = vld [vmem:[#allocation6 + $0x390] sm:$0xff]
    %v6707 = vld [vmem:[#allocation6 + $0x398] sm:$0xff]
    %v6708 = vld [vmem:[#allocation6 + $0x3a0] sm:$0xff]
    %v6709 = vld [vmem:[#allocation6 + $0x3a8] sm:$0xff]
    %v6710 = vld [vmem:[#allocation6 + $0x3b0] sm:$0xff]
    %v6711 = vld [vmem:[#allocation6 + $0x3b8] sm:$0xff]
    %v6712 = vld [vmem:[#allocation6 + $0x3c0] sm:$0xff]
    %v6713 = vld [vmem:[#allocation6 + $0x3c8] sm:$0xff]
    %v6714 = vld [vmem:[#allocation6 + $0x3d0] sm:$0xff]
    %v6715 = vld [vmem:[#allocation6 + $0x3d8] sm:$0xff]
    %v6716 = vld [vmem:[#allocation6 + $0x3e0] sm:$0xff]
    %v6717 = vld [vmem:[#allocation6 + $0x3e8] sm:$0xff]
    %v6718 = vld [vmem:[#allocation6 + $0x3f0] sm:$0xff]
    %v6719 = vld [vmem:[#allocation6 + $0x3f8] sm:$0xff]
    %v6721 = vunpack.c.l.b16 %v6591
    %v6722 = vunpack.c.h.b16 %v6591
    %v6723 = vpack.c.b16 %v6721, %v6721
    %v6724 = vpack.c.b16 %v6722, %v6722
    %v6855 = vunpack.c.l.b16 %v6592
    %v6856 = vunpack.c.h.b16 %v6592
    %v6857 = vunpack.c.l.b16 %v6593
    %v6858 = vunpack.c.h.b16 %v6593
    %v6859 = vunpack.c.l.b16 %v6594
    %v6860 = vunpack.c.h.b16 %v6594
    %v6861 = vunpack.c.l.b16 %v6595
    %v6862 = vunpack.c.h.b16 %v6595
    %v6863 = vunpack.c.l.b16 %v6596
    %v6864 = vunpack.c.h.b16 %v6596
    %v6865 = vunpack.c.l.b16 %v6597
    %v6866 = vunpack.c.h.b16 %v6597
    %v6867 = vunpack.c.l.b16 %v6598
    %v6868 = vunpack.c.h.b16 %v6598
    %v6869 = vunpack.c.l.b16 %v6599
    %v6870 = vunpack.c.h.b16 %v6599
    %v6871 = vunpack.c.l.b16 %v6600
    %v6872 = vunpack.c.h.b16 %v6600
    %v6873 = vunpack.c.l.b16 %v6601
    %v6874 = vunpack.c.h.b16 %v6601
    %v6875 = vunpack.c.l.b16 %v6602
    %v6876 = vunpack.c.h.b16 %v6602
    %v6877 = vunpack.c.l.b16 %v6603
    %v6878 = vunpack.c.h.b16 %v6603
    %v6879 = vunpack.c.l.b16 %v6604
    %v6880 = vunpack.c.h.b16 %v6604
    %v6881 = vunpack.c.l.b16 %v6605
    %v6882 = vunpack.c.h.b16 %v6605
    %v6883 = vunpack.c.l.b16 %v6606
    %v6884 = vunpack.c.h.b16 %v6606
    %v6885 = vunpack.c.l.b16 %v6607
    %v6886 = vunpack.c.h.b16 %v6607
    %v6887 = vunpack.c.l.b16 %v6608
    %v6888 = vunpack.c.h.b16 %v6608
    %v6889 = vunpack.c.l.b16 %v6609
    %v6890 = vunpack.c.h.b16 %v6609
    %v6891 = vunpack.c.l.b16 %v6610
    %v6892 = vunpack.c.h.b16 %v6610
    %v6893 = vunpack.c.l.b16 %v6611
    %v6894 = vunpack.c.h.b16 %v6611
    %v6895 = vunpack.c.l.b16 %v6612
    %v6896 = vunpack.c.h.b16 %v6612
    %v6897 = vunpack.c.l.b16 %v6613
    %v6898 = vunpack.c.h.b16 %v6613
    %v6899 = vunpack.c.l.b16 %v6614
    %v6900 = vunpack.c.h.b16 %v6614
    %v6901 = vunpack.c.l.b16 %v6615
    %v6902 = vunpack.c.h.b16 %v6615
    %v6903 = vunpack.c.l.b16 %v6616
    %v6904 = vunpack.c.h.b16 %v6616
    %v6905 = vunpack.c.l.b16 %v6617
    %v6906 = vunpack.c.h.b16 %v6617
    %v6907 = vunpack.c.l.b16 %v6618
    %v6908 = vunpack.c.h.b16 %v6618
    %v6909 = vunpack.c.l.b16 %v6619
    %v6910 = vunpack.c.h.b16 %v6619
    %v6911 = vunpack.c.l.b16 %v6620
    %v6912 = vunpack.c.h.b16 %v6620
    %v6913 = vunpack.c.l.b16 %v6621
    %v6914 = vunpack.c.h.b16 %v6621
    %v6915 = vunpack.c.l.b16 %v6622
    %v6916 = vunpack.c.h.b16 %v6622
    %v6917 = vunpack.c.l.b16 %v6623
    %v6918 = vunpack.c.h.b16 %v6623
    %v6919 = vunpack.c.l.b16 %v6624
    %v6920 = vunpack.c.h.b16 %v6624
    %v6921 = vunpack.c.l.b16 %v6625
    %v6922 = vunpack.c.h.b16 %v6625
    %v6923 = vunpack.c.l.b16 %v6626
    %v6924 = vunpack.c.h.b16 %v6626
    %v6925 = vunpack.c.l.b16 %v6627
    %v6926 = vunpack.c.h.b16 %v6627
    %v6927 = vunpack.c.l.b16 %v6628
    %v6928 = vunpack.c.h.b16 %v6628
    %v6929 = vunpack.c.l.b16 %v6629
    %v6930 = vunpack.c.h.b16 %v6629
    %v6931 = vunpack.c.l.b16 %v6630
    %v6932 = vunpack.c.h.b16 %v6630
    %v6933 = vunpack.c.l.b16 %v6631
    %v6934 = vunpack.c.h.b16 %v6631
    %v6935 = vunpack.c.l.b16 %v6632
    %v6936 = vunpack.c.h.b16 %v6632
    %v6937 = vunpack.c.l.b16 %v6633
    %v6938 = vunpack.c.h.b16 %v6633
    %v6939 = vunpack.c.l.b16 %v6634
    %v6940 = vunpack.c.h.b16 %v6634
    %v6941 = vunpack.c.l.b16 %v6635
    %v6942 = vunpack.c.h.b16 %v6635
    %v6943 = vunpack.c.l.b16 %v6636
    %v6944 = vunpack.c.h.b16 %v6636
    %v6945 = vunpack.c.l.b16 %v6637
    %v6946 = vunpack.c.h.b16 %v6637
    %v6947 = vunpack.c.l.b16 %v6638
    %v6948 = vunpack.c.h.b16 %v6638
    %v6949 = vunpack.c.l.b16 %v6639
    %v6950 = vunpack.c.h.b16 %v6639
    %v6951 = vunpack.c.l.b16 %v6640
    %v6952 = vunpack.c.h.b16 %v6640
    %v6953 = vunpack.c.l.b16 %v6641
    %v6954 = vunpack.c.h.b16 %v6641
    %v6955 = vunpack.c.l.b16 %v6642
    %v6956 = vunpack.c.h.b16 %v6642
    %v6957 = vunpack.c.l.b16 %v6643
    %v6958 = vunpack.c.h.b16 %v6643
    %v6959 = vunpack.c.l.b16 %v6644
    %v6960 = vunpack.c.h.b16 %v6644
    %v6961 = vunpack.c.l.b16 %v6645
    %v6962 = vunpack.c.h.b16 %v6645
    %v6963 = vunpack.c.l.b16 %v6646
    %v6964 = vunpack.c.h.b16 %v6646
    %v6965 = vunpack.c.l.b16 %v6647
    %v6966 = vunpack.c.h.b16 %v6647
    %v6967 = vunpack.c.l.b16 %v6648
    %v6968 = vunpack.c.h.b16 %v6648
    %v6969 = vunpack.c.l.b16 %v6649
    %v6970 = vunpack.c.h.b16 %v6649
    %v6971 = vunpack.c.l.b16 %v6650
    %v6972 = vunpack.c.h.b16 %v6650
    %v6973 = vunpack.c.l.b16 %v6651
    %v6974 = vunpack.c.h.b16 %v6651
    %v6975 = vunpack.c.l.b16 %v6652
    %v6976 = vunpack.c.h.b16 %v6652
    %v6977 = vunpack.c.l.b16 %v6653
    %v6978 = vunpack.c.h.b16 %v6653
    %v6979 = vunpack.c.l.b16 %v6654
    %v6980 = vunpack.c.h.b16 %v6654
    %v6981 = vunpack.c.l.b16 %v6655
    %v6982 = vunpack.c.h.b16 %v6655
    %v6983 = vunpack.c.l.b16 %v6656
    %v6984 = vunpack.c.h.b16 %v6656
    %v6985 = vunpack.c.l.b16 %v6657
    %v6986 = vunpack.c.h.b16 %v6657
    %v6987 = vunpack.c.l.b16 %v6658
    %v6988 = vunpack.c.h.b16 %v6658
    %v6989 = vunpack.c.l.b16 %v6659
    %v6990 = vunpack.c.h.b16 %v6659
    %v6991 = vunpack.c.l.b16 %v6660
    %v6992 = vunpack.c.h.b16 %v6660
    %v6993 = vunpack.c.l.b16 %v6661
    %v6994 = vunpack.c.h.b16 %v6661
    %v6995 = vunpack.c.l.b16 %v6662
    %v6996 = vunpack.c.h.b16 %v6662
    %v6997 = vunpack.c.l.b16 %v6663
    %v6998 = vunpack.c.h.b16 %v6663
    %v6999 = vunpack.c.l.b16 %v6664
    %v7000 = vunpack.c.h.b16 %v6664
    %v7001 = vunpack.c.l.b16 %v6665
    %v7002 = vunpack.c.h.b16 %v6665
    %v7003 = vunpack.c.l.b16 %v6666
    %v7004 = vunpack.c.h.b16 %v6666
    %v7005 = vunpack.c.l.b16 %v6667
    %v7006 = vunpack.c.h.b16 %v6667
    %v7007 = vunpack.c.l.b16 %v6668
    %v7008 = vunpack.c.h.b16 %v6668
    %v7009 = vunpack.c.l.b16 %v6669
    %v7010 = vunpack.c.h.b16 %v6669
    %v7011 = vunpack.c.l.b16 %v6670
    %v7012 = vunpack.c.h.b16 %v6670
    %v7013 = vunpack.c.l.b16 %v6671
    %v7014 = vunpack.c.h.b16 %v6671
    %v7015 = vunpack.c.l.b16 %v6672
    %v7016 = vunpack.c.h.b16 %v6672
    %v7017 = vunpack.c.l.b16 %v6673
    %v7018 = vunpack.c.h.b16 %v6673
    %v7019 = vunpack.c.l.b16 %v6674
    %v7020 = vunpack.c.h.b16 %v6674
    %v7021 = vunpack.c.l.b16 %v6675
    %v7022 = vunpack.c.h.b16 %v6675
    %v7023 = vunpack.c.l.b16 %v6676
    %v7024 = vunpack.c.h.b16 %v6676
    %v7025 = vunpack.c.l.b16 %v6677
    %v7026 = vunpack.c.h.b16 %v6677
    %v7027 = vunpack.c.l.b16 %v6678
    %v7028 = vunpack.c.h.b16 %v6678
    %v7029 = vunpack.c.l.b16 %v6679
    %v7030 = vunpack.c.h.b16 %v6679
    %v7031 = vunpack.c.l.b16 %v6680
    %v7032 = vunpack.c.h.b16 %v6680
    %v7033 = vunpack.c.l.b16 %v6681
    %v7034 = vunpack.c.h.b16 %v6681
    %v7035 = vunpack.c.l.b16 %v6682
    %v7036 = vunpack.c.h.b16 %v6682
    %v7037 = vunpack.c.l.b16 %v6683
    %v7038 = vunpack.c.h.b16 %v6683
    %v7039 = vunpack.c.l.b16 %v6684
    %v7040 = vunpack.c.h.b16 %v6684
    %v7041 = vunpack.c.l.b16 %v6685
    %v7042 = vunpack.c.h.b16 %v6685
    %v7043 = vunpack.c.l.b16 %v6686
    %v7044 = vunpack.c.h.b16 %v6686
    %v7045 = vunpack.c.l.b16 %v6687
    %v7046 = vunpack.c.h.b16 %v6687
    %v7047 = vunpack.c.l.b16 %v6688
    %v7048 = vunpack.c.h.b16 %v6688
    %v7049 = vunpack.c.l.b16 %v6689
    %v7050 = vunpack.c.h.b16 %v6689
    %v7051 = vunpack.c.l.b16 %v6690
    %v7052 = vunpack.c.h.b16 %v6690
    %v7053 = vunpack.c.l.b16 %v6691
    %v7054 = vunpack.c.h.b16 %v6691
    %v7055 = vunpack.c.l.b16 %v6692
    %v7056 = vunpack.c.h.b16 %v6692
    %v7057 = vunpack.c.l.b16 %v6693
    %v7058 = vunpack.c.h.b16 %v6693
    %v7059 = vunpack.c.l.b16 %v6694
    %v7060 = vunpack.c.h.b16 %v6694
    %v7061 = vunpack.c.l.b16 %v6695
    %v7062 = vunpack.c.h.b16 %v6695
    %v7063 = vunpack.c.l.b16 %v6696
    %v7064 = vunpack.c.h.b16 %v6696
    %v7065 = vunpack.c.l.b16 %v6697
    %v7066 = vunpack.c.h.b16 %v6697
    %v7067 = vunpack.c.l.b16 %v6698
    %v7068 = vunpack.c.h.b16 %v6698
    %v7069 = vunpack.c.l.b16 %v6699
    %v7070 = vunpack.c.h.b16 %v6699
    %v7071 = vunpack.c.l.b16 %v6700
    %v7072 = vunpack.c.h.b16 %v6700
    %v7073 = vunpack.c.l.b16 %v6701
    %v7074 = vunpack.c.h.b16 %v6701
    %v7075 = vunpack.c.l.b16 %v6702
    %v7076 = vunpack.c.h.b16 %v6702
    %v7077 = vunpack.c.l.b16 %v6703
    %v7078 = vunpack.c.h.b16 %v6703
    %v7079 = vunpack.c.l.b16 %v6704
    %v7080 = vunpack.c.h.b16 %v6704
    %v7081 = vunpack.c.l.b16 %v6705
    %v7082 = vunpack.c.h.b16 %v6705
    %v7083 = vunpack.c.l.b16 %v6706
    %v7084 = vunpack.c.h.b16 %v6706
    %v7085 = vunpack.c.l.b16 %v6707
    %v7086 = vunpack.c.h.b16 %v6707
    %v7087 = vunpack.c.l.b16 %v6708
    %v7088 = vunpack.c.h.b16 %v6708
    %v7089 = vunpack.c.l.b16 %v6709
    %v7090 = vunpack.c.h.b16 %v6709
    %v7091 = vunpack.c.l.b16 %v6710
    %v7092 = vunpack.c.h.b16 %v6710
    %v7093 = vunpack.c.l.b16 %v6711
    %v7094 = vunpack.c.h.b16 %v6711
    %v7095 = vunpack.c.l.b16 %v6712
    %v7096 = vunpack.c.h.b16 %v6712
    %v7097 = vunpack.c.l.b16 %v6713
    %v7098 = vunpack.c.h.b16 %v6713
    %v7099 = vunpack.c.l.b16 %v6714
    %v7100 = vunpack.c.h.b16 %v6714
    %v7101 = vunpack.c.l.b16 %v6715
    %v7102 = vunpack.c.h.b16 %v6715
    %v7103 = vunpack.c.l.b16 %v6716
    %v7104 = vunpack.c.h.b16 %v6716
    %v7105 = vunpack.c.l.b16 %v6717
    %v7106 = vunpack.c.h.b16 %v6717
    %v7107 = vunpack.c.l.b16 %v6718
    %v7108 = vunpack.c.h.b16 %v6718
    %v7109 = vunpack.c.l.b16 %v6719
    %v7110 = vunpack.c.h.b16 %v6719
    %v7111 = vpack.c.b16 %v6863, %v6855
    %v7112 = vpack.c.b16 %v6864, %v6856
    %v7113 = vpack.c.b16 %v6865, %v6857
    %v7114 = vpack.c.b16 %v6866, %v6858
    %v7115 = vpack.c.b16 %v6867, %v6859
    %v7116 = vpack.c.b16 %v6868, %v6860
    %v7117 = vpack.c.b16 %v6869, %v6861
    %v7118 = vpack.c.b16 %v6870, %v6862
    %v7119 = vpack.c.b16 %v6879, %v6871
    %v7120 = vpack.c.b16 %v6880, %v6872
    %v7121 = vpack.c.b16 %v6881, %v6873
    %v7122 = vpack.c.b16 %v6882, %v6874
    %v7123 = vpack.c.b16 %v6883, %v6875
    %v7124 = vpack.c.b16 %v6884, %v6876
    %v7125 = vpack.c.b16 %v6885, %v6877
    %v7126 = vpack.c.b16 %v6886, %v6878
    %v7127 = vpack.c.b16 %v6895, %v6887
    %v7128 = vpack.c.b16 %v6896, %v6888
    %v7129 = vpack.c.b16 %v6897, %v6889
    %v7130 = vpack.c.b16 %v6898, %v6890
    %v7131 = vpack.c.b16 %v6899, %v6891
    %v7132 = vpack.c.b16 %v6900, %v6892
    %v7133 = vpack.c.b16 %v6901, %v6893
    %v7134 = vpack.c.b16 %v6902, %v6894
    %v7135 = vpack.c.b16 %v6911, %v6903
    %v7136 = vpack.c.b16 %v6912, %v6904
    %v7137 = vpack.c.b16 %v6913, %v6905
    %v7138 = vpack.c.b16 %v6914, %v6906
    %v7139 = vpack.c.b16 %v6915, %v6907
    %v7140 = vpack.c.b16 %v6916, %v6908
    %v7141 = vpack.c.b16 %v6917, %v6909
    %v7142 = vpack.c.b16 %v6918, %v6910
    %v7143 = vpack.c.b16 %v6927, %v6919
    %v7144 = vpack.c.b16 %v6928, %v6920
    %v7145 = vpack.c.b16 %v6929, %v6921
    %v7146 = vpack.c.b16 %v6930, %v6922
    %v7147 = vpack.c.b16 %v6931, %v6923
    %v7148 = vpack.c.b16 %v6932, %v6924
    %v7149 = vpack.c.b16 %v6933, %v6925
    %v7150 = vpack.c.b16 %v6934, %v6926
    %v7151 = vpack.c.b16 %v6943, %v6935
    %v7152 = vpack.c.b16 %v6944, %v6936
    %v7153 = vpack.c.b16 %v6945, %v6937
    %v7154 = vpack.c.b16 %v6946, %v6938
    %v7155 = vpack.c.b16 %v6947, %v6939
    %v7156 = vpack.c.b16 %v6948, %v6940
    %v7157 = vpack.c.b16 %v6949, %v6941
    %v7158 = vpack.c.b16 %v6950, %v6942
    %v7159 = vpack.c.b16 %v6959, %v6951
    %v7160 = vpack.c.b16 %v6960, %v6952
    %v7161 = vpack.c.b16 %v6961, %v6953
    %v7162 = vpack.c.b16 %v6962, %v6954
    %v7163 = vpack.c.b16 %v6963, %v6955
    %v7164 = vpack.c.b16 %v6964, %v6956
    %v7165 = vpack.c.b16 %v6965, %v6957
    %v7166 = vpack.c.b16 %v6966, %v6958
    %v7167 = vpack.c.b16 %v6975, %v6967
    %v7168 = vpack.c.b16 %v6976, %v6968
    %v7169 = vpack.c.b16 %v6977, %v6969
    %v7170 = vpack.c.b16 %v6978, %v6970
    %v7171 = vpack.c.b16 %v6979, %v6971
    %v7172 = vpack.c.b16 %v6980, %v6972
    %v7173 = vpack.c.b16 %v6981, %v6973
    %v7174 = vpack.c.b16 %v6982, %v6974
    %v7175 = vpack.c.b16 %v6991, %v6983
    %v7176 = vpack.c.b16 %v6992, %v6984
    %v7177 = vpack.c.b16 %v6993, %v6985
    %v7178 = vpack.c.b16 %v6994, %v6986
    %v7179 = vpack.c.b16 %v6995, %v6987
    %v7180 = vpack.c.b16 %v6996, %v6988
    %v7181 = vpack.c.b16 %v6997, %v6989
    %v7182 = vpack.c.b16 %v6998, %v6990
    %v7183 = vpack.c.b16 %v7007, %v6999
    %v7184 = vpack.c.b16 %v7008, %v7000
    %v7185 = vpack.c.b16 %v7009, %v7001
    %v7186 = vpack.c.b16 %v7010, %v7002
    %v7187 = vpack.c.b16 %v7011, %v7003
    %v7188 = vpack.c.b16 %v7012, %v7004
    %v7189 = vpack.c.b16 %v7013, %v7005
    %v7190 = vpack.c.b16 %v7014, %v7006
    %v7191 = vpack.c.b16 %v7023, %v7015
    %v7192 = vpack.c.b16 %v7024, %v7016
    %v7193 = vpack.c.b16 %v7025, %v7017
    %v7194 = vpack.c.b16 %v7026, %v7018
    %v7195 = vpack.c.b16 %v7027, %v7019
    %v7196 = vpack.c.b16 %v7028, %v7020
    %v7197 = vpack.c.b16 %v7029, %v7021
    %v7198 = vpack.c.b16 %v7030, %v7022
    %v7199 = vpack.c.b16 %v7039, %v7031
    %v7200 = vpack.c.b16 %v7040, %v7032
    %v7201 = vpack.c.b16 %v7041, %v7033
    %v7202 = vpack.c.b16 %v7042, %v7034
    %v7203 = vpack.c.b16 %v7043, %v7035
    %v7204 = vpack.c.b16 %v7044, %v7036
    %v7205 = vpack.c.b16 %v7045, %v7037
    %v7206 = vpack.c.b16 %v7046, %v7038
    %v7207 = vpack.c.b16 %v7055, %v7047
    %v7208 = vpack.c.b16 %v7056, %v7048
    %v7209 = vpack.c.b16 %v7057, %v7049
    %v7210 = vpack.c.b16 %v7058, %v7050
    %v7211 = vpack.c.b16 %v7059, %v7051
    %v7212 = vpack.c.b16 %v7060, %v7052
    %v7213 = vpack.c.b16 %v7061, %v7053
    %v7214 = vpack.c.b16 %v7062, %v7054
    %v7215 = vpack.c.b16 %v7071, %v7063
    %v7216 = vpack.c.b16 %v7072, %v7064
    %v7217 = vpack.c.b16 %v7073, %v7065
    %v7218 = vpack.c.b16 %v7074, %v7066
    %v7219 = vpack.c.b16 %v7075, %v7067
    %v7220 = vpack.c.b16 %v7076, %v7068
    %v7221 = vpack.c.b16 %v7077, %v7069
    %v7222 = vpack.c.b16 %v7078, %v7070
    %v7223 = vpack.c.b16 %v7087, %v7079
    %v7224 = vpack.c.b16 %v7088, %v7080
    %v7225 = vpack.c.b16 %v7089, %v7081
    %v7226 = vpack.c.b16 %v7090, %v7082
    %v7227 = vpack.c.b16 %v7091, %v7083
    %v7228 = vpack.c.b16 %v7092, %v7084
    %v7229 = vpack.c.b16 %v7093, %v7085
    %v7230 = vpack.c.b16 %v7094, %v7086
    %v7231 = vpack.c.b16 %v7103, %v7095
    %v7232 = vpack.c.b16 %v7104, %v7096
    %v7233 = vpack.c.b16 %v7105, %v7097
    %v7234 = vpack.c.b16 %v7106, %v7098
    %v7235 = vpack.c.b16 %v7107, %v7099
    %v7236 = vpack.c.b16 %v7108, %v7100
    %v7237 = vpack.c.b16 %v7109, %v7101
    %v7238 = vpack.c.b16 %v7110, %v7102
    %7367 = vmatprep.subr.bf16.mxu0 %v7112
    %7368 = vmatpush1.bf16.msra.mxu0 %v7111
    %7369 = vmatprep.subr.bf16.mxu0 %v7120
    %7370 = vmatpush1.bf16.msra.mxu0 %v7119
    %7371 = vmatprep.subr.bf16.mxu0 %v7128
    %7372 = vmatpush1.bf16.msra.mxu0 %v7127
    %7373 = vmatprep.subr.bf16.mxu0 %v7136
    %7374 = vmatpush1.bf16.msra.mxu0 %v7135
    %7375 = vmatprep.subr.bf16.mxu0 %v7144
    %7376 = vmatpush1.bf16.msra.mxu0 %v7143
    %7377 = vmatprep.subr.bf16.mxu0 %v7152
    %7378 = vmatpush1.bf16.msra.mxu0 %v7151
    %7379 = vmatprep.subr.bf16.mxu0 %v7160
    %7380 = vmatpush1.bf16.msra.mxu0 %v7159
    %7381 = vmatprep.subr.bf16.mxu0 %v7168
    %7382 = vmatpush1.bf16.msra.mxu0 %v7167
    %7383 = vmatprep.subr.bf16.mxu0 %v7176
    %7384 = vmatpush1.bf16.msra.mxu0 %v7175
    %7385 = vmatprep.subr.bf16.mxu0 %v7184
    %7386 = vmatpush1.bf16.msra.mxu0 %v7183
    %7387 = vmatprep.subr.bf16.mxu0 %v7192
    %7388 = vmatpush1.bf16.msra.mxu0 %v7191
    %7389 = vmatprep.subr.bf16.mxu0 %v7200
    %7390 = vmatpush1.bf16.msra.mxu0 %v7199
    %7391 = vmatprep.subr.bf16.mxu0 %v7208
    %7392 = vmatpush1.bf16.msra.mxu0 %v7207
    %7393 = vmatprep.subr.bf16.mxu0 %v7216
    %7394 = vmatpush1.bf16.msra.mxu0 %v7215
    %7395 = vmatprep.subr.bf16.mxu0 %v7224
    %7396 = vmatpush1.bf16.msra.mxu0 %v7223
    %7397 = vmatprep.subr.bf16.mxu0 %v7232
    %7398 = vmatpush1.bf16.msra.mxu0 %v7231
    %7399 = vmatprep.mubr.bf16.mxu0 %v6724
    %7400 = vmatmul.mubr.bf16.gmra.mrb[0].mxu0 %v6723
    %v7401 = vpop.f32.mrb[0].mxu0
    %v7402 = vadd.f32 0.0, %v7401
    %v7403 = vpop.f32.mrb[0].mxu0
    %v7404 = vadd.f32 0.0, %v7403
    %v7405 = vpop.f32.mrb[0].mxu0
    %v7406 = vpop.f32.mrb[0].mxu0
    %7407 = vdwg.mxu0
    %7408 = vmatprep.subr.bf16.mxu0 %v7114
    %7409 = vmatpush1.bf16.msra.mxu0 %v7113
    %7410 = vmatprep.subr.bf16.mxu0 %v7122
    %7411 = vmatpush1.bf16.msra.mxu0 %v7121
    %7412 = vmatprep.subr.bf16.mxu0 %v7130
    %7413 = vmatpush1.bf16.msra.mxu0 %v7129
    %7414 = vmatprep.subr.bf16.mxu0 %v7138
    %7415 = vmatpush1.bf16.msra.mxu0 %v7137
    %7416 = vmatprep.subr.bf16.mxu0 %v7146
    %7417 = vmatpush1.bf16.msra.mxu0 %v7145
    %7418 = vmatprep.subr.bf16.mxu0 %v7154
    %7419 = vmatpush1.bf16.msra.mxu0 %v7153
    %7420 = vmatprep.subr.bf16.mxu0 %v7162
    %7421 = vmatpush1.bf16.msra.mxu0 %v7161
    %7422 = vmatprep.subr.bf16.mxu0 %v7170
    %7423 = vmatpush1.bf16.msra.mxu0 %v7169
    %7424 = vmatprep.subr.bf16.mxu0 %v7178
    %7425 = vmatpush1.bf16.msra.mxu0 %v7177
    %7426 = vmatprep.subr.bf16.mxu0 %v7186
    %7427 = vmatpush1.bf16.msra.mxu0 %v7185
    %7428 = vmatprep.subr.bf16.mxu0 %v7194
    %7429 = vmatpush1.bf16.msra.mxu0 %v7193
    %7430 = vmatprep.subr.bf16.mxu0 %v7202
    %7431 = vmatpush1.bf16.msra.mxu0 %v7201
    %7432 = vmatprep.subr.bf16.mxu0 %v7210
    %7433 = vmatpush1.bf16.msra.mxu0 %v7209
    %7434 = vmatprep.subr.bf16.mxu0 %v7218
    %7435 = vmatpush1.bf16.msra.mxu0 %v7217
    %7436 = vmatprep.subr.bf16.mxu0 %v7226
    %7437 = vmatpush1.bf16.msra.mxu0 %v7225
    %7438 = vmatprep.subr.bf16.mxu0 %v7234
    %7439 = vmatpush1.bf16.msra.mxu0 %v7233
    %7440 = vmatprep.mubr.bf16.mxu0 %v6724
    %7441 = vmatmul.mubr.bf16.gmra.mrb[0].mxu0 %v6723
    %v7442 = vpop.f32.mrb[0].mxu0
    %v7443 = vadd.f32 0.0, %v7442
    %v7444 = vpop.f32.mrb[0].mxu0
    %v7445 = vadd.f32 0.0, %v7444
    %v7446 = vpop.f32.mrb[0].mxu0
    %v7447 = vpop.f32.mrb[0].mxu0
    %7448 = vdwg.mxu0
    %7449 = vmatprep.subr.bf16.mxu0 %v7116
    %7450 = vmatpush1.bf16.msra.mxu0 %v7115
    %7451 = vmatprep.subr.bf16.mxu0 %v7124
    %7452 = vmatpush1.bf16.msra.mxu0 %v7123
    %7453 = vmatprep.subr.bf16.mxu0 %v7132
    %7454 = vmatpush1.bf16.msra.mxu0 %v7131
    %7455 = vmatprep.subr.bf16.mxu0 %v7140
    %7456 = vmatpush1.bf16.msra.mxu0 %v7139
    %7457 = vmatprep.subr.bf16.mxu0 %v7148
    %7458 = vmatpush1.bf16.msra.mxu0 %v7147
    %7459 = vmatprep.subr.bf16.mxu0 %v7156
    %7460 = vmatpush1.bf16.msra.mxu0 %v7155
    %7461 = vmatprep.subr.bf16.mxu0 %v7164
    %7462 = vmatpush1.bf16.msra.mxu0 %v7163
    %7463 = vmatprep.subr.bf16.mxu0 %v7172
    %7464 = vmatpush1.bf16.msra.mxu0 %v7171
    %7465 = vmatprep.subr.bf16.mxu0 %v7180
    %7466 = vmatpush1.bf16.msra.mxu0 %v7179
    %7467 = vmatprep.subr.bf16.mxu0 %v7188
    %7468 = vmatpush1.bf16.msra.mxu0 %v7187
    %7469 = vmatprep.subr.bf16.mxu0 %v7196
    %7470 = vmatpush1.bf16.msra.mxu0 %v7195
    %7471 = vmatprep.subr.bf16.mxu0 %v7204
    %7472 = vmatpush1.bf16.msra.mxu0 %v7203
    %7473 = vmatprep.subr.bf16.mxu0 %v7212
    %7474 = vmatpush1.bf16.msra.mxu0 %v7211
    %7475 = vmatprep.subr.bf16.mxu0 %v7220
    %7476 = vmatpush1.bf16.msra.mxu0 %v7219
    %7477 = vmatprep.subr.bf16.mxu0 %v7228
    %7478 = vmatpush1.bf16.msra.mxu0 %v7227
    %7479 = vmatprep.subr.bf16.mxu0 %v7236
    %7480 = vmatpush1.bf16.msra.mxu0 %v7235
    %7481 = vmatprep.mubr.bf16.mxu0 %v6724
    %7482 = vmatmul.mubr.bf16.gmra.mrb[0].mxu0 %v6723
    %v7483 = vpop.f32.mrb[0].mxu0
    %v7484 = vadd.f32 0.0, %v7483
    %v7485 = vpop.f32.mrb[0].mxu0
    %v7486 = vadd.f32 0.0, %v7485
    %v7487 = vpop.f32.mrb[0].mxu0
    %v7488 = vpop.f32.mrb[0].mxu0
    %7489 = vdwg.mxu0
    %7490 = vmatprep.subr.bf16.mxu0 %v7118
    %7491 = vmatpush1.bf16.msra.mxu0 %v7117
    %7492 = vmatprep.subr.bf16.mxu0 %v7126
    %7493 = vmatpush1.bf16.msra.mxu0 %v7125
    %7494 = vmatprep.subr.bf16.mxu0 %v7134
    %7495 = vmatpush1.bf16.msra.mxu0 %v7133
    %7496 = vmatprep.subr.bf16.mxu0 %v7142
    %7497 = vmatpush1.bf16.msra.mxu0 %v7141
    %7498 = vmatprep.subr.bf16.mxu0 %v7150
    %7499 = vmatpush1.bf16.msra.mxu0 %v7149
    %7500 = vmatprep.subr.bf16.mxu0 %v7158
    %7501 = vmatpush1.bf16.msra.mxu0 %v7157
    %7502 = vmatprep.subr.bf16.mxu0 %v7166
    %7503 = vmatpush1.bf16.msra.mxu0 %v7165
    %7504 = vmatprep.subr.bf16.mxu0 %v7174
    %7505 = vmatpush1.bf16.msra.mxu0 %v7173
    %7506 = vmatprep.subr.bf16.mxu0 %v7182
    %7507 = vmatpush1.bf16.msra.mxu0 %v7181
    %7508 = vmatprep.subr.bf16.mxu0 %v7190
    %7509 = vmatpush1.bf16.msra.mxu0 %v7189
    %7510 = vmatprep.subr.bf16.mxu0 %v7198
    %7511 = vmatpush1.bf16.msra.mxu0 %v7197
    %7512 = vmatprep.subr.bf16.mxu0 %v7206
    %7513 = vmatpush1.bf16.msra.mxu0 %v7205
    %7514 = vmatprep.subr.bf16.mxu0 %v7214
    %7515 = vmatpush1.bf16.msra.mxu0 %v7213
    %7516 = vmatprep.subr.bf16.mxu0 %v7222
    %7517 = vmatpush1.bf16.msra.mxu0 %v7221
    %7518 = vmatprep.subr.bf16.mxu0 %v7230
    %7519 = vmatpush1.bf16.msra.mxu0 %v7229
    %7520 = vmatprep.subr.bf16.mxu0 %v7238
    %7521 = vmatpush1.bf16.msra.mxu0 %v7237
    %7522 = vmatprep.mubr.bf16.mxu0 %v6724
    %7523 = vmatmul.mubr.bf16.gmra.mrb[0].mxu0 %v6723
    %v7524 = vpop.f32.mrb[0].mxu0
    %v7525 = vadd.f32 0.0, %v7524
    %v7526 = vpop.f32.mrb[0].mxu0
    %v7527 = vadd.f32 0.0, %v7526
    %v7528 = vpop.f32.mrb[0].mxu0
    %v7529 = vpop.f32.mrb[0].mxu0
    %7530 = vdwg.mxu0
    %s7531 = smul.u32 7, 4
    %s7532 = smul.addr %s7531, 8
    %s7533 = scalar_lea.vmem [#allocation2], %s7532
    %v7534 = vld [vmem:[%s7533] sm:$0xff]
    %v7535 = vld [vmem:[%s7533 + $0x8] sm:$0xff]
    %v7536 = vld [vmem:[%s7533 + $0x10] sm:$0xff]
    %v7537 = vld [vmem:[%s7533 + $0x18] sm:$0xff]
    %v7538 = vadd.f32 %v7534, %v7402
    %v7539 = vadd.f32 %v7535, %v7404
    %v7540 = vadd.f32 %v7536, %v7443
    %v7541 = vadd.f32 %v7537, %v7445
    %v7542 = vld [vmem:[#allocation4] sm:$0xff]
    %v7543 = vxor.u32 %v7538, 2147483648
    %v7544 = vxor.u32 %v7539, 2147483648
    %v7545 = vxor.u32 %v7540, 2147483648
    %v7546 = vmul.f32 %v7543, 1.442695
    %v7547 = vpow.pop %v7546
    %v7548 = vmul.f32 %v7544, 1.442695
    %v7549 = vpow.pop %v7548
    %v7550 = vmul.f32 %v7545, 1.442695
    %v7551 = vpow.pop %v7550
    %v7552 = vadd.f32 %v7547, 1.0
    %v7553 = vadd.f32 %v7549, 1.0
    %v7554 = vadd.f32 %v7551, 1.0
    %v7555 = vrcp.pop %v7552
    %v7556 = vmul.f32 1.0, %v7555
    %v7557 = vrcp.pop %v7553
    %v7558 = vmul.f32 1.0, %v7557
    %v7559 = vrcp.pop %v7554
    %v7560 = vmul.f32 1.0, %v7559
    %v7561 = vtanh.pop %v7541
    %v7562 = vmul.f32 %v7558, %v7542
    %v7563 = vmul.f32 %v7556, %v7561
    %v7564 = vadd.f32 %v7562, %v7563
    %v7565 = vtanh.pop %v7564
    %v7566 = vmul.f32 %v7560, %v7565
    %7567 = vst [vmem:[#allocation4] sm:$0xff] %v7564
    %v7568 = vpack.c.bf16 %v7566, %v7566
    %7569 = vst [vmem:[#allocation3] sm:$0xf] %v7568
    %v7570 = vadd.f32 %v7484, %v464
    %v7571 = vadd.f32 %v7486, %v468
    %v7572 = vadd.f32 %v7525, %v472
    %v7573 = vadd.f32 %v7527, %v476
    %v7574 = vld [vmem:[#allocation5] sm:$0xff]
    %v7575 = vxor.u32 %v7570, 2147483648
    %v7576 = vxor.u32 %v7571, 2147483648
    %v7577 = vxor.u32 %v7572, 2147483648
    %v7578 = vmul.f32 %v7575, 1.442695
    %v7579 = vpow.pop %v7578
    %v7580 = vmul.f32 %v7576, 1.442695
    %v7581 = vpow.pop %v7580
    %v7582 = vmul.f32 %v7577, 1.442695
    %v7583 = vpow.pop %v7582
    %v7584 = vadd.f32 %v7579, 1.0
    %v7585 = vadd.f32 %v7581, 1.0
    %v7586 = vadd.f32 %v7583, 1.0
    %v7587 = vrcp.pop %v7584
    %v7588 = vmul.f32 1.0, %v7587
    %v7589 = vrcp.pop %v7585
    %v7590 = vmul.f32 1.0, %v7589
    %v7591 = vrcp.pop %v7586
    %v7592 = vmul.f32 1.0, %v7591
    %v7593 = vtanh.pop %v7573
    %v7594 = vmul.f32 %v7590, %v7574
    %v7595 = vmul.f32 %v7588, %v7593
    %v7596 = vadd.f32 %v7594, %v7595
    %v7597 = vtanh.pop %v7596
    %v7598 = vmul.f32 %v7592, %v7597
    %7599 = vst [vmem:[#allocation5] sm:$0xff] %v7596
    %v7600 = vpack.c.bf16 %v7598, %v7598
    %7601 = vst [vmem:[#allocation3 + $0x4] sm:$0xf] %v7600
    %s7602 = scalar_lea.vmem %s5, 24
    %7603 = vst [vmem:[%s7602] sm:$0xf] %v7600
    %v7604 = vld [vmem:[#allocation3] sm:$0xff]
    %v7605 = vld [vmem:[#allocation6 + $0x10] sm:$0xff]
    %v7606 = vld [vmem:[#allocation6 + $0x18] sm:$0xff]
    %v7607 = vld [vmem:[#allocation6 + $0x30] sm:$0xff]
    %v7608 = vld [vmem:[#allocation6 + $0x38] sm:$0xff]
    %v7609 = vld [vmem:[#allocation6 + $0x50] sm:$0xff]
    %v7610 = vld [vmem:[#allocation6 + $0x58] sm:$0xff]
    %v7611 = vld [vmem:[#allocation6 + $0x70] sm:$0xff]
    %v7612 = vld [vmem:[#allocation6 + $0x78] sm:$0xff]
    %v7613 = vld [vmem:[#allocation6 + $0x90] sm:$0xff]
    %v7614 = vld [vmem:[#allocation6 + $0x98] sm:$0xff]
    %v7615 = vld [vmem:[#allocation6 + $0xb0] sm:$0xff]
    %v7616 = vld [vmem:[#allocation6 + $0xb8] sm:$0xff]
    %v7617 = vld [vmem:[#allocation6 + $0xd0] sm:$0xff]
    %v7618 = vld [vmem:[#allocation6 + $0xd8] sm:$0xff]
    %v7619 = vld [vmem:[#allocation6 + $0xf0] sm:$0xff]
    %v7620 = vld [vmem:[#allocation6 + $0xf8] sm:$0xff]
    %v7621 = vld [vmem:[#allocation6 + $0x110] sm:$0xff]
    %v7622 = vld [vmem:[#allocation6 + $0x118] sm:$0xff]
    %v7623 = vld [vmem:[#allocation6 + $0x130] sm:$0xff]
    %v7624 = vld [vmem:[#allocation6 + $0x138] sm:$0xff]
    %v7625 = vld [vmem:[#allocation6 + $0x150] sm:$0xff]
    %v7626 = vld [vmem:[#allocation6 + $0x158] sm:$0xff]
    %v7627 = vld [vmem:[#allocation6 + $0x170] sm:$0xff]
    %v7628 = vld [vmem:[#allocation6 + $0x178] sm:$0xff]
    %v7629 = vld [vmem:[#allocation6 + $0x190] sm:$0xff]
    %v7630 = vld [vmem:[#allocation6 + $0x198] sm:$0xff]
    %v7631 = vld [vmem:[#allocation6 + $0x1b0] sm:$0xff]
    %v7632 = vld [vmem:[#allocation6 + $0x1b8] sm:$0xff]
    %v7633 = vld [vmem:[#allocation6 + $0x1d0] sm:$0xff]
    %v7634 = vld [vmem:[#allocation6 + $0x1d8] sm:$0xff]
    %v7635 = vld [vmem:[#allocation6 + $0x1f0] sm:$0xff]
    %v7636 = vld [vmem:[#allocation6 + $0x1f8] sm:$0xff]
    %v7637 = vld [vmem:[#allocation6 + $0x210] sm:$0xff]
    %v7638 = vld [vmem:[#allocation6 + $0x218] sm:$0xff]
    %v7639 = vld [vmem:[#allocation6 + $0x230] sm:$0xff]
    %v7640 = vld [vmem:[#allocation6 + $0x238] sm:$0xff]
    %v7641 = vld [vmem:[#allocation6 + $0x250] sm:$0xff]
    %v7642 = vld [vmem:[#allocation6 + $0x258] sm:$0xff]
    %v7643 = vld [vmem:[#allocation6 + $0x270] sm:$0xff]
    %v7644 = vld [vmem:[#allocation6 + $0x278] sm:$0xff]
    %v7645 = vld [vmem:[#allocation6 + $0x290] sm:$0xff]
    %v7646 = vld [vmem:[#allocation6 + $0x298] sm:$0xff]
    %v7647 = vld [vmem:[#allocation6 + $0x2b0] sm:$0xff]
    %v7648 = vld [vmem:[#allocation6 + $0x2b8] sm:$0xff]
    %v7649 = vld [vmem:[#allocation6 + $0x2d0] sm:$0xff]
    %v7650 = vld [vmem:[#allocation6 + $0x2d8] sm:$0xff]
    %v7651 = vld [vmem:[#allocation6 + $0x2f0] sm:$0xff]
    %v7652 = vld [vmem:[#allocation6 + $0x2f8] sm:$0xff]
    %v7653 = vld [vmem:[#allocation6 + $0x310] sm:$0xff]
    %v7654 = vld [vmem:[#allocation6 + $0x318] sm:$0xff]
    %v7655 = vld [vmem:[#allocation6 + $0x330] sm:$0xff]
    %v7656 = vld [vmem:[#allocation6 + $0x338] sm:$0xff]
    %v7657 = vld [vmem:[#allocation6 + $0x350] sm:$0xff]
    %v7658 = vld [vmem:[#allocation6 + $0x358] sm:$0xff]
    %v7659 = vld [vmem:[#allocation6 + $0x370] sm:$0xff]
    %v7660 = vld [vmem:[#allocation6 + $0x378] sm:$0xff]
    %v7661 = vld [vmem:[#allocation6 + $0x390] sm:$0xff]
    %v7662 = vld [vmem:[#allocation6 + $0x398] sm:$0xff]
    %v7663 = vld [vmem:[#allocation6 + $0x3b0] sm:$0xff]
    %v7664 = vld [vmem:[#allocation6 + $0x3b8] sm:$0xff]
    %v7665 = vld [vmem:[#allocation6 + $0x3d0] sm:$0xff]
    %v7666 = vld [vmem:[#allocation6 + $0x3d8] sm:$0xff]
    %v7667 = vld [vmem:[#allocation6 + $0x3f0] sm:$0xff]
    %v7668 = vld [vmem:[#allocation6 + $0x3f8] sm:$0xff]
    %v7670 = vunpack.c.l.b16 %v7604
    %v7671 = vunpack.c.h.b16 %v7604
    %v7672 = vpack.c.b16 %v7670, %v7670
    %v7673 = vpack.c.b16 %v7671, %v7671
    %v7740 = vunpack.c.l.b16 %v7605
    %v7741 = vunpack.c.h.b16 %v7605
    %v7742 = vunpack.c.l.b16 %v7606
    %v7743 = vunpack.c.h.b16 %v7606
    %v7744 = vunpack.c.l.b16 %v7607
    %v7745 = vunpack.c.h.b16 %v7607
    %v7746 = vunpack.c.l.b16 %v7608
    %v7747 = vunpack.c.h.b16 %v7608
    %v7748 = vunpack.c.l.b16 %v7609
    %v7749 = vunpack.c.h.b16 %v7609
    %v7750 = vunpack.c.l.b16 %v7610
    %v7751 = vunpack.c.h.b16 %v7610
    %v7752 = vunpack.c.l.b16 %v7611
    %v7753 = vunpack.c.h.b16 %v7611
    %v7754 = vunpack.c.l.b16 %v7612
    %v7755 = vunpack.c.h.b16 %v7612
    %v7756 = vunpack.c.l.b16 %v7613
    %v7757 = vunpack.c.h.b16 %v7613
    %v7758 = vunpack.c.l.b16 %v7614
    %v7759 = vunpack.c.h.b16 %v7614
    %v7760 = vunpack.c.l.b16 %v7615
    %v7761 = vunpack.c.h.b16 %v7615
    %v7762 = vunpack.c.l.b16 %v7616
    %v7763 = vunpack.c.h.b16 %v7616
    %v7764 = vunpack.c.l.b16 %v7617
    %v7765 = vunpack.c.h.b16 %v7617
    %v7766 = vunpack.c.l.b16 %v7618
    %v7767 = vunpack.c.h.b16 %v7618
    %v7768 = vunpack.c.l.b16 %v7619
    %v7769 = vunpack.c.h.b16 %v7619
    %v7770 = vunpack.c.l.b16 %v7620
    %v7771 = vunpack.c.h.b16 %v7620
    %v7772 = vunpack.c.l.b16 %v7621
    %v7773 = vunpack.c.h.b16 %v7621
    %v7774 = vunpack.c.l.b16 %v7622
    %v7775 = vunpack.c.h.b16 %v7622
    %v7776 = vunpack.c.l.b16 %v7623
    %v7777 = vunpack.c.h.b16 %v7623
    %v7778 = vunpack.c.l.b16 %v7624
    %v7779 = vunpack.c.h.b16 %v7624
    %v7780 = vunpack.c.l.b16 %v7625
    %v7781 = vunpack.c.h.b16 %v7625
    %v7782 = vunpack.c.l.b16 %v7626
    %v7783 = vunpack.c.h.b16 %v7626
    %v7784 = vunpack.c.l.b16 %v7627
    %v7785 = vunpack.c.h.b16 %v7627
    %v7786 = vunpack.c.l.b16 %v7628
    %v7787 = vunpack.c.h.b16 %v7628
    %v7788 = vunpack.c.l.b16 %v7629
    %v7789 = vunpack.c.h.b16 %v7629
    %v7790 = vunpack.c.l.b16 %v7630
    %v7791 = vunpack.c.h.b16 %v7630
    %v7792 = vunpack.c.l.b16 %v7631
    %v7793 = vunpack.c.h.b16 %v7631
    %v7794 = vunpack.c.l.b16 %v7632
    %v7795 = vunpack.c.h.b16 %v7632
    %v7796 = vunpack.c.l.b16 %v7633
    %v7797 = vunpack.c.h.b16 %v7633
    %v7798 = vunpack.c.l.b16 %v7634
    %v7799 = vunpack.c.h.b16 %v7634
    %v7800 = vunpack.c.l.b16 %v7635
    %v7801 = vunpack.c.h.b16 %v7635
    %v7802 = vunpack.c.l.b16 %v7636
    %v7803 = vunpack.c.h.b16 %v7636
    %v7804 = vunpack.c.l.b16 %v7637
    %v7805 = vunpack.c.h.b16 %v7637
    %v7806 = vunpack.c.l.b16 %v7638
    %v7807 = vunpack.c.h.b16 %v7638
    %v7808 = vunpack.c.l.b16 %v7639
    %v7809 = vunpack.c.h.b16 %v7639
    %v7810 = vunpack.c.l.b16 %v7640
    %v7811 = vunpack.c.h.b16 %v7640
    %v7812 = vunpack.c.l.b16 %v7641
    %v7813 = vunpack.c.h.b16 %v7641
    %v7814 = vunpack.c.l.b16 %v7642
    %v7815 = vunpack.c.h.b16 %v7642
    %v7816 = vunpack.c.l.b16 %v7643
    %v7817 = vunpack.c.h.b16 %v7643
    %v7818 = vunpack.c.l.b16 %v7644
    %v7819 = vunpack.c.h.b16 %v7644
    %v7820 = vunpack.c.l.b16 %v7645
    %v7821 = vunpack.c.h.b16 %v7645
    %v7822 = vunpack.c.l.b16 %v7646
    %v7823 = vunpack.c.h.b16 %v7646
    %v7824 = vunpack.c.l.b16 %v7647
    %v7825 = vunpack.c.h.b16 %v7647
    %v7826 = vunpack.c.l.b16 %v7648
    %v7827 = vunpack.c.h.b16 %v7648
    %v7828 = vunpack.c.l.b16 %v7649
    %v7829 = vunpack.c.h.b16 %v7649
    %v7830 = vunpack.c.l.b16 %v7650
    %v7831 = vunpack.c.h.b16 %v7650
    %v7832 = vunpack.c.l.b16 %v7651
    %v7833 = vunpack.c.h.b16 %v7651
    %v7834 = vunpack.c.l.b16 %v7652
    %v7835 = vunpack.c.h.b16 %v7652
    %v7836 = vunpack.c.l.b16 %v7653
    %v7837 = vunpack.c.h.b16 %v7653
    %v7838 = vunpack.c.l.b16 %v7654
    %v7839 = vunpack.c.h.b16 %v7654
    %v7840 = vunpack.c.l.b16 %v7655
    %v7841 = vunpack.c.h.b16 %v7655
    %v7842 = vunpack.c.l.b16 %v7656
    %v7843 = vunpack.c.h.b16 %v7656
    %v7844 = vunpack.c.l.b16 %v7657
    %v7845 = vunpack.c.h.b16 %v7657
    %v7846 = vunpack.c.l.b16 %v7658
    %v7847 = vunpack.c.h.b16 %v7658
    %v7848 = vunpack.c.l.b16 %v7659
    %v7849 = vunpack.c.h.b16 %v7659
    %v7850 = vunpack.c.l.b16 %v7660
    %v7851 = vunpack.c.h.b16 %v7660
    %v7852 = vunpack.c.l.b16 %v7661
    %v7853 = vunpack.c.h.b16 %v7661
    %v7854 = vunpack.c.l.b16 %v7662
    %v7855 = vunpack.c.h.b16 %v7662
    %v7856 = vunpack.c.l.b16 %v7663
    %v7857 = vunpack.c.h.b16 %v7663
    %v7858 = vunpack.c.l.b16 %v7664
    %v7859 = vunpack.c.h.b16 %v7664
    %v7860 = vunpack.c.l.b16 %v7665
    %v7861 = vunpack.c.h.b16 %v7665
    %v7862 = vunpack.c.l.b16 %v7666
    %v7863 = vunpack.c.h.b16 %v7666
    %v7864 = vunpack.c.l.b16 %v7667
    %v7865 = vunpack.c.h.b16 %v7667
    %v7866 = vunpack.c.l.b16 %v7668
    %v7867 = vunpack.c.h.b16 %v7668
    %v7868 = vpack.c.b16 %v7744, %v7740
    %v7869 = vpack.c.b16 %v7745, %v7741
    %v7870 = vpack.c.b16 %v7746, %v7742
    %v7871 = vpack.c.b16 %v7747, %v7743
    %v7872 = vpack.c.b16 %v7752, %v7748
    %v7873 = vpack.c.b16 %v7753, %v7749
    %v7874 = vpack.c.b16 %v7754, %v7750
    %v7875 = vpack.c.b16 %v7755, %v7751
    %v7876 = vpack.c.b16 %v7760, %v7756
    %v7877 = vpack.c.b16 %v7761, %v7757
    %v7878 = vpack.c.b16 %v7762, %v7758
    %v7879 = vpack.c.b16 %v7763, %v7759
    %v7880 = vpack.c.b16 %v7768, %v7764
    %v7881 = vpack.c.b16 %v7769, %v7765
    %v7882 = vpack.c.b16 %v7770, %v7766
    %v7883 = vpack.c.b16 %v7771, %v7767
    %v7884 = vpack.c.b16 %v7776, %v7772
    %v7885 = vpack.c.b16 %v7777, %v7773
    %v7886 = vpack.c.b16 %v7778, %v7774
    %v7887 = vpack.c.b16 %v7779, %v7775
    %v7888 = vpack.c.b16 %v7784, %v7780
    %v7889 = vpack.c.b16 %v7785, %v7781
    %v7890 = vpack.c.b16 %v7786, %v7782
    %v7891 = vpack.c.b16 %v7787, %v7783
    %v7892 = vpack.c.b16 %v7792, %v7788
    %v7893 = vpack.c.b16 %v7793, %v7789
    %v7894 = vpack.c.b16 %v7794, %v7790
    %v7895 = vpack.c.b16 %v7795, %v7791
    %v7896 = vpack.c.b16 %v7800, %v7796
    %v7897 = vpack.c.b16 %v7801, %v7797
    %v7898 = vpack.c.b16 %v7802, %v7798
    %v7899 = vpack.c.b16 %v7803, %v7799
    %v7900 = vpack.c.b16 %v7808, %v7804
    %v7901 = vpack.c.b16 %v7809, %v7805
    %v7902 = vpack.c.b16 %v7810, %v7806
    %v7903 = vpack.c.b16 %v7811, %v7807
    %v7904 = vpack.c.b16 %v7816, %v7812
    %v7905 = vpack.c.b16 %v7817, %v7813
    %v7906 = vpack.c.b16 %v7818, %v7814
    %v7907 = vpack.c.b16 %v7819, %v7815
    %v7908 = vpack.c.b16 %v7824, %v7820
    %v7909 = vpack.c.b16 %v7825, %v7821
    %v7910 = vpack.c.b16 %v7826, %v7822
    %v7911 = vpack.c.b16 %v7827, %v7823
    %v7912 = vpack.c.b16 %v7832, %v7828
    %v7913 = vpack.c.b16 %v7833, %v7829
    %v7914 = vpack.c.b16 %v7834, %v7830
    %v7915 = vpack.c.b16 %v7835, %v7831
    %v7916 = vpack.c.b16 %v7840, %v7836
    %v7917 = vpack.c.b16 %v7841, %v7837
    %v7918 = vpack.c.b16 %v7842, %v7838
    %v7919 = vpack.c.b16 %v7843, %v7839
    %v7920 = vpack.c.b16 %v7848, %v7844
    %v7921 = vpack.c.b16 %v7849, %v7845
    %v7922 = vpack.c.b16 %v7850, %v7846
    %v7923 = vpack.c.b16 %v7851, %v7847
    %v7924 = vpack.c.b16 %v7856, %v7852
    %v7925 = vpack.c.b16 %v7857, %v7853
    %v7926 = vpack.c.b16 %v7858, %v7854
    %v7927 = vpack.c.b16 %v7859, %v7855
    %v7928 = vpack.c.b16 %v7864, %v7860
    %v7929 = vpack.c.b16 %v7865, %v7861
    %v7930 = vpack.c.b16 %v7866, %v7862
    %v7931 = vpack.c.b16 %v7867, %v7863
    %7996 = vmatprep.subr.bf16.mxu0 %v7869
    %7997 = vmatpush1.bf16.msra.mxu0 %v7868
    %7998 = vmatprep.subr.bf16.mxu0 %v7873
    %7999 = vmatpush1.bf16.msra.mxu0 %v7872
    %8000 = vmatprep.subr.bf16.mxu0 %v7877
    %8001 = vmatpush1.bf16.msra.mxu0 %v7876
    %8002 = vmatprep.subr.bf16.mxu0 %v7881
    %8003 = vmatpush1.bf16.msra.mxu0 %v7880
    %8004 = vmatprep.subr.bf16.mxu0 %v7885
    %8005 = vmatpush1.bf16.msra.mxu0 %v7884
    %8006 = vmatprep.subr.bf16.mxu0 %v7889
    %8007 = vmatpush1.bf16.msra.mxu0 %v7888
    %8008 = vmatprep.subr.bf16.mxu0 %v7893
    %8009 = vmatpush1.bf16.msra.mxu0 %v7892
    %8010 = vmatprep.subr.bf16.mxu0 %v7897
    %8011 = vmatpush1.bf16.msra.mxu0 %v7896
    %8012 = vmatprep.subr.bf16.mxu0 %v7901
    %8013 = vmatpush1.bf16.msra.mxu0 %v7900
    %8014 = vmatprep.subr.bf16.mxu0 %v7905
    %8015 = vmatpush1.bf16.msra.mxu0 %v7904
    %8016 = vmatprep.subr.bf16.mxu0 %v7909
    %8017 = vmatpush1.bf16.msra.mxu0 %v7908
    %8018 = vmatprep.subr.bf16.mxu0 %v7913
    %8019 = vmatpush1.bf16.msra.mxu0 %v7912
    %8020 = vmatprep.subr.bf16.mxu0 %v7917
    %8021 = vmatpush1.bf16.msra.mxu0 %v7916
    %8022 = vmatprep.subr.bf16.mxu0 %v7921
    %8023 = vmatpush1.bf16.msra.mxu0 %v7920
    %8024 = vmatprep.subr.bf16.mxu0 %v7925
    %8025 = vmatpush1.bf16.msra.mxu0 %v7924
    %8026 = vmatprep.subr.bf16.mxu0 %v7929
    %8027 = vmatpush1.bf16.msra.mxu0 %v7928
    %8028 = vmatprep.mubr.bf16.mxu0 %v7673
    %8029 = vmatmul.mubr.bf16.gmra.mrb[0].mxu0 %v7672
    %v8030 = vpop.f32.mrb[0].mxu0
    %v8031 = vadd.f32 %v464, %v8030
    %v8032 = vpop.f32.mrb[0].mxu0
    %v8033 = vadd.f32 %v468, %v8032
    %v8034 = vpop.f32.mrb[0].mxu0
    %v8035 = vpop.f32.mrb[0].mxu0
    %8036 = vdwg.mxu0
    %8037 = vmatprep.subr.bf16.mxu0 %v7871
    %8038 = vmatpush1.bf16.msra.mxu0 %v7870
    %8039 = vmatprep.subr.bf16.mxu0 %v7875
    %8040 = vmatpush1.bf16.msra.mxu0 %v7874
    %8041 = vmatprep.subr.bf16.mxu0 %v7879
    %8042 = vmatpush1.bf16.msra.mxu0 %v7878
    %8043 = vmatprep.subr.bf16.mxu0 %v7883
    %8044 = vmatpush1.bf16.msra.mxu0 %v7882
    %8045 = vmatprep.subr.bf16.mxu0 %v7887
    %8046 = vmatpush1.bf16.msra.mxu0 %v7886
    %8047 = vmatprep.subr.bf16.mxu0 %v7891
    %8048 = vmatpush1.bf16.msra.mxu0 %v7890
    %8049 = vmatprep.subr.bf16.mxu0 %v7895
    %8050 = vmatpush1.bf16.msra.mxu0 %v7894
    %8051 = vmatprep.subr.bf16.mxu0 %v7899
    %8052 = vmatpush1.bf16.msra.mxu0 %v7898
    %8053 = vmatprep.subr.bf16.mxu0 %v7903
    %8054 = vmatpush1.bf16.msra.mxu0 %v7902
    %8055 = vmatprep.subr.bf16.mxu0 %v7907
    %8056 = vmatpush1.bf16.msra.mxu0 %v7906
    %8057 = vmatprep.subr.bf16.mxu0 %v7911
    %8058 = vmatpush1.bf16.msra.mxu0 %v7910
    %8059 = vmatprep.subr.bf16.mxu0 %v7915
    %8060 = vmatpush1.bf16.msra.mxu0 %v7914
    %8061 = vmatprep.subr.bf16.mxu0 %v7919
    %8062 = vmatpush1.bf16.msra.mxu0 %v7918
    %8063 = vmatprep.subr.bf16.mxu0 %v7923
    %8064 = vmatpush1.bf16.msra.mxu0 %v7922
    %8065 = vmatprep.subr.bf16.mxu0 %v7927
    %8066 = vmatpush1.bf16.msra.mxu0 %v7926
    %8067 = vmatprep.subr.bf16.mxu0 %v7931
    %8068 = vmatpush1.bf16.msra.mxu0 %v7930
    %8069 = vmatprep.mubr.bf16.mxu0 %v7673
    %8070 = vmatmul.mubr.bf16.gmra.mrb[0].mxu0 %v7672
    %v8071 = vpop.f32.mrb[0].mxu0
    %v8072 = vadd.f32 %v472, %v8071
    %v8073 = vpop.f32.mrb[0].mxu0
    %v8074 = vadd.f32 %v476, %v8073
    %v8075 = vpop.f32.mrb[0].mxu0
    %v8076 = vpop.f32.mrb[0].mxu0
    %8077 = vdwg.mxu0
    %v8078 = vld [vmem:[#allocation5] sm:$0xff]
    %v8079 = vxor.u32 %v8031, 2147483648
    %v8080 = vxor.u32 %v8033, 2147483648
    %v8081 = vxor.u32 %v8072, 2147483648
    %v8082 = vmul.f32 %v8079, 1.442695
    %v8083 = vpow.pop %v8082
    %v8084 = vmul.f32 %v8080, 1.442695
    %v8085 = vpow.pop %v8084
    %v8086 = vmul.f32 %v8081, 1.442695
    %v8087 = vpow.pop %v8086
    %v8088 = vadd.f32 %v8083, 1.0
    %v8089 = vadd.f32 %v8085, 1.0
    %v8090 = vadd.f32 %v8087, 1.0
    %v8091 = vrcp.pop %v8088
    %v8092 = vmul.f32 1.0, %v8091
    %v8093 = vrcp.pop %v8089
    %v8094 = vmul.f32 1.0, %v8093
    %v8095 = vrcp.pop %v8090
    %v8096 = vmul.f32 1.0, %v8095
    %v8097 = vtanh.pop %v8074
    %v8098 = vmul.f32 %v8094, %v8078
    %v8099 = vmul.f32 %v8092, %v8097
    %v8100 = vadd.f32 %v8098, %v8099
    %v8101 = vtanh.pop %v8100
    %v8102 = vmul.f32 %v8096, %v8101
    %v8103 = vpack.c.bf16 %v8102, %v8102
    %s8104 = scalar_lea.vmem %s5, 28
    %8105 = vst [vmem:[%s8104] sm:$0xf] %v8103
    // Predicated region
    $region26: #{language_model_forward.2} parent=1 // pred_check
      _
    $region27: #{language_model_forward.2} parent=1 // pred_check_branch
      %8107 = sbr.rel (0) target = $region29
    $region28: #{language_model_forward.2} parent=1 // pred_region
      _
    $region29: #{language_model_forward.2} parent=1 // pred_fallthru
      _
    // Predicated region
    $region30: #{language_model_forward.2} parent=1 // pred_check
      _
    $region31: #{language_model_forward.2} parent=1 // pred_check_branch
      %8109 = sbr.rel (0) target = $region33
    $region32: #{language_model_forward.2} parent=1 // pred_region
      _
    $region33: #{language_model_forward.2} parent=1 // pred_fallthru
      _
    %8110 = vsyncpa [#allocation7], 1

</llo_original>
